<compile_context>
chip_gen: v6e
topology: v6e:2x2x1
jax: 0.10.0
libtpu: 0.0.40
codegen_flags: <defaults>
</compile_context>

<pallas_src>
import math
import functools
import random

import numpy as np
import jax
import jax.numpy as jnp
from jax.experimental import pallas as pl
from jax.experimental.pallas import tpu as pltpu

# ----------------------------- configuration --------------------------------
B = 2            # batch
T = 8            # sequence length
BT = B * T
ORIG_D_L = 20    # text feature dim
ORIG_D_A = 5     # audio feature dim
ORIG_D_V = 10    # video feature dim
D = 16           # dst_feature_dims (d_l = d_a = d_v)
NHEADS = 4
NLEVELS = 1      # args.nlevels (mem encoders use max(nlevels, 3) = 3 layers)
OUTPUT_DIM = 1   # regression
COMBINED = 2 * 3 * D   # 96
LC = max(NLEVELS, -1)  # cross-encoder layers
LM = max(NLEVELS, 3)   # mem-encoder layers

LOG_2PI = math.log(2.0 * math.pi)


# --------------------------- BlockSpec helpers -------------------------------
def _full_spec(shape):
    nd = len(shape)
    return pl.BlockSpec(tuple(shape), lambda i, _nd=nd: (0,) * _nd)


# --------------------- kernel 1: proj + log-p + reconstruction ---------------
def _make_prep_kernel(num_modal, ava):
    """Fused 1x1-conv projections, per-batch sum(z^2) and (optional) fused
    reconstruction chain + SSE.  Single grid step, everything stays in VMEM."""

    def kernel(*refs):
        xl_ref, xa_ref, xv_ref, wl_ref, wa_ref, wv_ref, sel_ref = refs[:7]
        extra = refs[7:-3]
        proj3_ref, ss_ref, sse_ref = refs[-3], refs[-2], refs[-1]
        f32 = jnp.float32

        yl = jnp.dot(xl_ref[...], wl_ref[...], preferred_element_type=f32)
        ya = jnp.dot(xa_ref[...], wa_ref[...], preferred_element_type=f32)
        yv = jnp.dot(xv_ref[...], wv_ref[...], preferred_element_type=f32)

        sel = sel_ref[...]
        # per-batch sum(z^2) (identity flow: z == projection)
        ss_ref[0] = jnp.sum(jnp.dot(sel, yl * yl, preferred_element_type=f32),
                            axis=-1, keepdims=True)
        ss_ref[1] = jnp.sum(jnp.dot(sel, ya * ya, preferred_element_type=f32),
                            axis=-1, keepdims=True)
        ss_ref[2] = jnp.sum(jnp.dot(sel, yv * yv, preferred_element_type=f32),
                            axis=-1, keepdims=True)

        out_l, out_a, out_v = yl, ya, yv
        sse = jnp.zeros((1, 1), f32)

        def _sse(diff):
            return jnp.sum(jnp.sum(diff * diff, axis=1, keepdims=True),
                           axis=0, keepdims=True)

        if num_modal == 2:
            ctw, cbw, cb, rw1, rb1, rw2, rb2 = [r[...] for r in extra]
            missing = (set([0, 1, 2]) - set(ava)).pop()
            first, second, feat = {0: (yv, ya, yl),
                                   1: (yl, ya, yv),
                                   2: (yl, yv, ya)}[missing]
            # cat conv as two row-split matmuls (no lane concat needed)
            h0 = (jnp.dot(first, ctw, preferred_element_type=f32)
                  + jnp.dot(second, cbw, preferred_element_type=f32) + cb)
            h1 = jnp.dot(h0, rw1, preferred_element_type=f32) + rb1
            # TODO(synk): Group residual channel-attention block treated as identity.
            rec = jnp.dot(h1, rw2, preferred_element_type=f32) + rb2
            sse = _sse(feat - rec)
            if missing == 0:
                out_l = rec
            elif missing == 1:
                out_v = rec
            else:
                out_a = rec
        elif num_modal == 1:
            (rw1x, rb1x, rw2x, rb2x, rw1y, rb1y, rw2y, rb2y) = [r[...] for r in extra]
            a0 = ava[0]
            src = {0: yl, 1: yv, 2: ya}[a0]
            recx = jnp.dot(jnp.dot(src, rw1x, preferred_element_type=f32) + rb1x,
                           rw2x, preferred_element_type=f32) + rb2x
            recy = jnp.dot(jnp.dot(src, rw1y, preferred_element_type=f32) + rb1y,
                           rw2y, preferred_element_type=f32) + rb2y
            if a0 == 0:       # l available -> rebuild v (x) and a (y)
                featx, featy = yv, ya
                out_v, out_a = recx, recy
            elif a0 == 1:     # v available -> rebuild a (x) and l (y)
                featx, featy = ya, yl
                out_a, out_l = recx, recy
            else:             # a available -> rebuild v (x) and l (y)
                featx, featy = yv, yl
                out_v, out_l = recx, recy
            sse = _sse(featx - recx) + _sse(featy - recy)

        sse_ref[...] = sse
        proj3_ref[0] = out_l
        proj3_ref[1] = out_a
        proj3_ref[2] = out_v

    return kernel


# ------------- kernel 2: all cross-modal + mem encoders, grid=(3,) -----------
def _make_fused_encoder_kernel(Lc, Lm, nheads):
    E_c, E_m = D, 2 * D
    qs_c = (E_c // nheads) ** -0.5
    qs_m = (E_m // nheads) ** -0.5
    esc_c = math.sqrt(E_c)
    esc_m = math.sqrt(E_m)

    def _ln(v, g, b, eps=1e-5):
        mu = jnp.mean(v, axis=-1, keepdims=True)
        var = jnp.mean((v - mu) ** 2, axis=-1, keepdims=True)
        return (v - mu) * jax.lax.rsqrt(var + eps) * g + b

    def _attn(q, k, v, hms, negs):
        # Heads collapsed onto the sublane axis: one score matmul, one softmax
        # chain and one P@V per layer instead of nheads of each.
        qs = jnp.concatenate([q] * nheads, axis=0) * hms            # (nh*BT, E)
        s = jnp.einsum('nd,kd->nk', qs, k,
                       preferred_element_type=jnp.float32) + negs   # (nh*BT, BT)
        m = jnp.max(s, axis=-1, keepdims=True)
        p = jnp.exp(s - m)
        p = p * pl.reciprocal(jnp.sum(p, axis=-1, keepdims=True), approx=True)
        ctx = jnp.dot(p, v, preferred_element_type=jnp.float32) * hms
        out = ctx[:BT]
        for h in range(1, nheads):
            out = out + ctx[h * BT:(h + 1) * BT]
        return out

    def _layers(x, src, L, qscale, hms, negs, get):
        for l in range(L):
            wq, wk, wv, wo, w1, w2, b1, vv = get(l)
            ln0g, ln0b = vv[0:1], vv[1:2]
            bq, bk, bvv, bo = vv[2:3], vv[3:4], vv[4:5], vv[5:6]
            ln1g, ln1b, b2 = vv[6:7], vv[7:8], vv[8:9]
            xn = _ln(x, ln0g, ln0b)
            sn = xn if src is None else _ln(src, ln0g, ln0b)
            q = (jnp.dot(xn, wq, preferred_element_type=jnp.float32) + bq) * qscale
            k = jnp.dot(sn, wk, preferred_element_type=jnp.float32) + bk
            v = jnp.dot(sn, wv, preferred_element_type=jnp.float32) + bvv
            x = x + jnp.dot(_attn(q, k, v, hms, negs), wo,
                            preferred_element_type=jnp.float32) + bo
            xn2 = _ln(x, ln1g, ln1b)
            hid = jax.nn.relu(
                jnp.dot(xn2, w1, preferred_element_type=jnp.float32) + b1)
            x = x + jnp.dot(hid, w2, preferred_element_type=jnp.float32) + b2
        return x

    def kernel(lut_ref, x_ref, sa_ref, sb_ref, posd_ref, pos2d_ref, negs_ref,
               hmc_ref, hmm_ref, sellast_ref,
               cwq, cwk, cwv, cwo, cw1, cw2, cb1, cvec,
               mwq, mwk, mwv, mwo, mw1, mw2, mb1, mvec,
               out_ref):
        del lut_ref  # only consumed by the index_maps
        posd = posd_ref[...]
        negs = negs_ref[...]
        hmc = hmc_ref[...]
        hmm = hmm_ref[...]

        # TODO(synk): args.attn_mask future mask assumed off; only the
        # cross-batch block-diagonal mask (negs) is applied here.
        x_emb = esc_c * x_ref[0] + posd
        src_embs = (esc_c * sa_ref[0] + posd, esc_c * sb_ref[0] + posd)

        # --- two cross-modal encoders of this group --------------------------
        outs = []
        for j in range(2):
            def get(l, j=j):
                return (cwq[0, j, l], cwk[0, j, l], cwv[0, j, l], cwo[0, j, l],
                        cw1[0, j, l], cw2[0, j, l], cb1[0, j, l], cvec[0, j, l])
            h = _layers(x_emb, src_embs[j], Lc, qs_c, hmc, negs, get)
            vv0 = cvec[0, j, 0]
            outs.append(_ln(h, vv0[9:10], vv0[10:11]))

        # --- self-attention "mem" encoder on the lane-concat of both ---------
        xm = esc_m * jnp.concatenate(outs, axis=-1) + pos2d_ref[...]

        def mget(l):
            return (mwq[0, l], mwk[0, l], mwv[0, l], mwo[0, l],
                    mw1[0, l], mw2[0, l], mb1[0, l], mvec[0, l])

        xm = _layers(xm, None, Lm, qs_m, hmm, negs, mget)
        mv0 = mvec[0, 0]
        xm = _ln(xm, mv0[9:10], mv0[10:11])

        # last-timestep row of every batch via a tiny selection matmul
        out_ref[0] = jnp.dot(sellast_ref[...], xm,
                             preferred_element_type=jnp.float32)

    return kernel


# ----------------------------- constants / params ----------------------------
def sinusoidal_pos_emb(seq_len, dim):
    half = dim // 2
    emb = math.log(10000.0) / (half - 1)
    inv = jnp.exp(jnp.arange(half, dtype=jnp.float32) * -emb)
    pos = jnp.arange(1, seq_len + 1, dtype=jnp.float32)
    ang = pos[:, None] * inv[None, :]
    return jnp.concatenate([jnp.sin(ang), jnp.cos(ang)], axis=1)   # (T, dim)


def build_constants():
    """Everything grid-/layer-invariant, built ONCE outside jit."""
    pos_d = jnp.tile(sinusoidal_pos_emb(T, D), (B, 1))             # (BT, D)
    pos_2d = jnp.tile(sinusoidal_pos_emb(T, 2 * D), (B, 1))        # (BT, 2D)

    rows = np.arange(BT)
    neg1 = np.where((rows[:, None] // T) == (rows[None, :] // T),
                    0.0, -1e9).astype(np.float32)                  # (BT, BT)
    negs = jnp.asarray(np.tile(neg1, (NHEADS, 1)))                 # (nh*BT, BT)

    def head_masks(E):
        dh = E // NHEADS
        hm = np.zeros((NHEADS * BT, E), np.float32)
        for h in range(NHEADS):
            hm[h * BT:(h + 1) * BT, h * dh:(h + 1) * dh] = 1.0
        return jnp.asarray(hm)

    sel = jnp.asarray((np.arange(B)[:, None] ==
                       (np.arange(BT)[None, :] // T)).astype(np.float32))
    sel_last = jnp.asarray((np.arange(BT)[None, :] ==
                            (np.arange(B)[:, None] * T + T - 1)).astype(np.float32))
    # grid step i -> (x modality, srcA modality, srcB modality)
    lut = jnp.asarray(np.array([[0, 1, 2], [1, 0, 2], [2, 0, 1]], np.int32))
    return dict(pos_d=pos_d, pos_2d=pos_2d, negs=negs,
                hmc=head_masks(D), hmm=head_masks(2 * D),
                sel=sel, sel_last=sel_last, lut=lut)


def _uniform(key, shape, bound):
    return jax.random.uniform(key, shape, jnp.float32, -bound, bound)


def init_linear(key, fan_in, fan_out):
    kw, kb = jax.random.split(key)
    bound = 1.0 / math.sqrt(fan_in)
    return _uniform(kw, (fan_in, fan_out), bound), _uniform(kb, (1, fan_out), bound)


def init_rec(key, d):
    k1, k2 = jax.random.split(key)
    w1, b1 = init_linear(k1, d, 2 * d)
    w2, b2 = init_linear(k2, 2 * d, d)
    return dict(w1=w1, b1=b1, w2=w2, b2=b2)


def _one_layer(key, E):
    ks = jax.random.split(key, 6)
    wq, bq = init_linear(ks[0], E, E)
    wk, bk = init_linear(ks[1], E, E)
    wv, bv = init_linear(ks[2], E, E)
    wo, bo = init_linear(ks[3], E, E)
    w1, b1 = init_linear(ks[4], E, 4 * E)
    w2, b2 = init_linear(ks[5], 4 * E, E)
    ones = jnp.ones((1, E), jnp.float32)
    zeros = jnp.zeros((1, E), jnp.float32)
    # rows: ln0_g ln0_b bq bk bv bo ln1_g ln1_b b2 lnf_g lnf_b (pad to 16 rows)
    vec = jnp.concatenate([ones, zeros, bq, bk, bv, bo, ones, zeros, b2,
                           ones, zeros, jnp.zeros((5, E), jnp.float32)], axis=0)
    return dict(wq=wq, wk=wk, wv=wv, wo=wo, w1=w1, w2=w2, b1=b1, vec=vec)


def init_encoder_bank(key, prefix, L, E):
    shape = tuple(prefix) + (L,)
    n = int(np.prod(shape))
    keys = jax.random.split(key, n)
    layers = [_one_layer(keys[i], E) for i in range(n)]
    bank = {}
    for name in layers[0]:
        stacked = jnp.stack([lyr[name] for lyr in layers])
        bank[name] = stacked.reshape(shape + layers[0][name].shape)
    return bank


def build_params(key):
    ki = iter(jax.random.split(key, 20))
    p = {}
    p['proj_l_w'] = _uniform(next(ki), (ORIG_D_L, D), 1.0 / math.sqrt(ORIG_D_L))
    p['proj_a_w'] = _uniform(next(ki), (ORIG_D_A, D), 1.0 / math.sqrt(ORIG_D_A))
    p['proj_v_w'] = _uniform(next(ki), (ORIG_D_V, D), 1.0 / math.sqrt(ORIG_D_V))
    for name in ('cat_l', 'cat_v', 'cat_a'):
        w, b = init_linear(next(ki), 2 * D, D)
        p[name + '_w_top'] = w[:D]          # pre-split: avoids per-call slices
        p[name + '_w_bot'] = w[D:]
        p[name + '_b'] = b
    p['rec_l'] = init_rec(next(ki), D)
    p['rec_v'] = init_rec(next(ki), D)
    p['rec_a'] = init_rec(next(ki), D)
    # cross bank indexed (group, j): (0,0)=l_with_a (0,1)=l_with_v
    #                                (1,0)=a_with_l (1,1)=a_with_v
    #                                (2,0)=v_with_l (2,1)=v_with_a
    p['cross_bank'] = init_encoder_bank(next(ki), (3, 2), LC, D)
    # mem bank indexed (group,): 0=l_mem 1=a_mem 2=v_mem
    p['mem_bank'] = init_encoder_bank(next(ki), (3,), LM, 2 * D)
    p['proj1_w'], p['proj1_b'] = init_linear(next(ki), COMBINED, COMBINED)
    p['proj2_w'], p['proj2_b'] = init_linear(next(ki), COMBINED, COMBINED)
    p['out_w'], p['out_b'] = init_linear(next(ki), COMBINED, OUTPUT_DIM)
    return p


# ----------------------------- DICMOR forward --------------------------------
@functools.partial(jax.jit, static_argnums=(6, 7))
def dicmor_forward(params, consts, text, audio, video, label,
                   num_modal, ava_modal_idx):
    f32 = jnp.float32
    xl = text.reshape(BT, ORIG_D_L).astype(f32)
    xa = audio.reshape(BT, ORIG_D_A).astype(f32)
    xv = video.reshape(BT, ORIG_D_V).astype(f32)

    # ---- kernel 1: projections + sum(z^2) + reconstruction + SSE ------------
    prep_inputs = [xl, xa, xv, params['proj_l_w'], params['proj_a_w'],
                   params['proj_v_w'], consts['sel']]
    if num_modal == 2:
        missing = (set([0, 1, 2]) - set(ava_modal_idx)).pop()
        cname = {0: 'cat_l', 1: 'cat_v', 2: 'cat_a'}[missing]
        rname = {0: 'rec_l', 1: 'rec_v', 2: 'rec_a'}[missing]
        rec = params[rname]
        prep_inputs += [params[cname + '_w_top'], params[cname + '_w_bot'],
                        params[cname + '_b'],
                        rec['w1'], rec['b1'], rec['w2'], rec['b2']]
    elif num_modal == 1:
        a0 = ava_modal_idx[0]
        rx, ry = {0: ('rec_v', 'rec_a'), 1: ('rec_a', 'rec_l'),
                  2: ('rec_v', 'rec_l')}[a0]
        for r in (rx, ry):
            prep_inputs += [params[r]['w1'], params[r]['b1'],
                            params[r]['w2'], params[r]['b2']]

    proj3, ss, sse = pl.pallas_call(
        _make_prep_kernel(num_modal, ava_modal_idx),
        out_shape=(jax.ShapeDtypeStruct((3, BT, D), f32),
                   jax.ShapeDtypeStruct((3, B, 1), f32),
                   jax.ShapeDtypeStruct((1, 1), f32)),
        grid=(1,),
        in_specs=[_full_spec(a.shape) for a in prep_inputs],
        out_specs=(_full_spec((3, BT, D)), _full_spec((3, B, 1)),
                   _full_spec((1, 1))),
    )(*prep_inputs)

    # ---- zero-prior gaussian log-p (closed form; identity flow, logdet=0) ---
    ssq = ss[:, :, 0]                                              # (3, B) l,a,v
    lp = -0.5 * LOG_2PI * (D * T) - 0.5 * ssq
    valid = (jnp.abs(jnp.round(label.reshape(-1))) <= 3.0).astype(f32)
    denom = math.log(2.0) * B * D * T
    log_p = jnp.maximum(0.0, -jnp.dot(lp, valid) / denom)          # (3,)
    log_p_l, log_p_a, log_p_v = log_p[0], log_p[1], log_p[2]

    n_elem = float(B * T * D)
    if num_modal == 3:
        loss_rec = jnp.float32(0.0)
    elif num_modal == 2:
        loss_rec = sse[0, 0] / n_elem
    else:
        loss_rec = sse[0, 0] / (2.0 * n_elem)

    # ---- kernel 2: 6 cross encoders + 3 mem encoders, grid=(3,) -------------
    cb = params['cross_bank']
    mb = params['mem_bank']
    cross_ws = [cb[n] for n in ('wq', 'wk', 'wv', 'wo', 'w1', 'w2', 'b1', 'vec')]
    mem_ws = [mb[n] for n in ('wq', 'wk', 'wv', 'wo', 'w1', 'w2', 'b1', 'vec')]

    def _const_spec(arr):
        nd = arr.ndim
        return pl.BlockSpec(arr.shape, lambda i, lut, _nd=nd: (0,) * _nd)

    def _bank_spec(arr):
        nd = arr.ndim
        return pl.BlockSpec((1,) + arr.shape[1:],
                            lambda i, lut, _nd=nd: (i,) + (0,) * (_nd - 1))

    in_specs = (
        [pl.BlockSpec((1, BT, D), lambda i, lut: (lut[i, 0], 0, 0)),
         pl.BlockSpec((1, BT, D), lambda i, lut: (lut[i, 1], 0, 0)),
         pl.BlockSpec((1, BT, D), lambda i, lut: (lut[i, 2], 0, 0))]
        + [_const_spec(consts['pos_d']), _const_spec(consts['pos_2d']),
           _const_spec(consts['negs']), _const_spec(consts['hmc']),
           _const_spec(consts['hmm']), _const_spec(consts['sel_last'])]
        + [_bank_spec(a) for a in cross_ws]
        + [_bank_spec(a) for a in mem_ws])

    last_rows = pl.pallas_call(
        _make_fused_encoder_kernel(LC, LM, NHEADS),
        out_shape=jax.ShapeDtypeStruct((3, B, 2 * D), f32),
        grid_spec=pltpu.PrefetchScalarGridSpec(
            num_scalar_prefetch=1,
            grid=(3,),
            in_specs=in_specs,
            out_specs=pl.BlockSpec((1, B, 2 * D), lambda i, lut: (i, 0, 0)),
        ),
        compiler_params=pltpu.CompilerParams(
            dimension_semantics=("parallel",)),    # megacore split on v7x
    )(consts['lut'], proj3, proj3, proj3,
      consts['pos_d'], consts['pos_2d'], consts['negs'], consts['hmc'],
      consts['hmm'], consts['sel_last'],
      *cross_ws, *mem_ws)

    # ---- output head (tiny (B,96) matmuls -> plain XLA per review) ----------
    last_hs = jnp.concatenate([last_rows[0], last_rows[1], last_rows[2]],
                              axis=-1)                             # (B, 6D)
    h = jax.nn.relu(last_hs @ params['proj1_w'] + params['proj1_b'])
    p = h @ params['proj2_w'] + params['proj2_b'] + last_hs
    output = p @ params['out_w'] + params['out_b']

    return {'log_p_l': log_p_l, 'log_p_v': log_p_v, 'log_p_a': log_p_a,
            'loss_rec': loss_rec, 'M': output}


# ----------------------------------- main ------------------------------------
if __name__ == "__main__":
    key = jax.random.PRNGKey(0)
    k_params, k_text, k_audio, k_video = jax.random.split(key, 4)

    params = build_params(k_params)
    consts = build_constants()

    text = jax.random.normal(k_text, (B, T, ORIG_D_L), jnp.float32)
    audio = jax.random.normal(k_audio, (B, T, ORIG_D_A), jnp.float32)
    video = jax.random.normal(k_video, (B, T, ORIG_D_V), jnp.float32)
    label = jnp.array([[2.0], [-1.0]], jnp.float32)

    # modality-availability sampling (seeded, mirrors sample(modal_idx, num_modal))
    random.seed(0)
    num_modal = 2
    ava_modal_idx = tuple(random.sample([0, 1, 2], num_modal))

    res = dicmor_forward(params, consts, text, audio, video, label,
                         num_modal, ava_modal_idx)
    res['ava_modal_idx'] = list(ava_modal_idx)
    jax.block_until_ready({k: v for k, v in res.items()
                           if k != 'ava_modal_idx'})
    print("KERNEL_OK")
</pallas_src>

<mosaic_0001>
module attributes {stable_mosaic.version = 11 : i64} {
  func.func @kernel(%arg0: i32, %arg1: memref<16x20xf32, #tpu.memory_space<vmem>>, %arg2: memref<16x5xf32, #tpu.memory_space<vmem>>, %arg3: memref<16x10xf32, #tpu.memory_space<vmem>>, %arg4: memref<20x16xf32, #tpu.memory_space<vmem>>, %arg5: memref<5x16xf32, #tpu.memory_space<vmem>>, %arg6: memref<10x16xf32, #tpu.memory_space<vmem>>, %arg7: memref<2x16xf32, #tpu.memory_space<vmem>>, %arg8: memref<16x16xf32, #tpu.memory_space<vmem>>, %arg9: memref<16x16xf32, #tpu.memory_space<vmem>>, %arg10: memref<1x16xf32, #tpu.memory_space<vmem>>, %arg11: memref<16x32xf32, #tpu.memory_space<vmem>>, %arg12: memref<1x32xf32, #tpu.memory_space<vmem>>, %arg13: memref<32x16xf32, #tpu.memory_space<vmem>>, %arg14: memref<1x16xf32, #tpu.memory_space<vmem>>, %arg15: memref<3x16x16xf32, #tpu.memory_space<vmem>>, %arg16: memref<3x2x1xf32, #tpu.memory_space<vmem>>, %arg17: memref<1x1xf32, #tpu.memory_space<vmem>>) attributes {dimension_semantics = [#tpu.dimension_semantics<arbitrary>], iteration_bounds = array<i64: 1>, scalar_prefetch = 0 : i64, scratch_operands = 0 : i64, tpu.core_type = #tpu.core_type<tc>, window_params = [{pipeline_mode = #tpu.pipeline_mode<synchronous>, transform_indices = @transform_0, window_bounds = array<i64: 16, 20>}, {pipeline_mode = #tpu.pipeline_mode<synchronous>, transform_indices = @transform_1, window_bounds = array<i64: 16, 5>}, {pipeline_mode = #tpu.pipeline_mode<synchronous>, transform_indices = @transform_2, window_bounds = array<i64: 16, 10>}, {pipeline_mode = #tpu.pipeline_mode<synchronous>, transform_indices = @transform_3, window_bounds = array<i64: 20, 16>}, {pipeline_mode = #tpu.pipeline_mode<synchronous>, transform_indices = @transform_4, window_bounds = array<i64: 5, 16>}, {pipeline_mode = #tpu.pipeline_mode<synchronous>, transform_indices = @transform_5, window_bounds = array<i64: 10, 16>}, {pipeline_mode = #tpu.pipeline_mode<synchronous>, transform_indices = @transform_6, window_bounds = array<i64: 2, 16>}, {pipeline_mode = #tpu.pipeline_mode<synchronous>, transform_indices = @transform_7, window_bounds = array<i64: 16, 16>}, {pipeline_mode = #tpu.pipeline_mode<synchronous>, transform_indices = @transform_8, window_bounds = array<i64: 16, 16>}, {pipeline_mode = #tpu.pipeline_mode<synchronous>, transform_indices = @transform_9, window_bounds = array<i64: 1, 16>}, {pipeline_mode = #tpu.pipeline_mode<synchronous>, transform_indices = @transform_10, window_bounds = array<i64: 16, 32>}, {pipeline_mode = #tpu.pipeline_mode<synchronous>, transform_indices = @transform_11, window_bounds = array<i64: 1, 32>}, {pipeline_mode = #tpu.pipeline_mode<synchronous>, transform_indices = @transform_12, window_bounds = array<i64: 32, 16>}, {pipeline_mode = #tpu.pipeline_mode<synchronous>, transform_indices = @transform_13, window_bounds = array<i64: 1, 16>}, {pipeline_mode = #tpu.pipeline_mode<synchronous>, transform_indices = @transform_14, window_bounds = array<i64: 3, 16, 16>}, {pipeline_mode = #tpu.pipeline_mode<synchronous>, transform_indices = @transform_15, window_bounds = array<i64: 3, 2, 1>}, {pipeline_mode = #tpu.pipeline_mode<synchronous>, transform_indices = @transform_16, window_bounds = array<i64: 1, 1>}]} {
    %c0 = arith.constant 0 : index
    %c0_0 = arith.constant 0 : index
    %0 = vector.load %arg1[%c0, %c0_0] : memref<16x20xf32, #tpu.memory_space<vmem>>, vector<16x20xf32>
    %c0_1 = arith.constant 0 : index
    %c0_2 = arith.constant 0 : index
    %1 = vector.load %arg4[%c0_1, %c0_2] : memref<20x16xf32, #tpu.memory_space<vmem>>, vector<20x16xf32>
    %cst = arith.constant dense<0.000000e+00> : vector<16x16xf32>
    %2 = tpu.matmul %0, %1, %cst {dimension_numbers = #tpu.dot_dimension_numbers<[1], [0], [0], [1], [0, 0, 1, 1], [], []>} : vector<16x20xf32>, vector<20x16xf32>, vector<16x16xf32> -> vector<16x16xf32>
    %c0_3 = arith.constant 0 : index
    %c0_4 = arith.constant 0 : index
    %3 = vector.load %arg2[%c0_3, %c0_4] : memref<16x5xf32, #tpu.memory_space<vmem>>, vector<16x5xf32>
    %c0_5 = arith.constant 0 : index
    %c0_6 = arith.constant 0 : index
    %4 = vector.load %arg5[%c0_5, %c0_6] : memref<5x16xf32, #tpu.memory_space<vmem>>, vector<5x16xf32>
    %cst_7 = arith.constant dense<0.000000e+00> : vector<16x16xf32>
    %5 = tpu.matmul %3, %4, %cst_7 {dimension_numbers = #tpu.dot_dimension_numbers<[1], [0], [0], [1], [0, 0, 1, 1], [], []>} : vector<16x5xf32>, vector<5x16xf32>, vector<16x16xf32> -> vector<16x16xf32>
    %c0_8 = arith.constant 0 : index
    %c0_9 = arith.constant 0 : index
    %6 = vector.load %arg3[%c0_8, %c0_9] : memref<16x10xf32, #tpu.memory_space<vmem>>, vector<16x10xf32>
    %c0_10 = arith.constant 0 : index
    %c0_11 = arith.constant 0 : index
    %7 = vector.load %arg6[%c0_10, %c0_11] : memref<10x16xf32, #tpu.memory_space<vmem>>, vector<10x16xf32>
    %cst_12 = arith.constant dense<0.000000e+00> : vector<16x16xf32>
    %8 = tpu.matmul %6, %7, %cst_12 {dimension_numbers = #tpu.dot_dimension_numbers<[1], [0], [0], [1], [0, 0, 1, 1], [], []>} : vector<16x10xf32>, vector<10x16xf32>, vector<16x16xf32> -> vector<16x16xf32>
    %c0_13 = arith.constant 0 : index
    %c0_14 = arith.constant 0 : index
    %9 = vector.load %arg7[%c0_13, %c0_14] : memref<2x16xf32, #tpu.memory_space<vmem>>, vector<2x16xf32>
    %10 = arith.mulf %2, %2 : vector<16x16xf32>
    %cst_15 = arith.constant dense<0.000000e+00> : vector<2x16xf32>
    %11 = tpu.matmul %9, %10, %cst_15 {dimension_numbers = #tpu.dot_dimension_numbers<[1], [0], [0], [1], [0, 0, 1, 1], [], []>} : vector<2x16xf32>, vector<16x16xf32>, vector<2x16xf32> -> vector<2x16xf32>
    %cst_16 = arith.constant dense<0.000000e+00> : vector<2xf32>
    %12 = vector.multi_reduction <add>, %11, %cst_16 [1] : vector<2x16xf32> to vector<2xf32>
    %13 = vector.shape_cast %12 : vector<2xf32> to vector<2x1xf32>
    %c0_17 = arith.constant 0 : index
    %c0_18 = arith.constant 0 : index
    %c0_19 = arith.constant 0 : index
    %14 = vector.load %arg16[%c0_17, %c0_18, %c0_19] : memref<3x2x1xf32, #tpu.memory_space<vmem>>, vector<1x2x1xf32>
    %15 = vector.shape_cast %14 : vector<1x2x1xf32> to vector<2x1xf32>
    %16 = vector.shape_cast %13 : vector<2x1xf32> to vector<1x2x1xf32>
    tpu.vector_store %arg16[%c0_17, %c0_18, %c0_19], %16 {strides = array<i32>} : memref<3x2x1xf32, #tpu.memory_space<vmem>>, vector<1x2x1xf32>,
    %17 = arith.mulf %5, %5 : vector<16x16xf32>
    %cst_20 = arith.constant dense<0.000000e+00> : vector<2x16xf32>
    %18 = tpu.matmul %9, %17, %cst_20 {dimension_numbers = #tpu.dot_dimension_numbers<[1], [0], [0], [1], [0, 0, 1, 1], [], []>} : vector<2x16xf32>, vector<16x16xf32>, vector<2x16xf32> -> vector<2x16xf32>
    %cst_21 = arith.constant dense<0.000000e+00> : vector<2xf32>
    %19 = vector.multi_reduction <add>, %18, %cst_21 [1] : vector<2x16xf32> to vector<2xf32>
    %20 = vector.shape_cast %19 : vector<2xf32> to vector<2x1xf32>
    %c1 = arith.constant 1 : index
    %c0_22 = arith.constant 0 : index
    %c0_23 = arith.constant 0 : index
    %21 = vector.load %arg16[%c1, %c0_22, %c0_23] : memref<3x2x1xf32, #tpu.memory_space<vmem>>, vector<1x2x1xf32>
    %22 = vector.shape_cast %21 : vector<1x2x1xf32> to vector<2x1xf32>
    %23 = vector.shape_cast %20 : vector<2x1xf32> to vector<1x2x1xf32>
    tpu.vector_store %arg16[%c1, %c0_22, %c0_23], %23 {strides = array<i32>} : memref<3x2x1xf32, #tpu.memory_space<vmem>>, vector<1x2x1xf32>,
    %24 = arith.mulf %8, %8 : vector<16x16xf32>
    %cst_24 = arith.constant dense<0.000000e+00> : vector<2x16xf32>
    %25 = tpu.matmul %9, %24, %cst_24 {dimension_numbers = #tpu.dot_dimension_numbers<[1], [0], [0], [1], [0, 0, 1, 1], [], []>} : vector<2x16xf32>, vector<16x16xf32>, vector<2x16xf32> -> vector<2x16xf32>
    %cst_25 = arith.constant dense<0.000000e+00> : vector<2xf32>
    %26 = vector.multi_reduction <add>, %25, %cst_25 [1] : vector<2x16xf32> to vector<2xf32>
    %27 = vector.shape_cast %26 : vector<2xf32> to vector<2x1xf32>
    %c2 = arith.constant 2 : index
    %c0_26 = arith.constant 0 : index
    %c0_27 = arith.constant 0 : index
    %28 = vector.load %arg16[%c2, %c0_26, %c0_27] : memref<3x2x1xf32, #tpu.memory_space<vmem>>, vector<1x2x1xf32>
    %29 = vector.shape_cast %28 : vector<1x2x1xf32> to vector<2x1xf32>
    %30 = vector.shape_cast %27 : vector<2x1xf32> to vector<1x2x1xf32>
    tpu.vector_store %arg16[%c2, %c0_26, %c0_27], %30 {strides = array<i32>} : memref<3x2x1xf32, #tpu.memory_space<vmem>>, vector<1x2x1xf32>,
    %c0_28 = arith.constant 0 : index
    %c0_29 = arith.constant 0 : index
    %31 = vector.load %arg8[%c0_28, %c0_29] : memref<16x16xf32, #tpu.memory_space<vmem>>, vector<16x16xf32>
    %c0_30 = arith.constant 0 : index
    %c0_31 = arith.constant 0 : index
    %32 = vector.load %arg9[%c0_30, %c0_31] : memref<16x16xf32, #tpu.memory_space<vmem>>, vector<16x16xf32>
    %c0_32 = arith.constant 0 : index
    %c0_33 = arith.constant 0 : index
    %33 = vector.load %arg10[%c0_32, %c0_33] : memref<1x16xf32, #tpu.memory_space<vmem>>, vector<1x16xf32>
    %c0_34 = arith.constant 0 : index
    %c0_35 = arith.constant 0 : index
    %34 = vector.load %arg11[%c0_34, %c0_35] : memref<16x32xf32, #tpu.memory_space<vmem>>, vector<16x32xf32>
    %c0_36 = arith.constant 0 : index
    %c0_37 = arith.constant 0 : index
    %35 = vector.load %arg12[%c0_36, %c0_37] : memref<1x32xf32, #tpu.memory_space<vmem>>, vector<1x32xf32>
    %c0_38 = arith.constant 0 : index
    %c0_39 = arith.constant 0 : index
    %36 = vector.load %arg13[%c0_38, %c0_39] : memref<32x16xf32, #tpu.memory_space<vmem>>, vector<32x16xf32>
    %c0_40 = arith.constant 0 : index
    %c0_41 = arith.constant 0 : index
    %37 = vector.load %arg14[%c0_40, %c0_41] : memref<1x16xf32, #tpu.memory_space<vmem>>, vector<1x16xf32>
    %cst_42 = arith.constant dense<0.000000e+00> : vector<16x16xf32>
    %38 = tpu.matmul %8, %31, %cst_42 {dimension_numbers = #tpu.dot_dimension_numbers<[1], [0], [0], [1], [0, 0, 1, 1], [], []>} : vector<16x16xf32>, vector<16x16xf32>, vector<16x16xf32> -> vector<16x16xf32>
    %cst_43 = arith.constant dense<0.000000e+00> : vector<16x16xf32>
    %39 = tpu.matmul %5, %32, %cst_43 {dimension_numbers = #tpu.dot_dimension_numbers<[1], [0], [0], [1], [0, 0, 1, 1], [], []>} : vector<16x16xf32>, vector<16x16xf32>, vector<16x16xf32> -> vector<16x16xf32>
    %40 = arith.addf %38, %39 : vector<16x16xf32>
    %41 = vector.broadcast %33 : vector<1x16xf32> to vector<16x16xf32>
    %42 = arith.addf %40, %41 : vector<16x16xf32>
    %cst_44 = arith.constant dense<0.000000e+00> : vector<16x32xf32>
    %43 = tpu.matmul %42, %34, %cst_44 {dimension_numbers = #tpu.dot_dimension_numbers<[1], [0], [0], [1], [0, 0, 1, 1], [], []>} : vector<16x16xf32>, vector<16x32xf32>, vector<16x32xf32> -> vector<16x32xf32>
    %44 = vector.broadcast %35 : vector<1x32xf32> to vector<16x32xf32>
    %45 = arith.addf %43, %44 : vector<16x32xf32>
    %cst_45 = arith.constant dense<0.000000e+00> : vector<16x16xf32>
    %46 = tpu.matmul %45, %36, %cst_45 {dimension_numbers = #tpu.dot_dimension_numbers<[1], [0], [0], [1], [0, 0, 1, 1], [], []>} : vector<16x32xf32>, vector<32x16xf32>, vector<16x16xf32> -> vector<16x16xf32>
    %47 = vector.broadcast %37 : vector<1x16xf32> to vector<16x16xf32>
    %48 = arith.addf %46, %47 : vector<16x16xf32>
    %49 = arith.subf %2, %48 : vector<16x16xf32>
    %50 = arith.mulf %49, %49 : vector<16x16xf32>
    %cst_46 = arith.constant dense<0.000000e+00> : vector<16xf32>
    %51 = vector.multi_reduction <add>, %50, %cst_46 [1] : vector<16x16xf32> to vector<16xf32>
    %52 = vector.shape_cast %51 : vector<16xf32> to vector<16x1xf32>
    %cst_47 = arith.constant dense<0.000000e+00> : vector<1xf32>
    %53 = vector.multi_reduction <add>, %52, %cst_47 [0] : vector<16x1xf32> to vector<1xf32>
    %54 = vector.shape_cast %53 : vector<1xf32> to vector<1x1xf32>
    %c0_48 = arith.constant 0 : index
    %c0_49 = arith.constant 0 : index
    %55 = vector.load %arg17[%c0_48, %c0_49] : memref<1x1xf32, #tpu.memory_space<vmem>>, vector<1x1xf32>
    tpu.vector_store %arg17[%c0_48, %c0_49], %54 {strides = array<i32>} : memref<1x1xf32, #tpu.memory_space<vmem>>, vector<1x1xf32>,
    %c0_50 = arith.constant 0 : index
    %c0_51 = arith.constant 0 : index
    %c0_52 = arith.constant 0 : index
    %56 = vector.load %arg15[%c0_50, %c0_51, %c0_52] : memref<3x16x16xf32, #tpu.memory_space<vmem>>, vector<1x16x16xf32>
    %57 = vector.shape_cast %56 : vector<1x16x16xf32> to vector<16x16xf32>
    %58 = vector.shape_cast %48 : vector<16x16xf32> to vector<1x16x16xf32>
    tpu.vector_store %arg15[%c0_50, %c0_51, %c0_52], %58 {strides = array<i32>} : memref<3x16x16xf32, #tpu.memory_space<vmem>>, vector<1x16x16xf32>,
    %c1_53 = arith.constant 1 : index
    %c0_54 = arith.constant 0 : index
    %c0_55 = arith.constant 0 : index
    %59 = vector.load %arg15[%c1_53, %c0_54, %c0_55] : memref<3x16x16xf32, #tpu.memory_space<vmem>>, vector<1x16x16xf32>
    %60 = vector.shape_cast %59 : vector<1x16x16xf32> to vector<16x16xf32>
    %61 = vector.shape_cast %5 : vector<16x16xf32> to vector<1x16x16xf32>
    tpu.vector_store %arg15[%c1_53, %c0_54, %c0_55], %61 {strides = array<i32>} : memref<3x16x16xf32, #tpu.memory_space<vmem>>, vector<1x16x16xf32>,
    %c2_56 = arith.constant 2 : index
    %c0_57 = arith.constant 0 : index
    %c0_58 = arith.constant 0 : index
    %62 = vector.load %arg15[%c2_56, %c0_57, %c0_58] : memref<3x16x16xf32, #tpu.memory_space<vmem>>, vector<1x16x16xf32>
    %63 = vector.shape_cast %62 : vector<1x16x16xf32> to vector<16x16xf32>
    %64 = vector.shape_cast %8 : vector<16x16xf32> to vector<1x16x16xf32>
    tpu.vector_store %arg15[%c2_56, %c0_57, %c0_58], %64 {strides = array<i32>} : memref<3x16x16xf32, #tpu.memory_space<vmem>>, vector<1x16x16xf32>,
    return
  }
  func.func @transform_0(%arg0: i32) -> (i32, i32) {
    %c0_i32 = arith.constant 0 : i32
    %c0_i32_0 = arith.constant 0 : i32
    %c0_i32_1 = arith.constant 0 : i32
    return %c0_i32, %c0_i32_0 : i32, i32
  }
  func.func @transform_1(%arg0: i32) -> (i32, i32) {
    %c0_i32 = arith.constant 0 : i32
    %c0_i32_0 = arith.constant 0 : i32
    %c0_i32_1 = arith.constant 0 : i32
    return %c0_i32, %c0_i32_0 : i32, i32
  }
  func.func @transform_2(%arg0: i32) -> (i32, i32) {
    %c0_i32 = arith.constant 0 : i32
    %c0_i32_0 = arith.constant 0 : i32
    %c0_i32_1 = arith.constant 0 : i32
    return %c0_i32, %c0_i32_0 : i32, i32
  }
  func.func @transform_3(%arg0: i32) -> (i32, i32) {
    %c0_i32 = arith.constant 0 : i32
    %c0_i32_0 = arith.constant 0 : i32
    %c0_i32_1 = arith.constant 0 : i32
    return %c0_i32, %c0_i32_0 : i32, i32
  }
  func.func @transform_4(%arg0: i32) -> (i32, i32) {
    %c0_i32 = arith.constant 0 : i32
    %c0_i32_0 = arith.constant 0 : i32
    %c0_i32_1 = arith.constant 0 : i32
    return %c0_i32, %c0_i32_0 : i32, i32
  }
  func.func @transform_5(%arg0: i32) -> (i32, i32) {
    %c0_i32 = arith.constant 0 : i32
    %c0_i32_0 = arith.constant 0 : i32
    %c0_i32_1 = arith.constant 0 : i32
    return %c0_i32, %c0_i32_0 : i32, i32
  }
  func.func @transform_6(%arg0: i32) -> (i32, i32) {
    %c0_i32 = arith.constant 0 : i32
    %c0_i32_0 = arith.constant 0 : i32
    %c0_i32_1 = arith.constant 0 : i32
    return %c0_i32, %c0_i32_0 : i32, i32
  }
  func.func @transform_7(%arg0: i32) -> (i32, i32) {
    %c0_i32 = arith.constant 0 : i32
    %c0_i32_0 = arith.constant 0 : i32
    %c0_i32_1 = arith.constant 0 : i32
    return %c0_i32, %c0_i32_0 : i32, i32
  }
  func.func @transform_8(%arg0: i32) -> (i32, i32) {
    %c0_i32 = arith.constant 0 : i32
    %c0_i32_0 = arith.constant 0 : i32
    %c0_i32_1 = arith.constant 0 : i32
    return %c0_i32, %c0_i32_0 : i32, i32
  }
  func.func @transform_9(%arg0: i32) -> (i32, i32) {
    %c0_i32 = arith.constant 0 : i32
    %c0_i32_0 = arith.constant 0 : i32
    %c0_i32_1 = arith.constant 0 : i32
    return %c0_i32, %c0_i32_0 : i32, i32
  }
  func.func @transform_10(%arg0: i32) -> (i32, i32) {
    %c0_i32 = arith.constant 0 : i32
    %c0_i32_0 = arith.constant 0 : i32
    %c0_i32_1 = arith.constant 0 : i32
    return %c0_i32, %c0_i32_0 : i32, i32
  }
  func.func @transform_11(%arg0: i32) -> (i32, i32) {
    %c0_i32 = arith.constant 0 : i32
    %c0_i32_0 = arith.constant 0 : i32
    %c0_i32_1 = arith.constant 0 : i32
    return %c0_i32, %c0_i32_0 : i32, i32
  }
  func.func @transform_12(%arg0: i32) -> (i32, i32) {
    %c0_i32 = arith.constant 0 : i32
    %c0_i32_0 = arith.constant 0 : i32
    %c0_i32_1 = arith.constant 0 : i32
    return %c0_i32, %c0_i32_0 : i32, i32
  }
  func.func @transform_13(%arg0: i32) -> (i32, i32) {
    %c0_i32 = arith.constant 0 : i32
    %c0_i32_0 = arith.constant 0 : i32
    %c0_i32_1 = arith.constant 0 : i32
    return %c0_i32, %c0_i32_0 : i32, i32
  }
  func.func @transform_14(%arg0: i32) -> (i32, i32, i32) {
    %c0_i32 = arith.constant 0 : i32
    %c0_i32_0 = arith.constant 0 : i32
    %c0_i32_1 = arith.constant 0 : i32
    %c0_i32_2 = arith.constant 0 : i32
    return %c0_i32, %c0_i32_0, %c0_i32_1 : i32, i32, i32
  }
  func.func @transform_15(%arg0: i32) -> (i32, i32, i32) {
    %c0_i32 = arith.constant 0 : i32
    %c0_i32_0 = arith.constant 0 : i32
    %c0_i32_1 = arith.constant 0 : i32
    %c0_i32_2 = arith.constant 0 : i32
    return %c0_i32, %c0_i32_0, %c0_i32_1 : i32, i32, i32
  }
  func.func @transform_16(%arg0: i32) -> (i32, i32) {
    %c0_i32 = arith.constant 0 : i32
    %c0_i32_0 = arith.constant 0 : i32
    %c0_i32_1 = arith.constant 0 : i32
    return %c0_i32, %c0_i32_0 : i32, i32
  }
}

module attributes {stable_mosaic.version = 11 : i64} {
  func.func @kernel(%arg0: i32, %arg1: memref<3x3xi32, #tpu.memory_space<smem>>, %arg2: memref<1x16x16xf32, #tpu.memory_space<vmem>>, %arg3: memref<1x16x16xf32, #tpu.memory_space<vmem>>, %arg4: memref<1x16x16xf32, #tpu.memory_space<vmem>>, %arg5: memref<16x16xf32, #tpu.memory_space<vmem>>, %arg6: memref<16x32xf32, #tpu.memory_space<vmem>>, %arg7: memref<64x16xf32, #tpu.memory_space<vmem>>, %arg8: memref<64x16xf32, #tpu.memory_space<vmem>>, %arg9: memref<64x32xf32, #tpu.memory_space<vmem>>, %arg10: memref<2x16xf32, #tpu.memory_space<vmem>>, %arg11: memref<1x2x1x16x16xf32, #tpu.memory_space<vmem>>, %arg12: memref<1x2x1x16x16xf32, #tpu.memory_space<vmem>>, %arg13: memref<1x2x1x16x16xf32, #tpu.memory_space<vmem>>, %arg14: memref<1x2x1x16x16xf32, #tpu.memory_space<vmem>>, %arg15: memref<1x2x1x16x64xf32, #tpu.memory_space<vmem>>, %arg16: memref<1x2x1x64x16xf32, #tpu.memory_space<vmem>>, %arg17: memref<1x2x1x1x64xf32, #tpu.memory_space<vmem>>, %arg18: memref<1x2x1x16x16xf32, #tpu.memory_space<vmem>>, %arg19: memref<1x3x32x32xf32, #tpu.memory_space<vmem>>, %arg20: memref<1x3x32x32xf32, #tpu.memory_space<vmem>>, %arg21: memref<1x3x32x32xf32, #tpu.memory_space<vmem>>, %arg22: memref<1x3x32x32xf32, #tpu.memory_space<vmem>>, %arg23: memref<1x3x32x128xf32, #tpu.memory_space<vmem>>, %arg24: memref<1x3x128x32xf32, #tpu.memory_space<vmem>>, %arg25: memref<1x3x1x128xf32, #tpu.memory_space<vmem>>, %arg26: memref<1x3x16x32xf32, #tpu.memory_space<vmem>>, %arg27: memref<1x2x32xf32, #tpu.memory_space<vmem>>) attributes {dimension_semantics = [#tpu.dimension_semantics<parallel>], iteration_bounds = array<i64: 3>, scalar_prefetch = 1 : i64, scratch_operands = 0 : i64, tpu.core_type = #tpu.core_type<tc>, window_params = [{transform_indices = @transform_0, window_bounds = array<i64: 1, 16, 16>}, {transform_indices = @transform_1, window_bounds = array<i64: 1, 16, 16>}, {transform_indices = @transform_2, window_bounds = array<i64: 1, 16, 16>}, {pipeline_mode = #tpu.pipeline_mode<synchronous>, transform_indices = @transform_3, window_bounds = array<i64: 16, 16>}, {pipeline_mode = #tpu.pipeline_mode<synchronous>, transform_indices = @transform_4, window_bounds = array<i64: 16, 32>}, {pipeline_mode = #tpu.pipeline_mode<synchronous>, transform_indices = @transform_5, window_bounds = array<i64: 64, 16>}, {pipeline_mode = #tpu.pipeline_mode<synchronous>, transform_indices = @transform_6, window_bounds = array<i64: 64, 16>}, {pipeline_mode = #tpu.pipeline_mode<synchronous>, transform_indices = @transform_7, window_bounds = array<i64: 64, 32>}, {pipeline_mode = #tpu.pipeline_mode<synchronous>, transform_indices = @transform_8, window_bounds = array<i64: 2, 16>}, {transform_indices = @transform_9, window_bounds = array<i64: 1, 2, 1, 16, 16>}, {transform_indices = @transform_10, window_bounds = array<i64: 1, 2, 1, 16, 16>}, {transform_indices = @transform_11, window_bounds = array<i64: 1, 2, 1, 16, 16>}, {transform_indices = @transform_12, window_bounds = array<i64: 1, 2, 1, 16, 16>}, {transform_indices = @transform_13, window_bounds = array<i64: 1, 2, 1, 16, 64>}, {transform_indices = @transform_14, window_bounds = array<i64: 1, 2, 1, 64, 16>}, {transform_indices = @transform_15, window_bounds = array<i64: 1, 2, 1, 1, 64>}, {transform_indices = @transform_16, window_bounds = array<i64: 1, 2, 1, 16, 16>}, {transform_indices = @transform_17, window_bounds = array<i64: 1, 3, 32, 32>}, {transform_indices = @transform_18, window_bounds = array<i64: 1, 3, 32, 32>}, {transform_indices = @transform_19, window_bounds = array<i64: 1, 3, 32, 32>}, {transform_indices = @transform_20, window_bounds = array<i64: 1, 3, 32, 32>}, {transform_indices = @transform_21, window_bounds = array<i64: 1, 3, 32, 128>}, {transform_indices = @transform_22, window_bounds = array<i64: 1, 3, 128, 32>}, {transform_indices = @transform_23, window_bounds = array<i64: 1, 3, 1, 128>}, {transform_indices = @transform_24, window_bounds = array<i64: 1, 3, 16, 32>}, {transform_indices = @transform_25, window_bounds = array<i64: 1, 2, 32>}]} {
    %c0 = arith.constant 0 : index
    %c0_0 = arith.constant 0 : index
    %0 = vector.load %arg5[%c0, %c0_0] : memref<16x16xf32, #tpu.memory_space<vmem>>, vector<16x16xf32>
    %c0_1 = arith.constant 0 : index
    %c0_2 = arith.constant 0 : index
    %1 = vector.load %arg7[%c0_1, %c0_2] : memref<64x16xf32, #tpu.memory_space<vmem>>, vector<64x16xf32>
    %c0_3 = arith.constant 0 : index
    %c0_4 = arith.constant 0 : index
    %2 = vector.load %arg8[%c0_3, %c0_4] : memref<64x16xf32, #tpu.memory_space<vmem>>, vector<64x16xf32>
    %c0_5 = arith.constant 0 : index
    %c0_6 = arith.constant 0 : index
    %3 = vector.load %arg9[%c0_5, %c0_6] : memref<64x32xf32, #tpu.memory_space<vmem>>, vector<64x32xf32>
    %c0_7 = arith.constant 0 : index
    %c0_8 = arith.constant 0 : index
    %c0_9 = arith.constant 0 : index
    %4 = vector.load %arg2[%c0_7, %c0_8, %c0_9] : memref<1x16x16xf32, #tpu.memory_space<vmem>>, vector<1x16x16xf32>
    %5 = vector.shape_cast %4 : vector<1x16x16xf32> to vector<16x16xf32>
    %cst = arith.constant 4.000000e+00 : f32
    %6 = vector.broadcast %cst : f32 to vector<16x16xf32>
    %7 = arith.mulf %6, %5 : vector<16x16xf32>
    %8 = arith.addf %7, %0 : vector<16x16xf32>
    %c0_10 = arith.constant 0 : index
    %c0_11 = arith.constant 0 : index
    %c0_12 = arith.constant 0 : index
    %9 = vector.load %arg3[%c0_10, %c0_11, %c0_12] : memref<1x16x16xf32, #tpu.memory_space<vmem>>, vector<1x16x16xf32>
    %10 = vector.shape_cast %9 : vector<1x16x16xf32> to vector<16x16xf32>
    %cst_13 = arith.constant 4.000000e+00 : f32
    %11 = vector.broadcast %cst_13 : f32 to vector<16x16xf32>
    %12 = arith.mulf %11, %10 : vector<16x16xf32>
    %13 = arith.addf %12, %0 : vector<16x16xf32>
    %c0_14 = arith.constant 0 : index
    %c0_15 = arith.constant 0 : index
    %c0_16 = arith.constant 0 : index
    %14 = vector.load %arg4[%c0_14, %c0_15, %c0_16] : memref<1x16x16xf32, #tpu.memory_space<vmem>>, vector<1x16x16xf32>
    %15 = vector.shape_cast %14 : vector<1x16x16xf32> to vector<16x16xf32>
    %cst_17 = arith.constant 4.000000e+00 : f32
    %16 = vector.broadcast %cst_17 : f32 to vector<16x16xf32>
    %17 = arith.mulf %16, %15 : vector<16x16xf32>
    %18 = arith.addf %17, %0 : vector<16x16xf32>
    %c0_18 = arith.constant 0 : index
    %c0_19 = arith.constant 0 : index
    %c0_20 = arith.constant 0 : index
    %c0_21 = arith.constant 0 : index
    %c0_22 = arith.constant 0 : index
    %19 = vector.load %arg11[%c0_18, %c0_19, %c0_20, %c0_21, %c0_22] : memref<1x2x1x16x16xf32, #tpu.memory_space<vmem>>, vector<1x1x1x16x16xf32>
    %20 = vector.shape_cast %19 : vector<1x1x1x16x16xf32> to vector<16x16xf32>
    %c0_23 = arith.constant 0 : index
    %c0_24 = arith.constant 0 : index
    %c0_25 = arith.constant 0 : index
    %c0_26 = arith.constant 0 : index
    %c0_27 = arith.constant 0 : index
    %21 = vector.load %arg12[%c0_23, %c0_24, %c0_25, %c0_26, %c0_27] : memref<1x2x1x16x16xf32, #tpu.memory_space<vmem>>, vector<1x1x1x16x16xf32>
    %22 = vector.shape_cast %21 : vector<1x1x1x16x16xf32> to vector<16x16xf32>
    %c0_28 = arith.constant 0 : index
    %c0_29 = arith.constant 0 : index
    %c0_30 = arith.constant 0 : index
    %c0_31 = arith.constant 0 : index
    %c0_32 = arith.constant 0 : index
    %23 = vector.load %arg13[%c0_28, %c0_29, %c0_30, %c0_31, %c0_32] : memref<1x2x1x16x16xf32, #tpu.memory_space<vmem>>, vector<1x1x1x16x16xf32>
    %24 = vector.shape_cast %23 : vector<1x1x1x16x16xf32> to vector<16x16xf32>
    %c0_33 = arith.constant 0 : index
    %c0_34 = arith.constant 0 : index
    %c0_35 = arith.constant 0 : index
    %c0_36 = arith.constant 0 : index
    %c0_37 = arith.constant 0 : index
    %25 = vector.load %arg14[%c0_33, %c0_34, %c0_35, %c0_36, %c0_37] : memref<1x2x1x16x16xf32, #tpu.memory_space<vmem>>, vector<1x1x1x16x16xf32>
    %26 = vector.shape_cast %25 : vector<1x1x1x16x16xf32> to vector<16x16xf32>
    %c0_38 = arith.constant 0 : index
    %c0_39 = arith.constant 0 : index
    %c0_40 = arith.constant 0 : index
    %c0_41 = arith.constant 0 : index
    %c0_42 = arith.constant 0 : index
    %27 = vector.load %arg15[%c0_38, %c0_39, %c0_40, %c0_41, %c0_42] : memref<1x2x1x16x64xf32, #tpu.memory_space<vmem>>, vector<1x1x1x16x64xf32>
    %28 = vector.shape_cast %27 : vector<1x1x1x16x64xf32> to vector<16x64xf32>
    %c0_43 = arith.constant 0 : index
    %c0_44 = arith.constant 0 : index
    %c0_45 = arith.constant 0 : index
    %c0_46 = arith.constant 0 : index
    %c0_47 = arith.constant 0 : index
    %29 = vector.load %arg16[%c0_43, %c0_44, %c0_45, %c0_46, %c0_47] : memref<1x2x1x64x16xf32, #tpu.memory_space<vmem>>, vector<1x1x1x64x16xf32>
    %30 = vector.shape_cast %29 : vector<1x1x1x64x16xf32> to vector<64x16xf32>
    %c0_48 = arith.constant 0 : index
    %c0_49 = arith.constant 0 : index
    %c0_50 = arith.constant 0 : index
    %c0_51 = arith.constant 0 : index
    %c0_52 = arith.constant 0 : index
    %31 = vector.load %arg17[%c0_48, %c0_49, %c0_50, %c0_51, %c0_52] : memref<1x2x1x1x64xf32, #tpu.memory_space<vmem>>, vector<1x1x1x1x64xf32>
    %32 = vector.shape_cast %31 : vector<1x1x1x1x64xf32> to vector<1x64xf32>
    %c0_53 = arith.constant 0 : index
    %c0_54 = arith.constant 0 : index
    %c0_55 = arith.constant 0 : index
    %c0_56 = arith.constant 0 : index
    %c0_57 = arith.constant 0 : index
    %33 = vector.load %arg18[%c0_53, %c0_54, %c0_55, %c0_56, %c0_57] : memref<1x2x1x16x16xf32, #tpu.memory_space<vmem>>, vector<1x1x1x16x16xf32>
    %34 = vector.shape_cast %33 : vector<1x1x1x16x16xf32> to vector<16x16xf32>
    %35 = vector.extract_strided_slice %34 {offsets = [0, 0], sizes = [1, 16], strides = [1, 1]} : vector<16x16xf32> to vector<1x16xf32>
    %36 = vector.extract_strided_slice %34 {offsets = [1, 0], sizes = [1, 16], strides = [1, 1]} : vector<16x16xf32> to vector<1x16xf32>
    %37 = vector.extract_strided_slice %34 {offsets = [2, 0], sizes = [1, 16], strides = [1, 1]} : vector<16x16xf32> to vector<1x16xf32>
    %38 = vector.extract_strided_slice %34 {offsets = [3, 0], sizes = [1, 16], strides = [1, 1]} : vector<16x16xf32> to vector<1x16xf32>
    %39 = vector.extract_strided_slice %34 {offsets = [4, 0], sizes = [1, 16], strides = [1, 1]} : vector<16x16xf32> to vector<1x16xf32>
    %40 = vector.extract_strided_slice %34 {offsets = [5, 0], sizes = [1, 16], strides = [1, 1]} : vector<16x16xf32> to vector<1x16xf32>
    %41 = vector.extract_strided_slice %34 {offsets = [6, 0], sizes = [1, 16], strides = [1, 1]} : vector<16x16xf32> to vector<1x16xf32>
    %42 = vector.extract_strided_slice %34 {offsets = [7, 0], sizes = [1, 16], strides = [1, 1]} : vector<16x16xf32> to vector<1x16xf32>
    %43 = vector.extract_strided_slice %34 {offsets = [8, 0], sizes = [1, 16], strides = [1, 1]} : vector<16x16xf32> to vector<1x16xf32>
    %cst_58 = arith.constant dense<0.000000e+00> : vector<16xf32>
    %44 = vector.multi_reduction <add>, %8, %cst_58 [1] : vector<16x16xf32> to vector<16xf32>
    %45 = vector.shape_cast %44 : vector<16xf32> to vector<16x1xf32>
    %cst_59 = arith.constant 1.600000e+01 : f32
    %46 = vector.broadcast %cst_59 : f32 to vector<16x1xf32>
    %47 = arith.divf %45, %46 : vector<16x1xf32>
    %48 = vector.broadcast %47 : vector<16x1xf32> to vector<16x16xf32>
    %49 = arith.subf %8, %48 : vector<16x16xf32>
    %50 = arith.mulf %49, %49 : vector<16x16xf32>
    %cst_60 = arith.constant dense<0.000000e+00> : vector<16xf32>
    %51 = vector.multi_reduction <add>, %50, %cst_60 [1] : vector<16x16xf32> to vector<16xf32>
    %52 = vector.shape_cast %51 : vector<16xf32> to vector<16x1xf32>
    %cst_61 = arith.constant 1.600000e+01 : f32
    %53 = vector.broadcast %cst_61 : f32 to vector<16x1xf32>
    %54 = arith.divf %52, %53 : vector<16x1xf32>
    %55 = vector.broadcast %47 : vector<16x1xf32> to vector<16x16xf32>
    %56 = arith.subf %8, %55 : vector<16x16xf32>
    %cst_62 = arith.constant 9.99999974E-6 : f32
    %57 = vector.broadcast %cst_62 : f32 to vector<16x1xf32>
    %58 = arith.addf %54, %57 : vector<16x1xf32>
    %59 = math.rsqrt %58 : vector<16x1xf32>
    %60 = vector.broadcast %59 : vector<16x1xf32> to vector<16x16xf32>
    %61 = arith.mulf %56, %60 : vector<16x16xf32>
    %62 = vector.broadcast %35 : vector<1x16xf32> to vector<16x16xf32>
    %63 = arith.mulf %61, %62 : vector<16x16xf32>
    %64 = vector.broadcast %36 : vector<1x16xf32> to vector<16x16xf32>
    %65 = arith.addf %63, %64 : vector<16x16xf32>
    %cst_63 = arith.constant dense<0.000000e+00> : vector<16xf32>
    %66 = vector.multi_reduction <add>, %13, %cst_63 [1] : vector<16x16xf32> to vector<16xf32>
    %67 = vector.shape_cast %66 : vector<16xf32> to vector<16x1xf32>
    %cst_64 = arith.constant 1.600000e+01 : f32
    %68 = vector.broadcast %cst_64 : f32 to vector<16x1xf32>
    %69 = arith.divf %67, %68 : vector<16x1xf32>
    %70 = vector.broadcast %69 : vector<16x1xf32> to vector<16x16xf32>
    %71 = arith.subf %13, %70 : vector<16x16xf32>
    %72 = arith.mulf %71, %71 : vector<16x16xf32>
    %cst_65 = arith.constant dense<0.000000e+00> : vector<16xf32>
    %73 = vector.multi_reduction <add>, %72, %cst_65 [1] : vector<16x16xf32> to vector<16xf32>
    %74 = vector.shape_cast %73 : vector<16xf32> to vector<16x1xf32>
    %cst_66 = arith.constant 1.600000e+01 : f32
    %75 = vector.broadcast %cst_66 : f32 to vector<16x1xf32>
    %76 = arith.divf %74, %75 : vector<16x1xf32>
    %77 = vector.broadcast %69 : vector<16x1xf32> to vector<16x16xf32>
    %78 = arith.subf %13, %77 : vector<16x16xf32>
    %cst_67 = arith.constant 9.99999974E-6 : f32
    %79 = vector.broadcast %cst_67 : f32 to vector<16x1xf32>
    %80 = arith.addf %76, %79 : vector<16x1xf32>
    %81 = math.rsqrt %80 : vector<16x1xf32>
    %82 = vector.broadcast %81 : vector<16x1xf32> to vector<16x16xf32>
    %83 = arith.mulf %78, %82 : vector<16x16xf32>
    %84 = vector.broadcast %35 : vector<1x16xf32> to vector<16x16xf32>
    %85 = arith.mulf %83, %84 : vector<16x16xf32>
    %86 = vector.broadcast %36 : vector<1x16xf32> to vector<16x16xf32>
    %87 = arith.addf %85, %86 : vector<16x16xf32>
    %cst_68 = arith.constant dense<0.000000e+00> : vector<16x16xf32>
    %88 = tpu.matmul %65, %20, %cst_68 {dimension_numbers = #tpu.dot_dimension_numbers<[1], [0], [0], [1], [0, 0, 1, 1], [], []>} : vector<16x16xf32>, vector<16x16xf32>, vector<16x16xf32> -> vector<16x16xf32>
    %89 = vector.broadcast %37 : vector<1x16xf32> to vector<16x16xf32>
    %90 = arith.addf %88, %89 : vector<16x16xf32>
    %cst_69 = arith.constant 5.000000e-01 : f32
    %91 = vector.broadcast %cst_69 : f32 to vector<16x16xf32>
    %92 = arith.mulf %90, %91 : vector<16x16xf32>
    %cst_70 = arith.constant dense<0.000000e+00> : vector<16x16xf32>
    %93 = tpu.matmul %87, %22, %cst_70 {dimension_numbers = #tpu.dot_dimension_numbers<[1], [0], [0], [1], [0, 0, 1, 1], [], []>} : vector<16x16xf32>, vector<16x16xf32>, vector<16x16xf32> -> vector<16x16xf32>
    %94 = vector.broadcast %38 : vector<1x16xf32> to vector<16x16xf32>
    %95 = arith.addf %93, %94 : vector<16x16xf32>
    %cst_71 = arith.constant dense<0.000000e+00> : vector<16x16xf32>
    %96 = tpu.matmul %87, %24, %cst_71 {dimension_numbers = #tpu.dot_dimension_numbers<[1], [0], [0], [1], [0, 0, 1, 1], [], []>} : vector<16x16xf32>, vector<16x16xf32>, vector<16x16xf32> -> vector<16x16xf32>
    %97 = vector.broadcast %39 : vector<1x16xf32> to vector<16x16xf32>
    %98 = arith.addf %96, %97 : vector<16x16xf32>
    %99 = tpu.concatenate %92, %92, %92, %92 in 0 : vector<16x16xf32>, vector<16x16xf32>, vector<16x16xf32>, vector<16x16xf32> -> vector<64x16xf32>
    %100 = arith.mulf %99, %2 : vector<64x16xf32>
    "tpu.trace_start"() <{level = 10 : i32, message = "nd,kd->nk"}> : () -> ()
    %cst_72 = arith.constant dense<0.000000e+00> : vector<64x16xf32>
    %101 = tpu.matmul %100, %95, %cst_72 {dimension_numbers = #tpu.dot_dimension_numbers<[1], [1], [0], [0], [0, 0, 1, 0], [], []>} : vector<64x16xf32>, vector<16x16xf32>, vector<64x16xf32> -> vector<64x16xf32>
    "tpu.trace_stop"() : () -> ()
    %102 = arith.addf %101, %1 : vector<64x16xf32>
    %cst_73 = arith.constant dense<0xFF800000> : vector<64xf32>
    %103 = vector.multi_reduction <maximumf>, %102, %cst_73 [1] : vector<64x16xf32> to vector<64xf32>
    %104 = vector.shape_cast %103 : vector<64xf32> to vector<64x1xf32>
    %105 = vector.broadcast %104 : vector<64x1xf32> to vector<64x16xf32>
    %106 = arith.subf %102, %105 : vector<64x16xf32>
    %107 = math.exp %106 : vector<64x16xf32>
    %cst_74 = arith.constant dense<0.000000e+00> : vector<64xf32>
    %108 = vector.multi_reduction <add>, %107, %cst_74 [1] : vector<64x16xf32> to vector<64xf32>
    %109 = vector.shape_cast %108 : vector<64xf32> to vector<64x1xf32>
    %110 = tpu.reciprocal %109 {approx = true} : vector<64x1xf32> -> vector<64x1xf32>
    %111 = vector.broadcast %110 : vector<64x1xf32> to vector<64x16xf32>
    %112 = arith.mulf %107, %111 : vector<64x16xf32>
    %cst_75 = arith.constant dense<0.000000e+00> : vector<64x16xf32>
    %113 = tpu.matmul %112, %98, %cst_75 {dimension_numbers = #tpu.dot_dimension_numbers<[1], [0], [0], [1], [0, 0, 1, 1], [], []>} : vector<64x16xf32>, vector<16x16xf32>, vector<64x16xf32> -> vector<64x16xf32>
    %114 = arith.mulf %113, %2 : vector<64x16xf32>
    %115 = vector.extract_strided_slice %114 {offsets = [0, 0], sizes = [16, 16], strides = [1, 1]} : vector<64x16xf32> to vector<16x16xf32>
    %116 = vector.extract_strided_slice %114 {offsets = [16, 0], sizes = [16, 16], strides = [1, 1]} : vector<64x16xf32> to vector<16x16xf32>
    %117 = arith.addf %115, %116 : vector<16x16xf32>
    %118 = vector.extract_strided_slice %114 {offsets = [32, 0], sizes = [16, 16], strides = [1, 1]} : vector<64x16xf32> to vector<16x16xf32>
    %119 = arith.addf %117, %118 : vector<16x16xf32>
    %120 = vector.extract_strided_slice %114 {offsets = [48, 0], sizes = [16, 16], strides = [1, 1]} : vector<64x16xf32> to vector<16x16xf32>
    %121 = arith.addf %119, %120 : vector<16x16xf32>
    %cst_76 = arith.constant dense<0.000000e+00> : vector<16x16xf32>
    %122 = tpu.matmul %121, %26, %cst_76 {dimension_numbers = #tpu.dot_dimension_numbers<[1], [0], [0], [1], [0, 0, 1, 1], [], []>} : vector<16x16xf32>, vector<16x16xf32>, vector<16x16xf32> -> vector<16x16xf32>
    %123 = arith.addf %8, %122 : vector<16x16xf32>
    %124 = vector.broadcast %40 : vector<1x16xf32> to vector<16x16xf32>
    %125 = arith.addf %123, %124 : vector<16x16xf32>
    %cst_77 = arith.constant dense<0.000000e+00> : vector<16xf32>
    %126 = vector.multi_reduction <add>, %125, %cst_77 [1] : vector<16x16xf32> to vector<16xf32>
    %127 = vector.shape_cast %126 : vector<16xf32> to vector<16x1xf32>
    %cst_78 = arith.constant 1.600000e+01 : f32
    %128 = vector.broadcast %cst_78 : f32 to vector<16x1xf32>
    %129 = arith.divf %127, %128 : vector<16x1xf32>
    %130 = vector.broadcast %129 : vector<16x1xf32> to vector<16x16xf32>
    %131 = arith.subf %125, %130 : vector<16x16xf32>
    %132 = arith.mulf %131, %131 : vector<16x16xf32>
    %cst_79 = arith.constant dense<0.000000e+00> : vector<16xf32>
    %133 = vector.multi_reduction <add>, %132, %cst_79 [1] : vector<16x16xf32> to vector<16xf32>
    %134 = vector.shape_cast %133 : vector<16xf32> to vector<16x1xf32>
    %cst_80 = arith.constant 1.600000e+01 : f32
    %135 = vector.broadcast %cst_80 : f32 to vector<16x1xf32>
    %136 = arith.divf %134, %135 : vector<16x1xf32>
    %137 = vector.broadcast %129 : vector<16x1xf32> to vector<16x16xf32>
    %138 = arith.subf %125, %137 : vector<16x16xf32>
    %cst_81 = arith.constant 9.99999974E-6 : f32
    %139 = vector.broadcast %cst_81 : f32 to vector<16x1xf32>
    %140 = arith.addf %136, %139 : vector<16x1xf32>
    %141 = math.rsqrt %140 : vector<16x1xf32>
    %142 = vector.broadcast %141 : vector<16x1xf32> to vector<16x16xf32>
    %143 = arith.mulf %138, %142 : vector<16x16xf32>
    %144 = vector.broadcast %41 : vector<1x16xf32> to vector<16x16xf32>
    %145 = arith.mulf %143, %144 : vector<16x16xf32>
    %146 = vector.broadcast %42 : vector<1x16xf32> to vector<16x16xf32>
    %147 = arith.addf %145, %146 : vector<16x16xf32>
    %cst_82 = arith.constant dense<0.000000e+00> : vector<16x64xf32>
    %148 = tpu.matmul %147, %28, %cst_82 {dimension_numbers = #tpu.dot_dimension_numbers<[1], [0], [0], [1], [0, 0, 1, 1], [], []>} : vector<16x16xf32>, vector<16x64xf32>, vector<16x64xf32> -> vector<16x64xf32>
    %149 = vector.broadcast %32 : vector<1x64xf32> to vector<16x64xf32>
    %150 = arith.addf %148, %149 : vector<16x64xf32>
    %cst_83 = arith.constant 0.000000e+00 : f32
    %151 = vector.broadcast %cst_83 : f32 to vector<16x64xf32>
    %152 = arith.maximumf %150, %151 : vector<16x64xf32>
    %cst_84 = arith.constant dense<0.000000e+00> : vector<16x16xf32>
    %153 = tpu.matmul %152, %30, %cst_84 {dimension_numbers = #tpu.dot_dimension_numbers<[1], [0], [0], [1], [0, 0, 1, 1], [], []>} : vector<16x64xf32>, vector<64x16xf32>, vector<16x16xf32> -> vector<16x16xf32>
    %154 = arith.addf %125, %153 : vector<16x16xf32>
    %155 = vector.broadcast %43 : vector<1x16xf32> to vector<16x16xf32>
    %156 = arith.addf %154, %155 : vector<16x16xf32>
    %c0_85 = arith.constant 0 : index
    %c0_86 = arith.constant 0 : index
    %c0_87 = arith.constant 0 : index
    %c0_88 = arith.constant 0 : index
    %c0_89 = arith.constant 0 : index
    %157 = vector.load %arg18[%c0_85, %c0_86, %c0_87, %c0_88, %c0_89] : memref<1x2x1x16x16xf32, #tpu.memory_space<vmem>>, vector<1x1x1x16x16xf32>
    %158 = vector.shape_cast %157 : vector<1x1x1x16x16xf32> to vector<16x16xf32>
    %159 = vector.extract_strided_slice %158 {offsets = [9, 0], sizes = [1, 16], strides = [1, 1]} : vector<16x16xf32> to vector<1x16xf32>
    %160 = vector.extract_strided_slice %158 {offsets = [10, 0], sizes = [1, 16], strides = [1, 1]} : vector<16x16xf32> to vector<1x16xf32>
    %cst_90 = arith.constant dense<0.000000e+00> : vector<16xf32>
    %161 = vector.multi_reduction <add>, %156, %cst_90 [1] : vector<16x16xf32> to vector<16xf32>
    %162 = vector.shape_cast %161 : vector<16xf32> to vector<16x1xf32>
    %cst_91 = arith.constant 1.600000e+01 : f32
    %163 = vector.broadcast %cst_91 : f32 to vector<16x1xf32>
    %164 = arith.divf %162, %163 : vector<16x1xf32>
    %165 = vector.broadcast %164 : vector<16x1xf32> to vector<16x16xf32>
    %166 = arith.subf %156, %165 : vector<16x16xf32>
    %167 = arith.mulf %166, %166 : vector<16x16xf32>
    %cst_92 = arith.constant dense<0.000000e+00> : vector<16xf32>
    %168 = vector.multi_reduction <add>, %167, %cst_92 [1] : vector<16x16xf32> to vector<16xf32>
    %169 = vector.shape_cast %168 : vector<16xf32> to vector<16x1xf32>
    %cst_93 = arith.constant 1.600000e+01 : f32
    %170 = vector.broadcast %cst_93 : f32 to vector<16x1xf32>
    %171 = arith.divf %169, %170 : vector<16x1xf32>
    %172 = vector.broadcast %164 : vector<16x1xf32> to vector<16x16xf32>
    %173 = arith.subf %156, %172 : vector<16x16xf32>
    %cst_94 = arith.constant 9.99999974E-6 : f32
    %174 = vector.broadcast %cst_94 : f32 to vector<16x1xf32>
    %175 = arith.addf %171, %174 : vector<16x1xf32>
    %176 = math.rsqrt %175 : vector<16x1xf32>
    %177 = vector.broadcast %176 : vector<16x1xf32> to vector<16x16xf32>
    %178 = arith.mulf %173, %177 : vector<16x16xf32>
    %179 = vector.broadcast %159 : vector<1x16xf32> to vector<16x16xf32>
    %180 = arith.mulf %178, %179 : vector<16x16xf32>
    %181 = vector.broadcast %160 : vector<1x16xf32> to vector<16x16xf32>
    %182 = arith.addf %180, %181 : vector<16x16xf32>
    %c0_95 = arith.constant 0 : index
    %c1 = arith.constant 1 : index
    %c0_96 = arith.constant 0 : index
    %c0_97 = arith.constant 0 : index
    %c0_98 = arith.constant 0 : index
    %183 = vector.load %arg11[%c0_95, %c1, %c0_96, %c0_97, %c0_98] : memref<1x2x1x16x16xf32, #tpu.memory_space<vmem>>, vector<1x1x1x16x16xf32>
    %184 = vector.shape_cast %183 : vector<1x1x1x16x16xf32> to vector<16x16xf32>
    %c0_99 = arith.constant 0 : index
    %c1_100 = arith.constant 1 : index
    %c0_101 = arith.constant 0 : index
    %c0_102 = arith.constant 0 : index
    %c0_103 = arith.constant 0 : index
    %185 = vector.load %arg12[%c0_99, %c1_100, %c0_101, %c0_102, %c0_103] : memref<1x2x1x16x16xf32, #tpu.memory_space<vmem>>, vector<1x1x1x16x16xf32>
    %186 = vector.shape_cast %185 : vector<1x1x1x16x16xf32> to vector<16x16xf32>
    %c0_104 = arith.constant 0 : index
    %c1_105 = arith.constant 1 : index
    %c0_106 = arith.constant 0 : index
    %c0_107 = arith.constant 0 : index
    %c0_108 = arith.constant 0 : index
    %187 = vector.load %arg13[%c0_104, %c1_105, %c0_106, %c0_107, %c0_108] : memref<1x2x1x16x16xf32, #tpu.memory_space<vmem>>, vector<1x1x1x16x16xf32>
    %188 = vector.shape_cast %187 : vector<1x1x1x16x16xf32> to vector<16x16xf32>
    %c0_109 = arith.constant 0 : index
    %c1_110 = arith.constant 1 : index
    %c0_111 = arith.constant 0 : index
    %c0_112 = arith.constant 0 : index
    %c0_113 = arith.constant 0 : index
    %189 = vector.load %arg14[%c0_109, %c1_110, %c0_111, %c0_112, %c0_113] : memref<1x2x1x16x16xf32, #tpu.memory_space<vmem>>, vector<1x1x1x16x16xf32>
    %190 = vector.shape_cast %189 : vector<1x1x1x16x16xf32> to vector<16x16xf32>
    %c0_114 = arith.constant 0 : index
    %c1_115 = arith.constant 1 : index
    %c0_116 = arith.constant 0 : index
    %c0_117 = arith.constant 0 : index
    %c0_118 = arith.constant 0 : index
    %191 = vector.load %arg15[%c0_114, %c1_115, %c0_116, %c0_117, %c0_118] : memref<1x2x1x16x64xf32, #tpu.memory_space<vmem>>, vector<1x1x1x16x64xf32>
    %192 = vector.shape_cast %191 : vector<1x1x1x16x64xf32> to vector<16x64xf32>
    %c0_119 = arith.constant 0 : index
    %c1_120 = arith.constant 1 : index
    %c0_121 = arith.constant 0 : index
    %c0_122 = arith.constant 0 : index
    %c0_123 = arith.constant 0 : index
    %193 = vector.load %arg16[%c0_119, %c1_120, %c0_121, %c0_122, %c0_123] : memref<1x2x1x64x16xf32, #tpu.memory_space<vmem>>, vector<1x1x1x64x16xf32>
    %194 = vector.shape_cast %193 : vector<1x1x1x64x16xf32> to vector<64x16xf32>
    %c0_124 = arith.constant 0 : index
    %c1_125 = arith.constant 1 : index
    %c0_126 = arith.constant 0 : index
    %c0_127 = arith.constant 0 : index
    %c0_128 = arith.constant 0 : index
    %195 = vector.load %arg17[%c0_124, %c1_125, %c0_126, %c0_127, %c0_128] : memref<1x2x1x1x64xf32, #tpu.memory_space<vmem>>, vector<1x1x1x1x64xf32>
    %196 = vector.shape_cast %195 : vector<1x1x1x1x64xf32> to vector<1x64xf32>
    %c0_129 = arith.constant 0 : index
    %c1_130 = arith.constant 1 : index
    %c0_131 = arith.constant 0 : index
    %c0_132 = arith.constant 0 : index
    %c0_133 = arith.constant 0 : index
    %197 = vector.load %arg18[%c0_129, %c1_130, %c0_131, %c0_132, %c0_133] : memref<1x2x1x16x16xf32, #tpu.memory_space<vmem>>, vector<1x1x1x16x16xf32>
    %198 = vector.shape_cast %197 : vector<1x1x1x16x16xf32> to vector<16x16xf32>
    %199 = vector.extract_strided_slice %198 {offsets = [0, 0], sizes = [1, 16], strides = [1, 1]} : vector<16x16xf32> to vector<1x16xf32>
    %200 = vector.extract_strided_slice %198 {offsets = [1, 0], sizes = [1, 16], strides = [1, 1]} : vector<16x16xf32> to vector<1x16xf32>
    %201 = vector.extract_strided_slice %198 {offsets = [2, 0], sizes = [1, 16], strides = [1, 1]} : vector<16x16xf32> to vector<1x16xf32>
    %202 = vector.extract_strided_slice %198 {offsets = [3, 0], sizes = [1, 16], strides = [1, 1]} : vector<16x16xf32> to vector<1x16xf32>
    %203 = vector.extract_strided_slice %198 {offsets = [4, 0], sizes = [1, 16], strides = [1, 1]} : vector<16x16xf32> to vector<1x16xf32>
    %204 = vector.extract_strided_slice %198 {offsets = [5, 0], sizes = [1, 16], strides = [1, 1]} : vector<16x16xf32> to vector<1x16xf32>
    %205 = vector.extract_strided_slice %198 {offsets = [6, 0], sizes = [1, 16], strides = [1, 1]} : vector<16x16xf32> to vector<1x16xf32>
    %206 = vector.extract_strided_slice %198 {offsets = [7, 0], sizes = [1, 16], strides = [1, 1]} : vector<16x16xf32> to vector<1x16xf32>
    %207 = vector.extract_strided_slice %198 {offsets = [8, 0], sizes = [1, 16], strides = [1, 1]} : vector<16x16xf32> to vector<1x16xf32>
    %cst_134 = arith.constant dense<0.000000e+00> : vector<16xf32>
    %208 = vector.multi_reduction <add>, %8, %cst_134 [1] : vector<16x16xf32> to vector<16xf32>
    %209 = vector.shape_cast %208 : vector<16xf32> to vector<16x1xf32>
    %cst_135 = arith.constant 1.600000e+01 : f32
    %210 = vector.broadcast %cst_135 : f32 to vector<16x1xf32>
    %211 = arith.divf %209, %210 : vector<16x1xf32>
    %212 = vector.broadcast %211 : vector<16x1xf32> to vector<16x16xf32>
    %213 = arith.subf %8, %212 : vector<16x16xf32>
    %214 = arith.mulf %213, %213 : vector<16x16xf32>
    %cst_136 = arith.constant dense<0.000000e+00> : vector<16xf32>
    %215 = vector.multi_reduction <add>, %214, %cst_136 [1] : vector<16x16xf32> to vector<16xf32>
    %216 = vector.shape_cast %215 : vector<16xf32> to vector<16x1xf32>
    %cst_137 = arith.constant 1.600000e+01 : f32
    %217 = vector.broadcast %cst_137 : f32 to vector<16x1xf32>
    %218 = arith.divf %216, %217 : vector<16x1xf32>
    %219 = vector.broadcast %211 : vector<16x1xf32> to vector<16x16xf32>
    %220 = arith.subf %8, %219 : vector<16x16xf32>
    %cst_138 = arith.constant 9.99999974E-6 : f32
    %221 = vector.broadcast %cst_138 : f32 to vector<16x1xf32>
    %222 = arith.addf %218, %221 : vector<16x1xf32>
    %223 = math.rsqrt %222 : vector<16x1xf32>
    %224 = vector.broadcast %223 : vector<16x1xf32> to vector<16x16xf32>
    %225 = arith.mulf %220, %224 : vector<16x16xf32>
    %226 = vector.broadcast %199 : vector<1x16xf32> to vector<16x16xf32>
    %227 = arith.mulf %225, %226 : vector<16x16xf32>
    %228 = vector.broadcast %200 : vector<1x16xf32> to vector<16x16xf32>
    %229 = arith.addf %227, %228 : vector<16x16xf32>
    %cst_139 = arith.constant dense<0.000000e+00> : vector<16xf32>
    %230 = vector.multi_reduction <add>, %18, %cst_139 [1] : vector<16x16xf32> to vector<16xf32>
    %231 = vector.shape_cast %230 : vector<16xf32> to vector<16x1xf32>
    %cst_140 = arith.constant 1.600000e+01 : f32
    %232 = vector.broadcast %cst_140 : f32 to vector<16x1xf32>
    %233 = arith.divf %231, %232 : vector<16x1xf32>
    %234 = vector.broadcast %233 : vector<16x1xf32> to vector<16x16xf32>
    %235 = arith.subf %18, %234 : vector<16x16xf32>
    %236 = arith.mulf %235, %235 : vector<16x16xf32>
    %cst_141 = arith.constant dense<0.000000e+00> : vector<16xf32>
    %237 = vector.multi_reduction <add>, %236, %cst_141 [1] : vector<16x16xf32> to vector<16xf32>
    %238 = vector.shape_cast %237 : vector<16xf32> to vector<16x1xf32>
    %cst_142 = arith.constant 1.600000e+01 : f32
    %239 = vector.broadcast %cst_142 : f32 to vector<16x1xf32>
    %240 = arith.divf %238, %239 : vector<16x1xf32>
    %241 = vector.broadcast %233 : vector<16x1xf32> to vector<16x16xf32>
    %242 = arith.subf %18, %241 : vector<16x16xf32>
    %cst_143 = arith.constant 9.99999974E-6 : f32
    %243 = vector.broadcast %cst_143 : f32 to vector<16x1xf32>
    %244 = arith.addf %240, %243 : vector<16x1xf32>
    %245 = math.rsqrt %244 : vector<16x1xf32>
    %246 = vector.broadcast %245 : vector<16x1xf32> to vector<16x16xf32>
    %247 = arith.mulf %242, %246 : vector<16x16xf32>
    %248 = vector.broadcast %199 : vector<1x16xf32> to vector<16x16xf32>
    %249 = arith.mulf %247, %248 : vector<16x16xf32>
    %250 = vector.broadcast %200 : vector<1x16xf32> to vector<16x16xf32>
    %251 = arith.addf %249, %250 : vector<16x16xf32>
    %cst_144 = arith.constant dense<0.000000e+00> : vector<16x16xf32>
    %252 = tpu.matmul %229, %184, %cst_144 {dimension_numbers = #tpu.dot_dimension_numbers<[1], [0], [0], [1], [0, 0, 1, 1], [], []>} : vector<16x16xf32>, vector<16x16xf32>, vector<16x16xf32> -> vector<16x16xf32>
    %253 = vector.broadcast %201 : vector<1x16xf32> to vector<16x16xf32>
    %254 = arith.addf %252, %253 : vector<16x16xf32>
    %cst_145 = arith.constant 5.000000e-01 : f32
    %255 = vector.broadcast %cst_145 : f32 to vector<16x16xf32>
    %256 = arith.mulf %254, %255 : vector<16x16xf32>
    %cst_146 = arith.constant dense<0.000000e+00> : vector<16x16xf32>
    %257 = tpu.matmul %251, %186, %cst_146 {dimension_numbers = #tpu.dot_dimension_numbers<[1], [0], [0], [1], [0, 0, 1, 1], [], []>} : vector<16x16xf32>, vector<16x16xf32>, vector<16x16xf32> -> vector<16x16xf32>
    %258 = vector.broadcast %202 : vector<1x16xf32> to vector<16x16xf32>
    %259 = arith.addf %257, %258 : vector<16x16xf32>
    %cst_147 = arith.constant dense<0.000000e+00> : vector<16x16xf32>
    %260 = tpu.matmul %251, %188, %cst_147 {dimension_numbers = #tpu.dot_dimension_numbers<[1], [0], [0], [1], [0, 0, 1, 1], [], []>} : vector<16x16xf32>, vector<16x16xf32>, vector<16x16xf32> -> vector<16x16xf32>
    %261 = vector.broadcast %203 : vector<1x16xf32> to vector<16x16xf32>
    %262 = arith.addf %260, %261 : vector<16x16xf32>
    %263 = tpu.concatenate %256, %256, %256, %256 in 0 : vector<16x16xf32>, vector<16x16xf32>, vector<16x16xf32>, vector<16x16xf32> -> vector<64x16xf32>
    %264 = arith.mulf %263, %2 : vector<64x16xf32>
    "tpu.trace_start"() <{level = 10 : i32, message = "nd,kd->nk"}> : () -> ()
    %cst_148 = arith.constant dense<0.000000e+00> : vector<64x16xf32>
    %265 = tpu.matmul %264, %259, %cst_148 {dimension_numbers = #tpu.dot_dimension_numbers<[1], [1], [0], [0], [0, 0, 1, 0], [], []>} : vector<64x16xf32>, vector<16x16xf32>, vector<64x16xf32> -> vector<64x16xf32>
    "tpu.trace_stop"() : () -> ()
    %266 = arith.addf %265, %1 : vector<64x16xf32>
    %cst_149 = arith.constant dense<0xFF800000> : vector<64xf32>
    %267 = vector.multi_reduction <maximumf>, %266, %cst_149 [1] : vector<64x16xf32> to vector<64xf32>
    %268 = vector.shape_cast %267 : vector<64xf32> to vector<64x1xf32>
    %269 = vector.broadcast %268 : vector<64x1xf32> to vector<64x16xf32>
    %270 = arith.subf %266, %269 : vector<64x16xf32>
    %271 = math.exp %270 : vector<64x16xf32>
    %cst_150 = arith.constant dense<0.000000e+00> : vector<64xf32>
    %272 = vector.multi_reduction <add>, %271, %cst_150 [1] : vector<64x16xf32> to vector<64xf32>
    %273 = vector.shape_cast %272 : vector<64xf32> to vector<64x1xf32>
    %274 = tpu.reciprocal %273 {approx = true} : vector<64x1xf32> -> vector<64x1xf32>
    %275 = vector.broadcast %274 : vector<64x1xf32> to vector<64x16xf32>
    %276 = arith.mulf %271, %275 : vector<64x16xf32>
    %cst_151 = arith.constant dense<0.000000e+00> : vector<64x16xf32>
    %277 = tpu.matmul %276, %262, %cst_151 {dimension_numbers = #tpu.dot_dimension_numbers<[1], [0], [0], [1], [0, 0, 1, 1], [], []>} : vector<64x16xf32>, vector<16x16xf32>, vector<64x16xf32> -> vector<64x16xf32>
    %278 = arith.mulf %277, %2 : vector<64x16xf32>
    %279 = vector.extract_strided_slice %278 {offsets = [0, 0], sizes = [16, 16], strides = [1, 1]} : vector<64x16xf32> to vector<16x16xf32>
    %280 = vector.extract_strided_slice %278 {offsets = [16, 0], sizes = [16, 16], strides = [1, 1]} : vector<64x16xf32> to vector<16x16xf32>
    %281 = arith.addf %279, %280 : vector<16x16xf32>
    %282 = vector.extract_strided_slice %278 {offsets = [32, 0], sizes = [16, 16], strides = [1, 1]} : vector<64x16xf32> to vector<16x16xf32>
    %283 = arith.addf %281, %282 : vector<16x16xf32>
    %284 = vector.extract_strided_slice %278 {offsets = [48, 0], sizes = [16, 16], strides = [1, 1]} : vector<64x16xf32> to vector<16x16xf32>
    %285 = arith.addf %283, %284 : vector<16x16xf32>
    %cst_152 = arith.constant dense<0.000000e+00> : vector<16x16xf32>
    %286 = tpu.matmul %285, %190, %cst_152 {dimension_numbers = #tpu.dot_dimension_numbers<[1], [0], [0], [1], [0, 0, 1, 1], [], []>} : vector<16x16xf32>, vector<16x16xf32>, vector<16x16xf32> -> vector<16x16xf32>
    %287 = arith.addf %8, %286 : vector<16x16xf32>
    %288 = vector.broadcast %204 : vector<1x16xf32> to vector<16x16xf32>
    %289 = arith.addf %287, %288 : vector<16x16xf32>
    %cst_153 = arith.constant dense<0.000000e+00> : vector<16xf32>
    %290 = vector.multi_reduction <add>, %289, %cst_153 [1] : vector<16x16xf32> to vector<16xf32>
    %291 = vector.shape_cast %290 : vector<16xf32> to vector<16x1xf32>
    %cst_154 = arith.constant 1.600000e+01 : f32
    %292 = vector.broadcast %cst_154 : f32 to vector<16x1xf32>
    %293 = arith.divf %291, %292 : vector<16x1xf32>
    %294 = vector.broadcast %293 : vector<16x1xf32> to vector<16x16xf32>
    %295 = arith.subf %289, %294 : vector<16x16xf32>
    %296 = arith.mulf %295, %295 : vector<16x16xf32>
    %cst_155 = arith.constant dense<0.000000e+00> : vector<16xf32>
    %297 = vector.multi_reduction <add>, %296, %cst_155 [1] : vector<16x16xf32> to vector<16xf32>
    %298 = vector.shape_cast %297 : vector<16xf32> to vector<16x1xf32>
    %cst_156 = arith.constant 1.600000e+01 : f32
    %299 = vector.broadcast %cst_156 : f32 to vector<16x1xf32>
    %300 = arith.divf %298, %299 : vector<16x1xf32>
    %301 = vector.broadcast %293 : vector<16x1xf32> to vector<16x16xf32>
    %302 = arith.subf %289, %301 : vector<16x16xf32>
    %cst_157 = arith.constant 9.99999974E-6 : f32
    %303 = vector.broadcast %cst_157 : f32 to vector<16x1xf32>
    %304 = arith.addf %300, %303 : vector<16x1xf32>
    %305 = math.rsqrt %304 : vector<16x1xf32>
    %306 = vector.broadcast %305 : vector<16x1xf32> to vector<16x16xf32>
    %307 = arith.mulf %302, %306 : vector<16x16xf32>
    %308 = vector.broadcast %205 : vector<1x16xf32> to vector<16x16xf32>
    %309 = arith.mulf %307, %308 : vector<16x16xf32>
    %310 = vector.broadcast %206 : vector<1x16xf32> to vector<16x16xf32>
    %311 = arith.addf %309, %310 : vector<16x16xf32>
    %cst_158 = arith.constant dense<0.000000e+00> : vector<16x64xf32>
    %312 = tpu.matmul %311, %192, %cst_158 {dimension_numbers = #tpu.dot_dimension_numbers<[1], [0], [0], [1], [0, 0, 1, 1], [], []>} : vector<16x16xf32>, vector<16x64xf32>, vector<16x64xf32> -> vector<16x64xf32>
    %313 = vector.broadcast %196 : vector<1x64xf32> to vector<16x64xf32>
    %314 = arith.addf %312, %313 : vector<16x64xf32>
    %cst_159 = arith.constant 0.000000e+00 : f32
    %315 = vector.broadcast %cst_159 : f32 to vector<16x64xf32>
    %316 = arith.maximumf %314, %315 : vector<16x64xf32>
    %cst_160 = arith.constant dense<0.000000e+00> : vector<16x16xf32>
    %317 = tpu.matmul %316, %194, %cst_160 {dimension_numbers = #tpu.dot_dimension_numbers<[1], [0], [0], [1], [0, 0, 1, 1], [], []>} : vector<16x64xf32>, vector<64x16xf32>, vector<16x16xf32> -> vector<16x16xf32>
    %318 = arith.addf %289, %317 : vector<16x16xf32>
    %319 = vector.broadcast %207 : vector<1x16xf32> to vector<16x16xf32>
    %320 = arith.addf %318, %319 : vector<16x16xf32>
    %c0_161 = arith.constant 0 : index
    %c1_162 = arith.constant 1 : index
    %c0_163 = arith.constant 0 : index
    %c0_164 = arith.constant 0 : index
    %c0_165 = arith.constant 0 : index
    %321 = vector.load %arg18[%c0_161, %c1_162, %c0_163, %c0_164, %c0_165] : memref<1x2x1x16x16xf32, #tpu.memory_space<vmem>>, vector<1x1x1x16x16xf32>
    %322 = vector.shape_cast %321 : vector<1x1x1x16x16xf32> to vector<16x16xf32>
    %323 = vector.extract_strided_slice %322 {offsets = [9, 0], sizes = [1, 16], strides = [1, 1]} : vector<16x16xf32> to vector<1x16xf32>
    %324 = vector.extract_strided_slice %322 {offsets = [10, 0], sizes = [1, 16], strides = [1, 1]} : vector<16x16xf32> to vector<1x16xf32>
    %cst_166 = arith.constant dense<0.000000e+00> : vector<16xf32>
    %325 = vector.multi_reduction <add>, %320, %cst_166 [1] : vector<16x16xf32> to vector<16xf32>
    %326 = vector.shape_cast %325 : vector<16xf32> to vector<16x1xf32>
    %cst_167 = arith.constant 1.600000e+01 : f32
    %327 = vector.broadcast %cst_167 : f32 to vector<16x1xf32>
    %328 = arith.divf %326, %327 : vector<16x1xf32>
    %329 = vector.broadcast %328 : vector<16x1xf32> to vector<16x16xf32>
    %330 = arith.subf %320, %329 : vector<16x16xf32>
    %331 = arith.mulf %330, %330 : vector<16x16xf32>
    %cst_168 = arith.constant dense<0.000000e+00> : vector<16xf32>
    %332 = vector.multi_reduction <add>, %331, %cst_168 [1] : vector<16x16xf32> to vector<16xf32>
    %333 = vector.shape_cast %332 : vector<16xf32> to vector<16x1xf32>
    %cst_169 = arith.constant 1.600000e+01 : f32
    %334 = vector.broadcast %cst_169 : f32 to vector<16x1xf32>
    %335 = arith.divf %333, %334 : vector<16x1xf32>
    %336 = vector.broadcast %328 : vector<16x1xf32> to vector<16x16xf32>
    %337 = arith.subf %320, %336 : vector<16x16xf32>
    %cst_170 = arith.constant 9.99999974E-6 : f32
    %338 = vector.broadcast %cst_170 : f32 to vector<16x1xf32>
    %339 = arith.addf %335, %338 : vector<16x1xf32>
    %340 = math.rsqrt %339 : vector<16x1xf32>
    %341 = vector.broadcast %340 : vector<16x1xf32> to vector<16x16xf32>
    %342 = arith.mulf %337, %341 : vector<16x16xf32>
    %343 = vector.broadcast %323 : vector<1x16xf32> to vector<16x16xf32>
    %344 = arith.mulf %342, %343 : vector<16x16xf32>
    %345 = vector.broadcast %324 : vector<1x16xf32> to vector<16x16xf32>
    %346 = arith.addf %344, %345 : vector<16x16xf32>
    %347 = tpu.concatenate %182, %346 in 1 : vector<16x16xf32>, vector<16x16xf32> -> vector<16x32xf32>
    %cst_171 = arith.constant 5.65685415 : f32
    %348 = vector.broadcast %cst_171 : f32 to vector<16x32xf32>
    %349 = arith.mulf %348, %347 : vector<16x32xf32>
    %c0_172 = arith.constant 0 : index
    %c0_173 = arith.constant 0 : index
    %350 = vector.load %arg6[%c0_172, %c0_173] : memref<16x32xf32, #tpu.memory_space<vmem>>, vector<16x32xf32>
    %351 = arith.addf %349, %350 : vector<16x32xf32>
    %c0_174 = arith.constant 0 : index
    %c0_175 = arith.constant 0 : index
    %c0_176 = arith.constant 0 : index
    %c0_177 = arith.constant 0 : index
    %352 = vector.load %arg19[%c0_174, %c0_175, %c0_176, %c0_177] : memref<1x3x32x32xf32, #tpu.memory_space<vmem>>, vector<1x1x32x32xf32>
    %353 = vector.shape_cast %352 : vector<1x1x32x32xf32> to vector<32x32xf32>
    %c0_178 = arith.constant 0 : index
    %c0_179 = arith.constant 0 : index
    %c0_180 = arith.constant 0 : index
    %c0_181 = arith.constant 0 : index
    %354 = vector.load %arg20[%c0_178, %c0_179, %c0_180, %c0_181] : memref<1x3x32x32xf32, #tpu.memory_space<vmem>>, vector<1x1x32x32xf32>
    %355 = vector.shape_cast %354 : vector<1x1x32x32xf32> to vector<32x32xf32>
    %c0_182 = arith.constant 0 : index
    %c0_183 = arith.constant 0 : index
    %c0_184 = arith.constant 0 : index
    %c0_185 = arith.constant 0 : index
    %356 = vector.load %arg21[%c0_182, %c0_183, %c0_184, %c0_185] : memref<1x3x32x32xf32, #tpu.memory_space<vmem>>, vector<1x1x32x32xf32>
    %357 = vector.shape_cast %356 : vector<1x1x32x32xf32> to vector<32x32xf32>
    %c0_186 = arith.constant 0 : index
    %c0_187 = arith.constant 0 : index
    %c0_188 = arith.constant 0 : index
    %c0_189 = arith.constant 0 : index
    %358 = vector.load %arg22[%c0_186, %c0_187, %c0_188, %c0_189] : memref<1x3x32x32xf32, #tpu.memory_space<vmem>>, vector<1x1x32x32xf32>
    %359 = vector.shape_cast %358 : vector<1x1x32x32xf32> to vector<32x32xf32>
    %c0_190 = arith.constant 0 : index
    %c0_191 = arith.constant 0 : index
    %c0_192 = arith.constant 0 : index
    %c0_193 = arith.constant 0 : index
    %360 = vector.load %arg23[%c0_190, %c0_191, %c0_192, %c0_193] : memref<1x3x32x128xf32, #tpu.memory_space<vmem>>, vector<1x1x32x128xf32>
    %361 = vector.shape_cast %360 : vector<1x1x32x128xf32> to vector<32x128xf32>
    %c0_194 = arith.constant 0 : index
    %c0_195 = arith.constant 0 : index
    %c0_196 = arith.constant 0 : index
    %c0_197 = arith.constant 0 : index
    %362 = vector.load %arg24[%c0_194, %c0_195, %c0_196, %c0_197] : memref<1x3x128x32xf32, #tpu.memory_space<vmem>>, vector<1x1x128x32xf32>
    %363 = vector.shape_cast %362 : vector<1x1x128x32xf32> to vector<128x32xf32>
    %c0_198 = arith.constant 0 : index
    %c0_199 = arith.constant 0 : index
    %c0_200 = arith.constant 0 : index
    %c0_201 = arith.constant 0 : index
    %364 = vector.load %arg25[%c0_198, %c0_199, %c0_200, %c0_201] : memref<1x3x1x128xf32, #tpu.memory_space<vmem>>, vector<1x1x1x128xf32>
    %365 = vector.shape_cast %364 : vector<1x1x1x128xf32> to vector<1x128xf32>
    %c0_202 = arith.constant 0 : index
    %c0_203 = arith.constant 0 : index
    %c0_204 = arith.constant 0 : index
    %c0_205 = arith.constant 0 : index
    %366 = vector.load %arg26[%c0_202, %c0_203, %c0_204, %c0_205] : memref<1x3x16x32xf32, #tpu.memory_space<vmem>>, vector<1x1x16x32xf32>
    %367 = vector.shape_cast %366 : vector<1x1x16x32xf32> to vector<16x32xf32>
    %368 = vector.extract_strided_slice %367 {offsets = [0, 0], sizes = [1, 32], strides = [1, 1]} : vector<16x32xf32> to vector<1x32xf32>
    %369 = vector.extract_strided_slice %367 {offsets = [1, 0], sizes = [1, 32], strides = [1, 1]} : vector<16x32xf32> to vector<1x32xf32>
    %370 = vector.extract_strided_slice %367 {offsets = [2, 0], sizes = [1, 32], strides = [1, 1]} : vector<16x32xf32> to vector<1x32xf32>
    %371 = vector.extract_strided_slice %367 {offsets = [3, 0], sizes = [1, 32], strides = [1, 1]} : vector<16x32xf32> to vector<1x32xf32>
    %372 = vector.extract_strided_slice %367 {offsets = [4, 0], sizes = [1, 32], strides = [1, 1]} : vector<16x32xf32> to vector<1x32xf32>
    %373 = vector.extract_strided_slice %367 {offsets = [5, 0], sizes = [1, 32], strides = [1, 1]} : vector<16x32xf32> to vector<1x32xf32>
    %374 = vector.extract_strided_slice %367 {offsets = [6, 0], sizes = [1, 32], strides = [1, 1]} : vector<16x32xf32> to vector<1x32xf32>
    %375 = vector.extract_strided_slice %367 {offsets = [7, 0], sizes = [1, 32], strides = [1, 1]} : vector<16x32xf32> to vector<1x32xf32>
    %376 = vector.extract_strided_slice %367 {offsets = [8, 0], sizes = [1, 32], strides = [1, 1]} : vector<16x32xf32> to vector<1x32xf32>
    %cst_206 = arith.constant dense<0.000000e+00> : vector<16xf32>
    %377 = vector.multi_reduction <add>, %351, %cst_206 [1] : vector<16x32xf32> to vector<16xf32>
    %378 = vector.shape_cast %377 : vector<16xf32> to vector<16x1xf32>
    %cst_207 = arith.constant 3.200000e+01 : f32
    %379 = vector.broadcast %cst_207 : f32 to vector<16x1xf32>
    %380 = arith.divf %378, %379 : vector<16x1xf32>
    %381 = vector.broadcast %380 : vector<16x1xf32> to vector<16x32xf32>
    %382 = arith.subf %351, %381 : vector<16x32xf32>
    %383 = arith.mulf %382, %382 : vector<16x32xf32>
    %cst_208 = arith.constant dense<0.000000e+00> : vector<16xf32>
    %384 = vector.multi_reduction <add>, %383, %cst_208 [1] : vector<16x32xf32> to vector<16xf32>
    %385 = vector.shape_cast %384 : vector<16xf32> to vector<16x1xf32>
    %cst_209 = arith.constant 3.200000e+01 : f32
    %386 = vector.broadcast %cst_209 : f32 to vector<16x1xf32>
    %387 = arith.divf %385, %386 : vector<16x1xf32>
    %388 = vector.broadcast %380 : vector<16x1xf32> to vector<16x32xf32>
    %389 = arith.subf %351, %388 : vector<16x32xf32>
    %cst_210 = arith.constant 9.99999974E-6 : f32
    %390 = vector.broadcast %cst_210 : f32 to vector<16x1xf32>
    %391 = arith.addf %387, %390 : vector<16x1xf32>
    %392 = math.rsqrt %391 : vector<16x1xf32>
    %393 = vector.broadcast %392 : vector<16x1xf32> to vector<16x32xf32>
    %394 = arith.mulf %389, %393 : vector<16x32xf32>
    %395 = vector.broadcast %368 : vector<1x32xf32> to vector<16x32xf32>
    %396 = arith.mulf %394, %395 : vector<16x32xf32>
    %397 = vector.broadcast %369 : vector<1x32xf32> to vector<16x32xf32>
    %398 = arith.addf %396, %397 : vector<16x32xf32>
    %cst_211 = arith.constant dense<0.000000e+00> : vector<16x32xf32>
    %399 = tpu.matmul %398, %353, %cst_211 {dimension_numbers = #tpu.dot_dimension_numbers<[1], [0], [0], [1], [0, 0, 1, 1], [], []>} : vector<16x32xf32>, vector<32x32xf32>, vector<16x32xf32> -> vector<16x32xf32>
    %400 = vector.broadcast %370 : vector<1x32xf32> to vector<16x32xf32>
    %401 = arith.addf %399, %400 : vector<16x32xf32>
    %cst_212 = arith.constant 0.353553385 : f32
    %402 = vector.broadcast %cst_212 : f32 to vector<16x32xf32>
    %403 = arith.mulf %401, %402 : vector<16x32xf32>
    %cst_213 = arith.constant dense<0.000000e+00> : vector<16x32xf32>
    %404 = tpu.matmul %398, %355, %cst_213 {dimension_numbers = #tpu.dot_dimension_numbers<[1], [0], [0], [1], [0, 0, 1, 1], [], []>} : vector<16x32xf32>, vector<32x32xf32>, vector<16x32xf32> -> vector<16x32xf32>
    %405 = vector.broadcast %371 : vector<1x32xf32> to vector<16x32xf32>
    %406 = arith.addf %404, %405 : vector<16x32xf32>
    %cst_214 = arith.constant dense<0.000000e+00> : vector<16x32xf32>
    %407 = tpu.matmul %398, %357, %cst_214 {dimension_numbers = #tpu.dot_dimension_numbers<[1], [0], [0], [1], [0, 0, 1, 1], [], []>} : vector<16x32xf32>, vector<32x32xf32>, vector<16x32xf32> -> vector<16x32xf32>
    %408 = vector.broadcast %372 : vector<1x32xf32> to vector<16x32xf32>
    %409 = arith.addf %407, %408 : vector<16x32xf32>
    %410 = tpu.concatenate %403, %403, %403, %403 in 0 : vector<16x32xf32>, vector<16x32xf32>, vector<16x32xf32>, vector<16x32xf32> -> vector<64x32xf32>
    %411 = arith.mulf %410, %3 : vector<64x32xf32>
    "tpu.trace_start"() <{level = 10 : i32, message = "nd,kd->nk"}> : () -> ()
    %cst_215 = arith.constant dense<0.000000e+00> : vector<64x16xf32>
    %412 = tpu.matmul %411, %406, %cst_215 {dimension_numbers = #tpu.dot_dimension_numbers<[1], [1], [0], [0], [0, 0, 1, 0], [], []>} : vector<64x32xf32>, vector<16x32xf32>, vector<64x16xf32> -> vector<64x16xf32>
    "tpu.trace_stop"() : () -> ()
    %413 = arith.addf %412, %1 : vector<64x16xf32>
    %cst_216 = arith.constant dense<0xFF800000> : vector<64xf32>
    %414 = vector.multi_reduction <maximumf>, %413, %cst_216 [1] : vector<64x16xf32> to vector<64xf32>
    %415 = vector.shape_cast %414 : vector<64xf32> to vector<64x1xf32>
    %416 = vector.broadcast %415 : vector<64x1xf32> to vector<64x16xf32>
    %417 = arith.subf %413, %416 : vector<64x16xf32>
    %418 = math.exp %417 : vector<64x16xf32>
    %cst_217 = arith.constant dense<0.000000e+00> : vector<64xf32>
    %419 = vector.multi_reduction <add>, %418, %cst_217 [1] : vector<64x16xf32> to vector<64xf32>
    %420 = vector.shape_cast %419 : vector<64xf32> to vector<64x1xf32>
    %421 = tpu.reciprocal %420 {approx = true} : vector<64x1xf32> -> vector<64x1xf32>
    %422 = vector.broadcast %421 : vector<64x1xf32> to vector<64x16xf32>
    %423 = arith.mulf %418, %422 : vector<64x16xf32>
    %cst_218 = arith.constant dense<0.000000e+00> : vector<64x32xf32>
    %424 = tpu.matmul %423, %409, %cst_218 {dimension_numbers = #tpu.dot_dimension_numbers<[1], [0], [0], [1], [0, 0, 1, 1], [], []>} : vector<64x16xf32>, vector<16x32xf32>, vector<64x32xf32> -> vector<64x32xf32>
    %425 = arith.mulf %424, %3 : vector<64x32xf32>
    %426 = vector.extract_strided_slice %425 {offsets = [0, 0], sizes = [16, 32], strides = [1, 1]} : vector<64x32xf32> to vector<16x32xf32>
    %427 = vector.extract_strided_slice %425 {offsets = [16, 0], sizes = [16, 32], strides = [1, 1]} : vector<64x32xf32> to vector<16x32xf32>
    %428 = arith.addf %426, %427 : vector<16x32xf32>
    %429 = vector.extract_strided_slice %425 {offsets = [32, 0], sizes = [16, 32], strides = [1, 1]} : vector<64x32xf32> to vector<16x32xf32>
    %430 = arith.addf %428, %429 : vector<16x32xf32>
    %431 = vector.extract_strided_slice %425 {offsets = [48, 0], sizes = [16, 32], strides = [1, 1]} : vector<64x32xf32> to vector<16x32xf32>
    %432 = arith.addf %430, %431 : vector<16x32xf32>
    %cst_219 = arith.constant dense<0.000000e+00> : vector<16x32xf32>
    %433 = tpu.matmul %432, %359, %cst_219 {dimension_numbers = #tpu.dot_dimension_numbers<[1], [0], [0], [1], [0, 0, 1, 1], [], []>} : vector<16x32xf32>, vector<32x32xf32>, vector<16x32xf32> -> vector<16x32xf32>
    %434 = arith.addf %351, %433 : vector<16x32xf32>
    %435 = vector.broadcast %373 : vector<1x32xf32> to vector<16x32xf32>
    %436 = arith.addf %434, %435 : vector<16x32xf32>
    %cst_220 = arith.constant dense<0.000000e+00> : vector<16xf32>
    %437 = vector.multi_reduction <add>, %436, %cst_220 [1] : vector<16x32xf32> to vector<16xf32>
    %438 = vector.shape_cast %437 : vector<16xf32> to vector<16x1xf32>
    %cst_221 = arith.constant 3.200000e+01 : f32
    %439 = vector.broadcast %cst_221 : f32 to vector<16x1xf32>
    %440 = arith.divf %438, %439 : vector<16x1xf32>
    %441 = vector.broadcast %440 : vector<16x1xf32> to vector<16x32xf32>
    %442 = arith.subf %436, %441 : vector<16x32xf32>
    %443 = arith.mulf %442, %442 : vector<16x32xf32>
    %cst_222 = arith.constant dense<0.000000e+00> : vector<16xf32>
    %444 = vector.multi_reduction <add>, %443, %cst_222 [1] : vector<16x32xf32> to vector<16xf32>
    %445 = vector.shape_cast %444 : vector<16xf32> to vector<16x1xf32>
    %cst_223 = arith.constant 3.200000e+01 : f32
    %446 = vector.broadcast %cst_223 : f32 to vector<16x1xf32>
    %447 = arith.divf %445, %446 : vector<16x1xf32>
    %448 = vector.broadcast %440 : vector<16x1xf32> to vector<16x32xf32>
    %449 = arith.subf %436, %448 : vector<16x32xf32>
    %cst_224 = arith.constant 9.99999974E-6 : f32
    %450 = vector.broadcast %cst_224 : f32 to vector<16x1xf32>
    %451 = arith.addf %447, %450 : vector<16x1xf32>
    %452 = math.rsqrt %451 : vector<16x1xf32>
    %453 = vector.broadcast %452 : vector<16x1xf32> to vector<16x32xf32>
    %454 = arith.mulf %449, %453 : vector<16x32xf32>
    %455 = vector.broadcast %374 : vector<1x32xf32> to vector<16x32xf32>
    %456 = arith.mulf %454, %455 : vector<16x32xf32>
    %457 = vector.broadcast %375 : vector<1x32xf32> to vector<16x32xf32>
    %458 = arith.addf %456, %457 : vector<16x32xf32>
    %cst_225 = arith.constant dense<0.000000e+00> : vector<16x128xf32>
    %459 = tpu.matmul %458, %361, %cst_225 {dimension_numbers = #tpu.dot_dimension_numbers<[1], [0], [0], [1], [0, 0, 1, 1], [], []>} : vector<16x32xf32>, vector<32x128xf32>, vector<16x128xf32> -> vector<16x128xf32>
    %460 = vector.broadcast %365 : vector<1x128xf32> to vector<16x128xf32>
    %461 = arith.addf %459, %460 : vector<16x128xf32>
    %cst_226 = arith.constant 0.000000e+00 : f32
    %462 = vector.broadcast %cst_226 : f32 to vector<16x128xf32>
    %463 = arith.maximumf %461, %462 : vector<16x128xf32>
    %cst_227 = arith.constant dense<0.000000e+00> : vector<16x32xf32>
    %464 = tpu.matmul %463, %363, %cst_227 {dimension_numbers = #tpu.dot_dimension_numbers<[1], [0], [0], [1], [0, 0, 1, 1], [], []>} : vector<16x128xf32>, vector<128x32xf32>, vector<16x32xf32> -> vector<16x32xf32>
    %465 = arith.addf %436, %464 : vector<16x32xf32>
    %466 = vector.broadcast %376 : vector<1x32xf32> to vector<16x32xf32>
    %467 = arith.addf %465, %466 : vector<16x32xf32>
    %c0_228 = arith.constant 0 : index
    %c1_229 = arith.constant 1 : index
    %c0_230 = arith.constant 0 : index
    %c0_231 = arith.constant 0 : index
    %468 = vector.load %arg19[%c0_228, %c1_229, %c0_230, %c0_231] : memref<1x3x32x32xf32, #tpu.memory_space<vmem>>, vector<1x1x32x32xf32>
    %469 = vector.shape_cast %468 : vector<1x1x32x32xf32> to vector<32x32xf32>
    %c0_232 = arith.constant 0 : index
    %c1_233 = arith.constant 1 : index
    %c0_234 = arith.constant 0 : index
    %c0_235 = arith.constant 0 : index
    %470 = vector.load %arg20[%c0_232, %c1_233, %c0_234, %c0_235] : memref<1x3x32x32xf32, #tpu.memory_space<vmem>>, vector<1x1x32x32xf32>
    %471 = vector.shape_cast %470 : vector<1x1x32x32xf32> to vector<32x32xf32>
    %c0_236 = arith.constant 0 : index
    %c1_237 = arith.constant 1 : index
    %c0_238 = arith.constant 0 : index
    %c0_239 = arith.constant 0 : index
    %472 = vector.load %arg21[%c0_236, %c1_237, %c0_238, %c0_239] : memref<1x3x32x32xf32, #tpu.memory_space<vmem>>, vector<1x1x32x32xf32>
    %473 = vector.shape_cast %472 : vector<1x1x32x32xf32> to vector<32x32xf32>
    %c0_240 = arith.constant 0 : index
    %c1_241 = arith.constant 1 : index
    %c0_242 = arith.constant 0 : index
    %c0_243 = arith.constant 0 : index
    %474 = vector.load %arg22[%c0_240, %c1_241, %c0_242, %c0_243] : memref<1x3x32x32xf32, #tpu.memory_space<vmem>>, vector<1x1x32x32xf32>
    %475 = vector.shape_cast %474 : vector<1x1x32x32xf32> to vector<32x32xf32>
    %c0_244 = arith.constant 0 : index
    %c1_245 = arith.constant 1 : index
    %c0_246 = arith.constant 0 : index
    %c0_247 = arith.constant 0 : index
    %476 = vector.load %arg23[%c0_244, %c1_245, %c0_246, %c0_247] : memref<1x3x32x128xf32, #tpu.memory_space<vmem>>, vector<1x1x32x128xf32>
    %477 = vector.shape_cast %476 : vector<1x1x32x128xf32> to vector<32x128xf32>
    %c0_248 = arith.constant 0 : index
    %c1_249 = arith.constant 1 : index
    %c0_250 = arith.constant 0 : index
    %c0_251 = arith.constant 0 : index
    %478 = vector.load %arg24[%c0_248, %c1_249, %c0_250, %c0_251] : memref<1x3x128x32xf32, #tpu.memory_space<vmem>>, vector<1x1x128x32xf32>
    %479 = vector.shape_cast %478 : vector<1x1x128x32xf32> to vector<128x32xf32>
    %c0_252 = arith.constant 0 : index
    %c1_253 = arith.constant 1 : index
    %c0_254 = arith.constant 0 : index
    %c0_255 = arith.constant 0 : index
    %480 = vector.load %arg25[%c0_252, %c1_253, %c0_254, %c0_255] : memref<1x3x1x128xf32, #tpu.memory_space<vmem>>, vector<1x1x1x128xf32>
    %481 = vector.shape_cast %480 : vector<1x1x1x128xf32> to vector<1x128xf32>
    %c0_256 = arith.constant 0 : index
    %c1_257 = arith.constant 1 : index
    %c0_258 = arith.constant 0 : index
    %c0_259 = arith.constant 0 : index
    %482 = vector.load %arg26[%c0_256, %c1_257, %c0_258, %c0_259] : memref<1x3x16x32xf32, #tpu.memory_space<vmem>>, vector<1x1x16x32xf32>
    %483 = vector.shape_cast %482 : vector<1x1x16x32xf32> to vector<16x32xf32>
    %484 = vector.extract_strided_slice %483 {offsets = [0, 0], sizes = [1, 32], strides = [1, 1]} : vector<16x32xf32> to vector<1x32xf32>
    %485 = vector.extract_strided_slice %483 {offsets = [1, 0], sizes = [1, 32], strides = [1, 1]} : vector<16x32xf32> to vector<1x32xf32>
    %486 = vector.extract_strided_slice %483 {offsets = [2, 0], sizes = [1, 32], strides = [1, 1]} : vector<16x32xf32> to vector<1x32xf32>
    %487 = vector.extract_strided_slice %483 {offsets = [3, 0], sizes = [1, 32], strides = [1, 1]} : vector<16x32xf32> to vector<1x32xf32>
    %488 = vector.extract_strided_slice %483 {offsets = [4, 0], sizes = [1, 32], strides = [1, 1]} : vector<16x32xf32> to vector<1x32xf32>
    %489 = vector.extract_strided_slice %483 {offsets = [5, 0], sizes = [1, 32], strides = [1, 1]} : vector<16x32xf32> to vector<1x32xf32>
    %490 = vector.extract_strided_slice %483 {offsets = [6, 0], sizes = [1, 32], strides = [1, 1]} : vector<16x32xf32> to vector<1x32xf32>
    %491 = vector.extract_strided_slice %483 {offsets = [7, 0], sizes = [1, 32], strides = [1, 1]} : vector<16x32xf32> to vector<1x32xf32>
    %492 = vector.extract_strided_slice %483 {offsets = [8, 0], sizes = [1, 32], strides = [1, 1]} : vector<16x32xf32> to vector<1x32xf32>
    %cst_260 = arith.constant dense<0.000000e+00> : vector<16xf32>
    %493 = vector.multi_reduction <add>, %467, %cst_260 [1] : vector<16x32xf32> to vector<16xf32>
    %494 = vector.shape_cast %493 : vector<16xf32> to vector<16x1xf32>
    %cst_261 = arith.constant 3.200000e+01 : f32
    %495 = vector.broadcast %cst_261 : f32 to vector<16x1xf32>
    %496 = arith.divf %494, %495 : vector<16x1xf32>
    %497 = vector.broadcast %496 : vector<16x1xf32> to vector<16x32xf32>
    %498 = arith.subf %467, %497 : vector<16x32xf32>
    %499 = arith.mulf %498, %498 : vector<16x32xf32>
    %cst_262 = arith.constant dense<0.000000e+00> : vector<16xf32>
    %500 = vector.multi_reduction <add>, %499, %cst_262 [1] : vector<16x32xf32> to vector<16xf32>
    %501 = vector.shape_cast %500 : vector<16xf32> to vector<16x1xf32>
    %cst_263 = arith.constant 3.200000e+01 : f32
    %502 = vector.broadcast %cst_263 : f32 to vector<16x1xf32>
    %503 = arith.divf %501, %502 : vector<16x1xf32>
    %504 = vector.broadcast %496 : vector<16x1xf32> to vector<16x32xf32>
    %505 = arith.subf %467, %504 : vector<16x32xf32>
    %cst_264 = arith.constant 9.99999974E-6 : f32
    %506 = vector.broadcast %cst_264 : f32 to vector<16x1xf32>
    %507 = arith.addf %503, %506 : vector<16x1xf32>
    %508 = math.rsqrt %507 : vector<16x1xf32>
    %509 = vector.broadcast %508 : vector<16x1xf32> to vector<16x32xf32>
    %510 = arith.mulf %505, %509 : vector<16x32xf32>
    %511 = vector.broadcast %484 : vector<1x32xf32> to vector<16x32xf32>
    %512 = arith.mulf %510, %511 : vector<16x32xf32>
    %513 = vector.broadcast %485 : vector<1x32xf32> to vector<16x32xf32>
    %514 = arith.addf %512, %513 : vector<16x32xf32>
    %cst_265 = arith.constant dense<0.000000e+00> : vector<16x32xf32>
    %515 = tpu.matmul %514, %469, %cst_265 {dimension_numbers = #tpu.dot_dimension_numbers<[1], [0], [0], [1], [0, 0, 1, 1], [], []>} : vector<16x32xf32>, vector<32x32xf32>, vector<16x32xf32> -> vector<16x32xf32>
    %516 = vector.broadcast %486 : vector<1x32xf32> to vector<16x32xf32>
    %517 = arith.addf %515, %516 : vector<16x32xf32>
    %cst_266 = arith.constant 0.353553385 : f32
    %518 = vector.broadcast %cst_266 : f32 to vector<16x32xf32>
    %519 = arith.mulf %517, %518 : vector<16x32xf32>
    %cst_267 = arith.constant dense<0.000000e+00> : vector<16x32xf32>
    %520 = tpu.matmul %514, %471, %cst_267 {dimension_numbers = #tpu.dot_dimension_numbers<[1], [0], [0], [1], [0, 0, 1, 1], [], []>} : vector<16x32xf32>, vector<32x32xf32>, vector<16x32xf32> -> vector<16x32xf32>
    %521 = vector.broadcast %487 : vector<1x32xf32> to vector<16x32xf32>
    %522 = arith.addf %520, %521 : vector<16x32xf32>
    %cst_268 = arith.constant dense<0.000000e+00> : vector<16x32xf32>
    %523 = tpu.matmul %514, %473, %cst_268 {dimension_numbers = #tpu.dot_dimension_numbers<[1], [0], [0], [1], [0, 0, 1, 1], [], []>} : vector<16x32xf32>, vector<32x32xf32>, vector<16x32xf32> -> vector<16x32xf32>
    %524 = vector.broadcast %488 : vector<1x32xf32> to vector<16x32xf32>
    %525 = arith.addf %523, %524 : vector<16x32xf32>
    %526 = tpu.concatenate %519, %519, %519, %519 in 0 : vector<16x32xf32>, vector<16x32xf32>, vector<16x32xf32>, vector<16x32xf32> -> vector<64x32xf32>
    %527 = arith.mulf %526, %3 : vector<64x32xf32>
    "tpu.trace_start"() <{level = 10 : i32, message = "nd,kd->nk"}> : () -> ()
    %cst_269 = arith.constant dense<0.000000e+00> : vector<64x16xf32>
    %528 = tpu.matmul %527, %522, %cst_269 {dimension_numbers = #tpu.dot_dimension_numbers<[1], [1], [0], [0], [0, 0, 1, 0], [], []>} : vector<64x32xf32>, vector<16x32xf32>, vector<64x16xf32> -> vector<64x16xf32>
    "tpu.trace_stop"() : () -> ()
    %529 = arith.addf %528, %1 : vector<64x16xf32>
    %cst_270 = arith.constant dense<0xFF800000> : vector<64xf32>
    %530 = vector.multi_reduction <maximumf>, %529, %cst_270 [1] : vector<64x16xf32> to vector<64xf32>
    %531 = vector.shape_cast %530 : vector<64xf32> to vector<64x1xf32>
    %532 = vector.broadcast %531 : vector<64x1xf32> to vector<64x16xf32>
    %533 = arith.subf %529, %532 : vector<64x16xf32>
    %534 = math.exp %533 : vector<64x16xf32>
    %cst_271 = arith.constant dense<0.000000e+00> : vector<64xf32>
    %535 = vector.multi_reduction <add>, %534, %cst_271 [1] : vector<64x16xf32> to vector<64xf32>
    %536 = vector.shape_cast %535 : vector<64xf32> to vector<64x1xf32>
    %537 = tpu.reciprocal %536 {approx = true} : vector<64x1xf32> -> vector<64x1xf32>
    %538 = vector.broadcast %537 : vector<64x1xf32> to vector<64x16xf32>
    %539 = arith.mulf %534, %538 : vector<64x16xf32>
    %cst_272 = arith.constant dense<0.000000e+00> : vector<64x32xf32>
    %540 = tpu.matmul %539, %525, %cst_272 {dimension_numbers = #tpu.dot_dimension_numbers<[1], [0], [0], [1], [0, 0, 1, 1], [], []>} : vector<64x16xf32>, vector<16x32xf32>, vector<64x32xf32> -> vector<64x32xf32>
    %541 = arith.mulf %540, %3 : vector<64x32xf32>
    %542 = vector.extract_strided_slice %541 {offsets = [0, 0], sizes = [16, 32], strides = [1, 1]} : vector<64x32xf32> to vector<16x32xf32>
    %543 = vector.extract_strided_slice %541 {offsets = [16, 0], sizes = [16, 32], strides = [1, 1]} : vector<64x32xf32> to vector<16x32xf32>
    %544 = arith.addf %542, %543 : vector<16x32xf32>
    %545 = vector.extract_strided_slice %541 {offsets = [32, 0], sizes = [16, 32], strides = [1, 1]} : vector<64x32xf32> to vector<16x32xf32>
    %546 = arith.addf %544, %545 : vector<16x32xf32>
    %547 = vector.extract_strided_slice %541 {offsets = [48, 0], sizes = [16, 32], strides = [1, 1]} : vector<64x32xf32> to vector<16x32xf32>
    %548 = arith.addf %546, %547 : vector<16x32xf32>
    %cst_273 = arith.constant dense<0.000000e+00> : vector<16x32xf32>
    %549 = tpu.matmul %548, %475, %cst_273 {dimension_numbers = #tpu.dot_dimension_numbers<[1], [0], [0], [1], [0, 0, 1, 1], [], []>} : vector<16x32xf32>, vector<32x32xf32>, vector<16x32xf32> -> vector<16x32xf32>
    %550 = arith.addf %467, %549 : vector<16x32xf32>
    %551 = vector.broadcast %489 : vector<1x32xf32> to vector<16x32xf32>
    %552 = arith.addf %550, %551 : vector<16x32xf32>
    %cst_274 = arith.constant dense<0.000000e+00> : vector<16xf32>
    %553 = vector.multi_reduction <add>, %552, %cst_274 [1] : vector<16x32xf32> to vector<16xf32>
    %554 = vector.shape_cast %553 : vector<16xf32> to vector<16x1xf32>
    %cst_275 = arith.constant 3.200000e+01 : f32
    %555 = vector.broadcast %cst_275 : f32 to vector<16x1xf32>
    %556 = arith.divf %554, %555 : vector<16x1xf32>
    %557 = vector.broadcast %556 : vector<16x1xf32> to vector<16x32xf32>
    %558 = arith.subf %552, %557 : vector<16x32xf32>
    %559 = arith.mulf %558, %558 : vector<16x32xf32>
    %cst_276 = arith.constant dense<0.000000e+00> : vector<16xf32>
    %560 = vector.multi_reduction <add>, %559, %cst_276 [1] : vector<16x32xf32> to vector<16xf32>
    %561 = vector.shape_cast %560 : vector<16xf32> to vector<16x1xf32>
    %cst_277 = arith.constant 3.200000e+01 : f32
    %562 = vector.broadcast %cst_277 : f32 to vector<16x1xf32>
    %563 = arith.divf %561, %562 : vector<16x1xf32>
    %564 = vector.broadcast %556 : vector<16x1xf32> to vector<16x32xf32>
    %565 = arith.subf %552, %564 : vector<16x32xf32>
    %cst_278 = arith.constant 9.99999974E-6 : f32
    %566 = vector.broadcast %cst_278 : f32 to vector<16x1xf32>
    %567 = arith.addf %563, %566 : vector<16x1xf32>
    %568 = math.rsqrt %567 : vector<16x1xf32>
    %569 = vector.broadcast %568 : vector<16x1xf32> to vector<16x32xf32>
    %570 = arith.mulf %565, %569 : vector<16x32xf32>
    %571 = vector.broadcast %490 : vector<1x32xf32> to vector<16x32xf32>
    %572 = arith.mulf %570, %571 : vector<16x32xf32>
    %573 = vector.broadcast %491 : vector<1x32xf32> to vector<16x32xf32>
    %574 = arith.addf %572, %573 : vector<16x32xf32>
    %cst_279 = arith.constant dense<0.000000e+00> : vector<16x128xf32>
    %575 = tpu.matmul %574, %477, %cst_279 {dimension_numbers = #tpu.dot_dimension_numbers<[1], [0], [0], [1], [0, 0, 1, 1], [], []>} : vector<16x32xf32>, vector<32x128xf32>, vector<16x128xf32> -> vector<16x128xf32>
    %576 = vector.broadcast %481 : vector<1x128xf32> to vector<16x128xf32>
    %577 = arith.addf %575, %576 : vector<16x128xf32>
    %cst_280 = arith.constant 0.000000e+00 : f32
    %578 = vector.broadcast %cst_280 : f32 to vector<16x128xf32>
    %579 = arith.maximumf %577, %578 : vector<16x128xf32>
    %cst_281 = arith.constant dense<0.000000e+00> : vector<16x32xf32>
    %580 = tpu.matmul %579, %479, %cst_281 {dimension_numbers = #tpu.dot_dimension_numbers<[1], [0], [0], [1], [0, 0, 1, 1], [], []>} : vector<16x128xf32>, vector<128x32xf32>, vector<16x32xf32> -> vector<16x32xf32>
    %581 = arith.addf %552, %580 : vector<16x32xf32>
    %582 = vector.broadcast %492 : vector<1x32xf32> to vector<16x32xf32>
    %583 = arith.addf %581, %582 : vector<16x32xf32>
    %c0_282 = arith.constant 0 : index
    %c2 = arith.constant 2 : index
    %c0_283 = arith.constant 0 : index
    %c0_284 = arith.constant 0 : index
    %584 = vector.load %arg19[%c0_282, %c2, %c0_283, %c0_284] : memref<1x3x32x32xf32, #tpu.memory_space<vmem>>, vector<1x1x32x32xf32>
    %585 = vector.shape_cast %584 : vector<1x1x32x32xf32> to vector<32x32xf32>
    %c0_285 = arith.constant 0 : index
    %c2_286 = arith.constant 2 : index
    %c0_287 = arith.constant 0 : index
    %c0_288 = arith.constant 0 : index
    %586 = vector.load %arg20[%c0_285, %c2_286, %c0_287, %c0_288] : memref<1x3x32x32xf32, #tpu.memory_space<vmem>>, vector<1x1x32x32xf32>
    %587 = vector.shape_cast %586 : vector<1x1x32x32xf32> to vector<32x32xf32>
    %c0_289 = arith.constant 0 : index
    %c2_290 = arith.constant 2 : index
    %c0_291 = arith.constant 0 : index
    %c0_292 = arith.constant 0 : index
    %588 = vector.load %arg21[%c0_289, %c2_290, %c0_291, %c0_292] : memref<1x3x32x32xf32, #tpu.memory_space<vmem>>, vector<1x1x32x32xf32>
    %589 = vector.shape_cast %588 : vector<1x1x32x32xf32> to vector<32x32xf32>
    %c0_293 = arith.constant 0 : index
    %c2_294 = arith.constant 2 : index
    %c0_295 = arith.constant 0 : index
    %c0_296 = arith.constant 0 : index
    %590 = vector.load %arg22[%c0_293, %c2_294, %c0_295, %c0_296] : memref<1x3x32x32xf32, #tpu.memory_space<vmem>>, vector<1x1x32x32xf32>
    %591 = vector.shape_cast %590 : vector<1x1x32x32xf32> to vector<32x32xf32>
    %c0_297 = arith.constant 0 : index
    %c2_298 = arith.constant 2 : index
    %c0_299 = arith.constant 0 : index
    %c0_300 = arith.constant 0 : index
    %592 = vector.load %arg23[%c0_297, %c2_298, %c0_299, %c0_300] : memref<1x3x32x128xf32, #tpu.memory_space<vmem>>, vector<1x1x32x128xf32>
    %593 = vector.shape_cast %592 : vector<1x1x32x128xf32> to vector<32x128xf32>
    %c0_301 = arith.constant 0 : index
    %c2_302 = arith.constant 2 : index
    %c0_303 = arith.constant 0 : index
    %c0_304 = arith.constant 0 : index
    %594 = vector.load %arg24[%c0_301, %c2_302, %c0_303, %c0_304] : memref<1x3x128x32xf32, #tpu.memory_space<vmem>>, vector<1x1x128x32xf32>
    %595 = vector.shape_cast %594 : vector<1x1x128x32xf32> to vector<128x32xf32>
    %c0_305 = arith.constant 0 : index
    %c2_306 = arith.constant 2 : index
    %c0_307 = arith.constant 0 : index
    %c0_308 = arith.constant 0 : index
    %596 = vector.load %arg25[%c0_305, %c2_306, %c0_307, %c0_308] : memref<1x3x1x128xf32, #tpu.memory_space<vmem>>, vector<1x1x1x128xf32>
    %597 = vector.shape_cast %596 : vector<1x1x1x128xf32> to vector<1x128xf32>
    %c0_309 = arith.constant 0 : index
    %c2_310 = arith.constant 2 : index
    %c0_311 = arith.constant 0 : index
    %c0_312 = arith.constant 0 : index
    %598 = vector.load %arg26[%c0_309, %c2_310, %c0_311, %c0_312] : memref<1x3x16x32xf32, #tpu.memory_space<vmem>>, vector<1x1x16x32xf32>
    %599 = vector.shape_cast %598 : vector<1x1x16x32xf32> to vector<16x32xf32>
    %600 = vector.extract_strided_slice %599 {offsets = [0, 0], sizes = [1, 32], strides = [1, 1]} : vector<16x32xf32> to vector<1x32xf32>
    %601 = vector.extract_strided_slice %599 {offsets = [1, 0], sizes = [1, 32], strides = [1, 1]} : vector<16x32xf32> to vector<1x32xf32>
    %602 = vector.extract_strided_slice %599 {offsets = [2, 0], sizes = [1, 32], strides = [1, 1]} : vector<16x32xf32> to vector<1x32xf32>
    %603 = vector.extract_strided_slice %599 {offsets = [3, 0], sizes = [1, 32], strides = [1, 1]} : vector<16x32xf32> to vector<1x32xf32>
    %604 = vector.extract_strided_slice %599 {offsets = [4, 0], sizes = [1, 32], strides = [1, 1]} : vector<16x32xf32> to vector<1x32xf32>
    %605 = vector.extract_strided_slice %599 {offsets = [5, 0], sizes = [1, 32], strides = [1, 1]} : vector<16x32xf32> to vector<1x32xf32>
    %606 = vector.extract_strided_slice %599 {offsets = [6, 0], sizes = [1, 32], strides = [1, 1]} : vector<16x32xf32> to vector<1x32xf32>
    %607 = vector.extract_strided_slice %599 {offsets = [7, 0], sizes = [1, 32], strides = [1, 1]} : vector<16x32xf32> to vector<1x32xf32>
    %608 = vector.extract_strided_slice %599 {offsets = [8, 0], sizes = [1, 32], strides = [1, 1]} : vector<16x32xf32> to vector<1x32xf32>
    %cst_313 = arith.constant dense<0.000000e+00> : vector<16xf32>
    %609 = vector.multi_reduction <add>, %583, %cst_313 [1] : vector<16x32xf32> to vector<16xf32>
    %610 = vector.shape_cast %609 : vector<16xf32> to vector<16x1xf32>
    %cst_314 = arith.constant 3.200000e+01 : f32
    %611 = vector.broadcast %cst_314 : f32 to vector<16x1xf32>
    %612 = arith.divf %610, %611 : vector<16x1xf32>
    %613 = vector.broadcast %612 : vector<16x1xf32> to vector<16x32xf32>
    %614 = arith.subf %583, %613 : vector<16x32xf32>
    %615 = arith.mulf %614, %614 : vector<16x32xf32>
    %cst_315 = arith.constant dense<0.000000e+00> : vector<16xf32>
    %616 = vector.multi_reduction <add>, %615, %cst_315 [1] : vector<16x32xf32> to vector<16xf32>
    %617 = vector.shape_cast %616 : vector<16xf32> to vector<16x1xf32>
    %cst_316 = arith.constant 3.200000e+01 : f32
    %618 = vector.broadcast %cst_316 : f32 to vector<16x1xf32>
    %619 = arith.divf %617, %618 : vector<16x1xf32>
    %620 = vector.broadcast %612 : vector<16x1xf32> to vector<16x32xf32>
    %621 = arith.subf %583, %620 : vector<16x32xf32>
    %cst_317 = arith.constant 9.99999974E-6 : f32
    %622 = vector.broadcast %cst_317 : f32 to vector<16x1xf32>
    %623 = arith.addf %619, %622 : vector<16x1xf32>
    %624 = math.rsqrt %623 : vector<16x1xf32>
    %625 = vector.broadcast %624 : vector<16x1xf32> to vector<16x32xf32>
    %626 = arith.mulf %621, %625 : vector<16x32xf32>
    %627 = vector.broadcast %600 : vector<1x32xf32> to vector<16x32xf32>
    %628 = arith.mulf %626, %627 : vector<16x32xf32>
    %629 = vector.broadcast %601 : vector<1x32xf32> to vector<16x32xf32>
    %630 = arith.addf %628, %629 : vector<16x32xf32>
    %cst_318 = arith.constant dense<0.000000e+00> : vector<16x32xf32>
    %631 = tpu.matmul %630, %585, %cst_318 {dimension_numbers = #tpu.dot_dimension_numbers<[1], [0], [0], [1], [0, 0, 1, 1], [], []>} : vector<16x32xf32>, vector<32x32xf32>, vector<16x32xf32> -> vector<16x32xf32>
    %632 = vector.broadcast %602 : vector<1x32xf32> to vector<16x32xf32>
    %633 = arith.addf %631, %632 : vector<16x32xf32>
    %cst_319 = arith.constant 0.353553385 : f32
    %634 = vector.broadcast %cst_319 : f32 to vector<16x32xf32>
    %635 = arith.mulf %633, %634 : vector<16x32xf32>
    %cst_320 = arith.constant dense<0.000000e+00> : vector<16x32xf32>
    %636 = tpu.matmul %630, %587, %cst_320 {dimension_numbers = #tpu.dot_dimension_numbers<[1], [0], [0], [1], [0, 0, 1, 1], [], []>} : vector<16x32xf32>, vector<32x32xf32>, vector<16x32xf32> -> vector<16x32xf32>
    %637 = vector.broadcast %603 : vector<1x32xf32> to vector<16x32xf32>
    %638 = arith.addf %636, %637 : vector<16x32xf32>
    %cst_321 = arith.constant dense<0.000000e+00> : vector<16x32xf32>
    %639 = tpu.matmul %630, %589, %cst_321 {dimension_numbers = #tpu.dot_dimension_numbers<[1], [0], [0], [1], [0, 0, 1, 1], [], []>} : vector<16x32xf32>, vector<32x32xf32>, vector<16x32xf32> -> vector<16x32xf32>
    %640 = vector.broadcast %604 : vector<1x32xf32> to vector<16x32xf32>
    %641 = arith.addf %639, %640 : vector<16x32xf32>
    %642 = tpu.concatenate %635, %635, %635, %635 in 0 : vector<16x32xf32>, vector<16x32xf32>, vector<16x32xf32>, vector<16x32xf32> -> vector<64x32xf32>
    %643 = arith.mulf %642, %3 : vector<64x32xf32>
    "tpu.trace_start"() <{level = 10 : i32, message = "nd,kd->nk"}> : () -> ()
    %cst_322 = arith.constant dense<0.000000e+00> : vector<64x16xf32>
    %644 = tpu.matmul %643, %638, %cst_322 {dimension_numbers = #tpu.dot_dimension_numbers<[1], [1], [0], [0], [0, 0, 1, 0], [], []>} : vector<64x32xf32>, vector<16x32xf32>, vector<64x16xf32> -> vector<64x16xf32>
    "tpu.trace_stop"() : () -> ()
    %645 = arith.addf %644, %1 : vector<64x16xf32>
    %cst_323 = arith.constant dense<0xFF800000> : vector<64xf32>
    %646 = vector.multi_reduction <maximumf>, %645, %cst_323 [1] : vector<64x16xf32> to vector<64xf32>
    %647 = vector.shape_cast %646 : vector<64xf32> to vector<64x1xf32>
    %648 = vector.broadcast %647 : vector<64x1xf32> to vector<64x16xf32>
    %649 = arith.subf %645, %648 : vector<64x16xf32>
    %650 = math.exp %649 : vector<64x16xf32>
    %cst_324 = arith.constant dense<0.000000e+00> : vector<64xf32>
    %651 = vector.multi_reduction <add>, %650, %cst_324 [1] : vector<64x16xf32> to vector<64xf32>
    %652 = vector.shape_cast %651 : vector<64xf32> to vector<64x1xf32>
    %653 = tpu.reciprocal %652 {approx = true} : vector<64x1xf32> -> vector<64x1xf32>
    %654 = vector.broadcast %653 : vector<64x1xf32> to vector<64x16xf32>
    %655 = arith.mulf %650, %654 : vector<64x16xf32>
    %cst_325 = arith.constant dense<0.000000e+00> : vector<64x32xf32>
    %656 = tpu.matmul %655, %641, %cst_325 {dimension_numbers = #tpu.dot_dimension_numbers<[1], [0], [0], [1], [0, 0, 1, 1], [], []>} : vector<64x16xf32>, vector<16x32xf32>, vector<64x32xf32> -> vector<64x32xf32>
    %657 = arith.mulf %656, %3 : vector<64x32xf32>
    %658 = vector.extract_strided_slice %657 {offsets = [0, 0], sizes = [16, 32], strides = [1, 1]} : vector<64x32xf32> to vector<16x32xf32>
    %659 = vector.extract_strided_slice %657 {offsets = [16, 0], sizes = [16, 32], strides = [1, 1]} : vector<64x32xf32> to vector<16x32xf32>
    %660 = arith.addf %658, %659 : vector<16x32xf32>
    %661 = vector.extract_strided_slice %657 {offsets = [32, 0], sizes = [16, 32], strides = [1, 1]} : vector<64x32xf32> to vector<16x32xf32>
    %662 = arith.addf %660, %661 : vector<16x32xf32>
    %663 = vector.extract_strided_slice %657 {offsets = [48, 0], sizes = [16, 32], strides = [1, 1]} : vector<64x32xf32> to vector<16x32xf32>
    %664 = arith.addf %662, %663 : vector<16x32xf32>
    %cst_326 = arith.constant dense<0.000000e+00> : vector<16x32xf32>
    %665 = tpu.matmul %664, %591, %cst_326 {dimension_numbers = #tpu.dot_dimension_numbers<[1], [0], [0], [1], [0, 0, 1, 1], [], []>} : vector<16x32xf32>, vector<32x32xf32>, vector<16x32xf32> -> vector<16x32xf32>
    %666 = arith.addf %583, %665 : vector<16x32xf32>
    %667 = vector.broadcast %605 : vector<1x32xf32> to vector<16x32xf32>
    %668 = arith.addf %666, %667 : vector<16x32xf32>
    %cst_327 = arith.constant dense<0.000000e+00> : vector<16xf32>
    %669 = vector.multi_reduction <add>, %668, %cst_327 [1] : vector<16x32xf32> to vector<16xf32>
    %670 = vector.shape_cast %669 : vector<16xf32> to vector<16x1xf32>
    %cst_328 = arith.constant 3.200000e+01 : f32
    %671 = vector.broadcast %cst_328 : f32 to vector<16x1xf32>
    %672 = arith.divf %670, %671 : vector<16x1xf32>
    %673 = vector.broadcast %672 : vector<16x1xf32> to vector<16x32xf32>
    %674 = arith.subf %668, %673 : vector<16x32xf32>
    %675 = arith.mulf %674, %674 : vector<16x32xf32>
    %cst_329 = arith.constant dense<0.000000e+00> : vector<16xf32>
    %676 = vector.multi_reduction <add>, %675, %cst_329 [1] : vector<16x32xf32> to vector<16xf32>
    %677 = vector.shape_cast %676 : vector<16xf32> to vector<16x1xf32>
    %cst_330 = arith.constant 3.200000e+01 : f32
    %678 = vector.broadcast %cst_330 : f32 to vector<16x1xf32>
    %679 = arith.divf %677, %678 : vector<16x1xf32>
    %680 = vector.broadcast %672 : vector<16x1xf32> to vector<16x32xf32>
    %681 = arith.subf %668, %680 : vector<16x32xf32>
    %cst_331 = arith.constant 9.99999974E-6 : f32
    %682 = vector.broadcast %cst_331 : f32 to vector<16x1xf32>
    %683 = arith.addf %679, %682 : vector<16x1xf32>
    %684 = math.rsqrt %683 : vector<16x1xf32>
    %685 = vector.broadcast %684 : vector<16x1xf32> to vector<16x32xf32>
    %686 = arith.mulf %681, %685 : vector<16x32xf32>
    %687 = vector.broadcast %606 : vector<1x32xf32> to vector<16x32xf32>
    %688 = arith.mulf %686, %687 : vector<16x32xf32>
    %689 = vector.broadcast %607 : vector<1x32xf32> to vector<16x32xf32>
    %690 = arith.addf %688, %689 : vector<16x32xf32>
    %cst_332 = arith.constant dense<0.000000e+00> : vector<16x128xf32>
    %691 = tpu.matmul %690, %593, %cst_332 {dimension_numbers = #tpu.dot_dimension_numbers<[1], [0], [0], [1], [0, 0, 1, 1], [], []>} : vector<16x32xf32>, vector<32x128xf32>, vector<16x128xf32> -> vector<16x128xf32>
    %692 = vector.broadcast %597 : vector<1x128xf32> to vector<16x128xf32>
    %693 = arith.addf %691, %692 : vector<16x128xf32>
    %cst_333 = arith.constant 0.000000e+00 : f32
    %694 = vector.broadcast %cst_333 : f32 to vector<16x128xf32>
    %695 = arith.maximumf %693, %694 : vector<16x128xf32>
    %cst_334 = arith.constant dense<0.000000e+00> : vector<16x32xf32>
    %696 = tpu.matmul %695, %595, %cst_334 {dimension_numbers = #tpu.dot_dimension_numbers<[1], [0], [0], [1], [0, 0, 1, 1], [], []>} : vector<16x128xf32>, vector<128x32xf32>, vector<16x32xf32> -> vector<16x32xf32>
    %697 = arith.addf %668, %696 : vector<16x32xf32>
    %698 = vector.broadcast %608 : vector<1x32xf32> to vector<16x32xf32>
    %699 = arith.addf %697, %698 : vector<16x32xf32>
    %c0_335 = arith.constant 0 : index
    %c0_336 = arith.constant 0 : index
    %c0_337 = arith.constant 0 : index
    %c0_338 = arith.constant 0 : index
    %700 = vector.load %arg26[%c0_335, %c0_336, %c0_337, %c0_338] : memref<1x3x16x32xf32, #tpu.memory_space<vmem>>, vector<1x1x16x32xf32>
    %701 = vector.shape_cast %700 : vector<1x1x16x32xf32> to vector<16x32xf32>
    %702 = vector.extract_strided_slice %701 {offsets = [9, 0], sizes = [1, 32], strides = [1, 1]} : vector<16x32xf32> to vector<1x32xf32>
    %703 = vector.extract_strided_slice %701 {offsets = [10, 0], sizes = [1, 32], strides = [1, 1]} : vector<16x32xf32> to vector<1x32xf32>
    %cst_339 = arith.constant dense<0.000000e+00> : vector<16xf32>
    %704 = vector.multi_reduction <add>, %699, %cst_339 [1] : vector<16x32xf32> to vector<16xf32>
    %705 = vector.shape_cast %704 : vector<16xf32> to vector<16x1xf32>
    %cst_340 = arith.constant 3.200000e+01 : f32
    %706 = vector.broadcast %cst_340 : f32 to vector<16x1xf32>
    %707 = arith.divf %705, %706 : vector<16x1xf32>
    %708 = vector.broadcast %707 : vector<16x1xf32> to vector<16x32xf32>
    %709 = arith.subf %699, %708 : vector<16x32xf32>
    %710 = arith.mulf %709, %709 : vector<16x32xf32>
    %cst_341 = arith.constant dense<0.000000e+00> : vector<16xf32>
    %711 = vector.multi_reduction <add>, %710, %cst_341 [1] : vector<16x32xf32> to vector<16xf32>
    %712 = vector.shape_cast %711 : vector<16xf32> to vector<16x1xf32>
    %cst_342 = arith.constant 3.200000e+01 : f32
    %713 = vector.broadcast %cst_342 : f32 to vector<16x1xf32>
    %714 = arith.divf %712, %713 : vector<16x1xf32>
    %715 = vector.broadcast %707 : vector<16x1xf32> to vector<16x32xf32>
    %716 = arith.subf %699, %715 : vector<16x32xf32>
    %cst_343 = arith.constant 9.99999974E-6 : f32
    %717 = vector.broadcast %cst_343 : f32 to vector<16x1xf32>
    %718 = arith.addf %714, %717 : vector<16x1xf32>
    %719 = math.rsqrt %718 : vector<16x1xf32>
    %720 = vector.broadcast %719 : vector<16x1xf32> to vector<16x32xf32>
    %721 = arith.mulf %716, %720 : vector<16x32xf32>
    %722 = vector.broadcast %702 : vector<1x32xf32> to vector<16x32xf32>
    %723 = arith.mulf %721, %722 : vector<16x32xf32>
    %724 = vector.broadcast %703 : vector<1x32xf32> to vector<16x32xf32>
    %725 = arith.addf %723, %724 : vector<16x32xf32>
    %c0_344 = arith.constant 0 : index
    %c0_345 = arith.constant 0 : index
    %726 = vector.load %arg10[%c0_344, %c0_345] : memref<2x16xf32, #tpu.memory_space<vmem>>, vector<2x16xf32>
    %cst_346 = arith.constant dense<0.000000e+00> : vector<2x32xf32>
    %727 = tpu.matmul %726, %725, %cst_346 {dimension_numbers = #tpu.dot_dimension_numbers<[1], [0], [0], [1], [0, 0, 1, 1], [], []>} : vector<2x16xf32>, vector<16x32xf32>, vector<2x32xf32> -> vector<2x32xf32>
    %c0_347 = arith.constant 0 : index
    %c0_348 = arith.constant 0 : index
    %c0_349 = arith.constant 0 : index
    %728 = vector.load %arg27[%c0_347, %c0_348, %c0_349] : memref<1x2x32xf32, #tpu.memory_space<vmem>>, vector<1x2x32xf32>
    %729 = vector.shape_cast %728 : vector<1x2x32xf32> to vector<2x32xf32>
    %730 = vector.shape_cast %727 : vector<2x32xf32> to vector<1x2x32xf32>
    tpu.vector_store %arg27[%c0_347, %c0_348, %c0_349], %730 {strides = array<i32>} : memref<1x2x32xf32, #tpu.memory_space<vmem>>, vector<1x2x32xf32>,
    return
  }
  func.func @transform_0(%arg0: i32, %arg1: memref<3x3xi32, #tpu.memory_space<smem>>) -> (i32, i32, i32) {
    %0 = arith.index_cast %arg0 : i32 to index
    %c0 = arith.constant 0 : index
    %1 = memref.load %arg1[%0, %c0] : memref<3x3xi32, #tpu.memory_space<smem>>
    %c0_i32 = arith.constant 0 : i32
    %c0_i32_0 = arith.constant 0 : i32
    %c0_i32_1 = arith.constant 0 : i32
    return %1, %c0_i32, %c0_i32_0 : i32, i32, i32
  }
  func.func @transform_1(%arg0: i32, %arg1: memref<3x3xi32, #tpu.memory_space<smem>>) -> (i32, i32, i32) {
    %0 = arith.index_cast %arg0 : i32 to index
    %c1 = arith.constant 1 : index
    %1 = memref.load %arg1[%0, %c1] : memref<3x3xi32, #tpu.memory_space<smem>>
    %c0_i32 = arith.constant 0 : i32
    %c0_i32_0 = arith.constant 0 : i32
    %c0_i32_1 = arith.constant 0 : i32
    return %1, %c0_i32, %c0_i32_0 : i32, i32, i32
  }
  func.func @transform_2(%arg0: i32, %arg1: memref<3x3xi32, #tpu.memory_space<smem>>) -> (i32, i32, i32) {
    %0 = arith.index_cast %arg0 : i32 to index
    %c2 = arith.constant 2 : index
    %1 = memref.load %arg1[%0, %c2] : memref<3x3xi32, #tpu.memory_space<smem>>
    %c0_i32 = arith.constant 0 : i32
    %c0_i32_0 = arith.constant 0 : i32
    %c0_i32_1 = arith.constant 0 : i32
    return %1, %c0_i32, %c0_i32_0 : i32, i32, i32
  }
  func.func @transform_3(%arg0: i32, %arg1: memref<3x3xi32, #tpu.memory_space<smem>>) -> (i32, i32) {
    %c0_i32 = arith.constant 0 : i32
    %c0_i32_0 = arith.constant 0 : i32
    %c0_i32_1 = arith.constant 0 : i32
    return %c0_i32, %c0_i32_0 : i32, i32
  }
  func.func @transform_4(%arg0: i32, %arg1: memref<3x3xi32, #tpu.memory_space<smem>>) -> (i32, i32) {
    %c0_i32 = arith.constant 0 : i32
    %c0_i32_0 = arith.constant 0 : i32
    %c0_i32_1 = arith.constant 0 : i32
    return %c0_i32, %c0_i32_0 : i32, i32
  }
  func.func @transform_5(%arg0: i32, %arg1: memref<3x3xi32, #tpu.memory_space<smem>>) -> (i32, i32) {
    %c0_i32 = arith.constant 0 : i32
    %c0_i32_0 = arith.constant 0 : i32
    %c0_i32_1 = arith.constant 0 : i32
    return %c0_i32, %c0_i32_0 : i32, i32
  }
  func.func @transform_6(%arg0: i32, %arg1: memref<3x3xi32, #tpu.memory_space<smem>>) -> (i32, i32) {
    %c0_i32 = arith.constant 0 : i32
    %c0_i32_0 = arith.constant 0 : i32
    %c0_i32_1 = arith.constant 0 : i32
    return %c0_i32, %c0_i32_0 : i32, i32
  }
  func.func @transform_7(%arg0: i32, %arg1: memref<3x3xi32, #tpu.memory_space<smem>>) -> (i32, i32) {
    %c0_i32 = arith.constant 0 : i32
    %c0_i32_0 = arith.constant 0 : i32
    %c0_i32_1 = arith.constant 0 : i32
    return %c0_i32, %c0_i32_0 : i32, i32
  }
  func.func @transform_8(%arg0: i32, %arg1: memref<3x3xi32, #tpu.memory_space<smem>>) -> (i32, i32) {
    %c0_i32 = arith.constant 0 : i32
    %c0_i32_0 = arith.constant 0 : i32
    %c0_i32_1 = arith.constant 0 : i32
    return %c0_i32, %c0_i32_0 : i32, i32
  }
  func.func @transform_9(%arg0: i32, %arg1: memref<3x3xi32, #tpu.memory_space<smem>>) -> (i32, i32, i32, i32, i32) {
    %c0_i32 = arith.constant 0 : i32
    %c0_i32_0 = arith.constant 0 : i32
    %c0_i32_1 = arith.constant 0 : i32
    %c0_i32_2 = arith.constant 0 : i32
    %c0_i32_3 = arith.constant 0 : i32
    return %arg0, %c0_i32, %c0_i32_0, %c0_i32_1, %c0_i32_2 : i32, i32, i32, i32, i32
  }
  func.func @transform_10(%arg0: i32, %arg1: memref<3x3xi32, #tpu.memory_space<smem>>) -> (i32, i32, i32, i32, i32) {
    %c0_i32 = arith.constant 0 : i32
    %c0_i32_0 = arith.constant 0 : i32
    %c0_i32_1 = arith.constant 0 : i32
    %c0_i32_2 = arith.constant 0 : i32
    %c0_i32_3 = arith.constant 0 : i32
    return %arg0, %c0_i32, %c0_i32_0, %c0_i32_1, %c0_i32_2 : i32, i32, i32, i32, i32
  }
  func.func @transform_11(%arg0: i32, %arg1: memref<3x3xi32, #tpu.memory_space<smem>>) -> (i32, i32, i32, i32, i32) {
    %c0_i32 = arith.constant 0 : i32
    %c0_i32_0 = arith.constant 0 : i32
    %c0_i32_1 = arith.constant 0 : i32
    %c0_i32_2 = arith.constant 0 : i32
    %c0_i32_3 = arith.constant 0 : i32
    return %arg0, %c0_i32, %c0_i32_0, %c0_i32_1, %c0_i32_2 : i32, i32, i32, i32, i32
  }
  func.func @transform_12(%arg0: i32, %arg1: memref<3x3xi32, #tpu.memory_space<smem>>) -> (i32, i32, i32, i32, i32) {
    %c0_i32 = arith.constant 0 : i32
    %c0_i32_0 = arith.constant 0 : i32
    %c0_i32_1 = arith.constant 0 : i32
    %c0_i32_2 = arith.constant 0 : i32
    %c0_i32_3 = arith.constant 0 : i32
    return %arg0, %c0_i32, %c0_i32_0, %c0_i32_1, %c0_i32_2 : i32, i32, i32, i32, i32
  }
  func.func @transform_13(%arg0: i32, %arg1: memref<3x3xi32, #tpu.memory_space<smem>>) -> (i32, i32, i32, i32, i32) {
    %c0_i32 = arith.constant 0 : i32
    %c0_i32_0 = arith.constant 0 : i32
    %c0_i32_1 = arith.constant 0 : i32
    %c0_i32_2 = arith.constant 0 : i32
    %c0_i32_3 = arith.constant 0 : i32
    return %arg0, %c0_i32, %c0_i32_0, %c0_i32_1, %c0_i32_2 : i32, i32, i32, i32, i32
  }
  func.func @transform_14(%arg0: i32, %arg1: memref<3x3xi32, #tpu.memory_space<smem>>) -> (i32, i32, i32, i32, i32) {
    %c0_i32 = arith.constant 0 : i32
    %c0_i32_0 = arith.constant 0 : i32
    %c0_i32_1 = arith.constant 0 : i32
    %c0_i32_2 = arith.constant 0 : i32
    %c0_i32_3 = arith.constant 0 : i32
    return %arg0, %c0_i32, %c0_i32_0, %c0_i32_1, %c0_i32_2 : i32, i32, i32, i32, i32
  }
  func.func @transform_15(%arg0: i32, %arg1: memref<3x3xi32, #tpu.memory_space<smem>>) -> (i32, i32, i32, i32, i32) {
    %c0_i32 = arith.constant 0 : i32
    %c0_i32_0 = arith.constant 0 : i32
    %c0_i32_1 = arith.constant 0 : i32
    %c0_i32_2 = arith.constant 0 : i32
    %c0_i32_3 = arith.constant 0 : i32
    return %arg0, %c0_i32, %c0_i32_0, %c0_i32_1, %c0_i32_2 : i32, i32, i32, i32, i32
  }
  func.func @transform_16(%arg0: i32, %arg1: memref<3x3xi32, #tpu.memory_space<smem>>) -> (i32, i32, i32, i32, i32) {
    %c0_i32 = arith.constant 0 : i32
    %c0_i32_0 = arith.constant 0 : i32
    %c0_i32_1 = arith.constant 0 : i32
    %c0_i32_2 = arith.constant 0 : i32
    %c0_i32_3 = arith.constant 0 : i32
    return %arg0, %c0_i32, %c0_i32_0, %c0_i32_1, %c0_i32_2 : i32, i32, i32, i32, i32
  }
  func.func @transform_17(%arg0: i32, %arg1: memref<3x3xi32, #tpu.memory_space<smem>>) -> (i32, i32, i32, i32) {
    %c0_i32 = arith.constant 0 : i32
    %c0_i32_0 = arith.constant 0 : i32
    %c0_i32_1 = arith.constant 0 : i32
    %c0_i32_2 = arith.constant 0 : i32
    return %arg0, %c0_i32, %c0_i32_0, %c0_i32_1 : i32, i32, i32, i32
  }
  func.func @transform_18(%arg0: i32, %arg1: memref<3x3xi32, #tpu.memory_space<smem>>) -> (i32, i32, i32, i32) {
    %c0_i32 = arith.constant 0 : i32
    %c0_i32_0 = arith.constant 0 : i32
    %c0_i32_1 = arith.constant 0 : i32
    %c0_i32_2 = arith.constant 0 : i32
    return %arg0, %c0_i32, %c0_i32_0, %c0_i32_1 : i32, i32, i32, i32
  }
  func.func @transform_19(%arg0: i32, %arg1: memref<3x3xi32, #tpu.memory_space<smem>>) -> (i32, i32, i32, i32) {
    %c0_i32 = arith.constant 0 : i32
    %c0_i32_0 = arith.constant 0 : i32
    %c0_i32_1 = arith.constant 0 : i32
    %c0_i32_2 = arith.constant 0 : i32
    return %arg0, %c0_i32, %c0_i32_0, %c0_i32_1 : i32, i32, i32, i32
  }
  func.func @transform_20(%arg0: i32, %arg1: memref<3x3xi32, #tpu.memory_space<smem>>) -> (i32, i32, i32, i32) {
    %c0_i32 = arith.constant 0 : i32
    %c0_i32_0 = arith.constant 0 : i32
    %c0_i32_1 = arith.constant 0 : i32
    %c0_i32_2 = arith.constant 0 : i32
    return %arg0, %c0_i32, %c0_i32_0, %c0_i32_1 : i32, i32, i32, i32
  }
  func.func @transform_21(%arg0: i32, %arg1: memref<3x3xi32, #tpu.memory_space<smem>>) -> (i32, i32, i32, i32) {
    %c0_i32 = arith.constant 0 : i32
    %c0_i32_0 = arith.constant 0 : i32
    %c0_i32_1 = arith.constant 0 : i32
    %c0_i32_2 = arith.constant 0 : i32
    return %arg0, %c0_i32, %c0_i32_0, %c0_i32_1 : i32, i32, i32, i32
  }
  func.func @transform_22(%arg0: i32, %arg1: memref<3x3xi32, #tpu.memory_space<smem>>) -> (i32, i32, i32, i32) {
    %c0_i32 = arith.constant 0 : i32
    %c0_i32_0 = arith.constant 0 : i32
    %c0_i32_1 = arith.constant 0 : i32
    %c0_i32_2 = arith.constant 0 : i32
    return %arg0, %c0_i32, %c0_i32_0, %c0_i32_1 : i32, i32, i32, i32
  }
  func.func @transform_23(%arg0: i32, %arg1: memref<3x3xi32, #tpu.memory_space<smem>>) -> (i32, i32, i32, i32) {
    %c0_i32 = arith.constant 0 : i32
    %c0_i32_0 = arith.constant 0 : i32
    %c0_i32_1 = arith.constant 0 : i32
    %c0_i32_2 = arith.constant 0 : i32
    return %arg0, %c0_i32, %c0_i32_0, %c0_i32_1 : i32, i32, i32, i32
  }
  func.func @transform_24(%arg0: i32, %arg1: memref<3x3xi32, #tpu.memory_space<smem>>) -> (i32, i32, i32, i32) {
    %c0_i32 = arith.constant 0 : i32
    %c0_i32_0 = arith.constant 0 : i32
    %c0_i32_1 = arith.constant 0 : i32
    %c0_i32_2 = arith.constant 0 : i32
    return %arg0, %c0_i32, %c0_i32_0, %c0_i32_1 : i32, i32, i32, i32
  }
  func.func @transform_25(%arg0: i32, %arg1: memref<3x3xi32, #tpu.memory_space<smem>>) -> (i32, i32, i32) {
    %c0_i32 = arith.constant 0 : i32
    %c0_i32_0 = arith.constant 0 : i32
    %c0_i32_1 = arith.constant 0 : i32
    return %arg0, %c0_i32, %c0_i32_0 : i32, i32, i32
  }
}

</mosaic_0001>

<llo_original>
// kernel: dicmor_forward.2
$region0: #{dicmor_forward.2}
  #allocation0 [shape = 'u32[]', space=smem, size = 0x4, offset = 0x4, fixed_abs, tag = 'smem constant byte address 0x4 - core index']
  #allocation1 [shape = 'u32[144,128]{1,0:T(1,128)}', space=vmem, size = 0x12000, scoped, tag = 'internal scratch']
  %s0 = inlined_call_operand.vmem [shape: f32[16,20], index: 0, kind: input, shape index: {}]
  %s1 = inlined_call_operand.vmem [shape: f32[16,5], index: 1, kind: input, shape index: {}]
  %s2 = inlined_call_operand.vmem [shape: f32[16,10], index: 2, kind: input, shape index: {}]
  %s3 = inlined_call_operand.vmem [shape: f32[20,16], index: 3, kind: input, shape index: {}]
  %s4 = inlined_call_operand.hbm [shape: f32[5,16], index: 4, kind: input, shape index: {}]
  %s5 = inlined_call_operand.hbm [shape: f32[10,16], index: 5, kind: input, shape index: {}]
  %s6 = inlined_call_operand.vmem [shape: f32[2,16], index: 6, kind: input, shape index: {}]
  %s7 = inlined_call_operand.hbm [shape: f32[16,16], index: 7, kind: input, shape index: {}]
  %s8 = inlined_call_operand.hbm [shape: f32[16,16], index: 8, kind: input, shape index: {}]
  %s9 = inlined_call_operand.hbm [shape: f32[1,16], index: 9, kind: input, shape index: {}]
  %s10 = inlined_call_operand.vmem [shape: f32[16,32], index: 10, kind: input, shape index: {}]
  %s11 = inlined_call_operand.hbm [shape: f32[1,32], index: 11, kind: input, shape index: {}]
  %s12 = inlined_call_operand.vmem [shape: f32[32,16], index: 12, kind: input, shape index: {}]
  %s13 = inlined_call_operand.hbm [shape: f32[1,16], index: 13, kind: input, shape index: {}]
  %s14 = inlined_call_operand.vmem [shape: f32[3,16,16], index: 14, kind: output, shape index: {0}]
  %s15 = inlined_call_operand.vmem [shape: f32[3,2,1], index: 15, kind: output, shape index: {1}]
  %s16 = inlined_call_operand.hbm [shape: f32[1,1], index: 16, kind: output, shape index: {2}]
  %17 = xla_tuple %s14, %s15, %s16
  %s18 = sld [smem:[#allocation0]]
  $region110: #{dicmor_forward.2} parent=0
    _
  %s20 = ssub.s32 1, %s18
  %s21 = scalar_select 0, %s20, %s18
  $region1: #{dicmor_forward.2} parent=0
    #allocation2 [shape = 'u8[4096]{0}', space=vmem, size = 0x1000, scoped, tag = 'input window, operand 4, single buffered']
    #allocation3 [shape = 's32[1]{0}', space=sflag, size = 0x4, scoped, tag = 'scoped memory for dicmor_forward.2']
    #allocation4 [shape = 's32[1]{0}', space=sflag, size = 0x4, scoped, tag = 'scoped memory for dicmor_forward.2']
    #allocation5 [shape = 'u8[8192]{0}', space=vmem, size = 0x2000, scoped, tag = 'input window, operand 5, single buffered']
    #allocation6 [shape = 's32[1]{0}', space=sflag, size = 0x4, scoped, tag = 'scoped memory for dicmor_forward.2']
    #allocation7 [shape = 'u8[8192]{0}', space=vmem, size = 0x2000, scoped, tag = 'input window, operand 7, single buffered']
    #allocation8 [shape = 'u8[8192]{0}', space=vmem, size = 0x2000, scoped, tag = 'input window, operand 8, single buffered']
    #allocation9 [shape = 's32[1]{0}', space=sflag, size = 0x4, scoped, tag = 'scoped memory for dicmor_forward.2']
    #allocation10 [shape = 'u8[512]{0}', space=vmem, size = 0x400, scoped, tag = 'input window, operand 9, single buffered']
    #allocation11 [shape = 'u8[512]{0}', space=vmem, size = 0x400, scoped, tag = 'input window, operand 11, single buffered']
    #allocation12 [shape = 's32[1]{0}', space=sflag, size = 0x4, scoped, tag = 'scoped memory for dicmor_forward.2']
    #allocation13 [shape = 'u8[512]{0}', space=vmem, size = 0x400, scoped, tag = 'input window, operand 13, single buffered']
    #allocation14 [shape = 'u8[512]{0}', space=vmem, size = 0x400, scoped, tag = 'output window, operand 2, single buffered']
    %22 = vsyncpa [#allocation3], 0
    %23 = vsyncpa [#allocation6], 0
    %24 = vsyncpa [#allocation9], 0
    %25 = vsyncpa [#allocation12], 0
    %26 = vsyncpa [#allocation4], 0
    // Predicated region
    $region2: #{dicmor_forward.2} parent=1 // pred_check
      _
    $region3: #{dicmor_forward.2} parent=1 // pred_check_branch
      %28 = sbr.rel (0) target = $region5
    $region4: #{dicmor_forward.2} parent=1 // pred_region
      _
    $region5: #{dicmor_forward.2} parent=1 // pred_fallthru
      _
    // Predicated region
    $region6: #{dicmor_forward.2} parent=1 // pred_check
      _
    $region7: #{dicmor_forward.2} parent=1 // pred_check_branch
      %30 = sbr.rel (0) target = $region9
    $region8: #{dicmor_forward.2} parent=1 // pred_region
      _
    $region9: #{dicmor_forward.2} parent=1 // pred_fallthru
      _
    // Predicated region
    $region10: #{dicmor_forward.2} parent=1 // pred_check
      _
    $region11: #{dicmor_forward.2} parent=1 // pred_check_branch
      %32 = sbr.rel (0) target = $region13
    $region12: #{dicmor_forward.2} parent=1 // pred_region
      _
    $region13: #{dicmor_forward.2} parent=1 // pred_fallthru
      _
    // Predicated region
    $region14: #{dicmor_forward.2} parent=1 // pred_check
      _
    $region15: #{dicmor_forward.2} parent=1 // pred_check_branch
      %34 = sbr.rel (0) target = $region17
    $region16: #{dicmor_forward.2} parent=1 // pred_region
      _
    $region17: #{dicmor_forward.2} parent=1 // pred_fallthru
      _
    // Predicated region
    $region18: #{dicmor_forward.2} parent=1 // pred_check
      _
    $region19: #{dicmor_forward.2} parent=1 // pred_check_branch
      %36 = sbr.rel (0) target = $region21
    $region20: #{dicmor_forward.2} parent=1 // pred_region
      %s38 = ssub.s32 128, 128
      %39 = vsyncadd [#allocation3], %s38
      %s41 = sshll.u32 [#allocation2], 4
      %s42 = int_to_ptr.vmem [resolvable:$true] %s41
      %44 = dma.hbm_to_vmem [thread:$0]  %s4, 128, %s42, [#allocation3]
    $region21: #{dicmor_forward.2} parent=1 // pred_fallthru
      _
    // Predicated region
    $region22: #{dicmor_forward.2} parent=1 // pred_check
      _
    $region23: #{dicmor_forward.2} parent=1 // pred_check_branch
      %46 = sbr.rel (0) target = $region25
    $region24: #{dicmor_forward.2} parent=1 // pred_region
      %s48 = ssub.s32 256, 256
      %49 = vsyncadd [#allocation6], %s48
      %s50 = sshll.u32 [#allocation5], 4
      %s51 = int_to_ptr.vmem [resolvable:$true] %s50
      %56 = dma.hbm_to_vmem [thread:$0]  %s5, 256, %s51, [#allocation6], 128, 128, 8
    $region25: #{dicmor_forward.2} parent=1 // pred_fallthru
      _
    // Predicated region
    $region26: #{dicmor_forward.2} parent=1 // pred_check
      _
    $region27: #{dicmor_forward.2} parent=1 // pred_check_branch
      %58 = sbr.rel (0) target = $region29
    $region28: #{dicmor_forward.2} parent=1 // pred_region
      _
    $region29: #{dicmor_forward.2} parent=1 // pred_fallthru
      _
    // Predicated region
    $region30: #{dicmor_forward.2} parent=1 // pred_check
      _
    $region31: #{dicmor_forward.2} parent=1 // pred_check_branch
      %60 = sbr.rel (0) target = $region33
    $region32: #{dicmor_forward.2} parent=1 // pred_region
      %s62 = ssub.s32 256, 256
      %63 = vsyncadd [#allocation6], %s62
      %s64 = sshll.u32 [#allocation7], 4
      %s65 = int_to_ptr.vmem [resolvable:$true] %s64
      %70 = dma.hbm_to_vmem [thread:$0]  %s7, 256, %s65, [#allocation6], 128, 128, 8
    $region33: #{dicmor_forward.2} parent=1 // pred_fallthru
      _
    // Predicated region
    $region34: #{dicmor_forward.2} parent=1 // pred_check
      _
    $region35: #{dicmor_forward.2} parent=1 // pred_check_branch
      %72 = sbr.rel (0) target = $region37
    $region36: #{dicmor_forward.2} parent=1 // pred_region
      %s74 = ssub.s32 256, 256
      %75 = vsyncadd [#allocation9], %s74
      %s76 = sshll.u32 [#allocation8], 4
      %s77 = int_to_ptr.vmem [resolvable:$true] %s76
      %82 = dma.hbm_to_vmem [thread:$0]  %s8, 256, %s77, [#allocation9], 128, 128, 8
    $region37: #{dicmor_forward.2} parent=1 // pred_fallthru
      _
    // Predicated region
    $region38: #{dicmor_forward.2} parent=1 // pred_check
      _
    $region39: #{dicmor_forward.2} parent=1 // pred_check_branch
      %84 = sbr.rel (0) target = $region41
    $region40: #{dicmor_forward.2} parent=1 // pred_region
      %s86 = ssub.s32 16, 16
      %87 = vsyncadd [#allocation9], %s86
      %s89 = sshll.u32 [#allocation10], 4
      %s90 = int_to_ptr.vmem [resolvable:$true] %s89
      %92 = dma.hbm_to_vmem [thread:$0]  %s9, 16, %s90, [#allocation9]
    $region41: #{dicmor_forward.2} parent=1 // pred_fallthru
      _
    // Predicated region
    $region42: #{dicmor_forward.2} parent=1 // pred_check
      _
    $region43: #{dicmor_forward.2} parent=1 // pred_check_branch
      %94 = sbr.rel (0) target = $region45
    $region44: #{dicmor_forward.2} parent=1 // pred_region
      _
    $region45: #{dicmor_forward.2} parent=1 // pred_fallthru
      _
    // Predicated region
    $region46: #{dicmor_forward.2} parent=1 // pred_check
      _
    $region47: #{dicmor_forward.2} parent=1 // pred_check_branch
      %96 = sbr.rel (0) target = $region49
    $region48: #{dicmor_forward.2} parent=1 // pred_region
      %s98 = ssub.s32 16, 16
      %99 = vsyncadd [#allocation12], %s98
      %s101 = sshll.u32 [#allocation11], 4
      %s102 = int_to_ptr.vmem [resolvable:$true] %s101
      %104 = dma.hbm_to_vmem [thread:$0]  %s11, 16, %s102, [#allocation12]
    $region49: #{dicmor_forward.2} parent=1 // pred_fallthru
      _
    // Predicated region
    $region50: #{dicmor_forward.2} parent=1 // pred_check
      _
    $region51: #{dicmor_forward.2} parent=1 // pred_check_branch
      %106 = sbr.rel (0) target = $region53
    $region52: #{dicmor_forward.2} parent=1 // pred_region
      _
    $region53: #{dicmor_forward.2} parent=1 // pred_fallthru
      _
    // Predicated region
    $region54: #{dicmor_forward.2} parent=1 // pred_check
      _
    $region55: #{dicmor_forward.2} parent=1 // pred_check_branch
      %108 = sbr.rel (0) target = $region57
    $region56: #{dicmor_forward.2} parent=1 // pred_region
      %s110 = ssub.s32 16, 16
      %111 = vsyncadd [#allocation12], %s110
      %s113 = sshll.u32 [#allocation13], 4
      %s114 = int_to_ptr.vmem [resolvable:$true] %s113
      %116 = dma.hbm_to_vmem [thread:$0]  %s13, 16, %s114, [#allocation12]
    $region57: #{dicmor_forward.2} parent=1 // pred_fallthru
      _
    // Predicated region
    $region58: #{dicmor_forward.2} parent=1 // pred_check
      _
    $region59: #{dicmor_forward.2} parent=1 // pred_check_branch
      %118 = sbr.rel (0) target = $region61
    $region60: #{dicmor_forward.2} parent=1 // pred_region
      %119 = dma.done [#allocation3], 128
    $region61: #{dicmor_forward.2} parent=1 // pred_fallthru
      _
    // Predicated region
    $region62: #{dicmor_forward.2} parent=1 // pred_check
      _
    $region63: #{dicmor_forward.2} parent=1 // pred_check_branch
      %121 = sbr.rel (0) target = $region65
    $region64: #{dicmor_forward.2} parent=1 // pred_region
      %122 = dma.done [#allocation6], 256
    $region65: #{dicmor_forward.2} parent=1 // pred_fallthru
      _
    // Predicated region
    $region66: #{dicmor_forward.2} parent=1 // pred_check
      _
    $region67: #{dicmor_forward.2} parent=1 // pred_check_branch
      %124 = sbr.rel (0) target = $region69
    $region68: #{dicmor_forward.2} parent=1 // pred_region
      %125 = dma.done [#allocation6], 256
    $region69: #{dicmor_forward.2} parent=1 // pred_fallthru
      _
    // Predicated region
    $region70: #{dicmor_forward.2} parent=1 // pred_check
      _
    $region71: #{dicmor_forward.2} parent=1 // pred_check_branch
      %127 = sbr.rel (0) target = $region73
    $region72: #{dicmor_forward.2} parent=1 // pred_region
      %128 = dma.done [#allocation9], 256
    $region73: #{dicmor_forward.2} parent=1 // pred_fallthru
      _
    // Predicated region
    $region74: #{dicmor_forward.2} parent=1 // pred_check
      _
    $region75: #{dicmor_forward.2} parent=1 // pred_check_branch
      %130 = sbr.rel (0) target = $region77
    $region76: #{dicmor_forward.2} parent=1 // pred_region
      %131 = dma.done [#allocation9], 16
    $region77: #{dicmor_forward.2} parent=1 // pred_fallthru
      _
    // Predicated region
    $region78: #{dicmor_forward.2} parent=1 // pred_check
      _
    $region79: #{dicmor_forward.2} parent=1 // pred_check_branch
      %133 = sbr.rel (0) target = $region81
    $region80: #{dicmor_forward.2} parent=1 // pred_region
      %134 = dma.done [#allocation12], 16
    $region81: #{dicmor_forward.2} parent=1 // pred_fallthru
      _
    // Predicated region
    $region82: #{dicmor_forward.2} parent=1 // pred_check
      _
    $region83: #{dicmor_forward.2} parent=1 // pred_check_branch
      %136 = sbr.rel (0) target = $region85
    $region84: #{dicmor_forward.2} parent=1 // pred_region
      %137 = dma.done [#allocation12], 16
    $region85: #{dicmor_forward.2} parent=1 // pred_fallthru
      _
    %v138 = vld [vmem:[%s0] sm:$0xff]
    %v139 = vld [vmem:[%s0 + $0x8] sm:$0xff]
    %v140 = vld [vmem:[%s3] sm:$0xff]
    %v141 = vld [vmem:[%s3 + $0x8] sm:$0xff]
    %v142 = vld [vmem:[%s3 + $0x10] sm:$0xf]
    %vm143 = vcmask 162816
    %v145 = vsel %vm143, %v138, 0
    %v148 = vsel %vm143, %v139, 0
    %vm150 = vcmask 1043456
    %v152 = vsel %vm150, %v142, 0
    %154 = vmatprep.subr.mxu0 0.0
    %155 = vmatpush1.msra.mxu0 0.0
    %156 = vmatprep.subr.mxu0 0.0
    %157 = vmatpush1.msra.mxu0 0.0
    %158 = vmatprep.subr.mxu0 0.0
    %159 = vmatpush1.msra.mxu0 0.0
    %160 = vmatprep.subr.mxu0 0.0
    %161 = vmatpush1.msra.mxu0 0.0
    %162 = vmatprep.subr.mxu0 0.0
    %163 = vmatpush1.msra.mxu0 0.0
    %164 = vmatprep.subr.mxu0 0.0
    %165 = vmatpush1.msra.mxu0 0.0
    %166 = vmatprep.subr.mxu0 0.0
    %167 = vmatpush1.msra.mxu0 0.0
    %168 = vmatprep.subr.mxu0 0.0
    %169 = vmatpush1.msra.mxu0 0.0
    %170 = vmatprep.subr.mxu0 0.0
    %171 = vmatpush1.msra.mxu0 0.0
    %172 = vmatprep.subr.mxu0 0.0
    %173 = vmatpush1.msra.mxu0 0.0
    %174 = vmatprep.subr.mxu0 0.0
    %175 = vmatpush1.msra.mxu0 0.0
    %176 = vmatprep.subr.mxu0 0.0
    %177 = vmatpush1.msra.mxu0 0.0
    %178 = vmatprep.subr.mxu0 0.0
    %179 = vmatpush1.msra.mxu0 0.0
    %180 = vmatprep.subr.mxu0 0.0
    %181 = vmatpush1.msra.mxu0 %v152
    %182 = vmatprep.subr.mxu0 0.0
    %183 = vmatpush1.msra.mxu0 %v141
    %184 = vmatprep.subr.mxu0 0.0
    %185 = vmatpush1.msra.mxu0 %v140
    %186 = vmatprep.subr.mxu0 0.0
    %187 = vmatpush2.msra.mxu0 0.0
    %188 = vmatprep.subr.mxu0 0.0
    %189 = vmatpush2.msra.mxu0 0.0
    %190 = vmatprep.subr.mxu0 0.0
    %191 = vmatpush2.msra.mxu0 0.0
    %192 = vmatprep.subr.mxu0 0.0
    %193 = vmatpush2.msra.mxu0 0.0
    %194 = vmatprep.subr.mxu0 0.0
    %195 = vmatpush2.msra.mxu0 0.0
    %196 = vmatprep.subr.mxu0 0.0
    %197 = vmatpush2.msra.mxu0 0.0
    %198 = vmatprep.subr.mxu0 0.0
    %199 = vmatpush2.msra.mxu0 0.0
    %200 = vmatprep.subr.mxu0 0.0
    %201 = vmatpush2.msra.mxu0 0.0
    %202 = vmatprep.subr.mxu0 0.0
    %203 = vmatpush2.msra.mxu0 0.0
    %204 = vmatprep.subr.mxu0 0.0
    %205 = vmatpush2.msra.mxu0 0.0
    %206 = vmatprep.subr.mxu0 0.0
    %207 = vmatpush2.msra.mxu0 0.0
    %208 = vmatprep.subr.mxu0 0.0
    %209 = vmatpush2.msra.mxu0 0.0
    %210 = vmatprep.subr.mxu0 0.0
    %211 = vmatpush2.msra.mxu0 0.0
    %212 = vmatprep.subr.mxu0 0.0
    %213 = vmatpush2.msra.mxu0 0.0
    %214 = vmatprep.subr.mxu0 0.0
    %215 = vmatpush2.msra.mxu0 0.0
    %216 = vmatprep.subr.mxu0 0.0
    %217 = vmatpush2.msra.mxu0 0.0
    %218 = vmatprep.mubr.f32.mxu0 0.0
    %219 = vmatmul.mubr.f32.gmra.mxu0 %v145
    %v220 = vpop.f32.mrf.mxu0
    %v221 = vadd.f32 0.0, %v220
    %v222 = vpop.f32.mrf.mxu0
    %223 = vmatprep.mubr.f32.mxu0 0.0
    %224 = vmatmul.mubr.f32.gmra.mxu0 %v148
    %v225 = vpop.f32.mrf.mxu0
    %v226 = vadd.f32 0.0, %v225
    %v227 = vpop.f32.mrf.mxu0
    %228 = vdwg.mxu0
    %v229 = vld [vmem:[%s1] sm:$0xff]
    %v230 = vld [vmem:[%s1 + $0x8] sm:$0xff]
    %v231 = vld [vmem:[#allocation2] sm:$0x1f]
    %vm232 = vcmask 39936
    %v234 = vsel %vm232, %v229, 0
    %v237 = vsel %vm232, %v230, 0
    %vm239 = vcmask 1044480
    %v241 = vsel %vm239, %v231, 0
    %243 = vmatprep.subr.mxu0 0.0
    %244 = vmatpush1.msra.mxu0 0.0
    %245 = vmatprep.subr.mxu0 0.0
    %246 = vmatpush1.msra.mxu0 0.0
    %247 = vmatprep.subr.mxu0 0.0
    %248 = vmatpush1.msra.mxu0 0.0
    %249 = vmatprep.subr.mxu0 0.0
    %250 = vmatpush1.msra.mxu0 0.0
    %251 = vmatprep.subr.mxu0 0.0
    %252 = vmatpush1.msra.mxu0 0.0
    %253 = vmatprep.subr.mxu0 0.0
    %254 = vmatpush1.msra.mxu0 0.0
    %255 = vmatprep.subr.mxu0 0.0
    %256 = vmatpush1.msra.mxu0 0.0
    %257 = vmatprep.subr.mxu0 0.0
    %258 = vmatpush1.msra.mxu0 0.0
    %259 = vmatprep.subr.mxu0 0.0
    %260 = vmatpush1.msra.mxu0 0.0
    %261 = vmatprep.subr.mxu0 0.0
    %262 = vmatpush1.msra.mxu0 0.0
    %263 = vmatprep.subr.mxu0 0.0
    %264 = vmatpush1.msra.mxu0 0.0
    %265 = vmatprep.subr.mxu0 0.0
    %266 = vmatpush1.msra.mxu0 0.0
    %267 = vmatprep.subr.mxu0 0.0
    %268 = vmatpush1.msra.mxu0 0.0
    %269 = vmatprep.subr.mxu0 0.0
    %270 = vmatpush1.msra.mxu0 0.0
    %271 = vmatprep.subr.mxu0 0.0
    %272 = vmatpush1.msra.mxu0 0.0
    %273 = vmatprep.subr.mxu0 0.0
    %274 = vmatpush1.msra.mxu0 %v241
    %275 = vmatprep.subr.mxu0 0.0
    %276 = vmatpush2.msra.mxu0 0.0
    %277 = vmatprep.subr.mxu0 0.0
    %278 = vmatpush2.msra.mxu0 0.0
    %279 = vmatprep.subr.mxu0 0.0
    %280 = vmatpush2.msra.mxu0 0.0
    %281 = vmatprep.subr.mxu0 0.0
    %282 = vmatpush2.msra.mxu0 0.0
    %283 = vmatprep.subr.mxu0 0.0
    %284 = vmatpush2.msra.mxu0 0.0
    %285 = vmatprep.subr.mxu0 0.0
    %286 = vmatpush2.msra.mxu0 0.0
    %287 = vmatprep.subr.mxu0 0.0
    %288 = vmatpush2.msra.mxu0 0.0
    %289 = vmatprep.subr.mxu0 0.0
    %290 = vmatpush2.msra.mxu0 0.0
    %291 = vmatprep.subr.mxu0 0.0
    %292 = vmatpush2.msra.mxu0 0.0
    %293 = vmatprep.subr.mxu0 0.0
    %294 = vmatpush2.msra.mxu0 0.0
    %295 = vmatprep.subr.mxu0 0.0
    %296 = vmatpush2.msra.mxu0 0.0
    %297 = vmatprep.subr.mxu0 0.0
    %298 = vmatpush2.msra.mxu0 0.0
    %299 = vmatprep.subr.mxu0 0.0
    %300 = vmatpush2.msra.mxu0 0.0
    %301 = vmatprep.subr.mxu0 0.0
    %302 = vmatpush2.msra.mxu0 0.0
    %303 = vmatprep.subr.mxu0 0.0
    %304 = vmatpush2.msra.mxu0 0.0
    %305 = vmatprep.subr.mxu0 0.0
    %306 = vmatpush2.msra.mxu0 0.0
    %307 = vmatprep.mubr.f32.mxu0 0.0
    %308 = vmatmul.mubr.f32.gmra.mxu0 %v234
    %v309 = vpop.f32.mrf.mxu0
    %v310 = vadd.f32 0.0, %v309
    %v311 = vpop.f32.mrf.mxu0
    %312 = vmatprep.mubr.f32.mxu0 0.0
    %313 = vmatmul.mubr.f32.gmra.mxu0 %v237
    %v314 = vpop.f32.mrf.mxu0
    %v315 = vadd.f32 0.0, %v314
    %v316 = vpop.f32.mrf.mxu0
    %317 = vdwg.mxu0
    %v318 = vld [vmem:[%s2] sm:$0xff]
    %v319 = vld [vmem:[%s2 + $0x8] sm:$0xff]
    %v320 = vld [vmem:[#allocation5] sm:$0xff]
    %v321 = vld [vmem:[#allocation5 + $0x8] sm:$0x3]
    %vm322 = vcmask 80896
    %v324 = vsel %vm322, %v318, 0
    %v327 = vsel %vm322, %v319, 0
    %vm329 = vcmask 1041408
    %v331 = vsel %vm329, %v321, 0
    %333 = vmatprep.subr.mxu0 0.0
    %334 = vmatpush1.msra.mxu0 0.0
    %335 = vmatprep.subr.mxu0 0.0
    %336 = vmatpush1.msra.mxu0 0.0
    %337 = vmatprep.subr.mxu0 0.0
    %338 = vmatpush1.msra.mxu0 0.0
    %339 = vmatprep.subr.mxu0 0.0
    %340 = vmatpush1.msra.mxu0 0.0
    %341 = vmatprep.subr.mxu0 0.0
    %342 = vmatpush1.msra.mxu0 0.0
    %343 = vmatprep.subr.mxu0 0.0
    %344 = vmatpush1.msra.mxu0 0.0
    %345 = vmatprep.subr.mxu0 0.0
    %346 = vmatpush1.msra.mxu0 0.0
    %347 = vmatprep.subr.mxu0 0.0
    %348 = vmatpush1.msra.mxu0 0.0
    %349 = vmatprep.subr.mxu0 0.0
    %350 = vmatpush1.msra.mxu0 0.0
    %351 = vmatprep.subr.mxu0 0.0
    %352 = vmatpush1.msra.mxu0 0.0
    %353 = vmatprep.subr.mxu0 0.0
    %354 = vmatpush1.msra.mxu0 0.0
    %355 = vmatprep.subr.mxu0 0.0
    %356 = vmatpush1.msra.mxu0 0.0
    %357 = vmatprep.subr.mxu0 0.0
    %358 = vmatpush1.msra.mxu0 0.0
    %359 = vmatprep.subr.mxu0 0.0
    %360 = vmatpush1.msra.mxu0 0.0
    %361 = vmatprep.subr.mxu0 0.0
    %362 = vmatpush1.msra.mxu0 %v331
    %363 = vmatprep.subr.mxu0 0.0
    %364 = vmatpush1.msra.mxu0 %v320
    %365 = vmatprep.subr.mxu0 0.0
    %366 = vmatpush2.msra.mxu0 0.0
    %367 = vmatprep.subr.mxu0 0.0
    %368 = vmatpush2.msra.mxu0 0.0
    %369 = vmatprep.subr.mxu0 0.0
    %370 = vmatpush2.msra.mxu0 0.0
    %371 = vmatprep.subr.mxu0 0.0
    %372 = vmatpush2.msra.mxu0 0.0
    %373 = vmatprep.subr.mxu0 0.0
    %374 = vmatpush2.msra.mxu0 0.0
    %375 = vmatprep.subr.mxu0 0.0
    %376 = vmatpush2.msra.mxu0 0.0
    %377 = vmatprep.subr.mxu0 0.0
    %378 = vmatpush2.msra.mxu0 0.0
    %379 = vmatprep.subr.mxu0 0.0
    %380 = vmatpush2.msra.mxu0 0.0
    %381 = vmatprep.subr.mxu0 0.0
    %382 = vmatpush2.msra.mxu0 0.0
    %383 = vmatprep.subr.mxu0 0.0
    %384 = vmatpush2.msra.mxu0 0.0
    %385 = vmatprep.subr.mxu0 0.0
    %386 = vmatpush2.msra.mxu0 0.0
    %387 = vmatprep.subr.mxu0 0.0
    %388 = vmatpush2.msra.mxu0 0.0
    %389 = vmatprep.subr.mxu0 0.0
    %390 = vmatpush2.msra.mxu0 0.0
    %391 = vmatprep.subr.mxu0 0.0
    %392 = vmatpush2.msra.mxu0 0.0
    %393 = vmatprep.subr.mxu0 0.0
    %394 = vmatpush2.msra.mxu0 0.0
    %395 = vmatprep.subr.mxu0 0.0
    %396 = vmatpush2.msra.mxu0 0.0
    %397 = vmatprep.mubr.f32.mxu0 0.0
    %398 = vmatmul.mubr.f32.gmra.mxu0 %v324
    %v399 = vpop.f32.mrf.mxu0
    %v400 = vadd.f32 0.0, %v399
    %v401 = vpop.f32.mrf.mxu0
    %402 = vmatprep.mubr.f32.mxu0 0.0
    %403 = vmatmul.mubr.f32.gmra.mxu0 %v327
    %v404 = vpop.f32.mrf.mxu0
    %v405 = vadd.f32 0.0, %v404
    %v406 = vpop.f32.mrf.mxu0
    %407 = vdwg.mxu0
    %v408 = vld [vmem:[%s6] sm:$0x3]
    %v409 = vmul.f32 %v221, %v221
    %v410 = vmul.f32 %v226, %v226
    %vm411 = vcmask 130048
    %v413 = vsel %vm411, %v408, 0
    %415 = vmatprep.subr.mxu0 0.0
    %416 = vmatpush1.msra.mxu0 0.0
    %417 = vmatprep.subr.mxu0 0.0
    %418 = vmatpush1.msra.mxu0 0.0
    %419 = vmatprep.subr.mxu0 0.0
    %420 = vmatpush1.msra.mxu0 0.0
    %421 = vmatprep.subr.mxu0 0.0
    %422 = vmatpush1.msra.mxu0 0.0
    %423 = vmatprep.subr.mxu0 0.0
    %424 = vmatpush1.msra.mxu0 0.0
    %425 = vmatprep.subr.mxu0 0.0
    %426 = vmatpush1.msra.mxu0 0.0
    %427 = vmatprep.subr.mxu0 0.0
    %428 = vmatpush1.msra.mxu0 0.0
    %429 = vmatprep.subr.mxu0 0.0
    %430 = vmatpush1.msra.mxu0 0.0
    %431 = vmatprep.subr.mxu0 0.0
    %432 = vmatpush1.msra.mxu0 0.0
    %433 = vmatprep.subr.mxu0 0.0
    %434 = vmatpush1.msra.mxu0 0.0
    %435 = vmatprep.subr.mxu0 0.0
    %436 = vmatpush1.msra.mxu0 0.0
    %437 = vmatprep.subr.mxu0 0.0
    %438 = vmatpush1.msra.mxu0 0.0
    %439 = vmatprep.subr.mxu0 0.0
    %440 = vmatpush1.msra.mxu0 0.0
    %441 = vmatprep.subr.mxu0 0.0
    %442 = vmatpush1.msra.mxu0 0.0
    %443 = vmatprep.subr.mxu0 0.0
    %444 = vmatpush1.msra.mxu0 %v410
    %445 = vmatprep.subr.mxu0 0.0
    %446 = vmatpush1.msra.mxu0 %v409
    %447 = vmatprep.subr.mxu0 0.0
    %448 = vmatpush2.msra.mxu0 0.0
    %449 = vmatprep.subr.mxu0 0.0
    %450 = vmatpush2.msra.mxu0 0.0
    %451 = vmatprep.subr.mxu0 0.0
    %452 = vmatpush2.msra.mxu0 0.0
    %453 = vmatprep.subr.mxu0 0.0
    %454 = vmatpush2.msra.mxu0 0.0
    %455 = vmatprep.subr.mxu0 0.0
    %456 = vmatpush2.msra.mxu0 0.0
    %457 = vmatprep.subr.mxu0 0.0
    %458 = vmatpush2.msra.mxu0 0.0
    %459 = vmatprep.subr.mxu0 0.0
    %460 = vmatpush2.msra.mxu0 0.0
    %461 = vmatprep.subr.mxu0 0.0
    %462 = vmatpush2.msra.mxu0 0.0
    %463 = vmatprep.subr.mxu0 0.0
    %464 = vmatpush2.msra.mxu0 0.0
    %465 = vmatprep.subr.mxu0 0.0
    %466 = vmatpush2.msra.mxu0 0.0
    %467 = vmatprep.subr.mxu0 0.0
    %468 = vmatpush2.msra.mxu0 0.0
    %469 = vmatprep.subr.mxu0 0.0
    %470 = vmatpush2.msra.mxu0 0.0
    %471 = vmatprep.subr.mxu0 0.0
    %472 = vmatpush2.msra.mxu0 0.0
    %473 = vmatprep.subr.mxu0 0.0
    %474 = vmatpush2.msra.mxu0 0.0
    %475 = vmatprep.subr.mxu0 0.0
    %476 = vmatpush2.msra.mxu0 0.0
    %477 = vmatprep.subr.mxu0 0.0
    %478 = vmatpush2.msra.mxu0 0.0
    %479 = vmatprep.mubr.f32.mxu0 0.0
    %480 = vmatmul.mubr.f32.gmra.mxu0 %v413
    %v481 = vpop.f32.mrf.mxu0
    %v482 = vadd.f32 0.0, %v481
    %v483 = vpop.f32.mrf.mxu0
    %484 = vdwg.mxu0
    %vm485 = vcmask 123904
    %v486 = vsel %vm485, %v482, 0.0
    %487 = vadd.xlane.f32.xlu0 %v486
    %v488 = vpop.xlane.xlu0 %487
    %vm489 = vcmask 1024
    %490 = vst.msk [vmem:[%s15] sm:$0x3] %vm489, %v488
    %v491 = vmul.f32 %v310, %v310
    %v492 = vmul.f32 %v315, %v315
    %493 = vmatprep.subr.mxu0 0.0
    %494 = vmatpush1.msra.mxu0 0.0
    %495 = vmatprep.subr.mxu0 0.0
    %496 = vmatpush1.msra.mxu0 0.0
    %497 = vmatprep.subr.mxu0 0.0
    %498 = vmatpush1.msra.mxu0 0.0
    %499 = vmatprep.subr.mxu0 0.0
    %500 = vmatpush1.msra.mxu0 0.0
    %501 = vmatprep.subr.mxu0 0.0
    %502 = vmatpush1.msra.mxu0 0.0
    %503 = vmatprep.subr.mxu0 0.0
    %504 = vmatpush1.msra.mxu0 0.0
    %505 = vmatprep.subr.mxu0 0.0
    %506 = vmatpush1.msra.mxu0 0.0
    %507 = vmatprep.subr.mxu0 0.0
    %508 = vmatpush1.msra.mxu0 0.0
    %509 = vmatprep.subr.mxu0 0.0
    %510 = vmatpush1.msra.mxu0 0.0
    %511 = vmatprep.subr.mxu0 0.0
    %512 = vmatpush1.msra.mxu0 0.0
    %513 = vmatprep.subr.mxu0 0.0
    %514 = vmatpush1.msra.mxu0 0.0
    %515 = vmatprep.subr.mxu0 0.0
    %516 = vmatpush1.msra.mxu0 0.0
    %517 = vmatprep.subr.mxu0 0.0
    %518 = vmatpush1.msra.mxu0 0.0
    %519 = vmatprep.subr.mxu0 0.0
    %520 = vmatpush1.msra.mxu0 0.0
    %521 = vmatprep.subr.mxu0 0.0
    %522 = vmatpush1.msra.mxu0 %v492
    %523 = vmatprep.subr.mxu0 0.0
    %524 = vmatpush1.msra.mxu0 %v491
    %525 = vmatprep.subr.mxu0 0.0
    %526 = vmatpush2.msra.mxu0 0.0
    %527 = vmatprep.subr.mxu0 0.0
    %528 = vmatpush2.msra.mxu0 0.0
    %529 = vmatprep.subr.mxu0 0.0
    %530 = vmatpush2.msra.mxu0 0.0
    %531 = vmatprep.subr.mxu0 0.0
    %532 = vmatpush2.msra.mxu0 0.0
    %533 = vmatprep.subr.mxu0 0.0
    %534 = vmatpush2.msra.mxu0 0.0
    %535 = vmatprep.subr.mxu0 0.0
    %536 = vmatpush2.msra.mxu0 0.0
    %537 = vmatprep.subr.mxu0 0.0
    %538 = vmatpush2.msra.mxu0 0.0
    %539 = vmatprep.subr.mxu0 0.0
    %540 = vmatpush2.msra.mxu0 0.0
    %541 = vmatprep.subr.mxu0 0.0
    %542 = vmatpush2.msra.mxu0 0.0
    %543 = vmatprep.subr.mxu0 0.0
    %544 = vmatpush2.msra.mxu0 0.0
    %545 = vmatprep.subr.mxu0 0.0
    %546 = vmatpush2.msra.mxu0 0.0
    %547 = vmatprep.subr.mxu0 0.0
    %548 = vmatpush2.msra.mxu0 0.0
    %549 = vmatprep.subr.mxu0 0.0
    %550 = vmatpush2.msra.mxu0 0.0
    %551 = vmatprep.subr.mxu0 0.0
    %552 = vmatpush2.msra.mxu0 0.0
    %553 = vmatprep.subr.mxu0 0.0
    %554 = vmatpush2.msra.mxu0 0.0
    %555 = vmatprep.subr.mxu0 0.0
    %556 = vmatpush2.msra.mxu0 0.0
    %557 = vmatprep.mubr.f32.mxu0 0.0
    %558 = vmatmul.mubr.f32.gmra.mxu0 %v413
    %v559 = vpop.f32.mrf.mxu0
    %v560 = vadd.f32 0.0, %v559
    %v561 = vpop.f32.mrf.mxu0
    %562 = vdwg.mxu0
    %v563 = vsel %vm485, %v560, 0.0
    %564 = vadd.xlane.f32.xlu0 %v563
    %v565 = vpop.xlane.xlu0 %564
    %s566 = scalar_lea.vmem %s15, 2
    %567 = vst.msk [vmem:[%s566] sm:$0x3] %vm489, %v565
    %v568 = vmul.f32 %v400, %v400
    %v569 = vmul.f32 %v405, %v405
    %570 = vmatprep.subr.mxu0 0.0
    %571 = vmatpush1.msra.mxu0 0.0
    %572 = vmatprep.subr.mxu0 0.0
    %573 = vmatpush1.msra.mxu0 0.0
    %574 = vmatprep.subr.mxu0 0.0
    %575 = vmatpush1.msra.mxu0 0.0
    %576 = vmatprep.subr.mxu0 0.0
    %577 = vmatpush1.msra.mxu0 0.0
    %578 = vmatprep.subr.mxu0 0.0
    %579 = vmatpush1.msra.mxu0 0.0
    %580 = vmatprep.subr.mxu0 0.0
    %581 = vmatpush1.msra.mxu0 0.0
    %582 = vmatprep.subr.mxu0 0.0
    %583 = vmatpush1.msra.mxu0 0.0
    %584 = vmatprep.subr.mxu0 0.0
    %585 = vmatpush1.msra.mxu0 0.0
    %586 = vmatprep.subr.mxu0 0.0
    %587 = vmatpush1.msra.mxu0 0.0
    %588 = vmatprep.subr.mxu0 0.0
    %589 = vmatpush1.msra.mxu0 0.0
    %590 = vmatprep.subr.mxu0 0.0
    %591 = vmatpush1.msra.mxu0 0.0
    %592 = vmatprep.subr.mxu0 0.0
    %593 = vmatpush1.msra.mxu0 0.0
    %594 = vmatprep.subr.mxu0 0.0
    %595 = vmatpush1.msra.mxu0 0.0
    %596 = vmatprep.subr.mxu0 0.0
    %597 = vmatpush1.msra.mxu0 0.0
    %598 = vmatprep.subr.mxu0 0.0
    %599 = vmatpush1.msra.mxu0 %v569
    %600 = vmatprep.subr.mxu0 0.0
    %601 = vmatpush1.msra.mxu0 %v568
    %602 = vmatprep.subr.mxu0 0.0
    %603 = vmatpush2.msra.mxu0 0.0
    %604 = vmatprep.subr.mxu0 0.0
    %605 = vmatpush2.msra.mxu0 0.0
    %606 = vmatprep.subr.mxu0 0.0
    %607 = vmatpush2.msra.mxu0 0.0
    %608 = vmatprep.subr.mxu0 0.0
    %609 = vmatpush2.msra.mxu0 0.0
    %610 = vmatprep.subr.mxu0 0.0
    %611 = vmatpush2.msra.mxu0 0.0
    %612 = vmatprep.subr.mxu0 0.0
    %613 = vmatpush2.msra.mxu0 0.0
    %614 = vmatprep.subr.mxu0 0.0
    %615 = vmatpush2.msra.mxu0 0.0
    %616 = vmatprep.subr.mxu0 0.0
    %617 = vmatpush2.msra.mxu0 0.0
    %618 = vmatprep.subr.mxu0 0.0
    %619 = vmatpush2.msra.mxu0 0.0
    %620 = vmatprep.subr.mxu0 0.0
    %621 = vmatpush2.msra.mxu0 0.0
    %622 = vmatprep.subr.mxu0 0.0
    %623 = vmatpush2.msra.mxu0 0.0
    %624 = vmatprep.subr.mxu0 0.0
    %625 = vmatpush2.msra.mxu0 0.0
    %626 = vmatprep.subr.mxu0 0.0
    %627 = vmatpush2.msra.mxu0 0.0
    %628 = vmatprep.subr.mxu0 0.0
    %629 = vmatpush2.msra.mxu0 0.0
    %630 = vmatprep.subr.mxu0 0.0
    %631 = vmatpush2.msra.mxu0 0.0
    %632 = vmatprep.subr.mxu0 0.0
    %633 = vmatpush2.msra.mxu0 0.0
    %634 = vmatprep.mubr.f32.mxu0 0.0
    %635 = vmatmul.mubr.f32.gmra.mxu0 %v413
    %v636 = vpop.f32.mrf.mxu0
    %v637 = vadd.f32 0.0, %v636
    %v638 = vpop.f32.mrf.mxu0
    %639 = vdwg.mxu0
    %v640 = vsel %vm485, %v637, 0.0
    %641 = vadd.xlane.f32.xlu0 %v640
    %v642 = vpop.xlane.xlu0 %641
    %s643 = scalar_lea.vmem %s15, 4
    %644 = vst.msk [vmem:[%s643] sm:$0x3] %vm489, %v642
    %v645 = vld [vmem:[#allocation7] sm:$0xff]
    %v646 = vld [vmem:[#allocation7 + $0x8] sm:$0xff]
    %v647 = vld [vmem:[#allocation8] sm:$0xff]
    %v648 = vld [vmem:[#allocation8 + $0x8] sm:$0xff]
    %v649 = vld [vmem:[#allocation10] sm:$0x1]
    %v650 = vld [vmem:[%s10] sm:$0xff]
    %v651 = vld [vmem:[%s10 + $0x8] sm:$0xff]
    %v652 = vld [vmem:[#allocation11] sm:$0x1]
    %v653 = vld [vmem:[%s12] sm:$0xff]
    %v654 = vld [vmem:[%s12 + $0x8] sm:$0xff]
    %v655 = vld [vmem:[%s12 + $0x10] sm:$0xff]
    %v656 = vld [vmem:[%s12 + $0x18] sm:$0xff]
    %v657 = vld [vmem:[#allocation13] sm:$0x1]
    %v659 = vsel %vm411, %v310, 0
    %v662 = vsel %vm411, %v315, 0
    %664 = vmatprep.subr.mxu0 0.0
    %665 = vmatpush1.msra.mxu0 0.0
    %666 = vmatprep.subr.mxu0 0.0
    %667 = vmatpush1.msra.mxu0 0.0
    %668 = vmatprep.subr.mxu0 0.0
    %669 = vmatpush1.msra.mxu0 0.0
    %670 = vmatprep.subr.mxu0 0.0
    %671 = vmatpush1.msra.mxu0 0.0
    %672 = vmatprep.subr.mxu0 0.0
    %673 = vmatpush1.msra.mxu0 0.0
    %674 = vmatprep.subr.mxu0 0.0
    %675 = vmatpush1.msra.mxu0 0.0
    %676 = vmatprep.subr.mxu0 0.0
    %677 = vmatpush1.msra.mxu0 0.0
    %678 = vmatprep.subr.mxu0 0.0
    %679 = vmatpush1.msra.mxu0 0.0
    %680 = vmatprep.subr.mxu0 0.0
    %681 = vmatpush1.msra.mxu0 0.0
    %682 = vmatprep.subr.mxu0 0.0
    %683 = vmatpush1.msra.mxu0 0.0
    %684 = vmatprep.subr.mxu0 0.0
    %685 = vmatpush1.msra.mxu0 0.0
    %686 = vmatprep.subr.mxu0 0.0
    %687 = vmatpush1.msra.mxu0 0.0
    %688 = vmatprep.subr.mxu0 0.0
    %689 = vmatpush1.msra.mxu0 0.0
    %690 = vmatprep.subr.mxu0 0.0
    %691 = vmatpush1.msra.mxu0 0.0
    %692 = vmatprep.subr.mxu0 0.0
    %693 = vmatpush1.msra.mxu0 %v648
    %694 = vmatprep.subr.mxu0 0.0
    %695 = vmatpush1.msra.mxu0 %v647
    %696 = vmatprep.subr.mxu0 0.0
    %697 = vmatpush2.msra.mxu0 0.0
    %698 = vmatprep.subr.mxu0 0.0
    %699 = vmatpush2.msra.mxu0 0.0
    %700 = vmatprep.subr.mxu0 0.0
    %701 = vmatpush2.msra.mxu0 0.0
    %702 = vmatprep.subr.mxu0 0.0
    %703 = vmatpush2.msra.mxu0 0.0
    %704 = vmatprep.subr.mxu0 0.0
    %705 = vmatpush2.msra.mxu0 0.0
    %706 = vmatprep.subr.mxu0 0.0
    %707 = vmatpush2.msra.mxu0 0.0
    %708 = vmatprep.subr.mxu0 0.0
    %709 = vmatpush2.msra.mxu0 0.0
    %710 = vmatprep.subr.mxu0 0.0
    %711 = vmatpush2.msra.mxu0 0.0
    %712 = vmatprep.subr.mxu0 0.0
    %713 = vmatpush2.msra.mxu0 0.0
    %714 = vmatprep.subr.mxu0 0.0
    %715 = vmatpush2.msra.mxu0 0.0
    %716 = vmatprep.subr.mxu0 0.0
    %717 = vmatpush2.msra.mxu0 0.0
    %718 = vmatprep.subr.mxu0 0.0
    %719 = vmatpush2.msra.mxu0 0.0
    %720 = vmatprep.subr.mxu0 0.0
    %721 = vmatpush2.msra.mxu0 0.0
    %722 = vmatprep.subr.mxu0 0.0
    %723 = vmatpush2.msra.mxu0 0.0
    %724 = vmatprep.subr.mxu0 0.0
    %725 = vmatpush2.msra.mxu0 0.0
    %726 = vmatprep.subr.mxu0 0.0
    %727 = vmatpush2.msra.mxu0 0.0
    %728 = vmatprep.mubr.f32.mxu0 0.0
    %729 = vmatmul.mubr.f32.gmra.mxu0 %v659
    %v730 = vpop.f32.mrf.mxu0
    %v731 = vadd.f32 0.0, %v730
    %v732 = vpop.f32.mrf.mxu0
    %733 = vmatprep.mubr.f32.mxu0 0.0
    %734 = vmatmul.mubr.f32.gmra.mxu0 %v662
    %v735 = vpop.f32.mrf.mxu0
    %v736 = vadd.f32 0.0, %v735
    %v737 = vpop.f32.mrf.mxu0
    %738 = vdwg.mxu0
    %v740 = vsel %vm411, %v400, 0
    %v743 = vsel %vm411, %v405, 0
    %745 = vmatprep.subr.mxu0 0.0
    %746 = vmatpush1.msra.mxu0 0.0
    %747 = vmatprep.subr.mxu0 0.0
    %748 = vmatpush1.msra.mxu0 0.0
    %749 = vmatprep.subr.mxu0 0.0
    %750 = vmatpush1.msra.mxu0 0.0
    %751 = vmatprep.subr.mxu0 0.0
    %752 = vmatpush1.msra.mxu0 0.0
    %753 = vmatprep.subr.mxu0 0.0
    %754 = vmatpush1.msra.mxu0 0.0
    %755 = vmatprep.subr.mxu0 0.0
    %756 = vmatpush1.msra.mxu0 0.0
    %757 = vmatprep.subr.mxu0 0.0
    %758 = vmatpush1.msra.mxu0 0.0
    %759 = vmatprep.subr.mxu0 0.0
    %760 = vmatpush1.msra.mxu0 0.0
    %761 = vmatprep.subr.mxu0 0.0
    %762 = vmatpush1.msra.mxu0 0.0
    %763 = vmatprep.subr.mxu0 0.0
    %764 = vmatpush1.msra.mxu0 0.0
    %765 = vmatprep.subr.mxu0 0.0
    %766 = vmatpush1.msra.mxu0 0.0
    %767 = vmatprep.subr.mxu0 0.0
    %768 = vmatpush1.msra.mxu0 0.0
    %769 = vmatprep.subr.mxu0 0.0
    %770 = vmatpush1.msra.mxu0 0.0
    %771 = vmatprep.subr.mxu0 0.0
    %772 = vmatpush1.msra.mxu0 0.0
    %773 = vmatprep.subr.mxu0 0.0
    %774 = vmatpush1.msra.mxu0 %v646
    %775 = vmatprep.subr.mxu0 0.0
    %776 = vmatpush1.msra.mxu0 %v645
    %777 = vmatprep.subr.mxu0 0.0
    %778 = vmatpush2.msra.mxu0 0.0
    %779 = vmatprep.subr.mxu0 0.0
    %780 = vmatpush2.msra.mxu0 0.0
    %781 = vmatprep.subr.mxu0 0.0
    %782 = vmatpush2.msra.mxu0 0.0
    %783 = vmatprep.subr.mxu0 0.0
    %784 = vmatpush2.msra.mxu0 0.0
    %785 = vmatprep.subr.mxu0 0.0
    %786 = vmatpush2.msra.mxu0 0.0
    %787 = vmatprep.subr.mxu0 0.0
    %788 = vmatpush2.msra.mxu0 0.0
    %789 = vmatprep.subr.mxu0 0.0
    %790 = vmatpush2.msra.mxu0 0.0
    %791 = vmatprep.subr.mxu0 0.0
    %792 = vmatpush2.msra.mxu0 0.0
    %793 = vmatprep.subr.mxu0 0.0
    %794 = vmatpush2.msra.mxu0 0.0
    %795 = vmatprep.subr.mxu0 0.0
    %796 = vmatpush2.msra.mxu0 0.0
    %797 = vmatprep.subr.mxu0 0.0
    %798 = vmatpush2.msra.mxu0 0.0
    %799 = vmatprep.subr.mxu0 0.0
    %800 = vmatpush2.msra.mxu0 0.0
    %801 = vmatprep.subr.mxu0 0.0
    %802 = vmatpush2.msra.mxu0 0.0
    %803 = vmatprep.subr.mxu0 0.0
    %804 = vmatpush2.msra.mxu0 0.0
    %805 = vmatprep.subr.mxu0 0.0
    %806 = vmatpush2.msra.mxu0 0.0
    %807 = vmatprep.subr.mxu0 0.0
    %808 = vmatpush2.msra.mxu0 0.0
    %809 = vmatprep.mubr.f32.mxu0 0.0
    %810 = vmatmul.mubr.f32.gmra.mxu0 %v740
    %v811 = vpop.f32.mrf.mxu0
    %v812 = vadd.f32 %v731, %v811
    %v813 = vpop.f32.mrf.mxu0
    %814 = vmatprep.mubr.f32.mxu0 0.0
    %815 = vmatmul.mubr.f32.gmra.mxu0 %v743
    %v816 = vpop.f32.mrf.mxu0
    %v817 = vadd.f32 %v736, %v816
    %v818 = vpop.f32.mrf.mxu0
    %819 = vdwg.mxu0
    %v821 = vlaneseq
    %v822 = vshrl.u32 %v821, 7
    %v823 = vsub.s32 0, %v822
    %v824 = vrot.slane %v649, %v823
    %v826 = vadd.f32 %v812, %v824
    %v827 = vadd.f32 %v817, %v824
    %v829 = vlaneseq
    %v830 = vshrl.u32 %v829, 7
    %v831 = vsub.s32 0, %v830
    %v832 = vrot.slane %v652, %v831
    %v835 = vsel %vm411, %v826, 0
    %v838 = vsel %vm411, %v827, 0
    %840 = vmatprep.subr.mxu0 0.0
    %841 = vmatpush1.msra.mxu0 0.0
    %842 = vmatprep.subr.mxu0 0.0
    %843 = vmatpush1.msra.mxu0 0.0
    %844 = vmatprep.subr.mxu0 0.0
    %845 = vmatpush1.msra.mxu0 0.0
    %846 = vmatprep.subr.mxu0 0.0
    %847 = vmatpush1.msra.mxu0 0.0
    %848 = vmatprep.subr.mxu0 0.0
    %849 = vmatpush1.msra.mxu0 0.0
    %850 = vmatprep.subr.mxu0 0.0
    %851 = vmatpush1.msra.mxu0 0.0
    %852 = vmatprep.subr.mxu0 0.0
    %853 = vmatpush1.msra.mxu0 0.0
    %854 = vmatprep.subr.mxu0 0.0
    %855 = vmatpush1.msra.mxu0 0.0
    %856 = vmatprep.subr.mxu0 0.0
    %857 = vmatpush1.msra.mxu0 0.0
    %858 = vmatprep.subr.mxu0 0.0
    %859 = vmatpush1.msra.mxu0 0.0
    %860 = vmatprep.subr.mxu0 0.0
    %861 = vmatpush1.msra.mxu0 0.0
    %862 = vmatprep.subr.mxu0 0.0
    %863 = vmatpush1.msra.mxu0 0.0
    %864 = vmatprep.subr.mxu0 0.0
    %865 = vmatpush1.msra.mxu0 0.0
    %866 = vmatprep.subr.mxu0 0.0
    %867 = vmatpush1.msra.mxu0 0.0
    %868 = vmatprep.subr.mxu0 0.0
    %869 = vmatpush1.msra.mxu0 %v651
    %870 = vmatprep.subr.mxu0 0.0
    %871 = vmatpush1.msra.mxu0 %v650
    %872 = vmatprep.subr.mxu0 0.0
    %873 = vmatpush2.msra.mxu0 0.0
    %874 = vmatprep.subr.mxu0 0.0
    %875 = vmatpush2.msra.mxu0 0.0
    %876 = vmatprep.subr.mxu0 0.0
    %877 = vmatpush2.msra.mxu0 0.0
    %878 = vmatprep.subr.mxu0 0.0
    %879 = vmatpush2.msra.mxu0 0.0
    %880 = vmatprep.subr.mxu0 0.0
    %881 = vmatpush2.msra.mxu0 0.0
    %882 = vmatprep.subr.mxu0 0.0
    %883 = vmatpush2.msra.mxu0 0.0
    %884 = vmatprep.subr.mxu0 0.0
    %885 = vmatpush2.msra.mxu0 0.0
    %886 = vmatprep.subr.mxu0 0.0
    %887 = vmatpush2.msra.mxu0 0.0
    %888 = vmatprep.subr.mxu0 0.0
    %889 = vmatpush2.msra.mxu0 0.0
    %890 = vmatprep.subr.mxu0 0.0
    %891 = vmatpush2.msra.mxu0 0.0
    %892 = vmatprep.subr.mxu0 0.0
    %893 = vmatpush2.msra.mxu0 0.0
    %894 = vmatprep.subr.mxu0 0.0
    %895 = vmatpush2.msra.mxu0 0.0
    %896 = vmatprep.subr.mxu0 0.0
    %897 = vmatpush2.msra.mxu0 0.0
    %898 = vmatprep.subr.mxu0 0.0
    %899 = vmatpush2.msra.mxu0 0.0
    %900 = vmatprep.subr.mxu0 0.0
    %901 = vmatpush2.msra.mxu0 0.0
    %902 = vmatprep.subr.mxu0 0.0
    %903 = vmatpush2.msra.mxu0 0.0
    %904 = vmatprep.mubr.f32.mxu0 0.0
    %905 = vmatmul.mubr.f32.gmra.mxu0 %v835
    %v906 = vpop.f32.mrf.mxu0
    %v907 = vadd.f32 %v832, %v906
    %v908 = vpop.f32.mrf.mxu0
    %909 = vmatprep.mubr.f32.mxu0 0.0
    %910 = vmatmul.mubr.f32.gmra.mxu0 %v838
    %v911 = vpop.f32.mrf.mxu0
    %v912 = vadd.f32 %v832, %v911
    %v913 = vpop.f32.mrf.mxu0
    %914 = vdwg.mxu0
    %v916 = vlaneseq
    %v917 = vshrl.u32 %v916, 7
    %v918 = vsub.s32 0, %v917
    %v919 = vrot.slane %v657, %v918
    %vm921 = vcmask 261120
    %v923 = vsel %vm921, %v907, 0
    %v926 = vsel %vm921, %v912, 0
    %928 = vmatprep.subr.mxu0 0.0
    %929 = vmatpush1.msra.mxu0 0.0
    %930 = vmatprep.subr.mxu0 0.0
    %931 = vmatpush1.msra.mxu0 0.0
    %932 = vmatprep.subr.mxu0 0.0
    %933 = vmatpush1.msra.mxu0 0.0
    %934 = vmatprep.subr.mxu0 0.0
    %935 = vmatpush1.msra.mxu0 0.0
    %936 = vmatprep.subr.mxu0 0.0
    %937 = vmatpush1.msra.mxu0 0.0
    %938 = vmatprep.subr.mxu0 0.0
    %939 = vmatpush1.msra.mxu0 0.0
    %940 = vmatprep.subr.mxu0 0.0
    %941 = vmatpush1.msra.mxu0 0.0
    %942 = vmatprep.subr.mxu0 0.0
    %943 = vmatpush1.msra.mxu0 0.0
    %944 = vmatprep.subr.mxu0 0.0
    %945 = vmatpush1.msra.mxu0 0.0
    %946 = vmatprep.subr.mxu0 0.0
    %947 = vmatpush1.msra.mxu0 0.0
    %948 = vmatprep.subr.mxu0 0.0
    %949 = vmatpush1.msra.mxu0 0.0
    %950 = vmatprep.subr.mxu0 0.0
    %951 = vmatpush1.msra.mxu0 0.0
    %952 = vmatprep.subr.mxu0 0.0
    %953 = vmatpush1.msra.mxu0 %v656
    %954 = vmatprep.subr.mxu0 0.0
    %955 = vmatpush1.msra.mxu0 %v655
    %956 = vmatprep.subr.mxu0 0.0
    %957 = vmatpush1.msra.mxu0 %v654
    %958 = vmatprep.subr.mxu0 0.0
    %959 = vmatpush1.msra.mxu0 %v653
    %960 = vmatprep.subr.mxu0 0.0
    %961 = vmatpush2.msra.mxu0 0.0
    %962 = vmatprep.subr.mxu0 0.0
    %963 = vmatpush2.msra.mxu0 0.0
    %964 = vmatprep.subr.mxu0 0.0
    %965 = vmatpush2.msra.mxu0 0.0
    %966 = vmatprep.subr.mxu0 0.0
    %967 = vmatpush2.msra.mxu0 0.0
    %968 = vmatprep.subr.mxu0 0.0
    %969 = vmatpush2.msra.mxu0 0.0
    %970 = vmatprep.subr.mxu0 0.0
    %971 = vmatpush2.msra.mxu0 0.0
    %972 = vmatprep.subr.mxu0 0.0
    %973 = vmatpush2.msra.mxu0 0.0
    %974 = vmatprep.subr.mxu0 0.0
    %975 = vmatpush2.msra.mxu0 0.0
    %976 = vmatprep.subr.mxu0 0.0
    %977 = vmatpush2.msra.mxu0 0.0
    %978 = vmatprep.subr.mxu0 0.0
    %979 = vmatpush2.msra.mxu0 0.0
    %980 = vmatprep.subr.mxu0 0.0
    %981 = vmatpush2.msra.mxu0 0.0
    %982 = vmatprep.subr.mxu0 0.0
    %983 = vmatpush2.msra.mxu0 0.0
    %984 = vmatprep.subr.mxu0 0.0
    %985 = vmatpush2.msra.mxu0 0.0
    %986 = vmatprep.subr.mxu0 0.0
    %987 = vmatpush2.msra.mxu0 0.0
    %988 = vmatprep.subr.mxu0 0.0
    %989 = vmatpush2.msra.mxu0 0.0
    %990 = vmatprep.subr.mxu0 0.0
    %991 = vmatpush2.msra.mxu0 0.0
    %992 = vmatprep.mubr.f32.mxu0 0.0
    %993 = vmatmul.mubr.f32.gmra.mxu0 %v923
    %v994 = vpop.f32.mrf.mxu0
    %v995 = vadd.f32 %v919, %v994
    %v996 = vpop.f32.mrf.mxu0
    %997 = vmatprep.mubr.f32.mxu0 0.0
    %998 = vmatmul.mubr.f32.gmra.mxu0 %v926
    %v999 = vpop.f32.mrf.mxu0
    %v1000 = vadd.f32 %v919, %v999
    %v1001 = vpop.f32.mrf.mxu0
    %1002 = vdwg.mxu0
    %v1003 = vsub.f32 %v221, %v995
    %v1004 = vsub.f32 %v226, %v1000
    %v1005 = vmul.f32 %v1003, %v1003
    %v1006 = vmul.f32 %v1004, %v1004
    %v1007 = vsel %vm411, %v1005, 0.0
    %1008 = vadd.xlane.f32.xlu0 %v1007
    %v1009 = vpop.xlane.xlu0 %1008
    %v1010 = vsel %vm411, %v1006, 0.0
    %1011 = vadd.xlane.f32.xlu0 %v1010
    %v1012 = vpop.xlane.xlu0 %1011
    %v1013 = vadd.f32 %v1009, %v1012
    %v1014 = vrot.slane %v1013, 4
    %v1015 = vadd.f32 %v1013, %v1014
    %v1016 = vrot.slane %v1015, 2
    %v1017 = vadd.f32 %v1015, %v1016
    %v1018 = vrot.slane %v1017, 1
    %v1019 = vadd.f32 %v1017, %v1018
    %vm1020 = vcmask 0
    %1021 = vst.msk [vmem:[#allocation14] sm:$0x1] %vm1020, %v1019
    %1022 = vst.msk [vmem:[%s14] sm:$0xff] %vm411, %v995
    %1023 = vst.msk [vmem:[%s14 + $0x8] sm:$0xff] %vm411, %v1000
    %s1024 = scalar_lea.vmem %s14, 16
    %1025 = vst.msk [vmem:[%s1024] sm:$0xff] %vm411, %v310
    %1026 = vst.msk [vmem:[%s1024 + $0x8] sm:$0xff] %vm411, %v315
    %s1027 = scalar_lea.vmem %s14, 32
    %1028 = vst.msk [vmem:[%s1027] sm:$0xff] %vm411, %v400
    %1029 = vst.msk [vmem:[%s1027 + $0x8] sm:$0xff] %vm411, %v405
    // Predicated region
    $region86: #{dicmor_forward.2} parent=1 // pred_check
      _
    $region87: #{dicmor_forward.2} parent=1 // pred_check_branch
      %1031 = sbr.rel (0) target = $region89
    $region88: #{dicmor_forward.2} parent=1 // pred_region
      _
    $region89: #{dicmor_forward.2} parent=1 // pred_fallthru
      _
    // Predicated region
    $region90: #{dicmor_forward.2} parent=1 // pred_check
      _
    $region91: #{dicmor_forward.2} parent=1 // pred_check_branch
      %1033 = sbr.rel (0) target = $region93
    $region92: #{dicmor_forward.2} parent=1 // pred_region
      _
    $region93: #{dicmor_forward.2} parent=1 // pred_fallthru
      _
    // Predicated region
    $region94: #{dicmor_forward.2} parent=1 // pred_check
      _
    $region95: #{dicmor_forward.2} parent=1 // pred_check_branch
      %1035 = sbr.rel (0) target = $region97
    $region96: #{dicmor_forward.2} parent=1 // pred_region
      %s1037 = ssub.s32 16, 16
      %1038 = vsyncadd [#allocation4], %s1037
      %s1040 = sshll.u32 [#allocation14], 4
      %s1041 = int_to_ptr.vmem [resolvable:$true] %s1040
      %1043 = dma.vmem_to_hbm [thread:$0]  %s1041, 16, %s16, [#allocation4]
    $region97: #{dicmor_forward.2} parent=1 // pred_fallthru
      _
    // Predicated region
    $region98: #{dicmor_forward.2} parent=1 // pred_check
      _
    $region99: #{dicmor_forward.2} parent=1 // pred_check_branch
      %1045 = sbr.rel (0) target = $region101
    $region100: #{dicmor_forward.2} parent=1 // pred_region
      _
    $region101: #{dicmor_forward.2} parent=1 // pred_fallthru
      _
    // Predicated region
    $region102: #{dicmor_forward.2} parent=1 // pred_check
      _
    $region103: #{dicmor_forward.2} parent=1 // pred_check_branch
      %1047 = sbr.rel (0) target = $region105
    $region104: #{dicmor_forward.2} parent=1 // pred_region
      _
    $region105: #{dicmor_forward.2} parent=1 // pred_fallthru
      _
    // Predicated region
    $region106: #{dicmor_forward.2} parent=1 // pred_check
      _
    $region107: #{dicmor_forward.2} parent=1 // pred_check_branch
      %1049 = sbr.rel (0) target = $region109
    $region108: #{dicmor_forward.2} parent=1 // pred_region
      %1050 = dma.done [#allocation4], 16
    $region109: #{dicmor_forward.2} parent=1 // pred_fallthru
      _
    %1051 = vsyncpa [#allocation3], 1
    %1052 = vsyncpa [#allocation6], 1
    %1053 = vsyncpa [#allocation9], 1
    %1054 = vsyncpa [#allocation12], 1
    %1055 = vsyncpa [#allocation4], 1

// kernel: dicmor_forward.3
$region0: #{dicmor_forward.3}
  #allocation0 [shape = 'u32[]', space=smem, size = 0x4, offset = 0x4, fixed_abs, tag = 'smem constant byte address 0x4 - core index']
  #allocation1 [shape = 'u32[144,128]{1,0:T(1,128)}', space=vmem, size = 0x12000, scoped, tag = 'internal scratch']
  #allocation2 [shape = 's32[1]{0}', space=sflag, size = 0x4, scoped, tag = 'scoped memory for dicmor_forward.3']
  #allocation3 [shape = 'u8[2048]{0}', space=smem, size = 0x800, scoped, tag = 'prefetched SMEM operand 0']
  %s0 = inlined_call_operand.hbm [shape: s32[3,3], index: 0, kind: input, shape index: {}]
  %s1 = inlined_call_operand.vmem [shape: f32[3,16,16], index: 1, kind: input, shape index: {}, may-alias: {1,2,3}]
  %s2 = inlined_call_operand.vmem [shape: f32[3,16,16], index: 2, kind: input, shape index: {}, may-alias: {1,2,3}]
  %s3 = inlined_call_operand.vmem [shape: f32[3,16,16], index: 3, kind: input, shape index: {}, may-alias: {1,2,3}]
  %s4 = inlined_call_operand.hbm [shape: f32[16,16], index: 4, kind: input, shape index: {}]
  %s5 = inlined_call_operand.hbm [shape: f32[16,32], index: 5, kind: input, shape index: {}]
  %s6 = inlined_call_operand.vmem [shape: f32[64,16], index: 6, kind: input, shape index: {}]
  %s7 = inlined_call_operand.vmem [shape: f32[64,16], index: 7, kind: input, shape index: {}]
  %s8 = inlined_call_operand.vmem [shape: f32[64,32], index: 8, kind: input, shape index: {}]
  %s9 = inlined_call_operand.vmem [shape: f32[2,16], index: 9, kind: input, shape index: {}]
  %s10 = inlined_call_operand.vmem [shape: f32[3,2,1,16,16], index: 10, kind: input, shape index: {}]
  %s11 = inlined_call_operand.vmem [shape: f32[3,2,1,16,16], index: 11, kind: input, shape index: {}]
  %s12 = inlined_call_operand.vmem [shape: f32[3,2,1,16,16], index: 12, kind: input, shape index: {}]
  %s13 = inlined_call_operand.vmem [shape: f32[3,2,1,16,16], index: 13, kind: input, shape index: {}]
  %s14 = inlined_call_operand.vmem [shape: f32[3,2,1,16,64], index: 14, kind: input, shape index: {}]
  %s15 = inlined_call_operand.vmem [shape: f32[3,2,1,64,16], index: 15, kind: input, shape index: {}]
  %s16 = inlined_call_operand.hbm [shape: f32[3,2,1,1,64], index: 16, kind: input, shape index: {}]
  %s17 = inlined_call_operand.hbm [shape: f32[3,2,1,16,16], index: 17, kind: input, shape index: {}]
  %s18 = inlined_call_operand.vmem [shape: f32[3,3,32,32], index: 18, kind: input, shape index: {}]
  %s19 = inlined_call_operand.vmem [shape: f32[3,3,32,32], index: 19, kind: input, shape index: {}]
  %s20 = inlined_call_operand.vmem [shape: f32[3,3,32,32], index: 20, kind: input, shape index: {}]
  %s21 = inlined_call_operand.vmem [shape: f32[3,3,32,32], index: 21, kind: input, shape index: {}]
  %s22 = inlined_call_operand.vmem [shape: f32[3,3,32,128], index: 22, kind: input, shape index: {}]
  %s23 = inlined_call_operand.vmem [shape: f32[3,3,128,32], index: 23, kind: input, shape index: {}]
  %s24 = inlined_call_operand.hbm [shape: f32[3,3,1,128], index: 24, kind: input, shape index: {}]
  %s25 = inlined_call_operand.vmem [shape: f32[3,3,16,32], index: 25, kind: input, shape index: {}]
  %s26 = inlined_call_operand.vmem [shape: f32[3,2,32], index: 26, kind: output, shape index: {}]
  %s27 = sld [smem:[#allocation0]]
  $region153: #{dicmor_forward.3} parent=0
    _
  %s29 = ssub.s32 1, %s27
  %s30 = scalar_select 0, %s29, %s27
  %32 = dma.hbm_to_smem %s0, 64, [#allocation3], [#allocation2]
  %33 = dma.done [#allocation2], 64
  %34 = sfence
  $region1: #{dicmor_forward.3} parent=0
    #allocation4 [shape = 'u8[8192]{0}', space=vmem, size = 0x2000, scoped, tag = 'input window, operand 4, single buffered']
    #allocation5 [shape = 's32[2]{0}', space=sflag, size = 0x8, scoped, tag = 'scoped memory for dicmor_forward.3']
    #allocation6 [shape = 'u8[8192]{0}', space=vmem, size = 0x2000, scoped, tag = 'input window, operand 5, single buffered']
    #allocation7 [shape = 's32[1]{0}', space=sflag, size = 0x4, scoped, tag = 'scoped memory for dicmor_forward.3']
    #allocation8 [shape = 'u8[2048]{0}', space=vmem, size = 0x800, scoped, tag = 'input window, operand 16']
    #allocation9 [shape = 'u8[32768]{0}', space=vmem, size = 0x8000, scoped, tag = 'input window, operand 17']
    #allocation10 [shape = 'u8[3072]{0}', space=vmem, size = 0xc00, scoped, tag = 'input window, operand 24']
    %35 = vsyncpa [#allocation5], 0
    %36 = vsyncpa [#allocation7], 0
    loop: start=0, step=1, limit=5
    $region2: #{dicmor_forward.3} parent=1 // loop_pre_header
      _
    $region3: #{dicmor_forward.3} parent=1 // loop_header
      %s38 = sphi 0, %s42
      %p39 = scmp.ge.s32.totalorder %s38, 5
      %s52 = sphi 0, %s54
      %s55 = sphi 0, %s52
      %s56 = sphi 0, %s55
      %s72 = sphi 0, %s56
      %s84 = sphi 0, %s86
      %s87 = sphi 0, %s84
      %s88 = sphi 0, %s87
      %s104 = sphi 0, %s88
      %s116 = sphi 0, %s118
      %s119 = sphi 0, %s116
      %s120 = sphi 0, %s119
      %s136 = sphi 0, %s120
      %s140 = sphi 0, %s140
      %s142 = sphi 0, %s140
      %s143 = sphi 0, %s142
      %s157 = sphi 0, %s143
      %s161 = sphi 0, %s161
      %s163 = sphi 0, %s161
      %s164 = sphi 0, %s163
      %s178 = sphi 0, %s164
      %s182 = sphi 0, %s182
      %s184 = sphi 0, %s182
      %s185 = sphi 0, %s184
      %s199 = sphi 0, %s185
      %s203 = sphi 0, %s203
      %s205 = sphi 0, %s203
      %s206 = sphi 0, %s205
      %s220 = sphi 0, %s206
      %s224 = sphi 0, %s224
      %s226 = sphi 0, %s224
      %s227 = sphi 0, %s226
      %s241 = sphi 0, %s227
      %s245 = sphi 0, %s245
      %s247 = sphi 0, %s245
      %s248 = sphi 0, %s247
      %s262 = sphi 0, %s248
      %s268 = sphi 0, %s270
      %s271 = sphi 0, %s268
      %s272 = sphi 0, %s271
      %s288 = sphi 0, %s272
      %s294 = sphi 0, %s296
      %s297 = sphi 0, %s294
      %s298 = sphi 0, %s297
      %s314 = sphi 0, %s298
      %s320 = sphi 0, %s322
      %s323 = sphi 0, %s320
      %s324 = sphi 0, %s323
      %s340 = sphi 0, %s324
      %s346 = sphi 0, %s348
      %s349 = sphi 0, %s346
      %s350 = sphi 0, %s349
      %s366 = sphi 0, %s350
      %s372 = sphi 0, %s374
      %s375 = sphi 0, %s372
      %s376 = sphi 0, %s375
      %s392 = sphi 0, %s376
      %s398 = sphi 0, %s400
      %s401 = sphi 0, %s398
      %s402 = sphi 0, %s401
      %s418 = sphi 0, %s402
      %s424 = sphi 0, %s426
      %s427 = sphi 0, %s424
      %s428 = sphi 0, %s427
      %s444 = sphi 0, %s428
      %s450 = sphi 0, %s452
      %s453 = sphi 0, %s450
      %s454 = sphi 0, %s453
      %s470 = sphi 0, %s454
      %s476 = sphi 0, %s478
      %s479 = sphi 0, %s476
      %s480 = sphi 0, %s479
      %s496 = sphi 0, %s480
      %s502 = sphi 0, %s504
      %s505 = sphi 0, %s502
      %s506 = sphi 0, %s505
      %s522 = sphi 0, %s506
      %s528 = sphi 0, %s530
      %s531 = sphi 0, %s528
      %s532 = sphi 0, %s531
      %s548 = sphi 0, %s532
      %s554 = sphi 0, %s556
      %s557 = sphi 0, %s554
      %s558 = sphi 0, %s557
      %s574 = sphi 0, %s558
      %s580 = sphi 0, %s582
      %s583 = sphi 0, %s580
      %s584 = sphi 0, %s583
      %s600 = sphi 0, %s584
      %s606 = sphi 0, %s608
      %s609 = sphi 0, %s606
      %s610 = sphi 0, %s609
      %s626 = sphi 0, %s610
      %s632 = sphi 0, %s634
      %s635 = sphi 0, %s632
      %s636 = sphi 0, %s635
      %s652 = sphi 0, %s636
      %s658 = sphi 0, %s660
      %s661 = sphi 0, %s658
      %s662 = sphi 0, %s661
      %s678 = sphi 0, %s662
      %s684 = sphi 0, %s686
      %s687 = sphi 0, %s684
      %s688 = sphi 0, %s687
      %s704 = sphi 0, %s688
    $region4: #{dicmor_forward.3} parent=1 // loop_header_branch
      %41 = sbr.rel (%p39) target = $region8
    $region5: #{dicmor_forward.3} parent=1 // loop_body
      %s43 = ssub.s32 %s38, 1
      %s44 = ssub.s32 %s38, 2
      %s45 = sadd.s32 %s38, 1
      %s46 = smul.u32 %s38, 128
      %s47 = sld [smem:[#allocation3 + %s46]]
      %s48 = smul.u32 %s45, 128
      %s49 = sld [smem:[#allocation3 + %s48]]
      %s50 = ssub.s32 %s47, %s49
      %p51 = scmp.eq.s32.totalorder %s50, 0
      %s53 = sadd.s32 %s52, 1
      %s54 = scalar_select %p51, %s52, %s53
      %p57 = pneg %p51
      %p58 = scmp.eq.s32.totalorder %s38, 2
      %p59 = por %p57, %p58
      %p60 = scmp.ne.s32.totalorder %s52, %s55
      %p61 = scmp.eq.s32.totalorder %s38, 0
      %p62 = por %p60, %p61
      %p63 = scmp.ne.s32.totalorder %s52, %s55
      %p64 = scmp.eq.s32.totalorder %s43, 2
      %p65 = por %p63, %p64
      %p66 = scmp.ne.s32.totalorder %s55, %s56
      %p67 = scmp.eq.s32.totalorder %s43, 0
      %p68 = por %p66, %p67
      %p69 = scmp.ne.s32.totalorder %s55, %s56
      %p70 = scmp.eq.s32.totalorder %s44, 2
      %p71 = por %p69, %p70
      %p73 = scmp.ne.s32.totalorder %s56, %s72
      %p74 = scmp.eq.s32.totalorder %s44, 0
      %p75 = por %p73, %p74
      %s76 = smul.u32 %s38, 128
      %s77 = sadd.s32 %s76, 1
      %s78 = sld [smem:[#allocation3 + %s77]]
      %s79 = smul.u32 %s45, 128
      %s80 = sadd.s32 %s79, 1
      %s81 = sld [smem:[#allocation3 + %s80]]
      %s82 = ssub.s32 %s78, %s81
      %p83 = scmp.eq.s32.totalorder %s82, 0
      %s85 = sadd.s32 %s84, 1
      %s86 = scalar_select %p83, %s84, %s85
      %p89 = pneg %p83
      %p90 = scmp.eq.s32.totalorder %s38, 2
      %p91 = por %p89, %p90
      %p92 = scmp.ne.s32.totalorder %s84, %s87
      %p93 = scmp.eq.s32.totalorder %s38, 0
      %p94 = por %p92, %p93
      %p95 = scmp.ne.s32.totalorder %s84, %s87
      %p96 = scmp.eq.s32.totalorder %s43, 2
      %p97 = por %p95, %p96
      %p98 = scmp.ne.s32.totalorder %s87, %s88
      %p99 = scmp.eq.s32.totalorder %s43, 0
      %p100 = por %p98, %p99
      %p101 = scmp.ne.s32.totalorder %s87, %s88
      %p102 = scmp.eq.s32.totalorder %s44, 2
      %p103 = por %p101, %p102
      %p105 = scmp.ne.s32.totalorder %s88, %s104
      %p106 = scmp.eq.s32.totalorder %s44, 0
      %p107 = por %p105, %p106
      %s108 = smul.u32 %s38, 128
      %s109 = sadd.s32 %s108, 2
      %s110 = sld [smem:[#allocation3 + %s109]]
      %s111 = smul.u32 %s45, 128
      %s112 = sadd.s32 %s111, 2
      %s113 = sld [smem:[#allocation3 + %s112]]
      %s114 = ssub.s32 %s110, %s113
      %p115 = scmp.eq.s32.totalorder %s114, 0
      %s117 = sadd.s32 %s116, 1
      %s118 = scalar_select %p115, %s116, %s117
      %p121 = pneg %p115
      %p122 = scmp.eq.s32.totalorder %s38, 2
      %p123 = por %p121, %p122
      %p124 = scmp.ne.s32.totalorder %s116, %s119
      %p125 = scmp.eq.s32.totalorder %s38, 0
      %p126 = por %p124, %p125
      %p127 = scmp.ne.s32.totalorder %s116, %s119
      %p128 = scmp.eq.s32.totalorder %s43, 2
      %p129 = por %p127, %p128
      %p130 = scmp.ne.s32.totalorder %s119, %s120
      %p131 = scmp.eq.s32.totalorder %s43, 0
      %p132 = por %p130, %p131
      %p133 = scmp.ne.s32.totalorder %s119, %s120
      %p134 = scmp.eq.s32.totalorder %s44, 2
      %p135 = por %p133, %p134
      %p137 = scmp.ne.s32.totalorder %s120, %s136
      %p138 = scmp.eq.s32.totalorder %s44, 0
      %p139 = por %p137, %p138
      %s141 = sadd.s32 %s140, 1
      %p144 = scmp.eq.s32.totalorder %s38, 2
      %p145 = scmp.ne.s32.totalorder %s140, %s142
      %p146 = scmp.eq.s32.totalorder %s38, 0
      %p147 = por %p145, %p146
      %p148 = scmp.ne.s32.totalorder %s140, %s142
      %p149 = scmp.eq.s32.totalorder %s43, 2
      %p150 = por %p148, %p149
      %p151 = scmp.ne.s32.totalorder %s142, %s143
      %p152 = scmp.eq.s32.totalorder %s43, 0
      %p153 = por %p151, %p152
      %p154 = scmp.ne.s32.totalorder %s142, %s143
      %p155 = scmp.eq.s32.totalorder %s44, 2
      %p156 = por %p154, %p155
      %p158 = scmp.ne.s32.totalorder %s143, %s157
      %p159 = scmp.eq.s32.totalorder %s44, 0
      %p160 = por %p158, %p159
      %s162 = sadd.s32 %s161, 1
      %p165 = scmp.eq.s32.totalorder %s38, 2
      %p166 = scmp.ne.s32.totalorder %s161, %s163
      %p167 = scmp.eq.s32.totalorder %s38, 0
      %p168 = por %p166, %p167
      %p169 = scmp.ne.s32.totalorder %s161, %s163
      %p170 = scmp.eq.s32.totalorder %s43, 2
      %p171 = por %p169, %p170
      %p172 = scmp.ne.s32.totalorder %s163, %s164
      %p173 = scmp.eq.s32.totalorder %s43, 0
      %p174 = por %p172, %p173
      %p175 = scmp.ne.s32.totalorder %s163, %s164
      %p176 = scmp.eq.s32.totalorder %s44, 2
      %p177 = por %p175, %p176
      %p179 = scmp.ne.s32.totalorder %s164, %s178
      %p180 = scmp.eq.s32.totalorder %s44, 0
      %p181 = por %p179, %p180
      %s183 = sadd.s32 %s182, 1
      %p186 = scmp.eq.s32.totalorder %s38, 2
      %p187 = scmp.ne.s32.totalorder %s182, %s184
      %p188 = scmp.eq.s32.totalorder %s38, 0
      %p189 = por %p187, %p188
      %p190 = scmp.ne.s32.totalorder %s182, %s184
      %p191 = scmp.eq.s32.totalorder %s43, 2
      %p192 = por %p190, %p191
      %p193 = scmp.ne.s32.totalorder %s184, %s185
      %p194 = scmp.eq.s32.totalorder %s43, 0
      %p195 = por %p193, %p194
      %p196 = scmp.ne.s32.totalorder %s184, %s185
      %p197 = scmp.eq.s32.totalorder %s44, 2
      %p198 = por %p196, %p197
      %p200 = scmp.ne.s32.totalorder %s185, %s199
      %p201 = scmp.eq.s32.totalorder %s44, 0
      %p202 = por %p200, %p201
      %s204 = sadd.s32 %s203, 1
      %p207 = scmp.eq.s32.totalorder %s38, 2
      %p208 = scmp.ne.s32.totalorder %s203, %s205
      %p209 = scmp.eq.s32.totalorder %s38, 0
      %p210 = por %p208, %p209
      %p211 = scmp.ne.s32.totalorder %s203, %s205
      %p212 = scmp.eq.s32.totalorder %s43, 2
      %p213 = por %p211, %p212
      %p214 = scmp.ne.s32.totalorder %s205, %s206
      %p215 = scmp.eq.s32.totalorder %s43, 0
      %p216 = por %p214, %p215
      %p217 = scmp.ne.s32.totalorder %s205, %s206
      %p218 = scmp.eq.s32.totalorder %s44, 2
      %p219 = por %p217, %p218
      %p221 = scmp.ne.s32.totalorder %s206, %s220
      %p222 = scmp.eq.s32.totalorder %s44, 0
      %p223 = por %p221, %p222
      %s225 = sadd.s32 %s224, 1
      %p228 = scmp.eq.s32.totalorder %s38, 2
      %p229 = scmp.ne.s32.totalorder %s224, %s226
      %p230 = scmp.eq.s32.totalorder %s38, 0
      %p231 = por %p229, %p230
      %p232 = scmp.ne.s32.totalorder %s224, %s226
      %p233 = scmp.eq.s32.totalorder %s43, 2
      %p234 = por %p232, %p233
      %p235 = scmp.ne.s32.totalorder %s226, %s227
      %p236 = scmp.eq.s32.totalorder %s43, 0
      %p237 = por %p235, %p236
      %p238 = scmp.ne.s32.totalorder %s226, %s227
      %p239 = scmp.eq.s32.totalorder %s44, 2
      %p240 = por %p238, %p239
      %p242 = scmp.ne.s32.totalorder %s227, %s241
      %p243 = scmp.eq.s32.totalorder %s44, 0
      %p244 = por %p242, %p243
      %s246 = sadd.s32 %s245, 1
      %p249 = scmp.eq.s32.totalorder %s38, 2
      %p250 = scmp.ne.s32.totalorder %s245, %s247
      %p251 = scmp.eq.s32.totalorder %s38, 0
      %p252 = por %p250, %p251
      %p253 = scmp.ne.s32.totalorder %s245, %s247
      %p254 = scmp.eq.s32.totalorder %s43, 2
      %p255 = por %p253, %p254
      %p256 = scmp.ne.s32.totalorder %s247, %s248
      %p257 = scmp.eq.s32.totalorder %s43, 0
      %p258 = por %p256, %p257
      %p259 = scmp.ne.s32.totalorder %s247, %s248
      %p260 = scmp.eq.s32.totalorder %s44, 2
      %p261 = por %p259, %p260
      %p263 = scmp.ne.s32.totalorder %s248, %s262
      %p264 = scmp.eq.s32.totalorder %s44, 0
      %p265 = por %p263, %p264
      %s266 = ssub.s32 %s38, %s45
      %p267 = scmp.eq.s32.totalorder %s266, 0
      %s269 = sadd.s32 %s268, 1
      %s270 = scalar_select %p267, %s268, %s269
      %p273 = pneg %p267
      %p274 = scmp.eq.s32.totalorder %s38, 2
      %p275 = por %p273, %p274
      %p276 = scmp.ne.s32.totalorder %s268, %s271
      %p277 = scmp.eq.s32.totalorder %s38, 0
      %p278 = por %p276, %p277
      %p279 = scmp.ne.s32.totalorder %s268, %s271
      %p280 = scmp.eq.s32.totalorder %s43, 2
      %p281 = por %p279, %p280
      %p282 = scmp.ne.s32.totalorder %s271, %s272
      %p283 = scmp.eq.s32.totalorder %s43, 0
      %p284 = por %p282, %p283
      %p285 = scmp.ne.s32.totalorder %s271, %s272
      %p286 = scmp.eq.s32.totalorder %s44, 2
      %p287 = por %p285, %p286
      %p289 = scmp.ne.s32.totalorder %s272, %s288
      %p290 = scmp.eq.s32.totalorder %s44, 0
      %p291 = por %p289, %p290
      %s292 = ssub.s32 %s38, %s45
      %p293 = scmp.eq.s32.totalorder %s292, 0
      %s295 = sadd.s32 %s294, 1
      %s296 = scalar_select %p293, %s294, %s295
      %p299 = pneg %p293
      %p300 = scmp.eq.s32.totalorder %s38, 2
      %p301 = por %p299, %p300
      %p302 = scmp.ne.s32.totalorder %s294, %s297
      %p303 = scmp.eq.s32.totalorder %s38, 0
      %p304 = por %p302, %p303
      %p305 = scmp.ne.s32.totalorder %s294, %s297
      %p306 = scmp.eq.s32.totalorder %s43, 2
      %p307 = por %p305, %p306
      %p308 = scmp.ne.s32.totalorder %s297, %s298
      %p309 = scmp.eq.s32.totalorder %s43, 0
      %p310 = por %p308, %p309
      %p311 = scmp.ne.s32.totalorder %s297, %s298
      %p312 = scmp.eq.s32.totalorder %s44, 2
      %p313 = por %p311, %p312
      %p315 = scmp.ne.s32.totalorder %s298, %s314
      %p316 = scmp.eq.s32.totalorder %s44, 0
      %p317 = por %p315, %p316
      %s318 = ssub.s32 %s38, %s45
      %p319 = scmp.eq.s32.totalorder %s318, 0
      %s321 = sadd.s32 %s320, 1
      %s322 = scalar_select %p319, %s320, %s321
      %p325 = pneg %p319
      %p326 = scmp.eq.s32.totalorder %s38, 2
      %p327 = por %p325, %p326
      %p328 = scmp.ne.s32.totalorder %s320, %s323
      %p329 = scmp.eq.s32.totalorder %s38, 0
      %p330 = por %p328, %p329
      %p331 = scmp.ne.s32.totalorder %s320, %s323
      %p332 = scmp.eq.s32.totalorder %s43, 2
      %p333 = por %p331, %p332
      %p334 = scmp.ne.s32.totalorder %s323, %s324
      %p335 = scmp.eq.s32.totalorder %s43, 0
      %p336 = por %p334, %p335
      %p337 = scmp.ne.s32.totalorder %s323, %s324
      %p338 = scmp.eq.s32.totalorder %s44, 2
      %p339 = por %p337, %p338
      %p341 = scmp.ne.s32.totalorder %s324, %s340
      %p342 = scmp.eq.s32.totalorder %s44, 0
      %p343 = por %p341, %p342
      %s344 = ssub.s32 %s38, %s45
      %p345 = scmp.eq.s32.totalorder %s344, 0
      %s347 = sadd.s32 %s346, 1
      %s348 = scalar_select %p345, %s346, %s347
      %p351 = pneg %p345
      %p352 = scmp.eq.s32.totalorder %s38, 2
      %p353 = por %p351, %p352
      %p354 = scmp.ne.s32.totalorder %s346, %s349
      %p355 = scmp.eq.s32.totalorder %s38, 0
      %p356 = por %p354, %p355
      %p357 = scmp.ne.s32.totalorder %s346, %s349
      %p358 = scmp.eq.s32.totalorder %s43, 2
      %p359 = por %p357, %p358
      %p360 = scmp.ne.s32.totalorder %s349, %s350
      %p361 = scmp.eq.s32.totalorder %s43, 0
      %p362 = por %p360, %p361
      %p363 = scmp.ne.s32.totalorder %s349, %s350
      %p364 = scmp.eq.s32.totalorder %s44, 2
      %p365 = por %p363, %p364
      %p367 = scmp.ne.s32.totalorder %s350, %s366
      %p368 = scmp.eq.s32.totalorder %s44, 0
      %p369 = por %p367, %p368
      %s370 = ssub.s32 %s38, %s45
      %p371 = scmp.eq.s32.totalorder %s370, 0
      %s373 = sadd.s32 %s372, 1
      %s374 = scalar_select %p371, %s372, %s373
      %p377 = pneg %p371
      %p378 = scmp.eq.s32.totalorder %s38, 2
      %p379 = por %p377, %p378
      %p380 = scmp.ne.s32.totalorder %s372, %s375
      %p381 = scmp.eq.s32.totalorder %s38, 0
      %p382 = por %p380, %p381
      %p383 = scmp.ne.s32.totalorder %s372, %s375
      %p384 = scmp.eq.s32.totalorder %s43, 2
      %p385 = por %p383, %p384
      %p386 = scmp.ne.s32.totalorder %s375, %s376
      %p387 = scmp.eq.s32.totalorder %s43, 0
      %p388 = por %p386, %p387
      %p389 = scmp.ne.s32.totalorder %s375, %s376
      %p390 = scmp.eq.s32.totalorder %s44, 2
      %p391 = por %p389, %p390
      %p393 = scmp.ne.s32.totalorder %s376, %s392
      %p394 = scmp.eq.s32.totalorder %s44, 0
      %p395 = por %p393, %p394
      %s396 = ssub.s32 %s38, %s45
      %p397 = scmp.eq.s32.totalorder %s396, 0
      %s399 = sadd.s32 %s398, 1
      %s400 = scalar_select %p397, %s398, %s399
      %p403 = pneg %p397
      %p404 = scmp.eq.s32.totalorder %s38, 2
      %p405 = por %p403, %p404
      %p406 = scmp.ne.s32.totalorder %s398, %s401
      %p407 = scmp.eq.s32.totalorder %s38, 0
      %p408 = por %p406, %p407
      %p409 = scmp.ne.s32.totalorder %s398, %s401
      %p410 = scmp.eq.s32.totalorder %s43, 2
      %p411 = por %p409, %p410
      %p412 = scmp.ne.s32.totalorder %s401, %s402
      %p413 = scmp.eq.s32.totalorder %s43, 0
      %p414 = por %p412, %p413
      %p415 = scmp.ne.s32.totalorder %s401, %s402
      %p416 = scmp.eq.s32.totalorder %s44, 2
      %p417 = por %p415, %p416
      %p419 = scmp.ne.s32.totalorder %s402, %s418
      %p420 = scmp.eq.s32.totalorder %s44, 0
      %p421 = por %p419, %p420
      %s422 = ssub.s32 %s38, %s45
      %p423 = scmp.eq.s32.totalorder %s422, 0
      %s425 = sadd.s32 %s424, 1
      %s426 = scalar_select %p423, %s424, %s425
      %p429 = pneg %p423
      %p430 = scmp.eq.s32.totalorder %s38, 2
      %p431 = por %p429, %p430
      %p432 = scmp.ne.s32.totalorder %s424, %s427
      %p433 = scmp.eq.s32.totalorder %s38, 0
      %p434 = por %p432, %p433
      %p435 = scmp.ne.s32.totalorder %s424, %s427
      %p436 = scmp.eq.s32.totalorder %s43, 2
      %p437 = por %p435, %p436
      %p438 = scmp.ne.s32.totalorder %s427, %s428
      %p439 = scmp.eq.s32.totalorder %s43, 0
      %p440 = por %p438, %p439
      %p441 = scmp.ne.s32.totalorder %s427, %s428
      %p442 = scmp.eq.s32.totalorder %s44, 2
      %p443 = por %p441, %p442
      %p445 = scmp.ne.s32.totalorder %s428, %s444
      %p446 = scmp.eq.s32.totalorder %s44, 0
      %p447 = por %p445, %p446
      %s448 = ssub.s32 %s38, %s45
      %p449 = scmp.eq.s32.totalorder %s448, 0
      %s451 = sadd.s32 %s450, 1
      %s452 = scalar_select %p449, %s450, %s451
      %p455 = pneg %p449
      %p456 = scmp.eq.s32.totalorder %s38, 2
      %p457 = por %p455, %p456
      %p458 = scmp.ne.s32.totalorder %s450, %s453
      %p459 = scmp.eq.s32.totalorder %s38, 0
      %p460 = por %p458, %p459
      %p461 = scmp.ne.s32.totalorder %s450, %s453
      %p462 = scmp.eq.s32.totalorder %s43, 2
      %p463 = por %p461, %p462
      %p464 = scmp.ne.s32.totalorder %s453, %s454
      %p465 = scmp.eq.s32.totalorder %s43, 0
      %p466 = por %p464, %p465
      %p467 = scmp.ne.s32.totalorder %s453, %s454
      %p468 = scmp.eq.s32.totalorder %s44, 2
      %p469 = por %p467, %p468
      %p471 = scmp.ne.s32.totalorder %s454, %s470
      %p472 = scmp.eq.s32.totalorder %s44, 0
      %p473 = por %p471, %p472
      %s474 = ssub.s32 %s38, %s45
      %p475 = scmp.eq.s32.totalorder %s474, 0
      %s477 = sadd.s32 %s476, 1
      %s478 = scalar_select %p475, %s476, %s477
      %p481 = pneg %p475
      %p482 = scmp.eq.s32.totalorder %s38, 2
      %p483 = por %p481, %p482
      %p484 = scmp.ne.s32.totalorder %s476, %s479
      %p485 = scmp.eq.s32.totalorder %s38, 0
      %p486 = por %p484, %p485
      %p487 = scmp.ne.s32.totalorder %s476, %s479
      %p488 = scmp.eq.s32.totalorder %s43, 2
      %p489 = por %p487, %p488
      %p490 = scmp.ne.s32.totalorder %s479, %s480
      %p491 = scmp.eq.s32.totalorder %s43, 0
      %p492 = por %p490, %p491
      %p493 = scmp.ne.s32.totalorder %s479, %s480
      %p494 = scmp.eq.s32.totalorder %s44, 2
      %p495 = por %p493, %p494
      %p497 = scmp.ne.s32.totalorder %s480, %s496
      %p498 = scmp.eq.s32.totalorder %s44, 0
      %p499 = por %p497, %p498
      %s500 = ssub.s32 %s38, %s45
      %p501 = scmp.eq.s32.totalorder %s500, 0
      %s503 = sadd.s32 %s502, 1
      %s504 = scalar_select %p501, %s502, %s503
      %p507 = pneg %p501
      %p508 = scmp.eq.s32.totalorder %s38, 2
      %p509 = por %p507, %p508
      %p510 = scmp.ne.s32.totalorder %s502, %s505
      %p511 = scmp.eq.s32.totalorder %s38, 0
      %p512 = por %p510, %p511
      %p513 = scmp.ne.s32.totalorder %s502, %s505
      %p514 = scmp.eq.s32.totalorder %s43, 2
      %p515 = por %p513, %p514
      %p516 = scmp.ne.s32.totalorder %s505, %s506
      %p517 = scmp.eq.s32.totalorder %s43, 0
      %p518 = por %p516, %p517
      %p519 = scmp.ne.s32.totalorder %s505, %s506
      %p520 = scmp.eq.s32.totalorder %s44, 2
      %p521 = por %p519, %p520
      %p523 = scmp.ne.s32.totalorder %s506, %s522
      %p524 = scmp.eq.s32.totalorder %s44, 0
      %p525 = por %p523, %p524
      %s526 = ssub.s32 %s38, %s45
      %p527 = scmp.eq.s32.totalorder %s526, 0
      %s529 = sadd.s32 %s528, 1
      %s530 = scalar_select %p527, %s528, %s529
      %p533 = pneg %p527
      %p534 = scmp.eq.s32.totalorder %s38, 2
      %p535 = por %p533, %p534
      %p536 = scmp.ne.s32.totalorder %s528, %s531
      %p537 = scmp.eq.s32.totalorder %s38, 0
      %p538 = por %p536, %p537
      %p539 = scmp.ne.s32.totalorder %s528, %s531
      %p540 = scmp.eq.s32.totalorder %s43, 2
      %p541 = por %p539, %p540
      %p542 = scmp.ne.s32.totalorder %s531, %s532
      %p543 = scmp.eq.s32.totalorder %s43, 0
      %p544 = por %p542, %p543
      %p545 = scmp.ne.s32.totalorder %s531, %s532
      %p546 = scmp.eq.s32.totalorder %s44, 2
      %p547 = por %p545, %p546
      %p549 = scmp.ne.s32.totalorder %s532, %s548
      %p550 = scmp.eq.s32.totalorder %s44, 0
      %p551 = por %p549, %p550
      %s552 = ssub.s32 %s38, %s45
      %p553 = scmp.eq.s32.totalorder %s552, 0
      %s555 = sadd.s32 %s554, 1
      %s556 = scalar_select %p553, %s554, %s555
      %p559 = pneg %p553
      %p560 = scmp.eq.s32.totalorder %s38, 2
      %p561 = por %p559, %p560
      %p562 = scmp.ne.s32.totalorder %s554, %s557
      %p563 = scmp.eq.s32.totalorder %s38, 0
      %p564 = por %p562, %p563
      %p565 = scmp.ne.s32.totalorder %s554, %s557
      %p566 = scmp.eq.s32.totalorder %s43, 2
      %p567 = por %p565, %p566
      %p568 = scmp.ne.s32.totalorder %s557, %s558
      %p569 = scmp.eq.s32.totalorder %s43, 0
      %p570 = por %p568, %p569
      %p571 = scmp.ne.s32.totalorder %s557, %s558
      %p572 = scmp.eq.s32.totalorder %s44, 2
      %p573 = por %p571, %p572
      %p575 = scmp.ne.s32.totalorder %s558, %s574
      %p576 = scmp.eq.s32.totalorder %s44, 0
      %p577 = por %p575, %p576
      %s578 = ssub.s32 %s38, %s45
      %p579 = scmp.eq.s32.totalorder %s578, 0
      %s581 = sadd.s32 %s580, 1
      %s582 = scalar_select %p579, %s580, %s581
      %p585 = pneg %p579
      %p586 = scmp.eq.s32.totalorder %s38, 2
      %p587 = por %p585, %p586
      %p588 = scmp.ne.s32.totalorder %s580, %s583
      %p589 = scmp.eq.s32.totalorder %s38, 0
      %p590 = por %p588, %p589
      %p591 = scmp.ne.s32.totalorder %s580, %s583
      %p592 = scmp.eq.s32.totalorder %s43, 2
      %p593 = por %p591, %p592
      %p594 = scmp.ne.s32.totalorder %s583, %s584
      %p595 = scmp.eq.s32.totalorder %s43, 0
      %p596 = por %p594, %p595
      %p597 = scmp.ne.s32.totalorder %s583, %s584
      %p598 = scmp.eq.s32.totalorder %s44, 2
      %p599 = por %p597, %p598
      %p601 = scmp.ne.s32.totalorder %s584, %s600
      %p602 = scmp.eq.s32.totalorder %s44, 0
      %p603 = por %p601, %p602
      %s604 = ssub.s32 %s38, %s45
      %p605 = scmp.eq.s32.totalorder %s604, 0
      %s607 = sadd.s32 %s606, 1
      %s608 = scalar_select %p605, %s606, %s607
      %p611 = pneg %p605
      %p612 = scmp.eq.s32.totalorder %s38, 2
      %p613 = por %p611, %p612
      %p614 = scmp.ne.s32.totalorder %s606, %s609
      %p615 = scmp.eq.s32.totalorder %s38, 0
      %p616 = por %p614, %p615
      %p617 = scmp.ne.s32.totalorder %s606, %s609
      %p618 = scmp.eq.s32.totalorder %s43, 2
      %p619 = por %p617, %p618
      %p620 = scmp.ne.s32.totalorder %s609, %s610
      %p621 = scmp.eq.s32.totalorder %s43, 0
      %p622 = por %p620, %p621
      %p623 = scmp.ne.s32.totalorder %s609, %s610
      %p624 = scmp.eq.s32.totalorder %s44, 2
      %p625 = por %p623, %p624
      %p627 = scmp.ne.s32.totalorder %s610, %s626
      %p628 = scmp.eq.s32.totalorder %s44, 0
      %p629 = por %p627, %p628
      %s630 = ssub.s32 %s38, %s45
      %p631 = scmp.eq.s32.totalorder %s630, 0
      %s633 = sadd.s32 %s632, 1
      %s634 = scalar_select %p631, %s632, %s633
      %p637 = pneg %p631
      %p638 = scmp.eq.s32.totalorder %s38, 2
      %p639 = por %p637, %p638
      %p640 = scmp.ne.s32.totalorder %s632, %s635
      %p641 = scmp.eq.s32.totalorder %s38, 0
      %p642 = por %p640, %p641
      %p643 = scmp.ne.s32.totalorder %s632, %s635
      %p644 = scmp.eq.s32.totalorder %s43, 2
      %p645 = por %p643, %p644
      %p646 = scmp.ne.s32.totalorder %s635, %s636
      %p647 = scmp.eq.s32.totalorder %s43, 0
      %p648 = por %p646, %p647
      %p649 = scmp.ne.s32.totalorder %s635, %s636
      %p650 = scmp.eq.s32.totalorder %s44, 2
      %p651 = por %p649, %p650
      %p653 = scmp.ne.s32.totalorder %s636, %s652
      %p654 = scmp.eq.s32.totalorder %s44, 0
      %p655 = por %p653, %p654
      %s656 = ssub.s32 %s38, %s45
      %p657 = scmp.eq.s32.totalorder %s656, 0
      %s659 = sadd.s32 %s658, 1
      %s660 = scalar_select %p657, %s658, %s659
      %p663 = pneg %p657
      %p664 = scmp.eq.s32.totalorder %s38, 2
      %p665 = por %p663, %p664
      %p666 = scmp.ne.s32.totalorder %s658, %s661
      %p667 = scmp.eq.s32.totalorder %s38, 0
      %p668 = por %p666, %p667
      %p669 = scmp.ne.s32.totalorder %s658, %s661
      %p670 = scmp.eq.s32.totalorder %s43, 2
      %p671 = por %p669, %p670
      %p672 = scmp.ne.s32.totalorder %s661, %s662
      %p673 = scmp.eq.s32.totalorder %s43, 0
      %p674 = por %p672, %p673
      %p675 = scmp.ne.s32.totalorder %s661, %s662
      %p676 = scmp.eq.s32.totalorder %s44, 2
      %p677 = por %p675, %p676
      %p679 = scmp.ne.s32.totalorder %s662, %s678
      %p680 = scmp.eq.s32.totalorder %s44, 0
      %p681 = por %p679, %p680
      %s682 = ssub.s32 %s38, %s45
      %p683 = scmp.eq.s32.totalorder %s682, 0
      %s685 = sadd.s32 %s684, 1
      %s686 = scalar_select %p683, %s684, %s685
      %p689 = pneg %p683
      %p690 = scmp.eq.s32.totalorder %s38, 2
      %p691 = por %p689, %p690
      %p692 = scmp.ne.s32.totalorder %s684, %s687
      %p693 = scmp.eq.s32.totalorder %s38, 0
      %p694 = por %p692, %p693
      %p695 = scmp.ne.s32.totalorder %s684, %s687
      %p696 = scmp.eq.s32.totalorder %s43, 2
      %p697 = por %p695, %p696
      %p698 = scmp.ne.s32.totalorder %s687, %s688
      %p699 = scmp.eq.s32.totalorder %s43, 0
      %p700 = por %p698, %p699
      %p701 = scmp.ne.s32.totalorder %s687, %s688
      %p702 = scmp.eq.s32.totalorder %s44, 2
      %p703 = por %p701, %p702
      %p705 = scmp.ne.s32.totalorder %s688, %s704
      %p706 = scmp.eq.s32.totalorder %s44, 0
      %p707 = por %p705, %p706
      %p708 = scmp.le.s32.totalorder 1, %s38
      %p709 = scmp.lt.s32.totalorder %s38, 4
      %p710 = pnand %p708, %p709
      %p711 = pneg %p710
      // Predicated region
      $region9: #{dicmor_forward.3} parent=5 // pred_check
        _
      $region10: #{dicmor_forward.3} parent=5 // pred_check_branch
        %713 = sbr.rel (%p710) target = $region12
      $region11: #{dicmor_forward.3} parent=5 // pred_region
        %s714 = ssub.s32 %s38, 1
        // Predicated region
        $region13: #{dicmor_forward.3} parent=11 // pred_check
          %p715 = pneg %p153
        $region14: #{dicmor_forward.3} parent=11 // pred_check_branch
          %717 = sbr.rel (%p715) target = $region16
        $region15: #{dicmor_forward.3} parent=11 // pred_region
          %s719 = ssub.s32 256, 256
          %720 = vsyncadd [#allocation5], %s719
          %s721 = sshll.u32 [#allocation4], 4
          %s722 = int_to_ptr.vmem [resolvable:$true] %s721
          %727 = dma.hbm_to_vmem [thread:$0]  %s4, 256, %s722, [#allocation5], 128, 128, 8
        $region16: #{dicmor_forward.3} parent=11 // pred_fallthru
          _
        // Predicated region
        $region17: #{dicmor_forward.3} parent=11 // pred_check
          %p728 = pneg %p174
        $region18: #{dicmor_forward.3} parent=11 // pred_check_branch
          %730 = sbr.rel (%p728) target = $region20
        $region19: #{dicmor_forward.3} parent=11 // pred_region
          %s732 = ssub.s32 256, 256
          %733 = vsyncadd [#allocation7], %s732
          %s734 = sshll.u32 [#allocation6], 4
          %s735 = int_to_ptr.vmem [resolvable:$true] %s734
          %740 = dma.hbm_to_vmem [thread:$0]  %s5, 256, %s735, [#allocation7], 128, 128, 8
        $region20: #{dicmor_forward.3} parent=11 // pred_fallthru
          _
        // Predicated region
        $region21: #{dicmor_forward.3} parent=11 // pred_check
          %p741 = pneg %p195
        $region22: #{dicmor_forward.3} parent=11 // pred_check_branch
          %743 = sbr.rel (%p741) target = $region24
        $region23: #{dicmor_forward.3} parent=11 // pred_region
          _
        $region24: #{dicmor_forward.3} parent=11 // pred_fallthru
          _
        // Predicated region
        $region25: #{dicmor_forward.3} parent=11 // pred_check
          %p744 = pneg %p216
        $region26: #{dicmor_forward.3} parent=11 // pred_check_branch
          %746 = sbr.rel (%p744) target = $region28
        $region27: #{dicmor_forward.3} parent=11 // pred_region
          _
        $region28: #{dicmor_forward.3} parent=11 // pred_fallthru
          _
        // Predicated region
        $region29: #{dicmor_forward.3} parent=11 // pred_check
          %p747 = pneg %p237
        $region30: #{dicmor_forward.3} parent=11 // pred_check_branch
          %749 = sbr.rel (%p747) target = $region32
        $region31: #{dicmor_forward.3} parent=11 // pred_region
          _
        $region32: #{dicmor_forward.3} parent=11 // pred_fallthru
          _
        // Predicated region
        $region33: #{dicmor_forward.3} parent=11 // pred_check
          %p750 = pneg %p258
        $region34: #{dicmor_forward.3} parent=11 // pred_check_branch
          %752 = sbr.rel (%p750) target = $region36
        $region35: #{dicmor_forward.3} parent=11 // pred_region
          _
        $region36: #{dicmor_forward.3} parent=11 // pred_fallthru
          _
      $region12: #{dicmor_forward.3} parent=5 // pred_fallthru
        _
      %p753 = scmp.lt.s32.totalorder %s38, 3
      // Predicated region
      $region37: #{dicmor_forward.3} parent=5 // pred_check
        %p754 = pneg %p753
      $region38: #{dicmor_forward.3} parent=5 // pred_check_branch
        %756 = sbr.rel (%p754) target = $region40
      $region39: #{dicmor_forward.3} parent=5 // pred_region
        // Predicated region
        $region41: #{dicmor_forward.3} parent=39 // pred_check
          %p757 = pneg %p62
        $region42: #{dicmor_forward.3} parent=39 // pred_check_branch
          %759 = sbr.rel (%p757) target = $region44
        $region43: #{dicmor_forward.3} parent=39 // pred_region
          %s760 = smul.u32 %s38, 128
          %s761 = sld [smem:[#allocation3 + %s760]]
          %p762 = scmp.lt.s32.totalorder %s761, 2
          %s763 = scalar_select %p762, %s761, 2
          %s764 = smul.addr %s763, 2
          %s765 = smul.addr %s764, 8
          %s766 = scalar_lea.vmem %s1, %s765
          %s767 = smul.u32 %s38, 128
          %s768 = sld [smem:[#allocation3 + %s767]]
        $region44: #{dicmor_forward.3} parent=39 // pred_fallthru
          _
        // Predicated region
        $region45: #{dicmor_forward.3} parent=39 // pred_check
          %p769 = pneg %p94
        $region46: #{dicmor_forward.3} parent=39 // pred_check_branch
          %771 = sbr.rel (%p769) target = $region48
        $region47: #{dicmor_forward.3} parent=39 // pred_region
          %s772 = smul.u32 %s38, 128
          %s773 = sadd.s32 %s772, 1
          %s774 = sld [smem:[#allocation3 + %s773]]
          %p775 = scmp.lt.s32.totalorder %s774, 2
          %s776 = scalar_select %p775, %s774, 2
          %s777 = smul.addr %s776, 2
          %s778 = smul.addr %s777, 8
          %s779 = scalar_lea.vmem %s2, %s778
          %s780 = smul.u32 %s38, 128
          %s781 = sadd.s32 %s780, 1
          %s782 = sld [smem:[#allocation3 + %s781]]
        $region48: #{dicmor_forward.3} parent=39 // pred_fallthru
          _
        // Predicated region
        $region49: #{dicmor_forward.3} parent=39 // pred_check
          %p783 = pneg %p126
        $region50: #{dicmor_forward.3} parent=39 // pred_check_branch
          %785 = sbr.rel (%p783) target = $region52
        $region51: #{dicmor_forward.3} parent=39 // pred_region
          %s786 = smul.u32 %s38, 128
          %s787 = sadd.s32 %s786, 2
          %s788 = sld [smem:[#allocation3 + %s787]]
          %p789 = scmp.lt.s32.totalorder %s788, 2
          %s790 = scalar_select %p789, %s788, 2
          %s791 = smul.addr %s790, 2
          %s792 = smul.addr %s791, 8
          %s793 = scalar_lea.vmem %s3, %s792
          %s794 = smul.u32 %s38, 128
          %s795 = sadd.s32 %s794, 2
          %s796 = sld [smem:[#allocation3 + %s795]]
        $region52: #{dicmor_forward.3} parent=39 // pred_fallthru
          _
        // Predicated region
        $region53: #{dicmor_forward.3} parent=39 // pred_check
          %p797 = pneg %p278
        $region54: #{dicmor_forward.3} parent=39 // pred_check_branch
          %799 = sbr.rel (%p797) target = $region56
        $region55: #{dicmor_forward.3} parent=39 // pred_region
          %p800 = scmp.lt.s32.totalorder %s38, 2
          %s801 = scalar_select %p800, %s38, 2
          %s802 = smul.addr %s801, 4
          %s803 = smul.addr %s802, 8
          %s804 = scalar_lea.vmem %s10, %s803
        $region56: #{dicmor_forward.3} parent=39 // pred_fallthru
          _
        // Predicated region
        $region57: #{dicmor_forward.3} parent=39 // pred_check
          %p805 = pneg %p304
        $region58: #{dicmor_forward.3} parent=39 // pred_check_branch
          %807 = sbr.rel (%p805) target = $region60
        $region59: #{dicmor_forward.3} parent=39 // pred_region
          %p808 = scmp.lt.s32.totalorder %s38, 2
          %s809 = scalar_select %p808, %s38, 2
          %s810 = smul.addr %s809, 4
          %s811 = smul.addr %s810, 8
          %s812 = scalar_lea.vmem %s11, %s811
        $region60: #{dicmor_forward.3} parent=39 // pred_fallthru
          _
        // Predicated region
        $region61: #{dicmor_forward.3} parent=39 // pred_check
          %p813 = pneg %p330
        $region62: #{dicmor_forward.3} parent=39 // pred_check_branch
          %815 = sbr.rel (%p813) target = $region64
        $region63: #{dicmor_forward.3} parent=39 // pred_region
          %p816 = scmp.lt.s32.totalorder %s38, 2
          %s817 = scalar_select %p816, %s38, 2
          %s818 = smul.addr %s817, 4
          %s819 = smul.addr %s818, 8
          %s820 = scalar_lea.vmem %s12, %s819
        $region64: #{dicmor_forward.3} parent=39 // pred_fallthru
          _
        // Predicated region
        $region65: #{dicmor_forward.3} parent=39 // pred_check
          %p821 = pneg %p356
        $region66: #{dicmor_forward.3} parent=39 // pred_check_branch
          %823 = sbr.rel (%p821) target = $region68
        $region67: #{dicmor_forward.3} parent=39 // pred_region
          %p824 = scmp.lt.s32.totalorder %s38, 2
          %s825 = scalar_select %p824, %s38, 2
          %s826 = smul.addr %s825, 4
          %s827 = smul.addr %s826, 8
          %s828 = scalar_lea.vmem %s13, %s827
        $region68: #{dicmor_forward.3} parent=39 // pred_fallthru
          _
        // Predicated region
        $region69: #{dicmor_forward.3} parent=39 // pred_check
          %p829 = pneg %p382
        $region70: #{dicmor_forward.3} parent=39 // pred_check_branch
          %831 = sbr.rel (%p829) target = $region72
        $region71: #{dicmor_forward.3} parent=39 // pred_region
          %p832 = scmp.lt.s32.totalorder %s38, 2
          %s833 = scalar_select %p832, %s38, 2
          %s834 = smul.addr %s833, 4
          %s835 = smul.addr %s834, 8
          %s836 = scalar_lea.vmem %s14, %s835
        $region72: #{dicmor_forward.3} parent=39 // pred_fallthru
          _
        // Predicated region
        $region73: #{dicmor_forward.3} parent=39 // pred_check
          %p837 = pneg %p408
        $region74: #{dicmor_forward.3} parent=39 // pred_check_branch
          %839 = sbr.rel (%p837) target = $region76
        $region75: #{dicmor_forward.3} parent=39 // pred_region
          %p840 = scmp.lt.s32.totalorder %s38, 2
          %s841 = scalar_select %p840, %s38, 2
          %s842 = smul.addr %s841, 16
          %s843 = smul.addr %s842, 8
          %s844 = scalar_lea.vmem %s15, %s843
        $region76: #{dicmor_forward.3} parent=39 // pred_fallthru
          _
        // Predicated region
        $region77: #{dicmor_forward.3} parent=39 // pred_check
          %p845 = pneg %p434
        $region78: #{dicmor_forward.3} parent=39 // pred_check_branch
          %847 = sbr.rel (%p845) target = $region80
        $region79: #{dicmor_forward.3} parent=39 // pred_region
          %s848 = sand.u32 %s38, 1
          %s849 = scalar_lea.sflag [#allocation5], %s848
          %s850 = sand.u32 %s424, 1
          %s851 = smul.addr %s850, 2
          %s852 = scalar_lea.vmem [#allocation8], %s851
          %s854 = ssub.s32 32, 32
          %855 = vsyncadd %s849, %s854
          %s856 = smul.addr %s38, 2
          %s857 = smul.addr %s856, 16
          %s858 = scalar_lea.hbm %s16, %s857
          %s859 = sshll.u32 %s852, 4
          %s860 = int_to_ptr.vmem [resolvable:$true] %s859
          %865 = dma.hbm_to_vmem [thread:$0]  %s858, 32, %s860, %s849, 16, 16, 1
        $region80: #{dicmor_forward.3} parent=39 // pred_fallthru
          _
        // Predicated region
        $region81: #{dicmor_forward.3} parent=39 // pred_check
          %p866 = pneg %p460
        $region82: #{dicmor_forward.3} parent=39 // pred_check_branch
          %868 = sbr.rel (%p866) target = $region84
        $region83: #{dicmor_forward.3} parent=39 // pred_region
          %s869 = sand.u32 %s38, 1
          %s870 = scalar_lea.sflag [#allocation5], %s869
          %s871 = sand.u32 %s450, 1
          %s872 = smul.addr %s871, 32
          %s873 = scalar_lea.vmem [#allocation9], %s872
          %s875 = ssub.s32 512, 512
          %876 = vsyncadd %s870, %s875
          %s877 = smul.addr %s38, 4
          %s878 = smul.addr %s877, 128
          %s879 = scalar_lea.hbm %s17, %s878
          %s880 = sshll.u32 %s873, 4
          %s881 = int_to_ptr.vmem [resolvable:$true] %s880
          %886 = dma.hbm_to_vmem [thread:$0]  %s879, 512, %s881, %s870, 128, 128, 8
        $region84: #{dicmor_forward.3} parent=39 // pred_fallthru
          _
        // Predicated region
        $region85: #{dicmor_forward.3} parent=39 // pred_check
          %p887 = pneg %p486
        $region86: #{dicmor_forward.3} parent=39 // pred_check_branch
          %889 = sbr.rel (%p887) target = $region88
        $region87: #{dicmor_forward.3} parent=39 // pred_region
          %p890 = scmp.lt.s32.totalorder %s38, 2
          %s891 = scalar_select %p890, %s38, 2
          %s892 = smul.addr %s891, 12
          %s893 = smul.addr %s892, 8
          %s894 = scalar_lea.vmem %s18, %s893
        $region88: #{dicmor_forward.3} parent=39 // pred_fallthru
          _
        // Predicated region
        $region89: #{dicmor_forward.3} parent=39 // pred_check
          %p895 = pneg %p512
        $region90: #{dicmor_forward.3} parent=39 // pred_check_branch
          %897 = sbr.rel (%p895) target = $region92
        $region91: #{dicmor_forward.3} parent=39 // pred_region
          %p898 = scmp.lt.s32.totalorder %s38, 2
          %s899 = scalar_select %p898, %s38, 2
          %s900 = smul.addr %s899, 12
          %s901 = smul.addr %s900, 8
          %s902 = scalar_lea.vmem %s19, %s901
        $region92: #{dicmor_forward.3} parent=39 // pred_fallthru
          _
        // Predicated region
        $region93: #{dicmor_forward.3} parent=39 // pred_check
          %p903 = pneg %p538
        $region94: #{dicmor_forward.3} parent=39 // pred_check_branch
          %905 = sbr.rel (%p903) target = $region96
        $region95: #{dicmor_forward.3} parent=39 // pred_region
          %p906 = scmp.lt.s32.totalorder %s38, 2
          %s907 = scalar_select %p906, %s38, 2
          %s908 = smul.addr %s907, 12
          %s909 = smul.addr %s908, 8
          %s910 = scalar_lea.vmem %s20, %s909
        $region96: #{dicmor_forward.3} parent=39 // pred_fallthru
          _
        // Predicated region
        $region97: #{dicmor_forward.3} parent=39 // pred_check
          %p911 = pneg %p564
        $region98: #{dicmor_forward.3} parent=39 // pred_check_branch
          %913 = sbr.rel (%p911) target = $region100
        $region99: #{dicmor_forward.3} parent=39 // pred_region
          %p914 = scmp.lt.s32.totalorder %s38, 2
          %s915 = scalar_select %p914, %s38, 2
          %s916 = smul.addr %s915, 12
          %s917 = smul.addr %s916, 8
          %s918 = scalar_lea.vmem %s21, %s917
        $region100: #{dicmor_forward.3} parent=39 // pred_fallthru
          _
        // Predicated region
        $region101: #{dicmor_forward.3} parent=39 // pred_check
          %p919 = pneg %p590
        $region102: #{dicmor_forward.3} parent=39 // pred_check_branch
          %921 = sbr.rel (%p919) target = $region104
        $region103: #{dicmor_forward.3} parent=39 // pred_region
          %p922 = scmp.lt.s32.totalorder %s38, 2
          %s923 = scalar_select %p922, %s38, 2
          %s924 = smul.addr %s923, 12
          %s925 = smul.addr %s924, 8
          %s926 = scalar_lea.vmem %s22, %s925
        $region104: #{dicmor_forward.3} parent=39 // pred_fallthru
          _
        // Predicated region
        $region105: #{dicmor_forward.3} parent=39 // pred_check
          %p927 = pneg %p616
        $region106: #{dicmor_forward.3} parent=39 // pred_check_branch
          %929 = sbr.rel (%p927) target = $region108
        $region107: #{dicmor_forward.3} parent=39 // pred_region
          %p930 = scmp.lt.s32.totalorder %s38, 2
          %s931 = scalar_select %p930, %s38, 2
          %s932 = smul.addr %s931, 48
          %s933 = smul.addr %s932, 8
          %s934 = scalar_lea.vmem %s23, %s933
        $region108: #{dicmor_forward.3} parent=39 // pred_fallthru
          _
        // Predicated region
        $region109: #{dicmor_forward.3} parent=39 // pred_check
          %p935 = pneg %p642
        $region110: #{dicmor_forward.3} parent=39 // pred_check_branch
          %937 = sbr.rel (%p935) target = $region112
        $region111: #{dicmor_forward.3} parent=39 // pred_region
          %s938 = sand.u32 %s38, 1
          %s939 = scalar_lea.sflag [#allocation5], %s938
          %s940 = sand.u32 %s632, 1
          %s941 = smul.addr %s940, 3
          %s942 = scalar_lea.vmem [#allocation10], %s941
          %s944 = ssub.s32 48, 48
          %945 = vsyncadd %s939, %s944
          %s946 = smul.addr %s38, 3
          %s947 = smul.addr %s946, 16
          %s948 = scalar_lea.hbm %s24, %s947
          %s949 = sshll.u32 %s942, 4
          %s950 = int_to_ptr.vmem [resolvable:$true] %s949
          %955 = dma.hbm_to_vmem [thread:$0]  %s948, 48, %s950, %s939, 16, 16, 1
        $region112: #{dicmor_forward.3} parent=39 // pred_fallthru
          _
        // Predicated region
        $region113: #{dicmor_forward.3} parent=39 // pred_check
          %p956 = pneg %p668
        $region114: #{dicmor_forward.3} parent=39 // pred_check_branch
          %958 = sbr.rel (%p956) target = $region116
        $region115: #{dicmor_forward.3} parent=39 // pred_region
          %p959 = scmp.lt.s32.totalorder %s38, 2
          %s960 = scalar_select %p959, %s38, 2
          %s961 = smul.addr %s960, 6
          %s962 = smul.addr %s961, 8
          %s963 = scalar_lea.vmem %s25, %s962
        $region116: #{dicmor_forward.3} parent=39 // pred_fallthru
          _
      $region40: #{dicmor_forward.3} parent=5 // pred_fallthru
        _
      %p964 = scmp.le.s32.totalorder 1, %s38
      %p965 = scmp.lt.s32.totalorder %s38, 4
      %p966 = pnand %p964, %p965
      %p967 = pneg %p966
      // Predicated region
      $region117: #{dicmor_forward.3} parent=5 // pred_check
        _
      $region118: #{dicmor_forward.3} parent=5 // pred_check_branch
        %969 = sbr.rel (%p966) target = $region120
      $region119: #{dicmor_forward.3} parent=5 // pred_region
        %s970 = ssub.s32 %s38, 1
        // Predicated region
        $region121: #{dicmor_forward.3} parent=119 // pred_check
          %p971 = pneg %p153
        $region122: #{dicmor_forward.3} parent=119 // pred_check_branch
          %973 = sbr.rel (%p971) target = $region124
        $region123: #{dicmor_forward.3} parent=119 // pred_region
          %974 = dma.done [#allocation5], 256
        $region124: #{dicmor_forward.3} parent=119 // pred_fallthru
          _
        // Predicated region
        $region125: #{dicmor_forward.3} parent=119 // pred_check
          %p975 = pneg %p174
        $region126: #{dicmor_forward.3} parent=119 // pred_check_branch
          %977 = sbr.rel (%p975) target = $region128
        $region127: #{dicmor_forward.3} parent=119 // pred_region
          %978 = dma.done [#allocation7], 256
        $region128: #{dicmor_forward.3} parent=119 // pred_fallthru
          _
        %s979 = sand.u32 %s43, 1
        %s980 = scalar_lea.sflag [#allocation5], %s979
        %s981 = sand.u32 %s427, 1
        %s982 = smul.addr %s981, 2
        %s983 = scalar_lea.vmem [#allocation8], %s982
        // Predicated region
        $region129: #{dicmor_forward.3} parent=119 // pred_check
          %p984 = pneg %p440
        $region130: #{dicmor_forward.3} parent=119 // pred_check_branch
          %986 = sbr.rel (%p984) target = $region132
        $region131: #{dicmor_forward.3} parent=119 // pred_region
          %987 = dma.done %s980, 32
        $region132: #{dicmor_forward.3} parent=119 // pred_fallthru
          _
        %s988 = sand.u32 %s43, 1
        %s989 = scalar_lea.sflag [#allocation5], %s988
        %s990 = sand.u32 %s453, 1
        %s991 = smul.addr %s990, 32
        %s992 = scalar_lea.vmem [#allocation9], %s991
        // Predicated region
        $region133: #{dicmor_forward.3} parent=119 // pred_check
          %p993 = pneg %p466
        $region134: #{dicmor_forward.3} parent=119 // pred_check_branch
          %995 = sbr.rel (%p993) target = $region136
        $region135: #{dicmor_forward.3} parent=119 // pred_region
          %996 = dma.done %s989, 512
        $region136: #{dicmor_forward.3} parent=119 // pred_fallthru
          _
        %s997 = sand.u32 %s43, 1
        %s998 = scalar_lea.sflag [#allocation5], %s997
        %s999 = sand.u32 %s635, 1
        %s1000 = smul.addr %s999, 3
        %s1001 = scalar_lea.vmem [#allocation10], %s1000
        // Predicated region
        $region137: #{dicmor_forward.3} parent=119 // pred_check
          %p1002 = pneg %p648
        $region138: #{dicmor_forward.3} parent=119 // pred_check_branch
          %1004 = sbr.rel (%p1002) target = $region140
        $region139: #{dicmor_forward.3} parent=119 // pred_region
          %1005 = dma.done %s998, 48
        $region140: #{dicmor_forward.3} parent=119 // pred_fallthru
          _
        %s1006 = smul.u32 %s43, 128
        %s1007 = sld [smem:[#allocation3 + %s1006]]
        %p1008 = scmp.lt.s32.totalorder %s1007, 2
        %s1009 = scalar_select %p1008, %s1007, 2
        %s1010 = smul.addr %s1009, 2
        %s1011 = smul.addr %s1010, 8
        %s1012 = scalar_lea.vmem %s1, %s1011
        %p1013 = pneg %p68
        %p1014 = pneg %p65
        %s1015 = smul.u32 %s43, 128
        %s1016 = sadd.s32 %s1015, 1
        %s1017 = sld [smem:[#allocation3 + %s1016]]
        %p1018 = scmp.lt.s32.totalorder %s1017, 2
        %s1019 = scalar_select %p1018, %s1017, 2
        %s1020 = smul.addr %s1019, 2
        %s1021 = smul.addr %s1020, 8
        %s1022 = scalar_lea.vmem %s2, %s1021
        %p1023 = pneg %p100
        %p1024 = pneg %p97
        %s1025 = smul.u32 %s43, 128
        %s1026 = sadd.s32 %s1025, 2
        %s1027 = sld [smem:[#allocation3 + %s1026]]
        %p1028 = scmp.lt.s32.totalorder %s1027, 2
        %s1029 = scalar_select %p1028, %s1027, 2
        %s1030 = smul.addr %s1029, 2
        %s1031 = smul.addr %s1030, 8
        %s1032 = scalar_lea.vmem %s3, %s1031
        %p1033 = pneg %p132
        %p1034 = pneg %p129
        %p1035 = pneg %p153
        %p1036 = pneg %p150
        %p1037 = pneg %p174
        %p1038 = pneg %p171
        %p1039 = pneg %p195
        %p1040 = pneg %p192
        %p1041 = pneg %p216
        %p1042 = pneg %p213
        %p1043 = pneg %p237
        %p1044 = pneg %p234
        %p1045 = pneg %p258
        %p1046 = pneg %p255
        %p1047 = scmp.lt.s32.totalorder %s43, 2
        %s1048 = scalar_select %p1047, %s43, 2
        %s1049 = smul.addr %s1048, 4
        %s1050 = smul.addr %s1049, 8
        %s1051 = scalar_lea.vmem %s10, %s1050
        %p1052 = pneg %p284
        %p1053 = pneg %p281
        %p1054 = scmp.lt.s32.totalorder %s43, 2
        %s1055 = scalar_select %p1054, %s43, 2
        %s1056 = smul.addr %s1055, 4
        %s1057 = smul.addr %s1056, 8
        %s1058 = scalar_lea.vmem %s11, %s1057
        %p1059 = pneg %p310
        %p1060 = pneg %p307
        %p1061 = scmp.lt.s32.totalorder %s43, 2
        %s1062 = scalar_select %p1061, %s43, 2
        %s1063 = smul.addr %s1062, 4
        %s1064 = smul.addr %s1063, 8
        %s1065 = scalar_lea.vmem %s12, %s1064
        %p1066 = pneg %p336
        %p1067 = pneg %p333
        %p1068 = scmp.lt.s32.totalorder %s43, 2
        %s1069 = scalar_select %p1068, %s43, 2
        %s1070 = smul.addr %s1069, 4
        %s1071 = smul.addr %s1070, 8
        %s1072 = scalar_lea.vmem %s13, %s1071
        %p1073 = pneg %p362
        %p1074 = pneg %p359
        %p1075 = scmp.lt.s32.totalorder %s43, 2
        %s1076 = scalar_select %p1075, %s43, 2
        %s1077 = smul.addr %s1076, 4
        %s1078 = smul.addr %s1077, 8
        %s1079 = scalar_lea.vmem %s14, %s1078
        %p1080 = pneg %p388
        %p1081 = pneg %p385
        %p1082 = scmp.lt.s32.totalorder %s43, 2
        %s1083 = scalar_select %p1082, %s43, 2
        %s1084 = smul.addr %s1083, 16
        %s1085 = smul.addr %s1084, 8
        %s1086 = scalar_lea.vmem %s15, %s1085
        %p1087 = pneg %p414
        %p1088 = pneg %p411
        %s1089 = sand.u32 %s43, 1
        %s1090 = scalar_lea.sflag [#allocation5], %s1089
        %s1091 = sand.u32 %s427, 1
        %s1092 = smul.addr %s1091, 2
        %s1093 = scalar_lea.vmem [#allocation8], %s1092
        %p1094 = pneg %p440
        %p1095 = pneg %p437
        %s1096 = sand.u32 %s43, 1
        %s1097 = scalar_lea.sflag [#allocation5], %s1096
        %s1098 = sand.u32 %s453, 1
        %s1099 = smul.addr %s1098, 32
        %s1100 = scalar_lea.vmem [#allocation9], %s1099
        %p1101 = pneg %p466
        %p1102 = pneg %p463
        %p1103 = scmp.lt.s32.totalorder %s43, 2
        %s1104 = scalar_select %p1103, %s43, 2
        %s1105 = smul.addr %s1104, 12
        %s1106 = smul.addr %s1105, 8
        %s1107 = scalar_lea.vmem %s18, %s1106
        %p1108 = pneg %p492
        %p1109 = pneg %p489
        %p1110 = scmp.lt.s32.totalorder %s43, 2
        %s1111 = scalar_select %p1110, %s43, 2
        %s1112 = smul.addr %s1111, 12
        %s1113 = smul.addr %s1112, 8
        %s1114 = scalar_lea.vmem %s19, %s1113
        %p1115 = pneg %p518
        %p1116 = pneg %p515
        %p1117 = scmp.lt.s32.totalorder %s43, 2
        %s1118 = scalar_select %p1117, %s43, 2
        %s1119 = smul.addr %s1118, 12
        %s1120 = smul.addr %s1119, 8
        %s1121 = scalar_lea.vmem %s20, %s1120
        %p1122 = pneg %p544
        %p1123 = pneg %p541
        %p1124 = scmp.lt.s32.totalorder %s43, 2
        %s1125 = scalar_select %p1124, %s43, 2
        %s1126 = smul.addr %s1125, 12
        %s1127 = smul.addr %s1126, 8
        %s1128 = scalar_lea.vmem %s21, %s1127
        %p1129 = pneg %p570
        %p1130 = pneg %p567
        %p1131 = scmp.lt.s32.totalorder %s43, 2
        %s1132 = scalar_select %p1131, %s43, 2
        %s1133 = smul.addr %s1132, 12
        %s1134 = smul.addr %s1133, 8
        %s1135 = scalar_lea.vmem %s22, %s1134
        %p1136 = pneg %p596
        %p1137 = pneg %p593
        %p1138 = scmp.lt.s32.totalorder %s43, 2
        %s1139 = scalar_select %p1138, %s43, 2
        %s1140 = smul.addr %s1139, 48
        %s1141 = smul.addr %s1140, 8
        %s1142 = scalar_lea.vmem %s23, %s1141
        %p1143 = pneg %p622
        %p1144 = pneg %p619
        %s1145 = sand.u32 %s43, 1
        %s1146 = scalar_lea.sflag [#allocation5], %s1145
        %s1147 = sand.u32 %s635, 1
        %s1148 = smul.addr %s1147, 3
        %s1149 = scalar_lea.vmem [#allocation10], %s1148
        %p1150 = pneg %p648
        %p1151 = pneg %p645
        %p1152 = scmp.lt.s32.totalorder %s43, 2
        %s1153 = scalar_select %p1152, %s43, 2
        %s1154 = smul.addr %s1153, 6
        %s1155 = smul.addr %s1154, 8
        %s1156 = scalar_lea.vmem %s25, %s1155
        %p1157 = pneg %p674
        %p1158 = pneg %p671
        %p1159 = pneg %p700
        %p1160 = pneg %p697
        %p1161 = scmp.lt.s32.totalorder %s43, 2
        %s1162 = scalar_select %p1161, %s43, 2
        %s1163 = smul.addr %s1162, 2
        %s1164 = scalar_lea.vmem %s26, %s1163
        %s1165 = smul.u32 %s43, 128
        %s1166 = sld [smem:[#allocation3 + %s1165]]
        %p1167 = scmp.lt.s32.totalorder %s1166, 2
        %s1168 = scalar_select %p1167, %s1166, 2
        %s1169 = smul.addr %s1168, 2
        %s1170 = smul.addr %s1169, 8
        %s1171 = scalar_lea.vmem %s1, %s1170
        %s1172 = smul.u32 %s43, 128
        %s1173 = sld [smem:[#allocation3 + %s1172]]
        %s1174 = smul.u32 %s43, 128
        %s1175 = sadd.s32 %s1174, 1
        %s1176 = sld [smem:[#allocation3 + %s1175]]
        %p1177 = scmp.lt.s32.totalorder %s1176, 2
        %s1178 = scalar_select %p1177, %s1176, 2
        %s1179 = smul.addr %s1178, 2
        %s1180 = smul.addr %s1179, 8
        %s1181 = scalar_lea.vmem %s2, %s1180
        %s1182 = smul.u32 %s43, 128
        %s1183 = sadd.s32 %s1182, 1
        %s1184 = sld [smem:[#allocation3 + %s1183]]
        %s1185 = smul.u32 %s43, 128
        %s1186 = sadd.s32 %s1185, 2
        %s1187 = sld [smem:[#allocation3 + %s1186]]
        %p1188 = scmp.lt.s32.totalorder %s1187, 2
        %s1189 = scalar_select %p1188, %s1187, 2
        %s1190 = smul.addr %s1189, 2
        %s1191 = smul.addr %s1190, 8
        %s1192 = scalar_lea.vmem %s3, %s1191
        %s1193 = smul.u32 %s43, 128
        %s1194 = sadd.s32 %s1193, 2
        %s1195 = sld [smem:[#allocation3 + %s1194]]
        %p1196 = scmp.lt.s32.totalorder %s43, 2
        %s1197 = scalar_select %p1196, %s43, 2
        %s1198 = smul.addr %s1197, 4
        %s1199 = smul.addr %s1198, 8
        %s1200 = scalar_lea.vmem %s10, %s1199
        %p1201 = scmp.lt.s32.totalorder %s43, 2
        %s1202 = scalar_select %p1201, %s43, 2
        %s1203 = smul.addr %s1202, 4
        %s1204 = smul.addr %s1203, 8
        %s1205 = scalar_lea.vmem %s11, %s1204
        %p1206 = scmp.lt.s32.totalorder %s43, 2
        %s1207 = scalar_select %p1206, %s43, 2
        %s1208 = smul.addr %s1207, 4
        %s1209 = smul.addr %s1208, 8
        %s1210 = scalar_lea.vmem %s12, %s1209
        %p1211 = scmp.lt.s32.totalorder %s43, 2
        %s1212 = scalar_select %p1211, %s43, 2
        %s1213 = smul.addr %s1212, 4
        %s1214 = smul.addr %s1213, 8
        %s1215 = scalar_lea.vmem %s13, %s1214
        %p1216 = scmp.lt.s32.totalorder %s43, 2
        %s1217 = scalar_select %p1216, %s43, 2
        %s1218 = smul.addr %s1217, 4
        %s1219 = smul.addr %s1218, 8
        %s1220 = scalar_lea.vmem %s14, %s1219
        %p1221 = scmp.lt.s32.totalorder %s43, 2
        %s1222 = scalar_select %p1221, %s43, 2
        %s1223 = smul.addr %s1222, 16
        %s1224 = smul.addr %s1223, 8
        %s1225 = scalar_lea.vmem %s15, %s1224
        %p1226 = scmp.lt.s32.totalorder %s43, 2
        %s1227 = scalar_select %p1226, %s43, 2
        %s1228 = smul.addr %s1227, 12
        %s1229 = smul.addr %s1228, 8
        %s1230 = scalar_lea.vmem %s18, %s1229
        %p1231 = scmp.lt.s32.totalorder %s43, 2
        %s1232 = scalar_select %p1231, %s43, 2
        %s1233 = smul.addr %s1232, 12
        %s1234 = smul.addr %s1233, 8
        %s1235 = scalar_lea.vmem %s19, %s1234
        %p1236 = scmp.lt.s32.totalorder %s43, 2
        %s1237 = scalar_select %p1236, %s43, 2
        %s1238 = smul.addr %s1237, 12
        %s1239 = smul.addr %s1238, 8
        %s1240 = scalar_lea.vmem %s20, %s1239
        %p1241 = scmp.lt.s32.totalorder %s43, 2
        %s1242 = scalar_select %p1241, %s43, 2
        %s1243 = smul.addr %s1242, 12
        %s1244 = smul.addr %s1243, 8
        %s1245 = scalar_lea.vmem %s21, %s1244
        %p1246 = scmp.lt.s32.totalorder %s43, 2
        %s1247 = scalar_select %p1246, %s43, 2
        %s1248 = smul.addr %s1247, 12
        %s1249 = smul.addr %s1248, 8
        %s1250 = scalar_lea.vmem %s22, %s1249
        %p1251 = scmp.lt.s32.totalorder %s43, 2
        %s1252 = scalar_select %p1251, %s43, 2
        %s1253 = smul.addr %s1252, 48
        %s1254 = smul.addr %s1253, 8
        %s1255 = scalar_lea.vmem %s23, %s1254
        %p1256 = scmp.lt.s32.totalorder %s43, 2
        %s1257 = scalar_select %p1256, %s43, 2
        %s1258 = smul.addr %s1257, 6
        %s1259 = smul.addr %s1258, 8
        %s1260 = scalar_lea.vmem %s25, %s1259
        %p1261 = scmp.lt.s32.totalorder %s43, 2
        %s1262 = scalar_select %p1261, %s43, 2
        %s1263 = smul.addr %s1262, 2
        %s1264 = scalar_lea.vmem %s26, %s1263
        %v1265 = vld [vmem:[#allocation4] sm:$0xff]
        %v1266 = vld [vmem:[#allocation4 + $0x8] sm:$0xff]
        %v1267 = vld [vmem:[%s6] sm:$0xff]
        %v1268 = vld [vmem:[%s6 + $0x8] sm:$0xff]
        %v1269 = vld [vmem:[%s6 + $0x10] sm:$0xff]
        %v1270 = vld [vmem:[%s6 + $0x18] sm:$0xff]
        %v1271 = vld [vmem:[%s6 + $0x20] sm:$0xff]
        %v1272 = vld [vmem:[%s6 + $0x28] sm:$0xff]
        %v1273 = vld [vmem:[%s6 + $0x30] sm:$0xff]
        %v1274 = vld [vmem:[%s6 + $0x38] sm:$0xff]
        %v1275 = vld [vmem:[%s7] sm:$0xff]
        %v1276 = vld [vmem:[%s7 + $0x8] sm:$0xff]
        %v1277 = vld [vmem:[%s7 + $0x10] sm:$0xff]
        %v1278 = vld [vmem:[%s7 + $0x18] sm:$0xff]
        %v1279 = vld [vmem:[%s7 + $0x20] sm:$0xff]
        %v1280 = vld [vmem:[%s7 + $0x28] sm:$0xff]
        %v1281 = vld [vmem:[%s7 + $0x30] sm:$0xff]
        %v1282 = vld [vmem:[%s7 + $0x38] sm:$0xff]
        %v1283 = vld [vmem:[%s8] sm:$0xff]
        %v1284 = vld [vmem:[%s8 + $0x8] sm:$0xff]
        %v1285 = vld [vmem:[%s8 + $0x10] sm:$0xff]
        %v1286 = vld [vmem:[%s8 + $0x18] sm:$0xff]
        %v1287 = vld [vmem:[%s8 + $0x20] sm:$0xff]
        %v1288 = vld [vmem:[%s8 + $0x28] sm:$0xff]
        %v1289 = vld [vmem:[%s8 + $0x30] sm:$0xff]
        %v1290 = vld [vmem:[%s8 + $0x38] sm:$0xff]
        %v1291 = vld [vmem:[%s1171] sm:$0xff]
        %v1292 = vld [vmem:[%s1171 + $0x8] sm:$0xff]
        %v1293 = vmul.f32 %v1291, 4.0
        %v1294 = vmul.f32 %v1292, 4.0
        %v1295 = vadd.f32 %v1293, %v1265
        %v1296 = vadd.f32 %v1294, %v1266
        %v1297 = vld [vmem:[%s1181] sm:$0xff]
        %v1298 = vld [vmem:[%s1181 + $0x8] sm:$0xff]
        %v1299 = vmul.f32 %v1297, 4.0
        %v1300 = vmul.f32 %v1298, 4.0
        %v1301 = vadd.f32 %v1299, %v1265
        %v1302 = vadd.f32 %v1300, %v1266
        %v1303 = vld [vmem:[%s1192] sm:$0xff]
        %v1304 = vld [vmem:[%s1192 + $0x8] sm:$0xff]
        %v1305 = vmul.f32 %v1303, 4.0
        %v1306 = vmul.f32 %v1304, 4.0
        %v1307 = vadd.f32 %v1305, %v1265
        %v1308 = vadd.f32 %v1306, %v1266
        %v1309 = vld [vmem:[%s1200] sm:$0xff]
        %v1310 = vld [vmem:[%s1200 + $0x8] sm:$0xff]
        %v1311 = vld [vmem:[%s1205] sm:$0xff]
        %v1312 = vld [vmem:[%s1205 + $0x8] sm:$0xff]
        %v1313 = vld [vmem:[%s1210] sm:$0xff]
        %v1314 = vld [vmem:[%s1210 + $0x8] sm:$0xff]
        %v1315 = vld [vmem:[%s1215] sm:$0xff]
        %v1316 = vld [vmem:[%s1215 + $0x8] sm:$0xff]
        %v1317 = vld [vmem:[%s1220] sm:$0xff]
        %v1318 = vld [vmem:[%s1220 + $0x8] sm:$0xff]
        %v1319 = vld [vmem:[%s1225] sm:$0xff]
        %v1320 = vld [vmem:[%s1225 + $0x8] sm:$0xff]
        %v1321 = vld [vmem:[%s1225 + $0x10] sm:$0xff]
        %v1322 = vld [vmem:[%s1225 + $0x18] sm:$0xff]
        %v1323 = vld [vmem:[%s1225 + $0x20] sm:$0xff]
        %v1324 = vld [vmem:[%s1225 + $0x28] sm:$0xff]
        %v1325 = vld [vmem:[%s1225 + $0x30] sm:$0xff]
        %v1326 = vld [vmem:[%s1225 + $0x38] sm:$0xff]
        %v1327 = vld [vmem:[%s983] sm:$0x1]
        %v1328 = vld [vmem:[%s992] sm:$0xff]
        %v1329 = vld [vmem:[%s992 + $0x8] sm:$0xff]
        %vm1330 = vcmask 130048
        %v1331 = vsel %vm1330, %v1295, 0.0
        %1332 = vadd.xlane.f32.xlu0 %v1331
        %v1333 = vpop.xlane.xlu0 %1332
        %v1334 = vsel %vm1330, %v1296, 0.0
        %1335 = vadd.xlane.f32.xlu0 %v1334
        %v1336 = vpop.xlane.xlu0 %1335
        %v1337 = vrcp.pop 16.0
        %v1338 = vmul.f32 %v1333, %v1337
        %v1339 = vmul.f32 %v1336, %v1337
        %v1340 = vsub.f32 %v1295, %v1338
        %v1341 = vsub.f32 %v1296, %v1339
        %v1342 = vmul.f32 %v1340, %v1340
        %v1343 = vmul.f32 %v1341, %v1341
        %v1344 = vsel %vm1330, %v1342, 0.0
        %1345 = vadd.xlane.f32.xlu0 %v1344
        %v1346 = vpop.xlane.xlu0 %1345
        %v1347 = vsel %vm1330, %v1343, 0.0
        %1348 = vadd.xlane.f32.xlu0 %v1347
        %v1349 = vpop.xlane.xlu0 %1348
        %v1350 = vmul.f32 %v1346, %v1337
        %v1351 = vmul.f32 %v1349, %v1337
        %v1352 = vadd.f32 %v1350, 1e-05
        %v1353 = vadd.f32 %v1351, 1e-05
        %v1354 = vrsqrt.pop %v1352
        %v1355 = vrsqrt.pop %v1353
        %v1356 = vmul.f32 %v1340, %v1354
        %v1357 = vmul.f32 %v1341, %v1355
        %v1358 = vlaneseq
        %v1359 = vshrl.u32 %v1358, 7
        %v1360 = vsub.s32 0, %v1359
        %v1361 = vrot.slane %v1328, %v1360
        %v1362 = vmul.f32 %v1356, %v1361
        %v1363 = vmul.f32 %v1357, %v1361
        %v1364 = vlaneseq
        %v1365 = vshrl.u32 %v1364, 7
        %v1366 = vsub.s32 1, %v1365
        %v1367 = vrot.slane %v1328, %v1366
        %v1368 = vadd.f32 %v1362, %v1367
        %v1369 = vadd.f32 %v1363, %v1367
        %v1370 = vsel %vm1330, %v1301, 0.0
        %1371 = vadd.xlane.f32.xlu0 %v1370
        %v1372 = vpop.xlane.xlu0 %1371
        %v1373 = vsel %vm1330, %v1302, 0.0
        %1374 = vadd.xlane.f32.xlu0 %v1373
        %v1375 = vpop.xlane.xlu0 %1374
        %v1376 = vmul.f32 %v1372, %v1337
        %v1377 = vmul.f32 %v1375, %v1337
        %v1378 = vsub.f32 %v1301, %v1376
        %v1379 = vsub.f32 %v1302, %v1377
        %v1380 = vmul.f32 %v1378, %v1378
        %v1381 = vmul.f32 %v1379, %v1379
        %v1382 = vsel %vm1330, %v1380, 0.0
        %1383 = vadd.xlane.f32.xlu0 %v1382
        %v1384 = vpop.xlane.xlu0 %1383
        %v1385 = vsel %vm1330, %v1381, 0.0
        %1386 = vadd.xlane.f32.xlu0 %v1385
        %v1387 = vpop.xlane.xlu0 %1386
        %v1388 = vmul.f32 %v1384, %v1337
        %v1389 = vmul.f32 %v1387, %v1337
        %v1390 = vadd.f32 %v1388, 1e-05
        %v1391 = vadd.f32 %v1389, 1e-05
        %v1392 = vrsqrt.pop %v1390
        %v1393 = vrsqrt.pop %v1391
        %v1394 = vmul.f32 %v1378, %v1392
        %v1395 = vmul.f32 %v1379, %v1393
        %v1396 = vmul.f32 %v1394, %v1361
        %v1397 = vmul.f32 %v1395, %v1361
        %v1398 = vadd.f32 %v1396, %v1367
        %v1399 = vadd.f32 %v1397, %v1367
        %v1400 = vlaneseq
        %v1401 = vshrl.u32 %v1400, 7
        %v1402 = vsub.s32 2, %v1401
        %v1403 = vrot.slane %v1328, %v1402
        %v1405 = vsel %vm1330, %v1368, 0
        %v1408 = vsel %vm1330, %v1369, 0
        %1410 = vmatprep.subr.mxu0 0.0
        %1411 = vmatpush1.msra.mxu0 0.0
        %1412 = vmatprep.subr.mxu0 0.0
        %1413 = vmatpush1.msra.mxu0 0.0
        %1414 = vmatprep.subr.mxu0 0.0
        %1415 = vmatpush1.msra.mxu0 0.0
        %1416 = vmatprep.subr.mxu0 0.0
        %1417 = vmatpush1.msra.mxu0 0.0
        %1418 = vmatprep.subr.mxu0 0.0
        %1419 = vmatpush1.msra.mxu0 0.0
        %1420 = vmatprep.subr.mxu0 0.0
        %1421 = vmatpush1.msra.mxu0 0.0
        %1422 = vmatprep.subr.mxu0 0.0
        %1423 = vmatpush1.msra.mxu0 0.0
        %1424 = vmatprep.subr.mxu0 0.0
        %1425 = vmatpush1.msra.mxu0 0.0
        %1426 = vmatprep.subr.mxu0 0.0
        %1427 = vmatpush1.msra.mxu0 0.0
        %1428 = vmatprep.subr.mxu0 0.0
        %1429 = vmatpush1.msra.mxu0 0.0
        %1430 = vmatprep.subr.mxu0 0.0
        %1431 = vmatpush1.msra.mxu0 0.0
        %1432 = vmatprep.subr.mxu0 0.0
        %1433 = vmatpush1.msra.mxu0 0.0
        %1434 = vmatprep.subr.mxu0 0.0
        %1435 = vmatpush1.msra.mxu0 0.0
        %1436 = vmatprep.subr.mxu0 0.0
        %1437 = vmatpush1.msra.mxu0 0.0
        %1438 = vmatprep.subr.mxu0 0.0
        %1439 = vmatpush1.msra.mxu0 %v1310
        %1440 = vmatprep.subr.mxu0 0.0
        %1441 = vmatpush1.msra.mxu0 %v1309
        %1442 = vmatprep.subr.mxu0 0.0
        %1443 = vmatpush2.msra.mxu0 0.0
        %1444 = vmatprep.subr.mxu0 0.0
        %1445 = vmatpush2.msra.mxu0 0.0
        %1446 = vmatprep.subr.mxu0 0.0
        %1447 = vmatpush2.msra.mxu0 0.0
        %1448 = vmatprep.subr.mxu0 0.0
        %1449 = vmatpush2.msra.mxu0 0.0
        %1450 = vmatprep.subr.mxu0 0.0
        %1451 = vmatpush2.msra.mxu0 0.0
        %1452 = vmatprep.subr.mxu0 0.0
        %1453 = vmatpush2.msra.mxu0 0.0
        %1454 = vmatprep.subr.mxu0 0.0
        %1455 = vmatpush2.msra.mxu0 0.0
        %1456 = vmatprep.subr.mxu0 0.0
        %1457 = vmatpush2.msra.mxu0 0.0
        %1458 = vmatprep.subr.mxu0 0.0
        %1459 = vmatpush2.msra.mxu0 0.0
        %1460 = vmatprep.subr.mxu0 0.0
        %1461 = vmatpush2.msra.mxu0 0.0
        %1462 = vmatprep.subr.mxu0 0.0
        %1463 = vmatpush2.msra.mxu0 0.0
        %1464 = vmatprep.subr.mxu0 0.0
        %1465 = vmatpush2.msra.mxu0 0.0
        %1466 = vmatprep.subr.mxu0 0.0
        %1467 = vmatpush2.msra.mxu0 0.0
        %1468 = vmatprep.subr.mxu0 0.0
        %1469 = vmatpush2.msra.mxu0 0.0
        %1470 = vmatprep.subr.mxu0 0.0
        %1471 = vmatpush2.msra.mxu0 0.0
        %1472 = vmatprep.subr.mxu0 0.0
        %1473 = vmatpush2.msra.mxu0 0.0
        %1474 = vmatprep.mubr.f32.mxu0 0.0
        %1475 = vmatmul.mubr.f32.gmra.mxu0 %v1405
        %v1476 = vpop.f32.mrf.mxu0
        %v1477 = vadd.f32 %v1403, %v1476
        %v1478 = vpop.f32.mrf.mxu0
        %1479 = vmatprep.mubr.f32.mxu0 0.0
        %1480 = vmatmul.mubr.f32.gmra.mxu0 %v1408
        %v1481 = vpop.f32.mrf.mxu0
        %v1482 = vadd.f32 %v1403, %v1481
        %v1483 = vpop.f32.mrf.mxu0
        %1484 = vdwg.mxu0
        %v1485 = vmul.f32 %v1477, 0.5
        %v1486 = vmul.f32 %v1482, 0.5
        %v1487 = vlaneseq
        %v1488 = vshrl.u32 %v1487, 7
        %v1489 = vsub.s32 3, %v1488
        %v1490 = vrot.slane %v1328, %v1489
        %v1492 = vsel %vm1330, %v1398, 0
        %v1495 = vsel %vm1330, %v1399, 0
        %1497 = vmatprep.subr.mxu0 0.0
        %1498 = vmatpush1.msra.mxu0 0.0
        %1499 = vmatprep.subr.mxu0 0.0
        %1500 = vmatpush1.msra.mxu0 0.0
        %1501 = vmatprep.subr.mxu0 0.0
        %1502 = vmatpush1.msra.mxu0 0.0
        %1503 = vmatprep.subr.mxu0 0.0
        %1504 = vmatpush1.msra.mxu0 0.0
        %1505 = vmatprep.subr.mxu0 0.0
        %1506 = vmatpush1.msra.mxu0 0.0
        %1507 = vmatprep.subr.mxu0 0.0
        %1508 = vmatpush1.msra.mxu0 0.0
        %1509 = vmatprep.subr.mxu0 0.0
        %1510 = vmatpush1.msra.mxu0 0.0
        %1511 = vmatprep.subr.mxu0 0.0
        %1512 = vmatpush1.msra.mxu0 0.0
        %1513 = vmatprep.subr.mxu0 0.0
        %1514 = vmatpush1.msra.mxu0 0.0
        %1515 = vmatprep.subr.mxu0 0.0
        %1516 = vmatpush1.msra.mxu0 0.0
        %1517 = vmatprep.subr.mxu0 0.0
        %1518 = vmatpush1.msra.mxu0 0.0
        %1519 = vmatprep.subr.mxu0 0.0
        %1520 = vmatpush1.msra.mxu0 0.0
        %1521 = vmatprep.subr.mxu0 0.0
        %1522 = vmatpush1.msra.mxu0 0.0
        %1523 = vmatprep.subr.mxu0 0.0
        %1524 = vmatpush1.msra.mxu0 0.0
        %1525 = vmatprep.subr.mxu0 0.0
        %1526 = vmatpush1.msra.mxu0 %v1312
        %1527 = vmatprep.subr.mxu0 0.0
        %1528 = vmatpush1.msra.mxu0 %v1311
        %1529 = vmatprep.subr.mxu0 0.0
        %1530 = vmatpush2.msra.mxu0 0.0
        %1531 = vmatprep.subr.mxu0 0.0
        %1532 = vmatpush2.msra.mxu0 0.0
        %1533 = vmatprep.subr.mxu0 0.0
        %1534 = vmatpush2.msra.mxu0 0.0
        %1535 = vmatprep.subr.mxu0 0.0
        %1536 = vmatpush2.msra.mxu0 0.0
        %1537 = vmatprep.subr.mxu0 0.0
        %1538 = vmatpush2.msra.mxu0 0.0
        %1539 = vmatprep.subr.mxu0 0.0
        %1540 = vmatpush2.msra.mxu0 0.0
        %1541 = vmatprep.subr.mxu0 0.0
        %1542 = vmatpush2.msra.mxu0 0.0
        %1543 = vmatprep.subr.mxu0 0.0
        %1544 = vmatpush2.msra.mxu0 0.0
        %1545 = vmatprep.subr.mxu0 0.0
        %1546 = vmatpush2.msra.mxu0 0.0
        %1547 = vmatprep.subr.mxu0 0.0
        %1548 = vmatpush2.msra.mxu0 0.0
        %1549 = vmatprep.subr.mxu0 0.0
        %1550 = vmatpush2.msra.mxu0 0.0
        %1551 = vmatprep.subr.mxu0 0.0
        %1552 = vmatpush2.msra.mxu0 0.0
        %1553 = vmatprep.subr.mxu0 0.0
        %1554 = vmatpush2.msra.mxu0 0.0
        %1555 = vmatprep.subr.mxu0 0.0
        %1556 = vmatpush2.msra.mxu0 0.0
        %1557 = vmatprep.subr.mxu0 0.0
        %1558 = vmatpush2.msra.mxu0 0.0
        %1559 = vmatprep.subr.mxu0 0.0
        %1560 = vmatpush2.msra.mxu0 0.0
        %1561 = vmatprep.mubr.f32.mxu0 0.0
        %1562 = vmatmul.mubr.f32.gmra.mxu0 %v1492
        %v1563 = vpop.f32.mrf.mxu0
        %v1564 = vadd.f32 %v1490, %v1563
        %v1565 = vpop.f32.mrf.mxu0
        %1566 = vmatprep.mubr.f32.mxu0 0.0
        %1567 = vmatmul.mubr.f32.gmra.mxu0 %v1495
        %v1568 = vpop.f32.mrf.mxu0
        %v1569 = vadd.f32 %v1490, %v1568
        %v1570 = vpop.f32.mrf.mxu0
        %1571 = vdwg.mxu0
        %v1572 = vlaneseq
        %v1573 = vshrl.u32 %v1572, 7
        %v1574 = vsub.s32 4, %v1573
        %v1575 = vrot.slane %v1328, %v1574
        %1576 = vmatprep.subr.mxu0 0.0
        %1577 = vmatpush1.msra.mxu0 0.0
        %1578 = vmatprep.subr.mxu0 0.0
        %1579 = vmatpush1.msra.mxu0 0.0
        %1580 = vmatprep.subr.mxu0 0.0
        %1581 = vmatpush1.msra.mxu0 0.0
        %1582 = vmatprep.subr.mxu0 0.0
        %1583 = vmatpush1.msra.mxu0 0.0
        %1584 = vmatprep.subr.mxu0 0.0
        %1585 = vmatpush1.msra.mxu0 0.0
        %1586 = vmatprep.subr.mxu0 0.0
        %1587 = vmatpush1.msra.mxu0 0.0
        %1588 = vmatprep.subr.mxu0 0.0
        %1589 = vmatpush1.msra.mxu0 0.0
        %1590 = vmatprep.subr.mxu0 0.0
        %1591 = vmatpush1.msra.mxu0 0.0
        %1592 = vmatprep.subr.mxu0 0.0
        %1593 = vmatpush1.msra.mxu0 0.0
        %1594 = vmatprep.subr.mxu0 0.0
        %1595 = vmatpush1.msra.mxu0 0.0
        %1596 = vmatprep.subr.mxu0 0.0
        %1597 = vmatpush1.msra.mxu0 0.0
        %1598 = vmatprep.subr.mxu0 0.0
        %1599 = vmatpush1.msra.mxu0 0.0
        %1600 = vmatprep.subr.mxu0 0.0
        %1601 = vmatpush1.msra.mxu0 0.0
        %1602 = vmatprep.subr.mxu0 0.0
        %1603 = vmatpush1.msra.mxu0 0.0
        %1604 = vmatprep.subr.mxu0 0.0
        %1605 = vmatpush1.msra.mxu0 %v1314
        %1606 = vmatprep.subr.mxu0 0.0
        %1607 = vmatpush1.msra.mxu0 %v1313
        %1608 = vmatprep.subr.mxu0 0.0
        %1609 = vmatpush2.msra.mxu0 0.0
        %1610 = vmatprep.subr.mxu0 0.0
        %1611 = vmatpush2.msra.mxu0 0.0
        %1612 = vmatprep.subr.mxu0 0.0
        %1613 = vmatpush2.msra.mxu0 0.0
        %1614 = vmatprep.subr.mxu0 0.0
        %1615 = vmatpush2.msra.mxu0 0.0
        %1616 = vmatprep.subr.mxu0 0.0
        %1617 = vmatpush2.msra.mxu0 0.0
        %1618 = vmatprep.subr.mxu0 0.0
        %1619 = vmatpush2.msra.mxu0 0.0
        %1620 = vmatprep.subr.mxu0 0.0
        %1621 = vmatpush2.msra.mxu0 0.0
        %1622 = vmatprep.subr.mxu0 0.0
        %1623 = vmatpush2.msra.mxu0 0.0
        %1624 = vmatprep.subr.mxu0 0.0
        %1625 = vmatpush2.msra.mxu0 0.0
        %1626 = vmatprep.subr.mxu0 0.0
        %1627 = vmatpush2.msra.mxu0 0.0
        %1628 = vmatprep.subr.mxu0 0.0
        %1629 = vmatpush2.msra.mxu0 0.0
        %1630 = vmatprep.subr.mxu0 0.0
        %1631 = vmatpush2.msra.mxu0 0.0
        %1632 = vmatprep.subr.mxu0 0.0
        %1633 = vmatpush2.msra.mxu0 0.0
        %1634 = vmatprep.subr.mxu0 0.0
        %1635 = vmatpush2.msra.mxu0 0.0
        %1636 = vmatprep.subr.mxu0 0.0
        %1637 = vmatpush2.msra.mxu0 0.0
        %1638 = vmatprep.subr.mxu0 0.0
        %1639 = vmatpush2.msra.mxu0 0.0
        %1640 = vmatprep.mubr.f32.mxu0 0.0
        %1641 = vmatmul.mubr.f32.gmra.mxu0 %v1492
        %v1642 = vpop.f32.mrf.mxu0
        %v1643 = vadd.f32 %v1575, %v1642
        %v1644 = vpop.f32.mrf.mxu0
        %1645 = vmatprep.mubr.f32.mxu0 0.0
        %1646 = vmatmul.mubr.f32.gmra.mxu0 %v1495
        %v1647 = vpop.f32.mrf.mxu0
        %v1648 = vadd.f32 %v1575, %v1647
        %v1649 = vpop.f32.mrf.mxu0
        %1650 = vdwg.mxu0
        %v1651 = vmul.f32 %v1485, %v1275
        %v1652 = vmul.f32 %v1486, %v1276
        %v1653 = vmul.f32 %v1485, %v1277
        %v1654 = vmul.f32 %v1486, %v1278
        %v1655 = vmul.f32 %v1485, %v1279
        %v1656 = vmul.f32 %v1486, %v1280
        %v1657 = vmul.f32 %v1485, %v1281
        %v1658 = vmul.f32 %v1486, %v1282
        %v1660 = vsel %vm1330, %v1651, 0
        %v1663 = vsel %vm1330, %v1652, 0
        %v1666 = vsel %vm1330, %v1653, 0
        %v1669 = vsel %vm1330, %v1654, 0
        %v1672 = vsel %vm1330, %v1655, 0
        %v1675 = vsel %vm1330, %v1656, 0
        %v1678 = vsel %vm1330, %v1657, 0
        %v1681 = vsel %vm1330, %v1658, 0
        %v1684 = vsel %vm1330, %v1564, 0
        %v1687 = vsel %vm1330, %v1569, 0
        %1689 = vmatprep.subr.mxu0 0.0
        %1690 = vmatpush1.xpose.msra.mxu0 0.0
        %1691 = vmatprep.subr.mxu0 0.0
        %1692 = vmatpush1.xpose.msra.mxu0 0.0
        %1693 = vmatprep.subr.mxu0 0.0
        %1694 = vmatpush1.xpose.msra.mxu0 0.0
        %1695 = vmatprep.subr.mxu0 0.0
        %1696 = vmatpush1.xpose.msra.mxu0 0.0
        %1697 = vmatprep.subr.mxu0 0.0
        %1698 = vmatpush1.xpose.msra.mxu0 0.0
        %1699 = vmatprep.subr.mxu0 0.0
        %1700 = vmatpush1.xpose.msra.mxu0 0.0
        %1701 = vmatprep.subr.mxu0 0.0
        %1702 = vmatpush1.xpose.msra.mxu0 0.0
        %1703 = vmatprep.subr.mxu0 0.0
        %1704 = vmatpush1.xpose.msra.mxu0 0.0
        %1705 = vmatprep.subr.mxu0 0.0
        %1706 = vmatpush1.xpose.msra.mxu0 0.0
        %1707 = vmatprep.subr.mxu0 0.0
        %1708 = vmatpush1.xpose.msra.mxu0 0.0
        %1709 = vmatprep.subr.mxu0 0.0
        %1710 = vmatpush1.xpose.msra.mxu0 0.0
        %1711 = vmatprep.subr.mxu0 0.0
        %1712 = vmatpush1.xpose.msra.mxu0 0.0
        %1713 = vmatprep.subr.mxu0 0.0
        %1714 = vmatpush1.xpose.msra.mxu0 0.0
        %1715 = vmatprep.subr.mxu0 0.0
        %1716 = vmatpush1.xpose.msra.mxu0 0.0
        %1717 = vmatprep.subr.mxu0 0.0
        %1718 = vmatpush1.xpose.msra.mxu0 %v1687
        %1719 = vmatprep.subr.mxu0 0.0
        %1720 = vmatpush1.xpose.msra.mxu0 %v1684
        %1721 = vmatprep.subr.mxu0 0.0
        %1722 = vmatpush2.xpose.msra.mxu0 0.0
        %1723 = vmatprep.subr.mxu0 0.0
        %1724 = vmatpush2.xpose.msra.mxu0 0.0
        %1725 = vmatprep.subr.mxu0 0.0
        %1726 = vmatpush2.xpose.msra.mxu0 0.0
        %1727 = vmatprep.subr.mxu0 0.0
        %1728 = vmatpush2.xpose.msra.mxu0 0.0
        %1729 = vmatprep.subr.mxu0 0.0
        %1730 = vmatpush2.xpose.msra.mxu0 0.0
        %1731 = vmatprep.subr.mxu0 0.0
        %1732 = vmatpush2.xpose.msra.mxu0 0.0
        %1733 = vmatprep.subr.mxu0 0.0
        %1734 = vmatpush2.xpose.msra.mxu0 0.0
        %1735 = vmatprep.subr.mxu0 0.0
        %1736 = vmatpush2.xpose.msra.mxu0 0.0
        %1737 = vmatprep.subr.mxu0 0.0
        %1738 = vmatpush2.xpose.msra.mxu0 0.0
        %1739 = vmatprep.subr.mxu0 0.0
        %1740 = vmatpush2.xpose.msra.mxu0 0.0
        %1741 = vmatprep.subr.mxu0 0.0
        %1742 = vmatpush2.xpose.msra.mxu0 0.0
        %1743 = vmatprep.subr.mxu0 0.0
        %1744 = vmatpush2.xpose.msra.mxu0 0.0
        %1745 = vmatprep.subr.mxu0 0.0
        %1746 = vmatpush2.xpose.msra.mxu0 0.0
        %1747 = vmatprep.subr.mxu0 0.0
        %1748 = vmatpush2.xpose.msra.mxu0 0.0
        %1749 = vmatprep.subr.mxu0 0.0
        %1750 = vmatpush2.xpose.msra.mxu0 0.0
        %1751 = vmatprep.subr.mxu0 0.0
        %1752 = vmatpush2.xpose.msra.mxu0 0.0
        %1753 = vmatprep.mubr.f32.mxu0 0.0
        %1754 = vmatmul.mubr.f32.gmra.mxu0 %v1660
        %v1755 = vpop.f32.mrf.mxu0
        %v1756 = vadd.f32 %v1267, %v1755
        %v1757 = vpop.f32.mrf.mxu0
        %1758 = vmatprep.mubr.f32.mxu0 0.0
        %1759 = vmatmul.mubr.f32.gmra.mxu0 %v1663
        %v1760 = vpop.f32.mrf.mxu0
        %v1761 = vadd.f32 %v1268, %v1760
        %v1762 = vpop.f32.mrf.mxu0
        %1763 = vmatprep.mubr.f32.mxu0 0.0
        %1764 = vmatmul.mubr.f32.gmra.mxu0 %v1666
        %v1765 = vpop.f32.mrf.mxu0
        %v1766 = vadd.f32 %v1269, %v1765
        %v1767 = vpop.f32.mrf.mxu0
        %1768 = vmatprep.mubr.f32.mxu0 0.0
        %1769 = vmatmul.mubr.f32.gmra.mxu0 %v1669
        %v1770 = vpop.f32.mrf.mxu0
        %v1771 = vadd.f32 %v1270, %v1770
        %v1772 = vpop.f32.mrf.mxu0
        %1773 = vmatprep.mubr.f32.mxu0 0.0
        %1774 = vmatmul.mubr.f32.gmra.mxu0 %v1672
        %v1775 = vpop.f32.mrf.mxu0
        %v1776 = vadd.f32 %v1271, %v1775
        %v1777 = vpop.f32.mrf.mxu0
        %1778 = vmatprep.mubr.f32.mxu0 0.0
        %1779 = vmatmul.mubr.f32.gmra.mxu0 %v1675
        %v1780 = vpop.f32.mrf.mxu0
        %v1781 = vadd.f32 %v1272, %v1780
        %v1782 = vpop.f32.mrf.mxu0
        %1783 = vmatprep.mubr.f32.mxu0 0.0
        %1784 = vmatmul.mubr.f32.gmra.mxu0 %v1678
        %v1785 = vpop.f32.mrf.mxu0
        %v1786 = vadd.f32 %v1273, %v1785
        %v1787 = vpop.f32.mrf.mxu0
        %1788 = vmatprep.mubr.f32.mxu0 0.0
        %1789 = vmatmul.mubr.f32.gmra.mxu0 %v1681
        %v1790 = vpop.f32.mrf.mxu0
        %v1791 = vadd.f32 %v1274, %v1790
        %v1792 = vpop.f32.mrf.mxu0
        %1793 = vdwg.mxu0
        %v1794 = vsel %vm1330, %v1756, -inf
        %1795 = vmax.xlane.f32.xlu0 %v1794
        %v1796 = vpop.xlane.xlu0 %1795
        %v1797 = vsel %vm1330, %v1761, -inf
        %1798 = vmax.xlane.f32.xlu0 %v1797
        %v1799 = vpop.xlane.xlu0 %1798
        %v1800 = vsel %vm1330, %v1766, -inf
        %1801 = vmax.xlane.f32.xlu0 %v1800
        %v1802 = vpop.xlane.xlu0 %1801
        %v1803 = vsel %vm1330, %v1771, -inf
        %1804 = vmax.xlane.f32.xlu0 %v1803
        %v1805 = vpop.xlane.xlu0 %1804
        %v1806 = vsel %vm1330, %v1776, -inf
        %1807 = vmax.xlane.f32.xlu0 %v1806
        %v1808 = vpop.xlane.xlu0 %1807
        %v1809 = vsel %vm1330, %v1781, -inf
        %1810 = vmax.xlane.f32.xlu0 %v1809
        %v1811 = vpop.xlane.xlu0 %1810
        %v1812 = vsel %vm1330, %v1786, -inf
        %1813 = vmax.xlane.f32.xlu0 %v1812
        %v1814 = vpop.xlane.xlu0 %1813
        %v1815 = vsel %vm1330, %v1791, -inf
        %1816 = vmax.xlane.f32.xlu0 %v1815
        %v1817 = vpop.xlane.xlu0 %1816
        %v1818 = vsub.f32 %v1756, %v1796
        %v1819 = vsub.f32 %v1761, %v1799
        %v1820 = vsub.f32 %v1766, %v1802
        %v1821 = vsub.f32 %v1771, %v1805
        %v1822 = vsub.f32 %v1776, %v1808
        %v1823 = vsub.f32 %v1781, %v1811
        %v1824 = vsub.f32 %v1786, %v1814
        %v1825 = vsub.f32 %v1791, %v1817
        %v1826 = vmul.f32 %v1818, 1.442695
        %v1827 = vpow.pop %v1826
        %v1828 = vmul.f32 %v1819, 1.442695
        %v1829 = vpow.pop %v1828
        %v1830 = vmul.f32 %v1820, 1.442695
        %v1831 = vpow.pop %v1830
        %v1832 = vmul.f32 %v1821, 1.442695
        %v1833 = vpow.pop %v1832
        %v1834 = vmul.f32 %v1822, 1.442695
        %v1835 = vpow.pop %v1834
        %v1836 = vmul.f32 %v1823, 1.442695
        %v1837 = vpow.pop %v1836
        %v1838 = vmul.f32 %v1824, 1.442695
        %v1839 = vpow.pop %v1838
        %v1840 = vmul.f32 %v1825, 1.442695
        %v1841 = vpow.pop %v1840
        %v1842 = vsel %vm1330, %v1827, 0.0
        %1843 = vadd.xlane.f32.xlu0 %v1842
        %v1844 = vpop.xlane.xlu0 %1843
        %v1845 = vsel %vm1330, %v1829, 0.0
        %1846 = vadd.xlane.f32.xlu0 %v1845
        %v1847 = vpop.xlane.xlu0 %1846
        %v1848 = vsel %vm1330, %v1831, 0.0
        %1849 = vadd.xlane.f32.xlu0 %v1848
        %v1850 = vpop.xlane.xlu0 %1849
        %v1851 = vsel %vm1330, %v1833, 0.0
        %1852 = vadd.xlane.f32.xlu0 %v1851
        %v1853 = vpop.xlane.xlu0 %1852
        %v1854 = vsel %vm1330, %v1835, 0.0
        %1855 = vadd.xlane.f32.xlu0 %v1854
        %v1856 = vpop.xlane.xlu0 %1855
        %v1857 = vsel %vm1330, %v1837, 0.0
        %1858 = vadd.xlane.f32.xlu0 %v1857
        %v1859 = vpop.xlane.xlu0 %1858
        %v1860 = vsel %vm1330, %v1839, 0.0
        %1861 = vadd.xlane.f32.xlu0 %v1860
        %v1862 = vpop.xlane.xlu0 %1861
        %v1863 = vsel %vm1330, %v1841, 0.0
        %1864 = vadd.xlane.f32.xlu0 %v1863
        %v1865 = vpop.xlane.xlu0 %1864
        %v1866 = vrcp.pop %v1844
        %v1867 = vrcp.pop %v1847
        %v1868 = vrcp.pop %v1850
        %v1869 = vrcp.pop %v1853
        %v1870 = vrcp.pop %v1856
        %v1871 = vrcp.pop %v1859
        %v1872 = vrcp.pop %v1862
        %v1873 = vrcp.pop %v1865
        %v1874 = vmul.f32 %v1827, %v1866
        %v1875 = vmul.f32 %v1829, %v1867
        %v1876 = vmul.f32 %v1831, %v1868
        %v1877 = vmul.f32 %v1833, %v1869
        %v1878 = vmul.f32 %v1835, %v1870
        %v1879 = vmul.f32 %v1837, %v1871
        %v1880 = vmul.f32 %v1839, %v1872
        %v1881 = vmul.f32 %v1841, %v1873
        %v1883 = vsel %vm1330, %v1874, 0
        %v1886 = vsel %vm1330, %v1875, 0
        %v1889 = vsel %vm1330, %v1876, 0
        %v1892 = vsel %vm1330, %v1877, 0
        %v1895 = vsel %vm1330, %v1878, 0
        %v1898 = vsel %vm1330, %v1879, 0
        %v1901 = vsel %vm1330, %v1880, 0
        %v1904 = vsel %vm1330, %v1881, 0
        %1906 = vmatprep.subr.mxu0 0.0
        %1907 = vmatpush1.msra.mxu0 0.0
        %1908 = vmatprep.subr.mxu0 0.0
        %1909 = vmatpush1.msra.mxu0 0.0
        %1910 = vmatprep.subr.mxu0 0.0
        %1911 = vmatpush1.msra.mxu0 0.0
        %1912 = vmatprep.subr.mxu0 0.0
        %1913 = vmatpush1.msra.mxu0 0.0
        %1914 = vmatprep.subr.mxu0 0.0
        %1915 = vmatpush1.msra.mxu0 0.0
        %1916 = vmatprep.subr.mxu0 0.0
        %1917 = vmatpush1.msra.mxu0 0.0
        %1918 = vmatprep.subr.mxu0 0.0
        %1919 = vmatpush1.msra.mxu0 0.0
        %1920 = vmatprep.subr.mxu0 0.0
        %1921 = vmatpush1.msra.mxu0 0.0
        %1922 = vmatprep.subr.mxu0 0.0
        %1923 = vmatpush1.msra.mxu0 0.0
        %1924 = vmatprep.subr.mxu0 0.0
        %1925 = vmatpush1.msra.mxu0 0.0
        %1926 = vmatprep.subr.mxu0 0.0
        %1927 = vmatpush1.msra.mxu0 0.0
        %1928 = vmatprep.subr.mxu0 0.0
        %1929 = vmatpush1.msra.mxu0 0.0
        %1930 = vmatprep.subr.mxu0 0.0
        %1931 = vmatpush1.msra.mxu0 0.0
        %1932 = vmatprep.subr.mxu0 0.0
        %1933 = vmatpush1.msra.mxu0 0.0
        %1934 = vmatprep.subr.mxu0 0.0
        %1935 = vmatpush1.msra.mxu0 %v1648
        %1936 = vmatprep.subr.mxu0 0.0
        %1937 = vmatpush1.msra.mxu0 %v1643
        %1938 = vmatprep.subr.mxu0 0.0
        %1939 = vmatpush2.msra.mxu0 0.0
        %1940 = vmatprep.subr.mxu0 0.0
        %1941 = vmatpush2.msra.mxu0 0.0
        %1942 = vmatprep.subr.mxu0 0.0
        %1943 = vmatpush2.msra.mxu0 0.0
        %1944 = vmatprep.subr.mxu0 0.0
        %1945 = vmatpush2.msra.mxu0 0.0
        %1946 = vmatprep.subr.mxu0 0.0
        %1947 = vmatpush2.msra.mxu0 0.0
        %1948 = vmatprep.subr.mxu0 0.0
        %1949 = vmatpush2.msra.mxu0 0.0
        %1950 = vmatprep.subr.mxu0 0.0
        %1951 = vmatpush2.msra.mxu0 0.0
        %1952 = vmatprep.subr.mxu0 0.0
        %1953 = vmatpush2.msra.mxu0 0.0
        %1954 = vmatprep.subr.mxu0 0.0
        %1955 = vmatpush2.msra.mxu0 0.0
        %1956 = vmatprep.subr.mxu0 0.0
        %1957 = vmatpush2.msra.mxu0 0.0
        %1958 = vmatprep.subr.mxu0 0.0
        %1959 = vmatpush2.msra.mxu0 0.0
        %1960 = vmatprep.subr.mxu0 0.0
        %1961 = vmatpush2.msra.mxu0 0.0
        %1962 = vmatprep.subr.mxu0 0.0
        %1963 = vmatpush2.msra.mxu0 0.0
        %1964 = vmatprep.subr.mxu0 0.0
        %1965 = vmatpush2.msra.mxu0 0.0
        %1966 = vmatprep.subr.mxu0 0.0
        %1967 = vmatpush2.msra.mxu0 0.0
        %1968 = vmatprep.subr.mxu0 0.0
        %1969 = vmatpush2.msra.mxu0 0.0
        %1970 = vmatprep.mubr.f32.mxu0 0.0
        %1971 = vmatmul.mubr.f32.gmra.mxu0 %v1883
        %v1972 = vpop.f32.mrf.mxu0
        %v1973 = vadd.f32 0.0, %v1972
        %v1974 = vpop.f32.mrf.mxu0
        %1975 = vmatprep.mubr.f32.mxu0 0.0
        %1976 = vmatmul.mubr.f32.gmra.mxu0 %v1886
        %v1977 = vpop.f32.mrf.mxu0
        %v1978 = vadd.f32 0.0, %v1977
        %v1979 = vpop.f32.mrf.mxu0
        %1980 = vmatprep.mubr.f32.mxu0 0.0
        %1981 = vmatmul.mubr.f32.gmra.mxu0 %v1889
        %v1982 = vpop.f32.mrf.mxu0
        %v1983 = vadd.f32 0.0, %v1982
        %v1984 = vpop.f32.mrf.mxu0
        %1985 = vmatprep.mubr.f32.mxu0 0.0
        %1986 = vmatmul.mubr.f32.gmra.mxu0 %v1892
        %v1987 = vpop.f32.mrf.mxu0
        %v1988 = vadd.f32 0.0, %v1987
        %v1989 = vpop.f32.mrf.mxu0
        %1990 = vmatprep.mubr.f32.mxu0 0.0
        %1991 = vmatmul.mubr.f32.gmra.mxu0 %v1895
        %v1992 = vpop.f32.mrf.mxu0
        %v1993 = vadd.f32 0.0, %v1992
        %v1994 = vpop.f32.mrf.mxu0
        %1995 = vmatprep.mubr.f32.mxu0 0.0
        %1996 = vmatmul.mubr.f32.gmra.mxu0 %v1898
        %v1997 = vpop.f32.mrf.mxu0
        %v1998 = vadd.f32 0.0, %v1997
        %v1999 = vpop.f32.mrf.mxu0
        %2000 = vmatprep.mubr.f32.mxu0 0.0
        %2001 = vmatmul.mubr.f32.gmra.mxu0 %v1901
        %v2002 = vpop.f32.mrf.mxu0
        %v2003 = vadd.f32 0.0, %v2002
        %v2004 = vpop.f32.mrf.mxu0
        %2005 = vmatprep.mubr.f32.mxu0 0.0
        %2006 = vmatmul.mubr.f32.gmra.mxu0 %v1904
        %v2007 = vpop.f32.mrf.mxu0
        %v2008 = vadd.f32 0.0, %v2007
        %v2009 = vpop.f32.mrf.mxu0
        %2010 = vdwg.mxu0
        %v2011 = vmul.f32 %v1973, %v1275
        %v2012 = vmul.f32 %v1978, %v1276
        %v2013 = vmul.f32 %v1983, %v1277
        %v2014 = vmul.f32 %v1988, %v1278
        %v2015 = vmul.f32 %v1993, %v1279
        %v2016 = vmul.f32 %v1998, %v1280
        %v2017 = vmul.f32 %v2003, %v1281
        %v2018 = vmul.f32 %v2008, %v1282
        %v2019 = vadd.f32 %v2011, %v2013
        %v2020 = vadd.f32 %v2012, %v2014
        %v2021 = vadd.f32 %v2019, %v2015
        %v2022 = vadd.f32 %v2020, %v2016
        %v2023 = vadd.f32 %v2021, %v2017
        %v2024 = vadd.f32 %v2022, %v2018
        %v2026 = vsel %vm1330, %v2023, 0
        %v2029 = vsel %vm1330, %v2024, 0
        %2031 = vmatprep.subr.mxu0 0.0
        %2032 = vmatpush1.msra.mxu0 0.0
        %2033 = vmatprep.subr.mxu0 0.0
        %2034 = vmatpush1.msra.mxu0 0.0
        %2035 = vmatprep.subr.mxu0 0.0
        %2036 = vmatpush1.msra.mxu0 0.0
        %2037 = vmatprep.subr.mxu0 0.0
        %2038 = vmatpush1.msra.mxu0 0.0
        %2039 = vmatprep.subr.mxu0 0.0
        %2040 = vmatpush1.msra.mxu0 0.0
        %2041 = vmatprep.subr.mxu0 0.0
        %2042 = vmatpush1.msra.mxu0 0.0
        %2043 = vmatprep.subr.mxu0 0.0
        %2044 = vmatpush1.msra.mxu0 0.0
        %2045 = vmatprep.subr.mxu0 0.0
        %2046 = vmatpush1.msra.mxu0 0.0
        %2047 = vmatprep.subr.mxu0 0.0
        %2048 = vmatpush1.msra.mxu0 0.0
        %2049 = vmatprep.subr.mxu0 0.0
        %2050 = vmatpush1.msra.mxu0 0.0
        %2051 = vmatprep.subr.mxu0 0.0
        %2052 = vmatpush1.msra.mxu0 0.0
        %2053 = vmatprep.subr.mxu0 0.0
        %2054 = vmatpush1.msra.mxu0 0.0
        %2055 = vmatprep.subr.mxu0 0.0
        %2056 = vmatpush1.msra.mxu0 0.0
        %2057 = vmatprep.subr.mxu0 0.0
        %2058 = vmatpush1.msra.mxu0 0.0
        %2059 = vmatprep.subr.mxu0 0.0
        %2060 = vmatpush1.msra.mxu0 %v1316
        %2061 = vmatprep.subr.mxu0 0.0
        %2062 = vmatpush1.msra.mxu0 %v1315
        %2063 = vmatprep.subr.mxu0 0.0
        %2064 = vmatpush2.msra.mxu0 0.0
        %2065 = vmatprep.subr.mxu0 0.0
        %2066 = vmatpush2.msra.mxu0 0.0
        %2067 = vmatprep.subr.mxu0 0.0
        %2068 = vmatpush2.msra.mxu0 0.0
        %2069 = vmatprep.subr.mxu0 0.0
        %2070 = vmatpush2.msra.mxu0 0.0
        %2071 = vmatprep.subr.mxu0 0.0
        %2072 = vmatpush2.msra.mxu0 0.0
        %2073 = vmatprep.subr.mxu0 0.0
        %2074 = vmatpush2.msra.mxu0 0.0
        %2075 = vmatprep.subr.mxu0 0.0
        %2076 = vmatpush2.msra.mxu0 0.0
        %2077 = vmatprep.subr.mxu0 0.0
        %2078 = vmatpush2.msra.mxu0 0.0
        %2079 = vmatprep.subr.mxu0 0.0
        %2080 = vmatpush2.msra.mxu0 0.0
        %2081 = vmatprep.subr.mxu0 0.0
        %2082 = vmatpush2.msra.mxu0 0.0
        %2083 = vmatprep.subr.mxu0 0.0
        %2084 = vmatpush2.msra.mxu0 0.0
        %2085 = vmatprep.subr.mxu0 0.0
        %2086 = vmatpush2.msra.mxu0 0.0
        %2087 = vmatprep.subr.mxu0 0.0
        %2088 = vmatpush2.msra.mxu0 0.0
        %2089 = vmatprep.subr.mxu0 0.0
        %2090 = vmatpush2.msra.mxu0 0.0
        %2091 = vmatprep.subr.mxu0 0.0
        %2092 = vmatpush2.msra.mxu0 0.0
        %2093 = vmatprep.subr.mxu0 0.0
        %2094 = vmatpush2.msra.mxu0 0.0
        %2095 = vmatprep.mubr.f32.mxu0 0.0
        %2096 = vmatmul.mubr.f32.gmra.mxu0 %v2026
        %v2097 = vpop.f32.mrf.mxu0
        %v2098 = vadd.f32 0.0, %v2097
        %v2099 = vpop.f32.mrf.mxu0
        %2100 = vmatprep.mubr.f32.mxu0 0.0
        %2101 = vmatmul.mubr.f32.gmra.mxu0 %v2029
        %v2102 = vpop.f32.mrf.mxu0
        %v2103 = vadd.f32 0.0, %v2102
        %v2104 = vpop.f32.mrf.mxu0
        %2105 = vdwg.mxu0
        %v2106 = vadd.f32 %v1295, %v2098
        %v2107 = vadd.f32 %v1296, %v2103
        %v2108 = vlaneseq
        %v2109 = vshrl.u32 %v2108, 7
        %v2110 = vsub.s32 5, %v2109
        %v2111 = vrot.slane %v1328, %v2110
        %v2112 = vadd.f32 %v2106, %v2111
        %v2113 = vadd.f32 %v2107, %v2111
        %v2114 = vsel %vm1330, %v2112, 0.0
        %2115 = vadd.xlane.f32.xlu0 %v2114
        %v2116 = vpop.xlane.xlu0 %2115
        %v2117 = vsel %vm1330, %v2113, 0.0
        %2118 = vadd.xlane.f32.xlu0 %v2117
        %v2119 = vpop.xlane.xlu0 %2118
        %v2120 = vmul.f32 %v2116, %v1337
        %v2121 = vmul.f32 %v2119, %v1337
        %v2122 = vsub.f32 %v2112, %v2120
        %v2123 = vsub.f32 %v2113, %v2121
        %v2124 = vmul.f32 %v2122, %v2122
        %v2125 = vmul.f32 %v2123, %v2123
        %v2126 = vsel %vm1330, %v2124, 0.0
        %2127 = vadd.xlane.f32.xlu0 %v2126
        %v2128 = vpop.xlane.xlu0 %2127
        %v2129 = vsel %vm1330, %v2125, 0.0
        %2130 = vadd.xlane.f32.xlu0 %v2129
        %v2131 = vpop.xlane.xlu0 %2130
        %v2132 = vmul.f32 %v2128, %v1337
        %v2133 = vmul.f32 %v2131, %v1337
        %v2134 = vadd.f32 %v2132, 1e-05
        %v2135 = vadd.f32 %v2133, 1e-05
        %v2136 = vrsqrt.pop %v2134
        %v2137 = vrsqrt.pop %v2135
        %v2138 = vmul.f32 %v2122, %v2136
        %v2139 = vmul.f32 %v2123, %v2137
        %v2140 = vlaneseq
        %v2141 = vshrl.u32 %v2140, 7
        %v2142 = vsub.s32 6, %v2141
        %v2143 = vrot.slane %v1328, %v2142
        %v2144 = vmul.f32 %v2138, %v2143
        %v2145 = vmul.f32 %v2139, %v2143
        %v2146 = vlaneseq
        %v2147 = vshrl.u32 %v2146, 7
        %v2148 = vsub.s32 7, %v2147
        %v2149 = vrot.slane %v1328, %v2148
        %v2150 = vadd.f32 %v2144, %v2149
        %v2151 = vadd.f32 %v2145, %v2149
        %v2153 = vlaneseq
        %v2154 = vshrl.u32 %v2153, 7
        %v2155 = vsub.s32 0, %v2154
        %v2156 = vrot.slane %v1327, %v2155
        %v2159 = vsel %vm1330, %v2150, 0
        %v2162 = vsel %vm1330, %v2151, 0
        %2164 = vmatprep.subr.mxu0 0.0
        %2165 = vmatpush1.msra.mxu0 0.0
        %2166 = vmatprep.subr.mxu0 0.0
        %2167 = vmatpush1.msra.mxu0 0.0
        %2168 = vmatprep.subr.mxu0 0.0
        %2169 = vmatpush1.msra.mxu0 0.0
        %2170 = vmatprep.subr.mxu0 0.0
        %2171 = vmatpush1.msra.mxu0 0.0
        %2172 = vmatprep.subr.mxu0 0.0
        %2173 = vmatpush1.msra.mxu0 0.0
        %2174 = vmatprep.subr.mxu0 0.0
        %2175 = vmatpush1.msra.mxu0 0.0
        %2176 = vmatprep.subr.mxu0 0.0
        %2177 = vmatpush1.msra.mxu0 0.0
        %2178 = vmatprep.subr.mxu0 0.0
        %2179 = vmatpush1.msra.mxu0 0.0
        %2180 = vmatprep.subr.mxu0 0.0
        %2181 = vmatpush1.msra.mxu0 0.0
        %2182 = vmatprep.subr.mxu0 0.0
        %2183 = vmatpush1.msra.mxu0 0.0
        %2184 = vmatprep.subr.mxu0 0.0
        %2185 = vmatpush1.msra.mxu0 0.0
        %2186 = vmatprep.subr.mxu0 0.0
        %2187 = vmatpush1.msra.mxu0 0.0
        %2188 = vmatprep.subr.mxu0 0.0
        %2189 = vmatpush1.msra.mxu0 0.0
        %2190 = vmatprep.subr.mxu0 0.0
        %2191 = vmatpush1.msra.mxu0 0.0
        %2192 = vmatprep.subr.mxu0 0.0
        %2193 = vmatpush1.msra.mxu0 %v1318
        %2194 = vmatprep.subr.mxu0 0.0
        %2195 = vmatpush1.msra.mxu0 %v1317
        %2196 = vmatprep.subr.mxu0 0.0
        %2197 = vmatpush2.msra.mxu0 0.0
        %2198 = vmatprep.subr.mxu0 0.0
        %2199 = vmatpush2.msra.mxu0 0.0
        %2200 = vmatprep.subr.mxu0 0.0
        %2201 = vmatpush2.msra.mxu0 0.0
        %2202 = vmatprep.subr.mxu0 0.0
        %2203 = vmatpush2.msra.mxu0 0.0
        %2204 = vmatprep.subr.mxu0 0.0
        %2205 = vmatpush2.msra.mxu0 0.0
        %2206 = vmatprep.subr.mxu0 0.0
        %2207 = vmatpush2.msra.mxu0 0.0
        %2208 = vmatprep.subr.mxu0 0.0
        %2209 = vmatpush2.msra.mxu0 0.0
        %2210 = vmatprep.subr.mxu0 0.0
        %2211 = vmatpush2.msra.mxu0 0.0
        %2212 = vmatprep.subr.mxu0 0.0
        %2213 = vmatpush2.msra.mxu0 0.0
        %2214 = vmatprep.subr.mxu0 0.0
        %2215 = vmatpush2.msra.mxu0 0.0
        %2216 = vmatprep.subr.mxu0 0.0
        %2217 = vmatpush2.msra.mxu0 0.0
        %2218 = vmatprep.subr.mxu0 0.0
        %2219 = vmatpush2.msra.mxu0 0.0
        %2220 = vmatprep.subr.mxu0 0.0
        %2221 = vmatpush2.msra.mxu0 0.0
        %2222 = vmatprep.subr.mxu0 0.0
        %2223 = vmatpush2.msra.mxu0 0.0
        %2224 = vmatprep.subr.mxu0 0.0
        %2225 = vmatpush2.msra.mxu0 0.0
        %2226 = vmatprep.subr.mxu0 0.0
        %2227 = vmatpush2.msra.mxu0 0.0
        %2228 = vmatprep.mubr.f32.mxu0 0.0
        %2229 = vmatmul.mubr.f32.gmra.mxu0 %v2159
        %v2230 = vpop.f32.mrf.mxu0
        %v2231 = vadd.f32 %v2156, %v2230
        %v2232 = vpop.f32.mrf.mxu0
        %2233 = vmatprep.mubr.f32.mxu0 0.0
        %2234 = vmatmul.mubr.f32.gmra.mxu0 %v2162
        %v2235 = vpop.f32.mrf.mxu0
        %v2236 = vadd.f32 %v2156, %v2235
        %v2237 = vpop.f32.mrf.mxu0
        %2238 = vdwg.mxu0
        %v2239 = vmax.f32 %v2231, 0.0
        %v2240 = vmax.f32 %v2236, 0.0
        %vm2241 = vcmask 523264
        %v2243 = vsel %vm2241, %v2239, 0
        %v2246 = vsel %vm2241, %v2240, 0
        %2248 = vmatprep.subr.mxu0 0.0
        %2249 = vmatpush1.msra.mxu0 0.0
        %2250 = vmatprep.subr.mxu0 0.0
        %2251 = vmatpush1.msra.mxu0 0.0
        %2252 = vmatprep.subr.mxu0 0.0
        %2253 = vmatpush1.msra.mxu0 0.0
        %2254 = vmatprep.subr.mxu0 0.0
        %2255 = vmatpush1.msra.mxu0 0.0
        %2256 = vmatprep.subr.mxu0 0.0
        %2257 = vmatpush1.msra.mxu0 0.0
        %2258 = vmatprep.subr.mxu0 0.0
        %2259 = vmatpush1.msra.mxu0 0.0
        %2260 = vmatprep.subr.mxu0 0.0
        %2261 = vmatpush1.msra.mxu0 0.0
        %2262 = vmatprep.subr.mxu0 0.0
        %2263 = vmatpush1.msra.mxu0 0.0
        %2264 = vmatprep.subr.mxu0 0.0
        %2265 = vmatpush1.msra.mxu0 %v1326
        %2266 = vmatprep.subr.mxu0 0.0
        %2267 = vmatpush1.msra.mxu0 %v1325
        %2268 = vmatprep.subr.mxu0 0.0
        %2269 = vmatpush1.msra.mxu0 %v1324
        %2270 = vmatprep.subr.mxu0 0.0
        %2271 = vmatpush1.msra.mxu0 %v1323
        %2272 = vmatprep.subr.mxu0 0.0
        %2273 = vmatpush1.msra.mxu0 %v1322
        %2274 = vmatprep.subr.mxu0 0.0
        %2275 = vmatpush1.msra.mxu0 %v1321
        %2276 = vmatprep.subr.mxu0 0.0
        %2277 = vmatpush1.msra.mxu0 %v1320
        %2278 = vmatprep.subr.mxu0 0.0
        %2279 = vmatpush1.msra.mxu0 %v1319
        %2280 = vmatprep.subr.mxu0 0.0
        %2281 = vmatpush2.msra.mxu0 0.0
        %2282 = vmatprep.subr.mxu0 0.0
        %2283 = vmatpush2.msra.mxu0 0.0
        %2284 = vmatprep.subr.mxu0 0.0
        %2285 = vmatpush2.msra.mxu0 0.0
        %2286 = vmatprep.subr.mxu0 0.0
        %2287 = vmatpush2.msra.mxu0 0.0
        %2288 = vmatprep.subr.mxu0 0.0
        %2289 = vmatpush2.msra.mxu0 0.0
        %2290 = vmatprep.subr.mxu0 0.0
        %2291 = vmatpush2.msra.mxu0 0.0
        %2292 = vmatprep.subr.mxu0 0.0
        %2293 = vmatpush2.msra.mxu0 0.0
        %2294 = vmatprep.subr.mxu0 0.0
        %2295 = vmatpush2.msra.mxu0 0.0
        %2296 = vmatprep.subr.mxu0 0.0
        %2297 = vmatpush2.msra.mxu0 0.0
        %2298 = vmatprep.subr.mxu0 0.0
        %2299 = vmatpush2.msra.mxu0 0.0
        %2300 = vmatprep.subr.mxu0 0.0
        %2301 = vmatpush2.msra.mxu0 0.0
        %2302 = vmatprep.subr.mxu0 0.0
        %2303 = vmatpush2.msra.mxu0 0.0
        %2304 = vmatprep.subr.mxu0 0.0
        %2305 = vmatpush2.msra.mxu0 0.0
        %2306 = vmatprep.subr.mxu0 0.0
        %2307 = vmatpush2.msra.mxu0 0.0
        %2308 = vmatprep.subr.mxu0 0.0
        %2309 = vmatpush2.msra.mxu0 0.0
        %2310 = vmatprep.subr.mxu0 0.0
        %2311 = vmatpush2.msra.mxu0 0.0
        %2312 = vmatprep.mubr.f32.mxu0 0.0
        %2313 = vmatmul.mubr.f32.gmra.mxu0 %v2243
        %v2314 = vpop.f32.mrf.mxu0
        %v2315 = vadd.f32 0.0, %v2314
        %v2316 = vpop.f32.mrf.mxu0
        %2317 = vmatprep.mubr.f32.mxu0 0.0
        %2318 = vmatmul.mubr.f32.gmra.mxu0 %v2246
        %v2319 = vpop.f32.mrf.mxu0
        %v2320 = vadd.f32 0.0, %v2319
        %v2321 = vpop.f32.mrf.mxu0
        %2322 = vdwg.mxu0
        %v2323 = vadd.f32 %v2112, %v2315
        %v2324 = vadd.f32 %v2113, %v2320
        %v2325 = vlaneseq
        %v2326 = vshrl.u32 %v2325, 7
        %v2327 = vsub.s32 0, %v2326
        %v2328 = vrot.slane %v1329, %v2327
        %v2329 = vadd.f32 %v2323, %v2328
        %v2330 = vadd.f32 %v2324, %v2328
        %v2331 = vld [vmem:[%s992 + $0x8] sm:$0xff]
        %v2332 = vsel %vm1330, %v2329, 0.0
        %2333 = vadd.xlane.f32.xlu0 %v2332
        %v2334 = vpop.xlane.xlu0 %2333
        %v2335 = vsel %vm1330, %v2330, 0.0
        %2336 = vadd.xlane.f32.xlu0 %v2335
        %v2337 = vpop.xlane.xlu0 %2336
        %v2338 = vmul.f32 %v2334, %v1337
        %v2339 = vmul.f32 %v2337, %v1337
        %v2340 = vsub.f32 %v2329, %v2338
        %v2341 = vsub.f32 %v2330, %v2339
        %v2342 = vmul.f32 %v2340, %v2340
        %v2343 = vmul.f32 %v2341, %v2341
        %v2344 = vsel %vm1330, %v2342, 0.0
        %2345 = vadd.xlane.f32.xlu0 %v2344
        %v2346 = vpop.xlane.xlu0 %2345
        %v2347 = vsel %vm1330, %v2343, 0.0
        %2348 = vadd.xlane.f32.xlu0 %v2347
        %v2349 = vpop.xlane.xlu0 %2348
        %v2350 = vmul.f32 %v2346, %v1337
        %v2351 = vmul.f32 %v2349, %v1337
        %v2352 = vadd.f32 %v2350, 1e-05
        %v2353 = vadd.f32 %v2351, 1e-05
        %v2354 = vrsqrt.pop %v2352
        %v2355 = vrsqrt.pop %v2353
        %v2356 = vmul.f32 %v2340, %v2354
        %v2357 = vmul.f32 %v2341, %v2355
        %v2358 = vlaneseq
        %v2359 = vshrl.u32 %v2358, 7
        %v2360 = vsub.s32 1, %v2359
        %v2361 = vrot.slane %v2331, %v2360
        %v2362 = vmul.f32 %v2356, %v2361
        %v2363 = vmul.f32 %v2357, %v2361
        %v2364 = vlaneseq
        %v2365 = vshrl.u32 %v2364, 7
        %v2366 = vsub.s32 2, %v2365
        %v2367 = vrot.slane %v2331, %v2366
        %v2368 = vadd.f32 %v2362, %v2367
        %v2369 = vadd.f32 %v2363, %v2367
        %s2370 = scalar_lea.vmem %s1200, 16
        %v2371 = vld [vmem:[%s2370] sm:$0xff]
        %v2372 = vld [vmem:[%s2370 + $0x8] sm:$0xff]
        %s2373 = scalar_lea.vmem %s1205, 16
        %v2374 = vld [vmem:[%s2373] sm:$0xff]
        %v2375 = vld [vmem:[%s2373 + $0x8] sm:$0xff]
        %s2376 = scalar_lea.vmem %s1210, 16
        %v2377 = vld [vmem:[%s2376] sm:$0xff]
        %v2378 = vld [vmem:[%s2376 + $0x8] sm:$0xff]
        %s2379 = scalar_lea.vmem %s1215, 16
        %v2380 = vld [vmem:[%s2379] sm:$0xff]
        %v2381 = vld [vmem:[%s2379 + $0x8] sm:$0xff]
        %s2382 = scalar_lea.vmem %s1220, 16
        %v2383 = vld [vmem:[%s2382] sm:$0xff]
        %v2384 = vld [vmem:[%s2382 + $0x8] sm:$0xff]
        %s2385 = scalar_lea.vmem %s1225, 64
        %v2386 = vld [vmem:[%s2385] sm:$0xff]
        %v2387 = vld [vmem:[%s2385 + $0x8] sm:$0xff]
        %v2388 = vld [vmem:[%s2385 + $0x10] sm:$0xff]
        %v2389 = vld [vmem:[%s2385 + $0x18] sm:$0xff]
        %v2390 = vld [vmem:[%s2385 + $0x20] sm:$0xff]
        %v2391 = vld [vmem:[%s2385 + $0x28] sm:$0xff]
        %v2392 = vld [vmem:[%s2385 + $0x30] sm:$0xff]
        %v2393 = vld [vmem:[%s2385 + $0x38] sm:$0xff]
        %s2394 = scalar_lea.vmem %s983, 1 [#allocation8]
        %v2395 = vld [vmem:[%s2394] sm:$0x1]
        %s2396 = scalar_lea.vmem %s992, 16 [#allocation9]
        %v2397 = vld [vmem:[%s2396] sm:$0xff]
        %v2398 = vld [vmem:[%s2396 + $0x8] sm:$0xff]
        %v2399 = vlaneseq
        %v2400 = vshrl.u32 %v2399, 7
        %v2401 = vsub.s32 0, %v2400
        %v2402 = vrot.slane %v2397, %v2401
        %v2403 = vmul.f32 %v1356, %v2402
        %v2404 = vmul.f32 %v1357, %v2402
        %v2405 = vlaneseq
        %v2406 = vshrl.u32 %v2405, 7
        %v2407 = vsub.s32 1, %v2406
        %v2408 = vrot.slane %v2397, %v2407
        %v2409 = vadd.f32 %v2403, %v2408
        %v2410 = vadd.f32 %v2404, %v2408
        %v2411 = vsel %vm1330, %v1307, 0.0
        %2412 = vadd.xlane.f32.xlu0 %v2411
        %v2413 = vpop.xlane.xlu0 %2412
        %v2414 = vsel %vm1330, %v1308, 0.0
        %2415 = vadd.xlane.f32.xlu0 %v2414
        %v2416 = vpop.xlane.xlu0 %2415
        %v2417 = vmul.f32 %v2413, %v1337
        %v2418 = vmul.f32 %v2416, %v1337
        %v2419 = vsub.f32 %v1307, %v2417
        %v2420 = vsub.f32 %v1308, %v2418
        %v2421 = vmul.f32 %v2419, %v2419
        %v2422 = vmul.f32 %v2420, %v2420
        %v2423 = vsel %vm1330, %v2421, 0.0
        %2424 = vadd.xlane.f32.xlu0 %v2423
        %v2425 = vpop.xlane.xlu0 %2424
        %v2426 = vsel %vm1330, %v2422, 0.0
        %2427 = vadd.xlane.f32.xlu0 %v2426
        %v2428 = vpop.xlane.xlu0 %2427
        %v2429 = vmul.f32 %v2425, %v1337
        %v2430 = vmul.f32 %v2428, %v1337
        %v2431 = vadd.f32 %v2429, 1e-05
        %v2432 = vadd.f32 %v2430, 1e-05
        %v2433 = vrsqrt.pop %v2431
        %v2434 = vrsqrt.pop %v2432
        %v2435 = vmul.f32 %v2419, %v2433
        %v2436 = vmul.f32 %v2420, %v2434
        %v2437 = vmul.f32 %v2435, %v2402
        %v2438 = vmul.f32 %v2436, %v2402
        %v2439 = vadd.f32 %v2437, %v2408
        %v2440 = vadd.f32 %v2438, %v2408
        %v2441 = vlaneseq
        %v2442 = vshrl.u32 %v2441, 7
        %v2443 = vsub.s32 2, %v2442
        %v2444 = vrot.slane %v2397, %v2443
        %v2446 = vsel %vm1330, %v2409, 0
        %v2449 = vsel %vm1330, %v2410, 0
        %2451 = vmatprep.subr.mxu0 0.0
        %2452 = vmatpush1.msra.mxu0 0.0
        %2453 = vmatprep.subr.mxu0 0.0
        %2454 = vmatpush1.msra.mxu0 0.0
        %2455 = vmatprep.subr.mxu0 0.0
        %2456 = vmatpush1.msra.mxu0 0.0
        %2457 = vmatprep.subr.mxu0 0.0
        %2458 = vmatpush1.msra.mxu0 0.0
        %2459 = vmatprep.subr.mxu0 0.0
        %2460 = vmatpush1.msra.mxu0 0.0
        %2461 = vmatprep.subr.mxu0 0.0
        %2462 = vmatpush1.msra.mxu0 0.0
        %2463 = vmatprep.subr.mxu0 0.0
        %2464 = vmatpush1.msra.mxu0 0.0
        %2465 = vmatprep.subr.mxu0 0.0
        %2466 = vmatpush1.msra.mxu0 0.0
        %2467 = vmatprep.subr.mxu0 0.0
        %2468 = vmatpush1.msra.mxu0 0.0
        %2469 = vmatprep.subr.mxu0 0.0
        %2470 = vmatpush1.msra.mxu0 0.0
        %2471 = vmatprep.subr.mxu0 0.0
        %2472 = vmatpush1.msra.mxu0 0.0
        %2473 = vmatprep.subr.mxu0 0.0
        %2474 = vmatpush1.msra.mxu0 0.0
        %2475 = vmatprep.subr.mxu0 0.0
        %2476 = vmatpush1.msra.mxu0 0.0
        %2477 = vmatprep.subr.mxu0 0.0
        %2478 = vmatpush1.msra.mxu0 0.0
        %2479 = vmatprep.subr.mxu0 0.0
        %2480 = vmatpush1.msra.mxu0 %v2372
        %2481 = vmatprep.subr.mxu0 0.0
        %2482 = vmatpush1.msra.mxu0 %v2371
        %2483 = vmatprep.subr.mxu0 0.0
        %2484 = vmatpush2.msra.mxu0 0.0
        %2485 = vmatprep.subr.mxu0 0.0
        %2486 = vmatpush2.msra.mxu0 0.0
        %2487 = vmatprep.subr.mxu0 0.0
        %2488 = vmatpush2.msra.mxu0 0.0
        %2489 = vmatprep.subr.mxu0 0.0
        %2490 = vmatpush2.msra.mxu0 0.0
        %2491 = vmatprep.subr.mxu0 0.0
        %2492 = vmatpush2.msra.mxu0 0.0
        %2493 = vmatprep.subr.mxu0 0.0
        %2494 = vmatpush2.msra.mxu0 0.0
        %2495 = vmatprep.subr.mxu0 0.0
        %2496 = vmatpush2.msra.mxu0 0.0
        %2497 = vmatprep.subr.mxu0 0.0
        %2498 = vmatpush2.msra.mxu0 0.0
        %2499 = vmatprep.subr.mxu0 0.0
        %2500 = vmatpush2.msra.mxu0 0.0
        %2501 = vmatprep.subr.mxu0 0.0
        %2502 = vmatpush2.msra.mxu0 0.0
        %2503 = vmatprep.subr.mxu0 0.0
        %2504 = vmatpush2.msra.mxu0 0.0
        %2505 = vmatprep.subr.mxu0 0.0
        %2506 = vmatpush2.msra.mxu0 0.0
        %2507 = vmatprep.subr.mxu0 0.0
        %2508 = vmatpush2.msra.mxu0 0.0
        %2509 = vmatprep.subr.mxu0 0.0
        %2510 = vmatpush2.msra.mxu0 0.0
        %2511 = vmatprep.subr.mxu0 0.0
        %2512 = vmatpush2.msra.mxu0 0.0
        %2513 = vmatprep.subr.mxu0 0.0
        %2514 = vmatpush2.msra.mxu0 0.0
        %2515 = vmatprep.mubr.f32.mxu0 0.0
        %2516 = vmatmul.mubr.f32.gmra.mxu0 %v2446
        %v2517 = vpop.f32.mrf.mxu0
        %v2518 = vadd.f32 %v2444, %v2517
        %v2519 = vpop.f32.mrf.mxu0
        %2520 = vmatprep.mubr.f32.mxu0 0.0
        %2521 = vmatmul.mubr.f32.gmra.mxu0 %v2449
        %v2522 = vpop.f32.mrf.mxu0
        %v2523 = vadd.f32 %v2444, %v2522
        %v2524 = vpop.f32.mrf.mxu0
        %2525 = vdwg.mxu0
        %v2526 = vmul.f32 %v2518, 0.5
        %v2527 = vmul.f32 %v2523, 0.5
        %v2528 = vlaneseq
        %v2529 = vshrl.u32 %v2528, 7
        %v2530 = vsub.s32 3, %v2529
        %v2531 = vrot.slane %v2397, %v2530
        %v2533 = vsel %vm1330, %v2439, 0
        %v2536 = vsel %vm1330, %v2440, 0
        %2538 = vmatprep.subr.mxu0 0.0
        %2539 = vmatpush1.msra.mxu0 0.0
        %2540 = vmatprep.subr.mxu0 0.0
        %2541 = vmatpush1.msra.mxu0 0.0
        %2542 = vmatprep.subr.mxu0 0.0
        %2543 = vmatpush1.msra.mxu0 0.0
        %2544 = vmatprep.subr.mxu0 0.0
        %2545 = vmatpush1.msra.mxu0 0.0
        %2546 = vmatprep.subr.mxu0 0.0
        %2547 = vmatpush1.msra.mxu0 0.0
        %2548 = vmatprep.subr.mxu0 0.0
        %2549 = vmatpush1.msra.mxu0 0.0
        %2550 = vmatprep.subr.mxu0 0.0
        %2551 = vmatpush1.msra.mxu0 0.0
        %2552 = vmatprep.subr.mxu0 0.0
        %2553 = vmatpush1.msra.mxu0 0.0
        %2554 = vmatprep.subr.mxu0 0.0
        %2555 = vmatpush1.msra.mxu0 0.0
        %2556 = vmatprep.subr.mxu0 0.0
        %2557 = vmatpush1.msra.mxu0 0.0
        %2558 = vmatprep.subr.mxu0 0.0
        %2559 = vmatpush1.msra.mxu0 0.0
        %2560 = vmatprep.subr.mxu0 0.0
        %2561 = vmatpush1.msra.mxu0 0.0
        %2562 = vmatprep.subr.mxu0 0.0
        %2563 = vmatpush1.msra.mxu0 0.0
        %2564 = vmatprep.subr.mxu0 0.0
        %2565 = vmatpush1.msra.mxu0 0.0
        %2566 = vmatprep.subr.mxu0 0.0
        %2567 = vmatpush1.msra.mxu0 %v2375
        %2568 = vmatprep.subr.mxu0 0.0
        %2569 = vmatpush1.msra.mxu0 %v2374
        %2570 = vmatprep.subr.mxu0 0.0
        %2571 = vmatpush2.msra.mxu0 0.0
        %2572 = vmatprep.subr.mxu0 0.0
        %2573 = vmatpush2.msra.mxu0 0.0
        %2574 = vmatprep.subr.mxu0 0.0
        %2575 = vmatpush2.msra.mxu0 0.0
        %2576 = vmatprep.subr.mxu0 0.0
        %2577 = vmatpush2.msra.mxu0 0.0
        %2578 = vmatprep.subr.mxu0 0.0
        %2579 = vmatpush2.msra.mxu0 0.0
        %2580 = vmatprep.subr.mxu0 0.0
        %2581 = vmatpush2.msra.mxu0 0.0
        %2582 = vmatprep.subr.mxu0 0.0
        %2583 = vmatpush2.msra.mxu0 0.0
        %2584 = vmatprep.subr.mxu0 0.0
        %2585 = vmatpush2.msra.mxu0 0.0
        %2586 = vmatprep.subr.mxu0 0.0
        %2587 = vmatpush2.msra.mxu0 0.0
        %2588 = vmatprep.subr.mxu0 0.0
        %2589 = vmatpush2.msra.mxu0 0.0
        %2590 = vmatprep.subr.mxu0 0.0
        %2591 = vmatpush2.msra.mxu0 0.0
        %2592 = vmatprep.subr.mxu0 0.0
        %2593 = vmatpush2.msra.mxu0 0.0
        %2594 = vmatprep.subr.mxu0 0.0
        %2595 = vmatpush2.msra.mxu0 0.0
        %2596 = vmatprep.subr.mxu0 0.0
        %2597 = vmatpush2.msra.mxu0 0.0
        %2598 = vmatprep.subr.mxu0 0.0
        %2599 = vmatpush2.msra.mxu0 0.0
        %2600 = vmatprep.subr.mxu0 0.0
        %2601 = vmatpush2.msra.mxu0 0.0
        %2602 = vmatprep.mubr.f32.mxu0 0.0
        %2603 = vmatmul.mubr.f32.gmra.mxu0 %v2533
        %v2604 = vpop.f32.mrf.mxu0
        %v2605 = vadd.f32 %v2531, %v2604
        %v2606 = vpop.f32.mrf.mxu0
        %2607 = vmatprep.mubr.f32.mxu0 0.0
        %2608 = vmatmul.mubr.f32.gmra.mxu0 %v2536
        %v2609 = vpop.f32.mrf.mxu0
        %v2610 = vadd.f32 %v2531, %v2609
        %v2611 = vpop.f32.mrf.mxu0
        %2612 = vdwg.mxu0
        %v2613 = vlaneseq
        %v2614 = vshrl.u32 %v2613, 7
        %v2615 = vsub.s32 4, %v2614
        %v2616 = vrot.slane %v2397, %v2615
        %2617 = vmatprep.subr.mxu0 0.0
        %2618 = vmatpush1.msra.mxu0 0.0
        %2619 = vmatprep.subr.mxu0 0.0
        %2620 = vmatpush1.msra.mxu0 0.0
        %2621 = vmatprep.subr.mxu0 0.0
        %2622 = vmatpush1.msra.mxu0 0.0
        %2623 = vmatprep.subr.mxu0 0.0
        %2624 = vmatpush1.msra.mxu0 0.0
        %2625 = vmatprep.subr.mxu0 0.0
        %2626 = vmatpush1.msra.mxu0 0.0
        %2627 = vmatprep.subr.mxu0 0.0
        %2628 = vmatpush1.msra.mxu0 0.0
        %2629 = vmatprep.subr.mxu0 0.0
        %2630 = vmatpush1.msra.mxu0 0.0
        %2631 = vmatprep.subr.mxu0 0.0
        %2632 = vmatpush1.msra.mxu0 0.0
        %2633 = vmatprep.subr.mxu0 0.0
        %2634 = vmatpush1.msra.mxu0 0.0
        %2635 = vmatprep.subr.mxu0 0.0
        %2636 = vmatpush1.msra.mxu0 0.0
        %2637 = vmatprep.subr.mxu0 0.0
        %2638 = vmatpush1.msra.mxu0 0.0
        %2639 = vmatprep.subr.mxu0 0.0
        %2640 = vmatpush1.msra.mxu0 0.0
        %2641 = vmatprep.subr.mxu0 0.0
        %2642 = vmatpush1.msra.mxu0 0.0
        %2643 = vmatprep.subr.mxu0 0.0
        %2644 = vmatpush1.msra.mxu0 0.0
        %2645 = vmatprep.subr.mxu0 0.0
        %2646 = vmatpush1.msra.mxu0 %v2378
        %2647 = vmatprep.subr.mxu0 0.0
        %2648 = vmatpush1.msra.mxu0 %v2377
        %2649 = vmatprep.subr.mxu0 0.0
        %2650 = vmatpush2.msra.mxu0 0.0
        %2651 = vmatprep.subr.mxu0 0.0
        %2652 = vmatpush2.msra.mxu0 0.0
        %2653 = vmatprep.subr.mxu0 0.0
        %2654 = vmatpush2.msra.mxu0 0.0
        %2655 = vmatprep.subr.mxu0 0.0
        %2656 = vmatpush2.msra.mxu0 0.0
        %2657 = vmatprep.subr.mxu0 0.0
        %2658 = vmatpush2.msra.mxu0 0.0
        %2659 = vmatprep.subr.mxu0 0.0
        %2660 = vmatpush2.msra.mxu0 0.0
        %2661 = vmatprep.subr.mxu0 0.0
        %2662 = vmatpush2.msra.mxu0 0.0
        %2663 = vmatprep.subr.mxu0 0.0
        %2664 = vmatpush2.msra.mxu0 0.0
        %2665 = vmatprep.subr.mxu0 0.0
        %2666 = vmatpush2.msra.mxu0 0.0
        %2667 = vmatprep.subr.mxu0 0.0
        %2668 = vmatpush2.msra.mxu0 0.0
        %2669 = vmatprep.subr.mxu0 0.0
        %2670 = vmatpush2.msra.mxu0 0.0
        %2671 = vmatprep.subr.mxu0 0.0
        %2672 = vmatpush2.msra.mxu0 0.0
        %2673 = vmatprep.subr.mxu0 0.0
        %2674 = vmatpush2.msra.mxu0 0.0
        %2675 = vmatprep.subr.mxu0 0.0
        %2676 = vmatpush2.msra.mxu0 0.0
        %2677 = vmatprep.subr.mxu0 0.0
        %2678 = vmatpush2.msra.mxu0 0.0
        %2679 = vmatprep.subr.mxu0 0.0
        %2680 = vmatpush2.msra.mxu0 0.0
        %2681 = vmatprep.mubr.f32.mxu0 0.0
        %2682 = vmatmul.mubr.f32.gmra.mxu0 %v2533
        %v2683 = vpop.f32.mrf.mxu0
        %v2684 = vadd.f32 %v2616, %v2683
        %v2685 = vpop.f32.mrf.mxu0
        %2686 = vmatprep.mubr.f32.mxu0 0.0
        %2687 = vmatmul.mubr.f32.gmra.mxu0 %v2536
        %v2688 = vpop.f32.mrf.mxu0
        %v2689 = vadd.f32 %v2616, %v2688
        %v2690 = vpop.f32.mrf.mxu0
        %2691 = vdwg.mxu0
        %v2692 = vmul.f32 %v2526, %v1275
        %v2693 = vmul.f32 %v2527, %v1276
        %v2694 = vmul.f32 %v2526, %v1277
        %v2695 = vmul.f32 %v2527, %v1278
        %v2696 = vmul.f32 %v2526, %v1279
        %v2697 = vmul.f32 %v2527, %v1280
        %v2698 = vmul.f32 %v2526, %v1281
        %v2699 = vmul.f32 %v2527, %v1282
        %v2701 = vsel %vm1330, %v2692, 0
        %v2704 = vsel %vm1330, %v2693, 0
        %v2707 = vsel %vm1330, %v2694, 0
        %v2710 = vsel %vm1330, %v2695, 0
        %v2713 = vsel %vm1330, %v2696, 0
        %v2716 = vsel %vm1330, %v2697, 0
        %v2719 = vsel %vm1330, %v2698, 0
        %v2722 = vsel %vm1330, %v2699, 0
        %v2725 = vsel %vm1330, %v2605, 0
        %v2728 = vsel %vm1330, %v2610, 0
        %2730 = vmatprep.subr.mxu0 0.0
        %2731 = vmatpush1.xpose.msra.mxu0 0.0
        %2732 = vmatprep.subr.mxu0 0.0
        %2733 = vmatpush1.xpose.msra.mxu0 0.0
        %2734 = vmatprep.subr.mxu0 0.0
        %2735 = vmatpush1.xpose.msra.mxu0 0.0
        %2736 = vmatprep.subr.mxu0 0.0
        %2737 = vmatpush1.xpose.msra.mxu0 0.0
        %2738 = vmatprep.subr.mxu0 0.0
        %2739 = vmatpush1.xpose.msra.mxu0 0.0
        %2740 = vmatprep.subr.mxu0 0.0
        %2741 = vmatpush1.xpose.msra.mxu0 0.0
        %2742 = vmatprep.subr.mxu0 0.0
        %2743 = vmatpush1.xpose.msra.mxu0 0.0
        %2744 = vmatprep.subr.mxu0 0.0
        %2745 = vmatpush1.xpose.msra.mxu0 0.0
        %2746 = vmatprep.subr.mxu0 0.0
        %2747 = vmatpush1.xpose.msra.mxu0 0.0
        %2748 = vmatprep.subr.mxu0 0.0
        %2749 = vmatpush1.xpose.msra.mxu0 0.0
        %2750 = vmatprep.subr.mxu0 0.0
        %2751 = vmatpush1.xpose.msra.mxu0 0.0
        %2752 = vmatprep.subr.mxu0 0.0
        %2753 = vmatpush1.xpose.msra.mxu0 0.0
        %2754 = vmatprep.subr.mxu0 0.0
        %2755 = vmatpush1.xpose.msra.mxu0 0.0
        %2756 = vmatprep.subr.mxu0 0.0
        %2757 = vmatpush1.xpose.msra.mxu0 0.0
        %2758 = vmatprep.subr.mxu0 0.0
        %2759 = vmatpush1.xpose.msra.mxu0 %v2728
        %2760 = vmatprep.subr.mxu0 0.0
        %2761 = vmatpush1.xpose.msra.mxu0 %v2725
        %2762 = vmatprep.subr.mxu0 0.0
        %2763 = vmatpush2.xpose.msra.mxu0 0.0
        %2764 = vmatprep.subr.mxu0 0.0
        %2765 = vmatpush2.xpose.msra.mxu0 0.0
        %2766 = vmatprep.subr.mxu0 0.0
        %2767 = vmatpush2.xpose.msra.mxu0 0.0
        %2768 = vmatprep.subr.mxu0 0.0
        %2769 = vmatpush2.xpose.msra.mxu0 0.0
        %2770 = vmatprep.subr.mxu0 0.0
        %2771 = vmatpush2.xpose.msra.mxu0 0.0
        %2772 = vmatprep.subr.mxu0 0.0
        %2773 = vmatpush2.xpose.msra.mxu0 0.0
        %2774 = vmatprep.subr.mxu0 0.0
        %2775 = vmatpush2.xpose.msra.mxu0 0.0
        %2776 = vmatprep.subr.mxu0 0.0
        %2777 = vmatpush2.xpose.msra.mxu0 0.0
        %2778 = vmatprep.subr.mxu0 0.0
        %2779 = vmatpush2.xpose.msra.mxu0 0.0
        %2780 = vmatprep.subr.mxu0 0.0
        %2781 = vmatpush2.xpose.msra.mxu0 0.0
        %2782 = vmatprep.subr.mxu0 0.0
        %2783 = vmatpush2.xpose.msra.mxu0 0.0
        %2784 = vmatprep.subr.mxu0 0.0
        %2785 = vmatpush2.xpose.msra.mxu0 0.0
        %2786 = vmatprep.subr.mxu0 0.0
        %2787 = vmatpush2.xpose.msra.mxu0 0.0
        %2788 = vmatprep.subr.mxu0 0.0
        %2789 = vmatpush2.xpose.msra.mxu0 0.0
        %2790 = vmatprep.subr.mxu0 0.0
        %2791 = vmatpush2.xpose.msra.mxu0 0.0
        %2792 = vmatprep.subr.mxu0 0.0
        %2793 = vmatpush2.xpose.msra.mxu0 0.0
        %2794 = vmatprep.mubr.f32.mxu0 0.0
        %2795 = vmatmul.mubr.f32.gmra.mxu0 %v2701
        %v2796 = vpop.f32.mrf.mxu0
        %v2797 = vadd.f32 %v1267, %v2796
        %v2798 = vpop.f32.mrf.mxu0
        %2799 = vmatprep.mubr.f32.mxu0 0.0
        %2800 = vmatmul.mubr.f32.gmra.mxu0 %v2704
        %v2801 = vpop.f32.mrf.mxu0
        %v2802 = vadd.f32 %v1268, %v2801
        %v2803 = vpop.f32.mrf.mxu0
        %2804 = vmatprep.mubr.f32.mxu0 0.0
        %2805 = vmatmul.mubr.f32.gmra.mxu0 %v2707
        %v2806 = vpop.f32.mrf.mxu0
        %v2807 = vadd.f32 %v1269, %v2806
        %v2808 = vpop.f32.mrf.mxu0
        %2809 = vmatprep.mubr.f32.mxu0 0.0
        %2810 = vmatmul.mubr.f32.gmra.mxu0 %v2710
        %v2811 = vpop.f32.mrf.mxu0
        %v2812 = vadd.f32 %v1270, %v2811
        %v2813 = vpop.f32.mrf.mxu0
        %2814 = vmatprep.mubr.f32.mxu0 0.0
        %2815 = vmatmul.mubr.f32.gmra.mxu0 %v2713
        %v2816 = vpop.f32.mrf.mxu0
        %v2817 = vadd.f32 %v1271, %v2816
        %v2818 = vpop.f32.mrf.mxu0
        %2819 = vmatprep.mubr.f32.mxu0 0.0
        %2820 = vmatmul.mubr.f32.gmra.mxu0 %v2716
        %v2821 = vpop.f32.mrf.mxu0
        %v2822 = vadd.f32 %v1272, %v2821
        %v2823 = vpop.f32.mrf.mxu0
        %2824 = vmatprep.mubr.f32.mxu0 0.0
        %2825 = vmatmul.mubr.f32.gmra.mxu0 %v2719
        %v2826 = vpop.f32.mrf.mxu0
        %v2827 = vadd.f32 %v1273, %v2826
        %v2828 = vpop.f32.mrf.mxu0
        %2829 = vmatprep.mubr.f32.mxu0 0.0
        %2830 = vmatmul.mubr.f32.gmra.mxu0 %v2722
        %v2831 = vpop.f32.mrf.mxu0
        %v2832 = vadd.f32 %v1274, %v2831
        %v2833 = vpop.f32.mrf.mxu0
        %2834 = vdwg.mxu0
        %v2835 = vsel %vm1330, %v2797, -inf
        %2836 = vmax.xlane.f32.xlu0 %v2835
        %v2837 = vpop.xlane.xlu0 %2836
        %v2838 = vsel %vm1330, %v2802, -inf
        %2839 = vmax.xlane.f32.xlu0 %v2838
        %v2840 = vpop.xlane.xlu0 %2839
        %v2841 = vsel %vm1330, %v2807, -inf
        %2842 = vmax.xlane.f32.xlu0 %v2841
        %v2843 = vpop.xlane.xlu0 %2842
        %v2844 = vsel %vm1330, %v2812, -inf
        %2845 = vmax.xlane.f32.xlu0 %v2844
        %v2846 = vpop.xlane.xlu0 %2845
        %v2847 = vsel %vm1330, %v2817, -inf
        %2848 = vmax.xlane.f32.xlu0 %v2847
        %v2849 = vpop.xlane.xlu0 %2848
        %v2850 = vsel %vm1330, %v2822, -inf
        %2851 = vmax.xlane.f32.xlu0 %v2850
        %v2852 = vpop.xlane.xlu0 %2851
        %v2853 = vsel %vm1330, %v2827, -inf
        %2854 = vmax.xlane.f32.xlu0 %v2853
        %v2855 = vpop.xlane.xlu0 %2854
        %v2856 = vsel %vm1330, %v2832, -inf
        %2857 = vmax.xlane.f32.xlu0 %v2856
        %v2858 = vpop.xlane.xlu0 %2857
        %v2859 = vsub.f32 %v2797, %v2837
        %v2860 = vsub.f32 %v2802, %v2840
        %v2861 = vsub.f32 %v2807, %v2843
        %v2862 = vsub.f32 %v2812, %v2846
        %v2863 = vsub.f32 %v2817, %v2849
        %v2864 = vsub.f32 %v2822, %v2852
        %v2865 = vsub.f32 %v2827, %v2855
        %v2866 = vsub.f32 %v2832, %v2858
        %v2867 = vmul.f32 %v2859, 1.442695
        %v2868 = vpow.pop %v2867
        %v2869 = vmul.f32 %v2860, 1.442695
        %v2870 = vpow.pop %v2869
        %v2871 = vmul.f32 %v2861, 1.442695
        %v2872 = vpow.pop %v2871
        %v2873 = vmul.f32 %v2862, 1.442695
        %v2874 = vpow.pop %v2873
        %v2875 = vmul.f32 %v2863, 1.442695
        %v2876 = vpow.pop %v2875
        %v2877 = vmul.f32 %v2864, 1.442695
        %v2878 = vpow.pop %v2877
        %v2879 = vmul.f32 %v2865, 1.442695
        %v2880 = vpow.pop %v2879
        %v2881 = vmul.f32 %v2866, 1.442695
        %v2882 = vpow.pop %v2881
        %v2883 = vsel %vm1330, %v2868, 0.0
        %2884 = vadd.xlane.f32.xlu0 %v2883
        %v2885 = vpop.xlane.xlu0 %2884
        %v2886 = vsel %vm1330, %v2870, 0.0
        %2887 = vadd.xlane.f32.xlu0 %v2886
        %v2888 = vpop.xlane.xlu0 %2887
        %v2889 = vsel %vm1330, %v2872, 0.0
        %2890 = vadd.xlane.f32.xlu0 %v2889
        %v2891 = vpop.xlane.xlu0 %2890
        %v2892 = vsel %vm1330, %v2874, 0.0
        %2893 = vadd.xlane.f32.xlu0 %v2892
        %v2894 = vpop.xlane.xlu0 %2893
        %v2895 = vsel %vm1330, %v2876, 0.0
        %2896 = vadd.xlane.f32.xlu0 %v2895
        %v2897 = vpop.xlane.xlu0 %2896
        %v2898 = vsel %vm1330, %v2878, 0.0
        %2899 = vadd.xlane.f32.xlu0 %v2898
        %v2900 = vpop.xlane.xlu0 %2899
        %v2901 = vsel %vm1330, %v2880, 0.0
        %2902 = vadd.xlane.f32.xlu0 %v2901
        %v2903 = vpop.xlane.xlu0 %2902
        %v2904 = vsel %vm1330, %v2882, 0.0
        %2905 = vadd.xlane.f32.xlu0 %v2904
        %v2906 = vpop.xlane.xlu0 %2905
        %v2907 = vrcp.pop %v2885
        %v2908 = vrcp.pop %v2888
        %v2909 = vrcp.pop %v2891
        %v2910 = vrcp.pop %v2894
        %v2911 = vrcp.pop %v2897
        %v2912 = vrcp.pop %v2900
        %v2913 = vrcp.pop %v2903
        %v2914 = vrcp.pop %v2906
        %v2915 = vmul.f32 %v2868, %v2907
        %v2916 = vmul.f32 %v2870, %v2908
        %v2917 = vmul.f32 %v2872, %v2909
        %v2918 = vmul.f32 %v2874, %v2910
        %v2919 = vmul.f32 %v2876, %v2911
        %v2920 = vmul.f32 %v2878, %v2912
        %v2921 = vmul.f32 %v2880, %v2913
        %v2922 = vmul.f32 %v2882, %v2914
        %v2924 = vsel %vm1330, %v2915, 0
        %v2927 = vsel %vm1330, %v2916, 0
        %v2930 = vsel %vm1330, %v2917, 0
        %v2933 = vsel %vm1330, %v2918, 0
        %v2936 = vsel %vm1330, %v2919, 0
        %v2939 = vsel %vm1330, %v2920, 0
        %v2942 = vsel %vm1330, %v2921, 0
        %v2945 = vsel %vm1330, %v2922, 0
        %2947 = vmatprep.subr.mxu0 0.0
        %2948 = vmatpush1.msra.mxu0 0.0
        %2949 = vmatprep.subr.mxu0 0.0
        %2950 = vmatpush1.msra.mxu0 0.0
        %2951 = vmatprep.subr.mxu0 0.0
        %2952 = vmatpush1.msra.mxu0 0.0
        %2953 = vmatprep.subr.mxu0 0.0
        %2954 = vmatpush1.msra.mxu0 0.0
        %2955 = vmatprep.subr.mxu0 0.0
        %2956 = vmatpush1.msra.mxu0 0.0
        %2957 = vmatprep.subr.mxu0 0.0
        %2958 = vmatpush1.msra.mxu0 0.0
        %2959 = vmatprep.subr.mxu0 0.0
        %2960 = vmatpush1.msra.mxu0 0.0
        %2961 = vmatprep.subr.mxu0 0.0
        %2962 = vmatpush1.msra.mxu0 0.0
        %2963 = vmatprep.subr.mxu0 0.0
        %2964 = vmatpush1.msra.mxu0 0.0
        %2965 = vmatprep.subr.mxu0 0.0
        %2966 = vmatpush1.msra.mxu0 0.0
        %2967 = vmatprep.subr.mxu0 0.0
        %2968 = vmatpush1.msra.mxu0 0.0
        %2969 = vmatprep.subr.mxu0 0.0
        %2970 = vmatpush1.msra.mxu0 0.0
        %2971 = vmatprep.subr.mxu0 0.0
        %2972 = vmatpush1.msra.mxu0 0.0
        %2973 = vmatprep.subr.mxu0 0.0
        %2974 = vmatpush1.msra.mxu0 0.0
        %2975 = vmatprep.subr.mxu0 0.0
        %2976 = vmatpush1.msra.mxu0 %v2689
        %2977 = vmatprep.subr.mxu0 0.0
        %2978 = vmatpush1.msra.mxu0 %v2684
        %2979 = vmatprep.subr.mxu0 0.0
        %2980 = vmatpush2.msra.mxu0 0.0
        %2981 = vmatprep.subr.mxu0 0.0
        %2982 = vmatpush2.msra.mxu0 0.0
        %2983 = vmatprep.subr.mxu0 0.0
        %2984 = vmatpush2.msra.mxu0 0.0
        %2985 = vmatprep.subr.mxu0 0.0
        %2986 = vmatpush2.msra.mxu0 0.0
        %2987 = vmatprep.subr.mxu0 0.0
        %2988 = vmatpush2.msra.mxu0 0.0
        %2989 = vmatprep.subr.mxu0 0.0
        %2990 = vmatpush2.msra.mxu0 0.0
        %2991 = vmatprep.subr.mxu0 0.0
        %2992 = vmatpush2.msra.mxu0 0.0
        %2993 = vmatprep.subr.mxu0 0.0
        %2994 = vmatpush2.msra.mxu0 0.0
        %2995 = vmatprep.subr.mxu0 0.0
        %2996 = vmatpush2.msra.mxu0 0.0
        %2997 = vmatprep.subr.mxu0 0.0
        %2998 = vmatpush2.msra.mxu0 0.0
        %2999 = vmatprep.subr.mxu0 0.0
        %3000 = vmatpush2.msra.mxu0 0.0
        %3001 = vmatprep.subr.mxu0 0.0
        %3002 = vmatpush2.msra.mxu0 0.0
        %3003 = vmatprep.subr.mxu0 0.0
        %3004 = vmatpush2.msra.mxu0 0.0
        %3005 = vmatprep.subr.mxu0 0.0
        %3006 = vmatpush2.msra.mxu0 0.0
        %3007 = vmatprep.subr.mxu0 0.0
        %3008 = vmatpush2.msra.mxu0 0.0
        %3009 = vmatprep.subr.mxu0 0.0
        %3010 = vmatpush2.msra.mxu0 0.0
        %3011 = vmatprep.mubr.f32.mxu0 0.0
        %3012 = vmatmul.mubr.f32.gmra.mxu0 %v2924
        %v3013 = vpop.f32.mrf.mxu0
        %v3014 = vadd.f32 0.0, %v3013
        %v3015 = vpop.f32.mrf.mxu0
        %3016 = vmatprep.mubr.f32.mxu0 0.0
        %3017 = vmatmul.mubr.f32.gmra.mxu0 %v2927
        %v3018 = vpop.f32.mrf.mxu0
        %v3019 = vadd.f32 0.0, %v3018
        %v3020 = vpop.f32.mrf.mxu0
        %3021 = vmatprep.mubr.f32.mxu0 0.0
        %3022 = vmatmul.mubr.f32.gmra.mxu0 %v2930
        %v3023 = vpop.f32.mrf.mxu0
        %v3024 = vadd.f32 0.0, %v3023
        %v3025 = vpop.f32.mrf.mxu0
        %3026 = vmatprep.mubr.f32.mxu0 0.0
        %3027 = vmatmul.mubr.f32.gmra.mxu0 %v2933
        %v3028 = vpop.f32.mrf.mxu0
        %v3029 = vadd.f32 0.0, %v3028
        %v3030 = vpop.f32.mrf.mxu0
        %3031 = vmatprep.mubr.f32.mxu0 0.0
        %3032 = vmatmul.mubr.f32.gmra.mxu0 %v2936
        %v3033 = vpop.f32.mrf.mxu0
        %v3034 = vadd.f32 0.0, %v3033
        %v3035 = vpop.f32.mrf.mxu0
        %3036 = vmatprep.mubr.f32.mxu0 0.0
        %3037 = vmatmul.mubr.f32.gmra.mxu0 %v2939
        %v3038 = vpop.f32.mrf.mxu0
        %v3039 = vadd.f32 0.0, %v3038
        %v3040 = vpop.f32.mrf.mxu0
        %3041 = vmatprep.mubr.f32.mxu0 0.0
        %3042 = vmatmul.mubr.f32.gmra.mxu0 %v2942
        %v3043 = vpop.f32.mrf.mxu0
        %v3044 = vadd.f32 0.0, %v3043
        %v3045 = vpop.f32.mrf.mxu0
        %3046 = vmatprep.mubr.f32.mxu0 0.0
        %3047 = vmatmul.mubr.f32.gmra.mxu0 %v2945
        %v3048 = vpop.f32.mrf.mxu0
        %v3049 = vadd.f32 0.0, %v3048
        %v3050 = vpop.f32.mrf.mxu0
        %3051 = vdwg.mxu0
        %v3052 = vmul.f32 %v3014, %v1275
        %v3053 = vmul.f32 %v3019, %v1276
        %v3054 = vmul.f32 %v3024, %v1277
        %v3055 = vmul.f32 %v3029, %v1278
        %v3056 = vmul.f32 %v3034, %v1279
        %v3057 = vmul.f32 %v3039, %v1280
        %v3058 = vmul.f32 %v3044, %v1281
        %v3059 = vmul.f32 %v3049, %v1282
        %v3060 = vadd.f32 %v3052, %v3054
        %v3061 = vadd.f32 %v3053, %v3055
        %v3062 = vadd.f32 %v3060, %v3056
        %v3063 = vadd.f32 %v3061, %v3057
        %v3064 = vadd.f32 %v3062, %v3058
        %v3065 = vadd.f32 %v3063, %v3059
        %v3067 = vsel %vm1330, %v3064, 0
        %v3070 = vsel %vm1330, %v3065, 0
        %3072 = vmatprep.subr.mxu0 0.0
        %3073 = vmatpush1.msra.mxu0 0.0
        %3074 = vmatprep.subr.mxu0 0.0
        %3075 = vmatpush1.msra.mxu0 0.0
        %3076 = vmatprep.subr.mxu0 0.0
        %3077 = vmatpush1.msra.mxu0 0.0
        %3078 = vmatprep.subr.mxu0 0.0
        %3079 = vmatpush1.msra.mxu0 0.0
        %3080 = vmatprep.subr.mxu0 0.0
        %3081 = vmatpush1.msra.mxu0 0.0
        %3082 = vmatprep.subr.mxu0 0.0
        %3083 = vmatpush1.msra.mxu0 0.0
        %3084 = vmatprep.subr.mxu0 0.0
        %3085 = vmatpush1.msra.mxu0 0.0
        %3086 = vmatprep.subr.mxu0 0.0
        %3087 = vmatpush1.msra.mxu0 0.0
        %3088 = vmatprep.subr.mxu0 0.0
        %3089 = vmatpush1.msra.mxu0 0.0
        %3090 = vmatprep.subr.mxu0 0.0
        %3091 = vmatpush1.msra.mxu0 0.0
        %3092 = vmatprep.subr.mxu0 0.0
        %3093 = vmatpush1.msra.mxu0 0.0
        %3094 = vmatprep.subr.mxu0 0.0
        %3095 = vmatpush1.msra.mxu0 0.0
        %3096 = vmatprep.subr.mxu0 0.0
        %3097 = vmatpush1.msra.mxu0 0.0
        %3098 = vmatprep.subr.mxu0 0.0
        %3099 = vmatpush1.msra.mxu0 0.0
        %3100 = vmatprep.subr.mxu0 0.0
        %3101 = vmatpush1.msra.mxu0 %v2381
        %3102 = vmatprep.subr.mxu0 0.0
        %3103 = vmatpush1.msra.mxu0 %v2380
        %3104 = vmatprep.subr.mxu0 0.0
        %3105 = vmatpush2.msra.mxu0 0.0
        %3106 = vmatprep.subr.mxu0 0.0
        %3107 = vmatpush2.msra.mxu0 0.0
        %3108 = vmatprep.subr.mxu0 0.0
        %3109 = vmatpush2.msra.mxu0 0.0
        %3110 = vmatprep.subr.mxu0 0.0
        %3111 = vmatpush2.msra.mxu0 0.0
        %3112 = vmatprep.subr.mxu0 0.0
        %3113 = vmatpush2.msra.mxu0 0.0
        %3114 = vmatprep.subr.mxu0 0.0
        %3115 = vmatpush2.msra.mxu0 0.0
        %3116 = vmatprep.subr.mxu0 0.0
        %3117 = vmatpush2.msra.mxu0 0.0
        %3118 = vmatprep.subr.mxu0 0.0
        %3119 = vmatpush2.msra.mxu0 0.0
        %3120 = vmatprep.subr.mxu0 0.0
        %3121 = vmatpush2.msra.mxu0 0.0
        %3122 = vmatprep.subr.mxu0 0.0
        %3123 = vmatpush2.msra.mxu0 0.0
        %3124 = vmatprep.subr.mxu0 0.0
        %3125 = vmatpush2.msra.mxu0 0.0
        %3126 = vmatprep.subr.mxu0 0.0
        %3127 = vmatpush2.msra.mxu0 0.0
        %3128 = vmatprep.subr.mxu0 0.0
        %3129 = vmatpush2.msra.mxu0 0.0
        %3130 = vmatprep.subr.mxu0 0.0
        %3131 = vmatpush2.msra.mxu0 0.0
        %3132 = vmatprep.subr.mxu0 0.0
        %3133 = vmatpush2.msra.mxu0 0.0
        %3134 = vmatprep.subr.mxu0 0.0
        %3135 = vmatpush2.msra.mxu0 0.0
        %3136 = vmatprep.mubr.f32.mxu0 0.0
        %3137 = vmatmul.mubr.f32.gmra.mxu0 %v3067
        %v3138 = vpop.f32.mrf.mxu0
        %v3139 = vadd.f32 0.0, %v3138
        %v3140 = vpop.f32.mrf.mxu0
        %3141 = vmatprep.mubr.f32.mxu0 0.0
        %3142 = vmatmul.mubr.f32.gmra.mxu0 %v3070
        %v3143 = vpop.f32.mrf.mxu0
        %v3144 = vadd.f32 0.0, %v3143
        %v3145 = vpop.f32.mrf.mxu0
        %3146 = vdwg.mxu0
        %v3147 = vadd.f32 %v1295, %v3139
        %v3148 = vadd.f32 %v1296, %v3144
        %v3149 = vlaneseq
        %v3150 = vshrl.u32 %v3149, 7
        %v3151 = vsub.s32 5, %v3150
        %v3152 = vrot.slane %v2397, %v3151
        %v3153 = vadd.f32 %v3147, %v3152
        %v3154 = vadd.f32 %v3148, %v3152
        %v3155 = vsel %vm1330, %v3153, 0.0
        %3156 = vadd.xlane.f32.xlu0 %v3155
        %v3157 = vpop.xlane.xlu0 %3156
        %v3158 = vsel %vm1330, %v3154, 0.0
        %3159 = vadd.xlane.f32.xlu0 %v3158
        %v3160 = vpop.xlane.xlu0 %3159
        %v3161 = vmul.f32 %v3157, %v1337
        %v3162 = vmul.f32 %v3160, %v1337
        %v3163 = vsub.f32 %v3153, %v3161
        %v3164 = vsub.f32 %v3154, %v3162
        %v3165 = vmul.f32 %v3163, %v3163
        %v3166 = vmul.f32 %v3164, %v3164
        %v3167 = vsel %vm1330, %v3165, 0.0
        %3168 = vadd.xlane.f32.xlu0 %v3167
        %v3169 = vpop.xlane.xlu0 %3168
        %v3170 = vsel %vm1330, %v3166, 0.0
        %3171 = vadd.xlane.f32.xlu0 %v3170
        %v3172 = vpop.xlane.xlu0 %3171
        %v3173 = vmul.f32 %v3169, %v1337
        %v3174 = vmul.f32 %v3172, %v1337
        %v3175 = vadd.f32 %v3173, 1e-05
        %v3176 = vadd.f32 %v3174, 1e-05
        %v3177 = vrsqrt.pop %v3175
        %v3178 = vrsqrt.pop %v3176
        %v3179 = vmul.f32 %v3163, %v3177
        %v3180 = vmul.f32 %v3164, %v3178
        %v3181 = vlaneseq
        %v3182 = vshrl.u32 %v3181, 7
        %v3183 = vsub.s32 6, %v3182
        %v3184 = vrot.slane %v2397, %v3183
        %v3185 = vmul.f32 %v3179, %v3184
        %v3186 = vmul.f32 %v3180, %v3184
        %v3187 = vlaneseq
        %v3188 = vshrl.u32 %v3187, 7
        %v3189 = vsub.s32 7, %v3188
        %v3190 = vrot.slane %v2397, %v3189
        %v3191 = vadd.f32 %v3185, %v3190
        %v3192 = vadd.f32 %v3186, %v3190
        %v3194 = vlaneseq
        %v3195 = vshrl.u32 %v3194, 7
        %v3196 = vsub.s32 0, %v3195
        %v3197 = vrot.slane %v2395, %v3196
        %v3200 = vsel %vm1330, %v3191, 0
        %v3203 = vsel %vm1330, %v3192, 0
        %3205 = vmatprep.subr.mxu0 0.0
        %3206 = vmatpush1.msra.mxu0 0.0
        %3207 = vmatprep.subr.mxu0 0.0
        %3208 = vmatpush1.msra.mxu0 0.0
        %3209 = vmatprep.subr.mxu0 0.0
        %3210 = vmatpush1.msra.mxu0 0.0
        %3211 = vmatprep.subr.mxu0 0.0
        %3212 = vmatpush1.msra.mxu0 0.0
        %3213 = vmatprep.subr.mxu0 0.0
        %3214 = vmatpush1.msra.mxu0 0.0
        %3215 = vmatprep.subr.mxu0 0.0
        %3216 = vmatpush1.msra.mxu0 0.0
        %3217 = vmatprep.subr.mxu0 0.0
        %3218 = vmatpush1.msra.mxu0 0.0
        %3219 = vmatprep.subr.mxu0 0.0
        %3220 = vmatpush1.msra.mxu0 0.0
        %3221 = vmatprep.subr.mxu0 0.0
        %3222 = vmatpush1.msra.mxu0 0.0
        %3223 = vmatprep.subr.mxu0 0.0
        %3224 = vmatpush1.msra.mxu0 0.0
        %3225 = vmatprep.subr.mxu0 0.0
        %3226 = vmatpush1.msra.mxu0 0.0
        %3227 = vmatprep.subr.mxu0 0.0
        %3228 = vmatpush1.msra.mxu0 0.0
        %3229 = vmatprep.subr.mxu0 0.0
        %3230 = vmatpush1.msra.mxu0 0.0
        %3231 = vmatprep.subr.mxu0 0.0
        %3232 = vmatpush1.msra.mxu0 0.0
        %3233 = vmatprep.subr.mxu0 0.0
        %3234 = vmatpush1.msra.mxu0 %v2384
        %3235 = vmatprep.subr.mxu0 0.0
        %3236 = vmatpush1.msra.mxu0 %v2383
        %3237 = vmatprep.subr.mxu0 0.0
        %3238 = vmatpush2.msra.mxu0 0.0
        %3239 = vmatprep.subr.mxu0 0.0
        %3240 = vmatpush2.msra.mxu0 0.0
        %3241 = vmatprep.subr.mxu0 0.0
        %3242 = vmatpush2.msra.mxu0 0.0
        %3243 = vmatprep.subr.mxu0 0.0
        %3244 = vmatpush2.msra.mxu0 0.0
        %3245 = vmatprep.subr.mxu0 0.0
        %3246 = vmatpush2.msra.mxu0 0.0
        %3247 = vmatprep.subr.mxu0 0.0
        %3248 = vmatpush2.msra.mxu0 0.0
        %3249 = vmatprep.subr.mxu0 0.0
        %3250 = vmatpush2.msra.mxu0 0.0
        %3251 = vmatprep.subr.mxu0 0.0
        %3252 = vmatpush2.msra.mxu0 0.0
        %3253 = vmatprep.subr.mxu0 0.0
        %3254 = vmatpush2.msra.mxu0 0.0
        %3255 = vmatprep.subr.mxu0 0.0
        %3256 = vmatpush2.msra.mxu0 0.0
        %3257 = vmatprep.subr.mxu0 0.0
        %3258 = vmatpush2.msra.mxu0 0.0
        %3259 = vmatprep.subr.mxu0 0.0
        %3260 = vmatpush2.msra.mxu0 0.0
        %3261 = vmatprep.subr.mxu0 0.0
        %3262 = vmatpush2.msra.mxu0 0.0
        %3263 = vmatprep.subr.mxu0 0.0
        %3264 = vmatpush2.msra.mxu0 0.0
        %3265 = vmatprep.subr.mxu0 0.0
        %3266 = vmatpush2.msra.mxu0 0.0
        %3267 = vmatprep.subr.mxu0 0.0
        %3268 = vmatpush2.msra.mxu0 0.0
        %3269 = vmatprep.mubr.f32.mxu0 0.0
        %3270 = vmatmul.mubr.f32.gmra.mxu0 %v3200
        %v3271 = vpop.f32.mrf.mxu0
        %v3272 = vadd.f32 %v3197, %v3271
        %v3273 = vpop.f32.mrf.mxu0
        %3274 = vmatprep.mubr.f32.mxu0 0.0
        %3275 = vmatmul.mubr.f32.gmra.mxu0 %v3203
        %v3276 = vpop.f32.mrf.mxu0
        %v3277 = vadd.f32 %v3197, %v3276
        %v3278 = vpop.f32.mrf.mxu0
        %3279 = vdwg.mxu0
        %v3280 = vmax.f32 %v3272, 0.0
        %v3281 = vmax.f32 %v3277, 0.0
        %v3283 = vsel %vm2241, %v3280, 0
        %v3286 = vsel %vm2241, %v3281, 0
        %3288 = vmatprep.subr.mxu0 0.0
        %3289 = vmatpush1.msra.mxu0 0.0
        %3290 = vmatprep.subr.mxu0 0.0
        %3291 = vmatpush1.msra.mxu0 0.0
        %3292 = vmatprep.subr.mxu0 0.0
        %3293 = vmatpush1.msra.mxu0 0.0
        %3294 = vmatprep.subr.mxu0 0.0
        %3295 = vmatpush1.msra.mxu0 0.0
        %3296 = vmatprep.subr.mxu0 0.0
        %3297 = vmatpush1.msra.mxu0 0.0
        %3298 = vmatprep.subr.mxu0 0.0
        %3299 = vmatpush1.msra.mxu0 0.0
        %3300 = vmatprep.subr.mxu0 0.0
        %3301 = vmatpush1.msra.mxu0 0.0
        %3302 = vmatprep.subr.mxu0 0.0
        %3303 = vmatpush1.msra.mxu0 0.0
        %3304 = vmatprep.subr.mxu0 0.0
        %3305 = vmatpush1.msra.mxu0 %v2393
        %3306 = vmatprep.subr.mxu0 0.0
        %3307 = vmatpush1.msra.mxu0 %v2392
        %3308 = vmatprep.subr.mxu0 0.0
        %3309 = vmatpush1.msra.mxu0 %v2391
        %3310 = vmatprep.subr.mxu0 0.0
        %3311 = vmatpush1.msra.mxu0 %v2390
        %3312 = vmatprep.subr.mxu0 0.0
        %3313 = vmatpush1.msra.mxu0 %v2389
        %3314 = vmatprep.subr.mxu0 0.0
        %3315 = vmatpush1.msra.mxu0 %v2388
        %3316 = vmatprep.subr.mxu0 0.0
        %3317 = vmatpush1.msra.mxu0 %v2387
        %3318 = vmatprep.subr.mxu0 0.0
        %3319 = vmatpush1.msra.mxu0 %v2386
        %3320 = vmatprep.subr.mxu0 0.0
        %3321 = vmatpush2.msra.mxu0 0.0
        %3322 = vmatprep.subr.mxu0 0.0
        %3323 = vmatpush2.msra.mxu0 0.0
        %3324 = vmatprep.subr.mxu0 0.0
        %3325 = vmatpush2.msra.mxu0 0.0
        %3326 = vmatprep.subr.mxu0 0.0
        %3327 = vmatpush2.msra.mxu0 0.0
        %3328 = vmatprep.subr.mxu0 0.0
        %3329 = vmatpush2.msra.mxu0 0.0
        %3330 = vmatprep.subr.mxu0 0.0
        %3331 = vmatpush2.msra.mxu0 0.0
        %3332 = vmatprep.subr.mxu0 0.0
        %3333 = vmatpush2.msra.mxu0 0.0
        %3334 = vmatprep.subr.mxu0 0.0
        %3335 = vmatpush2.msra.mxu0 0.0
        %3336 = vmatprep.subr.mxu0 0.0
        %3337 = vmatpush2.msra.mxu0 0.0
        %3338 = vmatprep.subr.mxu0 0.0
        %3339 = vmatpush2.msra.mxu0 0.0
        %3340 = vmatprep.subr.mxu0 0.0
        %3341 = vmatpush2.msra.mxu0 0.0
        %3342 = vmatprep.subr.mxu0 0.0
        %3343 = vmatpush2.msra.mxu0 0.0
        %3344 = vmatprep.subr.mxu0 0.0
        %3345 = vmatpush2.msra.mxu0 0.0
        %3346 = vmatprep.subr.mxu0 0.0
        %3347 = vmatpush2.msra.mxu0 0.0
        %3348 = vmatprep.subr.mxu0 0.0
        %3349 = vmatpush2.msra.mxu0 0.0
        %3350 = vmatprep.subr.mxu0 0.0
        %3351 = vmatpush2.msra.mxu0 0.0
        %3352 = vmatprep.mubr.f32.mxu0 0.0
        %3353 = vmatmul.mubr.f32.gmra.mxu0 %v3283
        %v3354 = vpop.f32.mrf.mxu0
        %v3355 = vadd.f32 0.0, %v3354
        %v3356 = vpop.f32.mrf.mxu0
        %3357 = vmatprep.mubr.f32.mxu0 0.0
        %3358 = vmatmul.mubr.f32.gmra.mxu0 %v3286
        %v3359 = vpop.f32.mrf.mxu0
        %v3360 = vadd.f32 0.0, %v3359
        %v3361 = vpop.f32.mrf.mxu0
        %3362 = vdwg.mxu0
        %v3363 = vadd.f32 %v3153, %v3355
        %v3364 = vadd.f32 %v3154, %v3360
        %v3365 = vlaneseq
        %v3366 = vshrl.u32 %v3365, 7
        %v3367 = vsub.s32 0, %v3366
        %v3368 = vrot.slane %v2398, %v3367
        %v3369 = vadd.f32 %v3363, %v3368
        %v3370 = vadd.f32 %v3364, %v3368
        %v3371 = vld [vmem:[%s2396 + $0x8] sm:$0xff]
        %v3372 = vsel %vm1330, %v3369, 0.0
        %3373 = vadd.xlane.f32.xlu0 %v3372
        %v3374 = vpop.xlane.xlu0 %3373
        %v3375 = vsel %vm1330, %v3370, 0.0
        %3376 = vadd.xlane.f32.xlu0 %v3375
        %v3377 = vpop.xlane.xlu0 %3376
        %v3378 = vmul.f32 %v3374, %v1337
        %v3379 = vmul.f32 %v3377, %v1337
        %v3380 = vsub.f32 %v3369, %v3378
        %v3381 = vsub.f32 %v3370, %v3379
        %v3382 = vmul.f32 %v3380, %v3380
        %v3383 = vmul.f32 %v3381, %v3381
        %v3384 = vsel %vm1330, %v3382, 0.0
        %3385 = vadd.xlane.f32.xlu0 %v3384
        %v3386 = vpop.xlane.xlu0 %3385
        %v3387 = vsel %vm1330, %v3383, 0.0
        %3388 = vadd.xlane.f32.xlu0 %v3387
        %v3389 = vpop.xlane.xlu0 %3388
        %v3390 = vmul.f32 %v3386, %v1337
        %v3391 = vmul.f32 %v3389, %v1337
        %v3392 = vadd.f32 %v3390, 1e-05
        %v3393 = vadd.f32 %v3391, 1e-05
        %v3394 = vrsqrt.pop %v3392
        %v3395 = vrsqrt.pop %v3393
        %v3396 = vmul.f32 %v3380, %v3394
        %v3397 = vmul.f32 %v3381, %v3395
        %v3398 = vlaneseq
        %v3399 = vshrl.u32 %v3398, 7
        %v3400 = vsub.s32 1, %v3399
        %v3401 = vrot.slane %v3371, %v3400
        %v3402 = vmul.f32 %v3396, %v3401
        %v3403 = vmul.f32 %v3397, %v3401
        %v3404 = vlaneseq
        %v3405 = vshrl.u32 %v3404, 7
        %v3406 = vsub.s32 2, %v3405
        %v3407 = vrot.slane %v3371, %v3406
        %v3408 = vadd.f32 %v3402, %v3407
        %v3409 = vadd.f32 %v3403, %v3407
        %3412 = vrot.lane.b32.xlu0 %v3408, 16
        %v3413 = vpop.permute.xlu0 %3412
        %3414 = vrot.lane.b32.xlu0 %v3409, 16
        %v3415 = vpop.permute.xlu0 %3414
        %v3418 = vsel %vm1330, %v2368, %v3413
        %v3419 = vsel %vm1330, %v2369, %v3415
        %v3420 = vmul.f32 %v3418, 5.656854
        %v3421 = vmul.f32 %v3419, 5.656854
        %v3422 = vld [vmem:[#allocation6] sm:$0xff]
        %v3423 = vld [vmem:[#allocation6 + $0x8] sm:$0xff]
        %v3424 = vadd.f32 %v3420, %v3422
        %v3425 = vadd.f32 %v3421, %v3423
        %v3426 = vld [vmem:[%s1230] sm:$0xff]
        %v3427 = vld [vmem:[%s1230 + $0x8] sm:$0xff]
        %v3428 = vld [vmem:[%s1230 + $0x10] sm:$0xff]
        %v3429 = vld [vmem:[%s1230 + $0x18] sm:$0xff]
        %v3430 = vld [vmem:[%s1235] sm:$0xff]
        %v3431 = vld [vmem:[%s1235 + $0x8] sm:$0xff]
        %v3432 = vld [vmem:[%s1235 + $0x10] sm:$0xff]
        %v3433 = vld [vmem:[%s1235 + $0x18] sm:$0xff]
        %v3434 = vld [vmem:[%s1240] sm:$0xff]
        %v3435 = vld [vmem:[%s1240 + $0x8] sm:$0xff]
        %v3436 = vld [vmem:[%s1240 + $0x10] sm:$0xff]
        %v3437 = vld [vmem:[%s1240 + $0x18] sm:$0xff]
        %v3438 = vld [vmem:[%s1245] sm:$0xff]
        %v3439 = vld [vmem:[%s1245 + $0x8] sm:$0xff]
        %v3440 = vld [vmem:[%s1245 + $0x10] sm:$0xff]
        %v3441 = vld [vmem:[%s1245 + $0x18] sm:$0xff]
        %v3442 = vld [vmem:[%s1250] sm:$0xff]
        %v3443 = vld [vmem:[%s1250 + $0x8] sm:$0xff]
        %v3444 = vld [vmem:[%s1250 + $0x10] sm:$0xff]
        %v3445 = vld [vmem:[%s1250 + $0x18] sm:$0xff]
        %v3446 = vld [vmem:[%s1255] sm:$0xff]
        %v3447 = vld [vmem:[%s1255 + $0x8] sm:$0xff]
        %v3448 = vld [vmem:[%s1255 + $0x10] sm:$0xff]
        %v3449 = vld [vmem:[%s1255 + $0x18] sm:$0xff]
        %v3450 = vld [vmem:[%s1255 + $0x20] sm:$0xff]
        %v3451 = vld [vmem:[%s1255 + $0x28] sm:$0xff]
        %v3452 = vld [vmem:[%s1255 + $0x30] sm:$0xff]
        %v3453 = vld [vmem:[%s1255 + $0x38] sm:$0xff]
        %v3454 = vld [vmem:[%s1255 + $0x40] sm:$0xff]
        %v3455 = vld [vmem:[%s1255 + $0x48] sm:$0xff]
        %v3456 = vld [vmem:[%s1255 + $0x50] sm:$0xff]
        %v3457 = vld [vmem:[%s1255 + $0x58] sm:$0xff]
        %v3458 = vld [vmem:[%s1255 + $0x60] sm:$0xff]
        %v3459 = vld [vmem:[%s1255 + $0x68] sm:$0xff]
        %v3460 = vld [vmem:[%s1255 + $0x70] sm:$0xff]
        %v3461 = vld [vmem:[%s1255 + $0x78] sm:$0xff]
        %v3462 = vld [vmem:[%s1001] sm:$0x1]
        %v3463 = vld [vmem:[%s1260] sm:$0xff]
        %v3464 = vld [vmem:[%s1260 + $0x8] sm:$0xff]
        %vm3465 = vcmask 261120
        %v3466 = vsel %vm3465, %v3424, 0.0
        %3467 = vadd.xlane.f32.xlu0 %v3466
        %v3468 = vpop.xlane.xlu0 %3467
        %v3469 = vsel %vm3465, %v3425, 0.0
        %3470 = vadd.xlane.f32.xlu0 %v3469
        %v3471 = vpop.xlane.xlu0 %3470
        %v3472 = vrcp.pop 32.0
        %v3473 = vmul.f32 %v3468, %v3472
        %v3474 = vmul.f32 %v3471, %v3472
        %v3475 = vsub.f32 %v3424, %v3473
        %v3476 = vsub.f32 %v3425, %v3474
        %v3477 = vmul.f32 %v3475, %v3475
        %v3478 = vmul.f32 %v3476, %v3476
        %v3479 = vsel %vm3465, %v3477, 0.0
        %3480 = vadd.xlane.f32.xlu0 %v3479
        %v3481 = vpop.xlane.xlu0 %3480
        %v3482 = vsel %vm3465, %v3478, 0.0
        %3483 = vadd.xlane.f32.xlu0 %v3482
        %v3484 = vpop.xlane.xlu0 %3483
        %v3485 = vmul.f32 %v3481, %v3472
        %v3486 = vmul.f32 %v3484, %v3472
        %v3487 = vadd.f32 %v3485, 1e-05
        %v3488 = vadd.f32 %v3486, 1e-05
        %v3489 = vrsqrt.pop %v3487
        %v3490 = vrsqrt.pop %v3488
        %v3491 = vmul.f32 %v3475, %v3489
        %v3492 = vmul.f32 %v3476, %v3490
        %v3493 = vlaneseq
        %v3494 = vshrl.u32 %v3493, 7
        %v3495 = vsub.s32 0, %v3494
        %v3496 = vrot.slane %v3463, %v3495
        %v3497 = vmul.f32 %v3491, %v3496
        %v3498 = vmul.f32 %v3492, %v3496
        %v3499 = vlaneseq
        %v3500 = vshrl.u32 %v3499, 7
        %v3501 = vsub.s32 1, %v3500
        %v3502 = vrot.slane %v3463, %v3501
        %v3503 = vadd.f32 %v3497, %v3502
        %v3504 = vadd.f32 %v3498, %v3502
        %v3505 = vlaneseq
        %v3506 = vshrl.u32 %v3505, 7
        %v3507 = vsub.s32 2, %v3506
        %v3508 = vrot.slane %v3463, %v3507
        %v3510 = vsel %vm3465, %v3503, 0
        %v3513 = vsel %vm3465, %v3504, 0
        %3515 = vmatprep.subr.mxu0 0.0
        %3516 = vmatpush1.msra.mxu0 0.0
        %3517 = vmatprep.subr.mxu0 0.0
        %3518 = vmatpush1.msra.mxu0 0.0
        %3519 = vmatprep.subr.mxu0 0.0
        %3520 = vmatpush1.msra.mxu0 0.0
        %3521 = vmatprep.subr.mxu0 0.0
        %3522 = vmatpush1.msra.mxu0 0.0
        %3523 = vmatprep.subr.mxu0 0.0
        %3524 = vmatpush1.msra.mxu0 0.0
        %3525 = vmatprep.subr.mxu0 0.0
        %3526 = vmatpush1.msra.mxu0 0.0
        %3527 = vmatprep.subr.mxu0 0.0
        %3528 = vmatpush1.msra.mxu0 0.0
        %3529 = vmatprep.subr.mxu0 0.0
        %3530 = vmatpush1.msra.mxu0 0.0
        %3531 = vmatprep.subr.mxu0 0.0
        %3532 = vmatpush1.msra.mxu0 0.0
        %3533 = vmatprep.subr.mxu0 0.0
        %3534 = vmatpush1.msra.mxu0 0.0
        %3535 = vmatprep.subr.mxu0 0.0
        %3536 = vmatpush1.msra.mxu0 0.0
        %3537 = vmatprep.subr.mxu0 0.0
        %3538 = vmatpush1.msra.mxu0 0.0
        %3539 = vmatprep.subr.mxu0 0.0
        %3540 = vmatpush1.msra.mxu0 %v3429
        %3541 = vmatprep.subr.mxu0 0.0
        %3542 = vmatpush1.msra.mxu0 %v3428
        %3543 = vmatprep.subr.mxu0 0.0
        %3544 = vmatpush1.msra.mxu0 %v3427
        %3545 = vmatprep.subr.mxu0 0.0
        %3546 = vmatpush1.msra.mxu0 %v3426
        %3547 = vmatprep.subr.mxu0 0.0
        %3548 = vmatpush2.msra.mxu0 0.0
        %3549 = vmatprep.subr.mxu0 0.0
        %3550 = vmatpush2.msra.mxu0 0.0
        %3551 = vmatprep.subr.mxu0 0.0
        %3552 = vmatpush2.msra.mxu0 0.0
        %3553 = vmatprep.subr.mxu0 0.0
        %3554 = vmatpush2.msra.mxu0 0.0
        %3555 = vmatprep.subr.mxu0 0.0
        %3556 = vmatpush2.msra.mxu0 0.0
        %3557 = vmatprep.subr.mxu0 0.0
        %3558 = vmatpush2.msra.mxu0 0.0
        %3559 = vmatprep.subr.mxu0 0.0
        %3560 = vmatpush2.msra.mxu0 0.0
        %3561 = vmatprep.subr.mxu0 0.0
        %3562 = vmatpush2.msra.mxu0 0.0
        %3563 = vmatprep.subr.mxu0 0.0
        %3564 = vmatpush2.msra.mxu0 0.0
        %3565 = vmatprep.subr.mxu0 0.0
        %3566 = vmatpush2.msra.mxu0 0.0
        %3567 = vmatprep.subr.mxu0 0.0
        %3568 = vmatpush2.msra.mxu0 0.0
        %3569 = vmatprep.subr.mxu0 0.0
        %3570 = vmatpush2.msra.mxu0 0.0
        %3571 = vmatprep.subr.mxu0 0.0
        %3572 = vmatpush2.msra.mxu0 0.0
        %3573 = vmatprep.subr.mxu0 0.0
        %3574 = vmatpush2.msra.mxu0 0.0
        %3575 = vmatprep.subr.mxu0 0.0
        %3576 = vmatpush2.msra.mxu0 0.0
        %3577 = vmatprep.subr.mxu0 0.0
        %3578 = vmatpush2.msra.mxu0 0.0
        %3579 = vmatprep.mubr.f32.mxu0 0.0
        %3580 = vmatmul.mubr.f32.gmra.mxu0 %v3510
        %v3581 = vpop.f32.mrf.mxu0
        %v3582 = vadd.f32 %v3508, %v3581
        %v3583 = vpop.f32.mrf.mxu0
        %3584 = vmatprep.mubr.f32.mxu0 0.0
        %3585 = vmatmul.mubr.f32.gmra.mxu0 %v3513
        %v3586 = vpop.f32.mrf.mxu0
        %v3587 = vadd.f32 %v3508, %v3586
        %v3588 = vpop.f32.mrf.mxu0
        %3589 = vdwg.mxu0
        %v3590 = vmul.f32 %v3582, 0.35355338
        %v3591 = vmul.f32 %v3587, 0.35355338
        %v3592 = vlaneseq
        %v3593 = vshrl.u32 %v3592, 7
        %v3594 = vsub.s32 3, %v3593
        %v3595 = vrot.slane %v3463, %v3594
        %3596 = vmatprep.subr.mxu0 0.0
        %3597 = vmatpush1.msra.mxu0 0.0
        %3598 = vmatprep.subr.mxu0 0.0
        %3599 = vmatpush1.msra.mxu0 0.0
        %3600 = vmatprep.subr.mxu0 0.0
        %3601 = vmatpush1.msra.mxu0 0.0
        %3602 = vmatprep.subr.mxu0 0.0
        %3603 = vmatpush1.msra.mxu0 0.0
        %3604 = vmatprep.subr.mxu0 0.0
        %3605 = vmatpush1.msra.mxu0 0.0
        %3606 = vmatprep.subr.mxu0 0.0
        %3607 = vmatpush1.msra.mxu0 0.0
        %3608 = vmatprep.subr.mxu0 0.0
        %3609 = vmatpush1.msra.mxu0 0.0
        %3610 = vmatprep.subr.mxu0 0.0
        %3611 = vmatpush1.msra.mxu0 0.0
        %3612 = vmatprep.subr.mxu0 0.0
        %3613 = vmatpush1.msra.mxu0 0.0
        %3614 = vmatprep.subr.mxu0 0.0
        %3615 = vmatpush1.msra.mxu0 0.0
        %3616 = vmatprep.subr.mxu0 0.0
        %3617 = vmatpush1.msra.mxu0 0.0
        %3618 = vmatprep.subr.mxu0 0.0
        %3619 = vmatpush1.msra.mxu0 0.0
        %3620 = vmatprep.subr.mxu0 0.0
        %3621 = vmatpush1.msra.mxu0 %v3433
        %3622 = vmatprep.subr.mxu0 0.0
        %3623 = vmatpush1.msra.mxu0 %v3432
        %3624 = vmatprep.subr.mxu0 0.0
        %3625 = vmatpush1.msra.mxu0 %v3431
        %3626 = vmatprep.subr.mxu0 0.0
        %3627 = vmatpush1.msra.mxu0 %v3430
        %3628 = vmatprep.subr.mxu0 0.0
        %3629 = vmatpush2.msra.mxu0 0.0
        %3630 = vmatprep.subr.mxu0 0.0
        %3631 = vmatpush2.msra.mxu0 0.0
        %3632 = vmatprep.subr.mxu0 0.0
        %3633 = vmatpush2.msra.mxu0 0.0
        %3634 = vmatprep.subr.mxu0 0.0
        %3635 = vmatpush2.msra.mxu0 0.0
        %3636 = vmatprep.subr.mxu0 0.0
        %3637 = vmatpush2.msra.mxu0 0.0
        %3638 = vmatprep.subr.mxu0 0.0
        %3639 = vmatpush2.msra.mxu0 0.0
        %3640 = vmatprep.subr.mxu0 0.0
        %3641 = vmatpush2.msra.mxu0 0.0
        %3642 = vmatprep.subr.mxu0 0.0
        %3643 = vmatpush2.msra.mxu0 0.0
        %3644 = vmatprep.subr.mxu0 0.0
        %3645 = vmatpush2.msra.mxu0 0.0
        %3646 = vmatprep.subr.mxu0 0.0
        %3647 = vmatpush2.msra.mxu0 0.0
        %3648 = vmatprep.subr.mxu0 0.0
        %3649 = vmatpush2.msra.mxu0 0.0
        %3650 = vmatprep.subr.mxu0 0.0
        %3651 = vmatpush2.msra.mxu0 0.0
        %3652 = vmatprep.subr.mxu0 0.0
        %3653 = vmatpush2.msra.mxu0 0.0
        %3654 = vmatprep.subr.mxu0 0.0
        %3655 = vmatpush2.msra.mxu0 0.0
        %3656 = vmatprep.subr.mxu0 0.0
        %3657 = vmatpush2.msra.mxu0 0.0
        %3658 = vmatprep.subr.mxu0 0.0
        %3659 = vmatpush2.msra.mxu0 0.0
        %3660 = vmatprep.mubr.f32.mxu0 0.0
        %3661 = vmatmul.mubr.f32.gmra.mxu0 %v3510
        %v3662 = vpop.f32.mrf.mxu0
        %v3663 = vadd.f32 %v3595, %v3662
        %v3664 = vpop.f32.mrf.mxu0
        %3665 = vmatprep.mubr.f32.mxu0 0.0
        %3666 = vmatmul.mubr.f32.gmra.mxu0 %v3513
        %v3667 = vpop.f32.mrf.mxu0
        %v3668 = vadd.f32 %v3595, %v3667
        %v3669 = vpop.f32.mrf.mxu0
        %3670 = vdwg.mxu0
        %v3671 = vlaneseq
        %v3672 = vshrl.u32 %v3671, 7
        %v3673 = vsub.s32 4, %v3672
        %v3674 = vrot.slane %v3463, %v3673
        %3675 = vmatprep.subr.mxu0 0.0
        %3676 = vmatpush1.msra.mxu0 0.0
        %3677 = vmatprep.subr.mxu0 0.0
        %3678 = vmatpush1.msra.mxu0 0.0
        %3679 = vmatprep.subr.mxu0 0.0
        %3680 = vmatpush1.msra.mxu0 0.0
        %3681 = vmatprep.subr.mxu0 0.0
        %3682 = vmatpush1.msra.mxu0 0.0
        %3683 = vmatprep.subr.mxu0 0.0
        %3684 = vmatpush1.msra.mxu0 0.0
        %3685 = vmatprep.subr.mxu0 0.0
        %3686 = vmatpush1.msra.mxu0 0.0
        %3687 = vmatprep.subr.mxu0 0.0
        %3688 = vmatpush1.msra.mxu0 0.0
        %3689 = vmatprep.subr.mxu0 0.0
        %3690 = vmatpush1.msra.mxu0 0.0
        %3691 = vmatprep.subr.mxu0 0.0
        %3692 = vmatpush1.msra.mxu0 0.0
        %3693 = vmatprep.subr.mxu0 0.0
        %3694 = vmatpush1.msra.mxu0 0.0
        %3695 = vmatprep.subr.mxu0 0.0
        %3696 = vmatpush1.msra.mxu0 0.0
        %3697 = vmatprep.subr.mxu0 0.0
        %3698 = vmatpush1.msra.mxu0 0.0
        %3699 = vmatprep.subr.mxu0 0.0
        %3700 = vmatpush1.msra.mxu0 %v3437
        %3701 = vmatprep.subr.mxu0 0.0
        %3702 = vmatpush1.msra.mxu0 %v3436
        %3703 = vmatprep.subr.mxu0 0.0
        %3704 = vmatpush1.msra.mxu0 %v3435
        %3705 = vmatprep.subr.mxu0 0.0
        %3706 = vmatpush1.msra.mxu0 %v3434
        %3707 = vmatprep.subr.mxu0 0.0
        %3708 = vmatpush2.msra.mxu0 0.0
        %3709 = vmatprep.subr.mxu0 0.0
        %3710 = vmatpush2.msra.mxu0 0.0
        %3711 = vmatprep.subr.mxu0 0.0
        %3712 = vmatpush2.msra.mxu0 0.0
        %3713 = vmatprep.subr.mxu0 0.0
        %3714 = vmatpush2.msra.mxu0 0.0
        %3715 = vmatprep.subr.mxu0 0.0
        %3716 = vmatpush2.msra.mxu0 0.0
        %3717 = vmatprep.subr.mxu0 0.0
        %3718 = vmatpush2.msra.mxu0 0.0
        %3719 = vmatprep.subr.mxu0 0.0
        %3720 = vmatpush2.msra.mxu0 0.0
        %3721 = vmatprep.subr.mxu0 0.0
        %3722 = vmatpush2.msra.mxu0 0.0
        %3723 = vmatprep.subr.mxu0 0.0
        %3724 = vmatpush2.msra.mxu0 0.0
        %3725 = vmatprep.subr.mxu0 0.0
        %3726 = vmatpush2.msra.mxu0 0.0
        %3727 = vmatprep.subr.mxu0 0.0
        %3728 = vmatpush2.msra.mxu0 0.0
        %3729 = vmatprep.subr.mxu0 0.0
        %3730 = vmatpush2.msra.mxu0 0.0
        %3731 = vmatprep.subr.mxu0 0.0
        %3732 = vmatpush2.msra.mxu0 0.0
        %3733 = vmatprep.subr.mxu0 0.0
        %3734 = vmatpush2.msra.mxu0 0.0
        %3735 = vmatprep.subr.mxu0 0.0
        %3736 = vmatpush2.msra.mxu0 0.0
        %3737 = vmatprep.subr.mxu0 0.0
        %3738 = vmatpush2.msra.mxu0 0.0
        %3739 = vmatprep.mubr.f32.mxu0 0.0
        %3740 = vmatmul.mubr.f32.gmra.mxu0 %v3510
        %v3741 = vpop.f32.mrf.mxu0
        %v3742 = vadd.f32 %v3674, %v3741
        %v3743 = vpop.f32.mrf.mxu0
        %3744 = vmatprep.mubr.f32.mxu0 0.0
        %3745 = vmatmul.mubr.f32.gmra.mxu0 %v3513
        %v3746 = vpop.f32.mrf.mxu0
        %v3747 = vadd.f32 %v3674, %v3746
        %v3748 = vpop.f32.mrf.mxu0
        %3749 = vdwg.mxu0
        %v3750 = vmul.f32 %v3590, %v1283
        %v3751 = vmul.f32 %v3591, %v1284
        %v3752 = vmul.f32 %v3590, %v1285
        %v3753 = vmul.f32 %v3591, %v1286
        %v3754 = vmul.f32 %v3590, %v1287
        %v3755 = vmul.f32 %v3591, %v1288
        %v3756 = vmul.f32 %v3590, %v1289
        %v3757 = vmul.f32 %v3591, %v1290
        %v3759 = vsel %vm3465, %v3750, 0
        %v3762 = vsel %vm3465, %v3751, 0
        %v3765 = vsel %vm3465, %v3752, 0
        %v3768 = vsel %vm3465, %v3753, 0
        %v3771 = vsel %vm3465, %v3754, 0
        %v3774 = vsel %vm3465, %v3755, 0
        %v3777 = vsel %vm3465, %v3756, 0
        %v3780 = vsel %vm3465, %v3757, 0
        %v3783 = vsel %vm3465, %v3663, 0
        %v3786 = vsel %vm3465, %v3668, 0
        %3788 = vmatprep.subr.mxu0 0.0
        %3789 = vmatpush1.xpose.msra.mxu0 0.0
        %3790 = vmatprep.subr.mxu0 0.0
        %3791 = vmatpush1.xpose.msra.mxu0 0.0
        %3792 = vmatprep.subr.mxu0 0.0
        %3793 = vmatpush1.xpose.msra.mxu0 0.0
        %3794 = vmatprep.subr.mxu0 0.0
        %3795 = vmatpush1.xpose.msra.mxu0 0.0
        %3796 = vmatprep.subr.mxu0 0.0
        %3797 = vmatpush1.xpose.msra.mxu0 0.0
        %3798 = vmatprep.subr.mxu0 0.0
        %3799 = vmatpush1.xpose.msra.mxu0 0.0
        %3800 = vmatprep.subr.mxu0 0.0
        %3801 = vmatpush1.xpose.msra.mxu0 0.0
        %3802 = vmatprep.subr.mxu0 0.0
        %3803 = vmatpush1.xpose.msra.mxu0 0.0
        %3804 = vmatprep.subr.mxu0 0.0
        %3805 = vmatpush1.xpose.msra.mxu0 0.0
        %3806 = vmatprep.subr.mxu0 0.0
        %3807 = vmatpush1.xpose.msra.mxu0 0.0
        %3808 = vmatprep.subr.mxu0 0.0
        %3809 = vmatpush1.xpose.msra.mxu0 0.0
        %3810 = vmatprep.subr.mxu0 0.0
        %3811 = vmatpush1.xpose.msra.mxu0 0.0
        %3812 = vmatprep.subr.mxu0 0.0
        %3813 = vmatpush1.xpose.msra.mxu0 0.0
        %3814 = vmatprep.subr.mxu0 0.0
        %3815 = vmatpush1.xpose.msra.mxu0 0.0
        %3816 = vmatprep.subr.mxu0 0.0
        %3817 = vmatpush1.xpose.msra.mxu0 %v3786
        %3818 = vmatprep.subr.mxu0 0.0
        %3819 = vmatpush1.xpose.msra.mxu0 %v3783
        %3820 = vmatprep.subr.mxu0 0.0
        %3821 = vmatpush2.xpose.msra.mxu0 0.0
        %3822 = vmatprep.subr.mxu0 0.0
        %3823 = vmatpush2.xpose.msra.mxu0 0.0
        %3824 = vmatprep.subr.mxu0 0.0
        %3825 = vmatpush2.xpose.msra.mxu0 0.0
        %3826 = vmatprep.subr.mxu0 0.0
        %3827 = vmatpush2.xpose.msra.mxu0 0.0
        %3828 = vmatprep.subr.mxu0 0.0
        %3829 = vmatpush2.xpose.msra.mxu0 0.0
        %3830 = vmatprep.subr.mxu0 0.0
        %3831 = vmatpush2.xpose.msra.mxu0 0.0
        %3832 = vmatprep.subr.mxu0 0.0
        %3833 = vmatpush2.xpose.msra.mxu0 0.0
        %3834 = vmatprep.subr.mxu0 0.0
        %3835 = vmatpush2.xpose.msra.mxu0 0.0
        %3836 = vmatprep.subr.mxu0 0.0
        %3837 = vmatpush2.xpose.msra.mxu0 0.0
        %3838 = vmatprep.subr.mxu0 0.0
        %3839 = vmatpush2.xpose.msra.mxu0 0.0
        %3840 = vmatprep.subr.mxu0 0.0
        %3841 = vmatpush2.xpose.msra.mxu0 0.0
        %3842 = vmatprep.subr.mxu0 0.0
        %3843 = vmatpush2.xpose.msra.mxu0 0.0
        %3844 = vmatprep.subr.mxu0 0.0
        %3845 = vmatpush2.xpose.msra.mxu0 0.0
        %3846 = vmatprep.subr.mxu0 0.0
        %3847 = vmatpush2.xpose.msra.mxu0 0.0
        %3848 = vmatprep.subr.mxu0 0.0
        %3849 = vmatpush2.xpose.msra.mxu0 0.0
        %3850 = vmatprep.subr.mxu0 0.0
        %3851 = vmatpush2.xpose.msra.mxu0 0.0
        %3852 = vmatprep.mubr.f32.mxu0 0.0
        %3853 = vmatmul.mubr.f32.gmra.mxu0 %v3759
        %v3854 = vpop.f32.mrf.mxu0
        %v3855 = vadd.f32 %v1267, %v3854
        %v3856 = vpop.f32.mrf.mxu0
        %3857 = vmatprep.mubr.f32.mxu0 0.0
        %3858 = vmatmul.mubr.f32.gmra.mxu0 %v3762
        %v3859 = vpop.f32.mrf.mxu0
        %v3860 = vadd.f32 %v1268, %v3859
        %v3861 = vpop.f32.mrf.mxu0
        %3862 = vmatprep.mubr.f32.mxu0 0.0
        %3863 = vmatmul.mubr.f32.gmra.mxu0 %v3765
        %v3864 = vpop.f32.mrf.mxu0
        %v3865 = vadd.f32 %v1269, %v3864
        %v3866 = vpop.f32.mrf.mxu0
        %3867 = vmatprep.mubr.f32.mxu0 0.0
        %3868 = vmatmul.mubr.f32.gmra.mxu0 %v3768
        %v3869 = vpop.f32.mrf.mxu0
        %v3870 = vadd.f32 %v1270, %v3869
        %v3871 = vpop.f32.mrf.mxu0
        %3872 = vmatprep.mubr.f32.mxu0 0.0
        %3873 = vmatmul.mubr.f32.gmra.mxu0 %v3771
        %v3874 = vpop.f32.mrf.mxu0
        %v3875 = vadd.f32 %v1271, %v3874
        %v3876 = vpop.f32.mrf.mxu0
        %3877 = vmatprep.mubr.f32.mxu0 0.0
        %3878 = vmatmul.mubr.f32.gmra.mxu0 %v3774
        %v3879 = vpop.f32.mrf.mxu0
        %v3880 = vadd.f32 %v1272, %v3879
        %v3881 = vpop.f32.mrf.mxu0
        %3882 = vmatprep.mubr.f32.mxu0 0.0
        %3883 = vmatmul.mubr.f32.gmra.mxu0 %v3777
        %v3884 = vpop.f32.mrf.mxu0
        %v3885 = vadd.f32 %v1273, %v3884
        %v3886 = vpop.f32.mrf.mxu0
        %3887 = vmatprep.mubr.f32.mxu0 0.0
        %3888 = vmatmul.mubr.f32.gmra.mxu0 %v3780
        %v3889 = vpop.f32.mrf.mxu0
        %v3890 = vadd.f32 %v1274, %v3889
        %v3891 = vpop.f32.mrf.mxu0
        %3892 = vdwg.mxu0
        %v3893 = vsel %vm1330, %v3855, -inf
        %3894 = vmax.xlane.f32.xlu0 %v3893
        %v3895 = vpop.xlane.xlu0 %3894
        %v3896 = vsel %vm1330, %v3860, -inf
        %3897 = vmax.xlane.f32.xlu0 %v3896
        %v3898 = vpop.xlane.xlu0 %3897
        %v3899 = vsel %vm1330, %v3865, -inf
        %3900 = vmax.xlane.f32.xlu0 %v3899
        %v3901 = vpop.xlane.xlu0 %3900
        %v3902 = vsel %vm1330, %v3870, -inf
        %3903 = vmax.xlane.f32.xlu0 %v3902
        %v3904 = vpop.xlane.xlu0 %3903
        %v3905 = vsel %vm1330, %v3875, -inf
        %3906 = vmax.xlane.f32.xlu0 %v3905
        %v3907 = vpop.xlane.xlu0 %3906
        %v3908 = vsel %vm1330, %v3880, -inf
        %3909 = vmax.xlane.f32.xlu0 %v3908
        %v3910 = vpop.xlane.xlu0 %3909
        %v3911 = vsel %vm1330, %v3885, -inf
        %3912 = vmax.xlane.f32.xlu0 %v3911
        %v3913 = vpop.xlane.xlu0 %3912
        %v3914 = vsel %vm1330, %v3890, -inf
        %3915 = vmax.xlane.f32.xlu0 %v3914
        %v3916 = vpop.xlane.xlu0 %3915
        %v3917 = vsub.f32 %v3855, %v3895
        %v3918 = vsub.f32 %v3860, %v3898
        %v3919 = vsub.f32 %v3865, %v3901
        %v3920 = vsub.f32 %v3870, %v3904
        %v3921 = vsub.f32 %v3875, %v3907
        %v3922 = vsub.f32 %v3880, %v3910
        %v3923 = vsub.f32 %v3885, %v3913
        %v3924 = vsub.f32 %v3890, %v3916
        %v3925 = vmul.f32 %v3917, 1.442695
        %v3926 = vpow.pop %v3925
        %v3927 = vmul.f32 %v3918, 1.442695
        %v3928 = vpow.pop %v3927
        %v3929 = vmul.f32 %v3919, 1.442695
        %v3930 = vpow.pop %v3929
        %v3931 = vmul.f32 %v3920, 1.442695
        %v3932 = vpow.pop %v3931
        %v3933 = vmul.f32 %v3921, 1.442695
        %v3934 = vpow.pop %v3933
        %v3935 = vmul.f32 %v3922, 1.442695
        %v3936 = vpow.pop %v3935
        %v3937 = vmul.f32 %v3923, 1.442695
        %v3938 = vpow.pop %v3937
        %v3939 = vmul.f32 %v3924, 1.442695
        %v3940 = vpow.pop %v3939
        %v3941 = vsel %vm1330, %v3926, 0.0
        %3942 = vadd.xlane.f32.xlu0 %v3941
        %v3943 = vpop.xlane.xlu0 %3942
        %v3944 = vsel %vm1330, %v3928, 0.0
        %3945 = vadd.xlane.f32.xlu0 %v3944
        %v3946 = vpop.xlane.xlu0 %3945
        %v3947 = vsel %vm1330, %v3930, 0.0
        %3948 = vadd.xlane.f32.xlu0 %v3947
        %v3949 = vpop.xlane.xlu0 %3948
        %v3950 = vsel %vm1330, %v3932, 0.0
        %3951 = vadd.xlane.f32.xlu0 %v3950
        %v3952 = vpop.xlane.xlu0 %3951
        %v3953 = vsel %vm1330, %v3934, 0.0
        %3954 = vadd.xlane.f32.xlu0 %v3953
        %v3955 = vpop.xlane.xlu0 %3954
        %v3956 = vsel %vm1330, %v3936, 0.0
        %3957 = vadd.xlane.f32.xlu0 %v3956
        %v3958 = vpop.xlane.xlu0 %3957
        %v3959 = vsel %vm1330, %v3938, 0.0
        %3960 = vadd.xlane.f32.xlu0 %v3959
        %v3961 = vpop.xlane.xlu0 %3960
        %v3962 = vsel %vm1330, %v3940, 0.0
        %3963 = vadd.xlane.f32.xlu0 %v3962
        %v3964 = vpop.xlane.xlu0 %3963
        %v3965 = vrcp.pop %v3943
        %v3966 = vrcp.pop %v3946
        %v3967 = vrcp.pop %v3949
        %v3968 = vrcp.pop %v3952
        %v3969 = vrcp.pop %v3955
        %v3970 = vrcp.pop %v3958
        %v3971 = vrcp.pop %v3961
        %v3972 = vrcp.pop %v3964
        %v3973 = vmul.f32 %v3926, %v3965
        %v3974 = vmul.f32 %v3928, %v3966
        %v3975 = vmul.f32 %v3930, %v3967
        %v3976 = vmul.f32 %v3932, %v3968
        %v3977 = vmul.f32 %v3934, %v3969
        %v3978 = vmul.f32 %v3936, %v3970
        %v3979 = vmul.f32 %v3938, %v3971
        %v3980 = vmul.f32 %v3940, %v3972
        %v3982 = vsel %vm1330, %v3973, 0
        %v3985 = vsel %vm1330, %v3974, 0
        %v3988 = vsel %vm1330, %v3975, 0
        %v3991 = vsel %vm1330, %v3976, 0
        %v3994 = vsel %vm1330, %v3977, 0
        %v3997 = vsel %vm1330, %v3978, 0
        %v4000 = vsel %vm1330, %v3979, 0
        %v4003 = vsel %vm1330, %v3980, 0
        %4005 = vmatprep.subr.mxu0 0.0
        %4006 = vmatpush1.msra.mxu0 0.0
        %4007 = vmatprep.subr.mxu0 0.0
        %4008 = vmatpush1.msra.mxu0 0.0
        %4009 = vmatprep.subr.mxu0 0.0
        %4010 = vmatpush1.msra.mxu0 0.0
        %4011 = vmatprep.subr.mxu0 0.0
        %4012 = vmatpush1.msra.mxu0 0.0
        %4013 = vmatprep.subr.mxu0 0.0
        %4014 = vmatpush1.msra.mxu0 0.0
        %4015 = vmatprep.subr.mxu0 0.0
        %4016 = vmatpush1.msra.mxu0 0.0
        %4017 = vmatprep.subr.mxu0 0.0
        %4018 = vmatpush1.msra.mxu0 0.0
        %4019 = vmatprep.subr.mxu0 0.0
        %4020 = vmatpush1.msra.mxu0 0.0
        %4021 = vmatprep.subr.mxu0 0.0
        %4022 = vmatpush1.msra.mxu0 0.0
        %4023 = vmatprep.subr.mxu0 0.0
        %4024 = vmatpush1.msra.mxu0 0.0
        %4025 = vmatprep.subr.mxu0 0.0
        %4026 = vmatpush1.msra.mxu0 0.0
        %4027 = vmatprep.subr.mxu0 0.0
        %4028 = vmatpush1.msra.mxu0 0.0
        %4029 = vmatprep.subr.mxu0 0.0
        %4030 = vmatpush1.msra.mxu0 0.0
        %4031 = vmatprep.subr.mxu0 0.0
        %4032 = vmatpush1.msra.mxu0 0.0
        %4033 = vmatprep.subr.mxu0 0.0
        %4034 = vmatpush1.msra.mxu0 %v3747
        %4035 = vmatprep.subr.mxu0 0.0
        %4036 = vmatpush1.msra.mxu0 %v3742
        %4037 = vmatprep.subr.mxu0 0.0
        %4038 = vmatpush2.msra.mxu0 0.0
        %4039 = vmatprep.subr.mxu0 0.0
        %4040 = vmatpush2.msra.mxu0 0.0
        %4041 = vmatprep.subr.mxu0 0.0
        %4042 = vmatpush2.msra.mxu0 0.0
        %4043 = vmatprep.subr.mxu0 0.0
        %4044 = vmatpush2.msra.mxu0 0.0
        %4045 = vmatprep.subr.mxu0 0.0
        %4046 = vmatpush2.msra.mxu0 0.0
        %4047 = vmatprep.subr.mxu0 0.0
        %4048 = vmatpush2.msra.mxu0 0.0
        %4049 = vmatprep.subr.mxu0 0.0
        %4050 = vmatpush2.msra.mxu0 0.0
        %4051 = vmatprep.subr.mxu0 0.0
        %4052 = vmatpush2.msra.mxu0 0.0
        %4053 = vmatprep.subr.mxu0 0.0
        %4054 = vmatpush2.msra.mxu0 0.0
        %4055 = vmatprep.subr.mxu0 0.0
        %4056 = vmatpush2.msra.mxu0 0.0
        %4057 = vmatprep.subr.mxu0 0.0
        %4058 = vmatpush2.msra.mxu0 0.0
        %4059 = vmatprep.subr.mxu0 0.0
        %4060 = vmatpush2.msra.mxu0 0.0
        %4061 = vmatprep.subr.mxu0 0.0
        %4062 = vmatpush2.msra.mxu0 0.0
        %4063 = vmatprep.subr.mxu0 0.0
        %4064 = vmatpush2.msra.mxu0 0.0
        %4065 = vmatprep.subr.mxu0 0.0
        %4066 = vmatpush2.msra.mxu0 0.0
        %4067 = vmatprep.subr.mxu0 0.0
        %4068 = vmatpush2.msra.mxu0 0.0
        %4069 = vmatprep.mubr.f32.mxu0 0.0
        %4070 = vmatmul.mubr.f32.gmra.mxu0 %v3982
        %v4071 = vpop.f32.mrf.mxu0
        %v4072 = vadd.f32 0.0, %v4071
        %v4073 = vpop.f32.mrf.mxu0
        %4074 = vmatprep.mubr.f32.mxu0 0.0
        %4075 = vmatmul.mubr.f32.gmra.mxu0 %v3985
        %v4076 = vpop.f32.mrf.mxu0
        %v4077 = vadd.f32 0.0, %v4076
        %v4078 = vpop.f32.mrf.mxu0
        %4079 = vmatprep.mubr.f32.mxu0 0.0
        %4080 = vmatmul.mubr.f32.gmra.mxu0 %v3988
        %v4081 = vpop.f32.mrf.mxu0
        %v4082 = vadd.f32 0.0, %v4081
        %v4083 = vpop.f32.mrf.mxu0
        %4084 = vmatprep.mubr.f32.mxu0 0.0
        %4085 = vmatmul.mubr.f32.gmra.mxu0 %v3991
        %v4086 = vpop.f32.mrf.mxu0
        %v4087 = vadd.f32 0.0, %v4086
        %v4088 = vpop.f32.mrf.mxu0
        %4089 = vmatprep.mubr.f32.mxu0 0.0
        %4090 = vmatmul.mubr.f32.gmra.mxu0 %v3994
        %v4091 = vpop.f32.mrf.mxu0
        %v4092 = vadd.f32 0.0, %v4091
        %v4093 = vpop.f32.mrf.mxu0
        %4094 = vmatprep.mubr.f32.mxu0 0.0
        %4095 = vmatmul.mubr.f32.gmra.mxu0 %v3997
        %v4096 = vpop.f32.mrf.mxu0
        %v4097 = vadd.f32 0.0, %v4096
        %v4098 = vpop.f32.mrf.mxu0
        %4099 = vmatprep.mubr.f32.mxu0 0.0
        %4100 = vmatmul.mubr.f32.gmra.mxu0 %v4000
        %v4101 = vpop.f32.mrf.mxu0
        %v4102 = vadd.f32 0.0, %v4101
        %v4103 = vpop.f32.mrf.mxu0
        %4104 = vmatprep.mubr.f32.mxu0 0.0
        %4105 = vmatmul.mubr.f32.gmra.mxu0 %v4003
        %v4106 = vpop.f32.mrf.mxu0
        %v4107 = vadd.f32 0.0, %v4106
        %v4108 = vpop.f32.mrf.mxu0
        %4109 = vdwg.mxu0
        %v4110 = vmul.f32 %v4072, %v1283
        %v4111 = vmul.f32 %v4077, %v1284
        %v4112 = vmul.f32 %v4082, %v1285
        %v4113 = vmul.f32 %v4087, %v1286
        %v4114 = vmul.f32 %v4092, %v1287
        %v4115 = vmul.f32 %v4097, %v1288
        %v4116 = vmul.f32 %v4102, %v1289
        %v4117 = vmul.f32 %v4107, %v1290
        %v4118 = vadd.f32 %v4110, %v4112
        %v4119 = vadd.f32 %v4111, %v4113
        %v4120 = vadd.f32 %v4118, %v4114
        %v4121 = vadd.f32 %v4119, %v4115
        %v4122 = vadd.f32 %v4120, %v4116
        %v4123 = vadd.f32 %v4121, %v4117
        %v4125 = vsel %vm3465, %v4122, 0
        %v4128 = vsel %vm3465, %v4123, 0
        %4130 = vmatprep.subr.mxu0 0.0
        %4131 = vmatpush1.msra.mxu0 0.0
        %4132 = vmatprep.subr.mxu0 0.0
        %4133 = vmatpush1.msra.mxu0 0.0
        %4134 = vmatprep.subr.mxu0 0.0
        %4135 = vmatpush1.msra.mxu0 0.0
        %4136 = vmatprep.subr.mxu0 0.0
        %4137 = vmatpush1.msra.mxu0 0.0
        %4138 = vmatprep.subr.mxu0 0.0
        %4139 = vmatpush1.msra.mxu0 0.0
        %4140 = vmatprep.subr.mxu0 0.0
        %4141 = vmatpush1.msra.mxu0 0.0
        %4142 = vmatprep.subr.mxu0 0.0
        %4143 = vmatpush1.msra.mxu0 0.0
        %4144 = vmatprep.subr.mxu0 0.0
        %4145 = vmatpush1.msra.mxu0 0.0
        %4146 = vmatprep.subr.mxu0 0.0
        %4147 = vmatpush1.msra.mxu0 0.0
        %4148 = vmatprep.subr.mxu0 0.0
        %4149 = vmatpush1.msra.mxu0 0.0
        %4150 = vmatprep.subr.mxu0 0.0
        %4151 = vmatpush1.msra.mxu0 0.0
        %4152 = vmatprep.subr.mxu0 0.0
        %4153 = vmatpush1.msra.mxu0 0.0
        %4154 = vmatprep.subr.mxu0 0.0
        %4155 = vmatpush1.msra.mxu0 %v3441
        %4156 = vmatprep.subr.mxu0 0.0
        %4157 = vmatpush1.msra.mxu0 %v3440
        %4158 = vmatprep.subr.mxu0 0.0
        %4159 = vmatpush1.msra.mxu0 %v3439
        %4160 = vmatprep.subr.mxu0 0.0
        %4161 = vmatpush1.msra.mxu0 %v3438
        %4162 = vmatprep.subr.mxu0 0.0
        %4163 = vmatpush2.msra.mxu0 0.0
        %4164 = vmatprep.subr.mxu0 0.0
        %4165 = vmatpush2.msra.mxu0 0.0
        %4166 = vmatprep.subr.mxu0 0.0
        %4167 = vmatpush2.msra.mxu0 0.0
        %4168 = vmatprep.subr.mxu0 0.0
        %4169 = vmatpush2.msra.mxu0 0.0
        %4170 = vmatprep.subr.mxu0 0.0
        %4171 = vmatpush2.msra.mxu0 0.0
        %4172 = vmatprep.subr.mxu0 0.0
        %4173 = vmatpush2.msra.mxu0 0.0
        %4174 = vmatprep.subr.mxu0 0.0
        %4175 = vmatpush2.msra.mxu0 0.0
        %4176 = vmatprep.subr.mxu0 0.0
        %4177 = vmatpush2.msra.mxu0 0.0
        %4178 = vmatprep.subr.mxu0 0.0
        %4179 = vmatpush2.msra.mxu0 0.0
        %4180 = vmatprep.subr.mxu0 0.0
        %4181 = vmatpush2.msra.mxu0 0.0
        %4182 = vmatprep.subr.mxu0 0.0
        %4183 = vmatpush2.msra.mxu0 0.0
        %4184 = vmatprep.subr.mxu0 0.0
        %4185 = vmatpush2.msra.mxu0 0.0
        %4186 = vmatprep.subr.mxu0 0.0
        %4187 = vmatpush2.msra.mxu0 0.0
        %4188 = vmatprep.subr.mxu0 0.0
        %4189 = vmatpush2.msra.mxu0 0.0
        %4190 = vmatprep.subr.mxu0 0.0
        %4191 = vmatpush2.msra.mxu0 0.0
        %4192 = vmatprep.subr.mxu0 0.0
        %4193 = vmatpush2.msra.mxu0 0.0
        %4194 = vmatprep.mubr.f32.mxu0 0.0
        %4195 = vmatmul.mubr.f32.gmra.mxu0 %v4125
        %v4196 = vpop.f32.mrf.mxu0
        %v4197 = vadd.f32 0.0, %v4196
        %v4198 = vpop.f32.mrf.mxu0
        %4199 = vmatprep.mubr.f32.mxu0 0.0
        %4200 = vmatmul.mubr.f32.gmra.mxu0 %v4128
        %v4201 = vpop.f32.mrf.mxu0
        %v4202 = vadd.f32 0.0, %v4201
        %v4203 = vpop.f32.mrf.mxu0
        %4204 = vdwg.mxu0
        %v4205 = vadd.f32 %v3424, %v4197
        %v4206 = vadd.f32 %v3425, %v4202
        %v4207 = vlaneseq
        %v4208 = vshrl.u32 %v4207, 7
        %v4209 = vsub.s32 5, %v4208
        %v4210 = vrot.slane %v3463, %v4209
        %v4211 = vadd.f32 %v4205, %v4210
        %v4212 = vadd.f32 %v4206, %v4210
        %v4213 = vsel %vm3465, %v4211, 0.0
        %4214 = vadd.xlane.f32.xlu0 %v4213
        %v4215 = vpop.xlane.xlu0 %4214
        %v4216 = vsel %vm3465, %v4212, 0.0
        %4217 = vadd.xlane.f32.xlu0 %v4216
        %v4218 = vpop.xlane.xlu0 %4217
        %v4219 = vmul.f32 %v4215, %v3472
        %v4220 = vmul.f32 %v4218, %v3472
        %v4221 = vsub.f32 %v4211, %v4219
        %v4222 = vsub.f32 %v4212, %v4220
        %v4223 = vmul.f32 %v4221, %v4221
        %v4224 = vmul.f32 %v4222, %v4222
        %v4225 = vsel %vm3465, %v4223, 0.0
        %4226 = vadd.xlane.f32.xlu0 %v4225
        %v4227 = vpop.xlane.xlu0 %4226
        %v4228 = vsel %vm3465, %v4224, 0.0
        %4229 = vadd.xlane.f32.xlu0 %v4228
        %v4230 = vpop.xlane.xlu0 %4229
        %v4231 = vmul.f32 %v4227, %v3472
        %v4232 = vmul.f32 %v4230, %v3472
        %v4233 = vadd.f32 %v4231, 1e-05
        %v4234 = vadd.f32 %v4232, 1e-05
        %v4235 = vrsqrt.pop %v4233
        %v4236 = vrsqrt.pop %v4234
        %v4237 = vmul.f32 %v4221, %v4235
        %v4238 = vmul.f32 %v4222, %v4236
        %v4239 = vlaneseq
        %v4240 = vshrl.u32 %v4239, 7
        %v4241 = vsub.s32 6, %v4240
        %v4242 = vrot.slane %v3463, %v4241
        %v4243 = vmul.f32 %v4237, %v4242
        %v4244 = vmul.f32 %v4238, %v4242
        %v4245 = vlaneseq
        %v4246 = vshrl.u32 %v4245, 7
        %v4247 = vsub.s32 7, %v4246
        %v4248 = vrot.slane %v3463, %v4247
        %v4249 = vadd.f32 %v4243, %v4248
        %v4250 = vadd.f32 %v4244, %v4248
        %v4252 = vlaneseq
        %v4253 = vshrl.u32 %v4252, 7
        %v4254 = vsub.s32 0, %v4253
        %v4255 = vrot.slane %v3462, %v4254
        %v4258 = vsel %vm3465, %v4249, 0
        %v4261 = vsel %vm3465, %v4250, 0
        %4263 = vmatprep.subr.mxu0 0.0
        %4264 = vmatpush1.msra.mxu0 0.0
        %4265 = vmatprep.subr.mxu0 0.0
        %4266 = vmatpush1.msra.mxu0 0.0
        %4267 = vmatprep.subr.mxu0 0.0
        %4268 = vmatpush1.msra.mxu0 0.0
        %4269 = vmatprep.subr.mxu0 0.0
        %4270 = vmatpush1.msra.mxu0 0.0
        %4271 = vmatprep.subr.mxu0 0.0
        %4272 = vmatpush1.msra.mxu0 0.0
        %4273 = vmatprep.subr.mxu0 0.0
        %4274 = vmatpush1.msra.mxu0 0.0
        %4275 = vmatprep.subr.mxu0 0.0
        %4276 = vmatpush1.msra.mxu0 0.0
        %4277 = vmatprep.subr.mxu0 0.0
        %4278 = vmatpush1.msra.mxu0 0.0
        %4279 = vmatprep.subr.mxu0 0.0
        %4280 = vmatpush1.msra.mxu0 0.0
        %4281 = vmatprep.subr.mxu0 0.0
        %4282 = vmatpush1.msra.mxu0 0.0
        %4283 = vmatprep.subr.mxu0 0.0
        %4284 = vmatpush1.msra.mxu0 0.0
        %4285 = vmatprep.subr.mxu0 0.0
        %4286 = vmatpush1.msra.mxu0 0.0
        %4287 = vmatprep.subr.mxu0 0.0
        %4288 = vmatpush1.msra.mxu0 %v3445
        %4289 = vmatprep.subr.mxu0 0.0
        %4290 = vmatpush1.msra.mxu0 %v3444
        %4291 = vmatprep.subr.mxu0 0.0
        %4292 = vmatpush1.msra.mxu0 %v3443
        %4293 = vmatprep.subr.mxu0 0.0
        %4294 = vmatpush1.msra.mxu0 %v3442
        %4295 = vmatprep.subr.mxu0 0.0
        %4296 = vmatpush2.msra.mxu0 0.0
        %4297 = vmatprep.subr.mxu0 0.0
        %4298 = vmatpush2.msra.mxu0 0.0
        %4299 = vmatprep.subr.mxu0 0.0
        %4300 = vmatpush2.msra.mxu0 0.0
        %4301 = vmatprep.subr.mxu0 0.0
        %4302 = vmatpush2.msra.mxu0 0.0
        %4303 = vmatprep.subr.mxu0 0.0
        %4304 = vmatpush2.msra.mxu0 0.0
        %4305 = vmatprep.subr.mxu0 0.0
        %4306 = vmatpush2.msra.mxu0 0.0
        %4307 = vmatprep.subr.mxu0 0.0
        %4308 = vmatpush2.msra.mxu0 0.0
        %4309 = vmatprep.subr.mxu0 0.0
        %4310 = vmatpush2.msra.mxu0 0.0
        %4311 = vmatprep.subr.mxu0 0.0
        %4312 = vmatpush2.msra.mxu0 0.0
        %4313 = vmatprep.subr.mxu0 0.0
        %4314 = vmatpush2.msra.mxu0 0.0
        %4315 = vmatprep.subr.mxu0 0.0
        %4316 = vmatpush2.msra.mxu0 0.0
        %4317 = vmatprep.subr.mxu0 0.0
        %4318 = vmatpush2.msra.mxu0 0.0
        %4319 = vmatprep.subr.mxu0 0.0
        %4320 = vmatpush2.msra.mxu0 0.0
        %4321 = vmatprep.subr.mxu0 0.0
        %4322 = vmatpush2.msra.mxu0 0.0
        %4323 = vmatprep.subr.mxu0 0.0
        %4324 = vmatpush2.msra.mxu0 0.0
        %4325 = vmatprep.subr.mxu0 0.0
        %4326 = vmatpush2.msra.mxu0 0.0
        %4327 = vmatprep.mubr.f32.mxu0 0.0
        %4328 = vmatmul.mubr.f32.gmra.mxu0 %v4258
        %v4329 = vpop.f32.mrf.mxu0
        %v4330 = vadd.f32 %v4255, %v4329
        %v4331 = vpop.f32.mrf.mxu0
        %4332 = vmatprep.mubr.f32.mxu0 0.0
        %4333 = vmatmul.mubr.f32.gmra.mxu0 %v4261
        %v4334 = vpop.f32.mrf.mxu0
        %v4335 = vadd.f32 %v4255, %v4334
        %v4336 = vpop.f32.mrf.mxu0
        %4337 = vdwg.mxu0
        %v4338 = vmax.f32 %v4330, 0.0
        %v4339 = vmax.f32 %v4335, 0.0
        %4340 = vmatprep.subr.mxu0 0.0
        %4341 = vmatpush1.msra.mxu0 %v3461
        %4342 = vmatprep.subr.mxu0 0.0
        %4343 = vmatpush1.msra.mxu0 %v3460
        %4344 = vmatprep.subr.mxu0 0.0
        %4345 = vmatpush1.msra.mxu0 %v3459
        %4346 = vmatprep.subr.mxu0 0.0
        %4347 = vmatpush1.msra.mxu0 %v3458
        %4348 = vmatprep.subr.mxu0 0.0
        %4349 = vmatpush1.msra.mxu0 %v3457
        %4350 = vmatprep.subr.mxu0 0.0
        %4351 = vmatpush1.msra.mxu0 %v3456
        %4352 = vmatprep.subr.mxu0 0.0
        %4353 = vmatpush1.msra.mxu0 %v3455
        %4354 = vmatprep.subr.mxu0 0.0
        %4355 = vmatpush1.msra.mxu0 %v3454
        %4356 = vmatprep.subr.mxu0 0.0
        %4357 = vmatpush1.msra.mxu0 %v3453
        %4358 = vmatprep.subr.mxu0 0.0
        %4359 = vmatpush1.msra.mxu0 %v3452
        %4360 = vmatprep.subr.mxu0 0.0
        %4361 = vmatpush1.msra.mxu0 %v3451
        %4362 = vmatprep.subr.mxu0 0.0
        %4363 = vmatpush1.msra.mxu0 %v3450
        %4364 = vmatprep.subr.mxu0 0.0
        %4365 = vmatpush1.msra.mxu0 %v3449
        %4366 = vmatprep.subr.mxu0 0.0
        %4367 = vmatpush1.msra.mxu0 %v3448
        %4368 = vmatprep.subr.mxu0 0.0
        %4369 = vmatpush1.msra.mxu0 %v3447
        %4370 = vmatprep.subr.mxu0 0.0
        %4371 = vmatpush1.msra.mxu0 %v3446
        %4372 = vmatprep.subr.mxu0 0.0
        %4373 = vmatpush2.msra.mxu0 0.0
        %4374 = vmatprep.subr.mxu0 0.0
        %4375 = vmatpush2.msra.mxu0 0.0
        %4376 = vmatprep.subr.mxu0 0.0
        %4377 = vmatpush2.msra.mxu0 0.0
        %4378 = vmatprep.subr.mxu0 0.0
        %4379 = vmatpush2.msra.mxu0 0.0
        %4380 = vmatprep.subr.mxu0 0.0
        %4381 = vmatpush2.msra.mxu0 0.0
        %4382 = vmatprep.subr.mxu0 0.0
        %4383 = vmatpush2.msra.mxu0 0.0
        %4384 = vmatprep.subr.mxu0 0.0
        %4385 = vmatpush2.msra.mxu0 0.0
        %4386 = vmatprep.subr.mxu0 0.0
        %4387 = vmatpush2.msra.mxu0 0.0
        %4388 = vmatprep.subr.mxu0 0.0
        %4389 = vmatpush2.msra.mxu0 0.0
        %4390 = vmatprep.subr.mxu0 0.0
        %4391 = vmatpush2.msra.mxu0 0.0
        %4392 = vmatprep.subr.mxu0 0.0
        %4393 = vmatpush2.msra.mxu0 0.0
        %4394 = vmatprep.subr.mxu0 0.0
        %4395 = vmatpush2.msra.mxu0 0.0
        %4396 = vmatprep.subr.mxu0 0.0
        %4397 = vmatpush2.msra.mxu0 0.0
        %4398 = vmatprep.subr.mxu0 0.0
        %4399 = vmatpush2.msra.mxu0 0.0
        %4400 = vmatprep.subr.mxu0 0.0
        %4401 = vmatpush2.msra.mxu0 0.0
        %4402 = vmatprep.subr.mxu0 0.0
        %4403 = vmatpush2.msra.mxu0 0.0
        %4404 = vmatprep.mubr.f32.mxu0 0.0
        %4405 = vmatmul.mubr.f32.gmra.mxu0 %v4338
        %v4406 = vpop.f32.mrf.mxu0
        %v4407 = vadd.f32 0.0, %v4406
        %v4408 = vpop.f32.mrf.mxu0
        %4409 = vmatprep.mubr.f32.mxu0 0.0
        %4410 = vmatmul.mubr.f32.gmra.mxu0 %v4339
        %v4411 = vpop.f32.mrf.mxu0
        %v4412 = vadd.f32 0.0, %v4411
        %v4413 = vpop.f32.mrf.mxu0
        %4414 = vdwg.mxu0
        %v4415 = vadd.f32 %v4211, %v4407
        %v4416 = vadd.f32 %v4212, %v4412
        %v4417 = vlaneseq
        %v4418 = vshrl.u32 %v4417, 7
        %v4419 = vsub.s32 0, %v4418
        %v4420 = vrot.slane %v3464, %v4419
        %v4421 = vadd.f32 %v4415, %v4420
        %v4422 = vadd.f32 %v4416, %v4420
        %s4423 = scalar_lea.vmem %s1230, 32
        %v4424 = vld [vmem:[%s4423] sm:$0xff]
        %v4425 = vld [vmem:[%s4423 + $0x8] sm:$0xff]
        %v4426 = vld [vmem:[%s4423 + $0x10] sm:$0xff]
        %v4427 = vld [vmem:[%s4423 + $0x18] sm:$0xff]
        %s4428 = scalar_lea.vmem %s1235, 32
        %v4429 = vld [vmem:[%s4428] sm:$0xff]
        %v4430 = vld [vmem:[%s4428 + $0x8] sm:$0xff]
        %v4431 = vld [vmem:[%s4428 + $0x10] sm:$0xff]
        %v4432 = vld [vmem:[%s4428 + $0x18] sm:$0xff]
        %s4433 = scalar_lea.vmem %s1240, 32
        %v4434 = vld [vmem:[%s4433] sm:$0xff]
        %v4435 = vld [vmem:[%s4433 + $0x8] sm:$0xff]
        %v4436 = vld [vmem:[%s4433 + $0x10] sm:$0xff]
        %v4437 = vld [vmem:[%s4433 + $0x18] sm:$0xff]
        %s4438 = scalar_lea.vmem %s1245, 32
        %v4439 = vld [vmem:[%s4438] sm:$0xff]
        %v4440 = vld [vmem:[%s4438 + $0x8] sm:$0xff]
        %v4441 = vld [vmem:[%s4438 + $0x10] sm:$0xff]
        %v4442 = vld [vmem:[%s4438 + $0x18] sm:$0xff]
        %s4443 = scalar_lea.vmem %s1250, 32
        %v4444 = vld [vmem:[%s4443] sm:$0xff]
        %v4445 = vld [vmem:[%s4443 + $0x8] sm:$0xff]
        %v4446 = vld [vmem:[%s4443 + $0x10] sm:$0xff]
        %v4447 = vld [vmem:[%s4443 + $0x18] sm:$0xff]
        %s4448 = scalar_lea.vmem %s1255, 128
        %v4449 = vld [vmem:[%s4448] sm:$0xff]
        %v4450 = vld [vmem:[%s4448 + $0x8] sm:$0xff]
        %v4451 = vld [vmem:[%s4448 + $0x10] sm:$0xff]
        %v4452 = vld [vmem:[%s4448 + $0x18] sm:$0xff]
        %v4453 = vld [vmem:[%s4448 + $0x20] sm:$0xff]
        %v4454 = vld [vmem:[%s4448 + $0x28] sm:$0xff]
        %v4455 = vld [vmem:[%s4448 + $0x30] sm:$0xff]
        %v4456 = vld [vmem:[%s4448 + $0x38] sm:$0xff]
        %v4457 = vld [vmem:[%s4448 + $0x40] sm:$0xff]
        %v4458 = vld [vmem:[%s4448 + $0x48] sm:$0xff]
        %v4459 = vld [vmem:[%s4448 + $0x50] sm:$0xff]
        %v4460 = vld [vmem:[%s4448 + $0x58] sm:$0xff]
        %v4461 = vld [vmem:[%s4448 + $0x60] sm:$0xff]
        %v4462 = vld [vmem:[%s4448 + $0x68] sm:$0xff]
        %v4463 = vld [vmem:[%s4448 + $0x70] sm:$0xff]
        %v4464 = vld [vmem:[%s4448 + $0x78] sm:$0xff]
        %s4465 = scalar_lea.vmem %s1001, 1 [#allocation10]
        %v4466 = vld [vmem:[%s4465] sm:$0x1]
        %s4467 = scalar_lea.vmem %s1260, 16
        %v4468 = vld [vmem:[%s4467] sm:$0xff]
        %v4469 = vld [vmem:[%s4467 + $0x8] sm:$0xff]
        %v4470 = vsel %vm3465, %v4421, 0.0
        %4471 = vadd.xlane.f32.xlu0 %v4470
        %v4472 = vpop.xlane.xlu0 %4471
        %v4473 = vsel %vm3465, %v4422, 0.0
        %4474 = vadd.xlane.f32.xlu0 %v4473
        %v4475 = vpop.xlane.xlu0 %4474
        %v4476 = vmul.f32 %v4472, %v3472
        %v4477 = vmul.f32 %v4475, %v3472
        %v4478 = vsub.f32 %v4421, %v4476
        %v4479 = vsub.f32 %v4422, %v4477
        %v4480 = vmul.f32 %v4478, %v4478
        %v4481 = vmul.f32 %v4479, %v4479
        %v4482 = vsel %vm3465, %v4480, 0.0
        %4483 = vadd.xlane.f32.xlu0 %v4482
        %v4484 = vpop.xlane.xlu0 %4483
        %v4485 = vsel %vm3465, %v4481, 0.0
        %4486 = vadd.xlane.f32.xlu0 %v4485
        %v4487 = vpop.xlane.xlu0 %4486
        %v4488 = vmul.f32 %v4484, %v3472
        %v4489 = vmul.f32 %v4487, %v3472
        %v4490 = vadd.f32 %v4488, 1e-05
        %v4491 = vadd.f32 %v4489, 1e-05
        %v4492 = vrsqrt.pop %v4490
        %v4493 = vrsqrt.pop %v4491
        %v4494 = vmul.f32 %v4478, %v4492
        %v4495 = vmul.f32 %v4479, %v4493
        %v4496 = vlaneseq
        %v4497 = vshrl.u32 %v4496, 7
        %v4498 = vsub.s32 0, %v4497
        %v4499 = vrot.slane %v4468, %v4498
        %v4500 = vmul.f32 %v4494, %v4499
        %v4501 = vmul.f32 %v4495, %v4499
        %v4502 = vlaneseq
        %v4503 = vshrl.u32 %v4502, 7
        %v4504 = vsub.s32 1, %v4503
        %v4505 = vrot.slane %v4468, %v4504
        %v4506 = vadd.f32 %v4500, %v4505
        %v4507 = vadd.f32 %v4501, %v4505
        %v4508 = vlaneseq
        %v4509 = vshrl.u32 %v4508, 7
        %v4510 = vsub.s32 2, %v4509
        %v4511 = vrot.slane %v4468, %v4510
        %v4513 = vsel %vm3465, %v4506, 0
        %v4516 = vsel %vm3465, %v4507, 0
        %4518 = vmatprep.subr.mxu0 0.0
        %4519 = vmatpush1.msra.mxu0 0.0
        %4520 = vmatprep.subr.mxu0 0.0
        %4521 = vmatpush1.msra.mxu0 0.0
        %4522 = vmatprep.subr.mxu0 0.0
        %4523 = vmatpush1.msra.mxu0 0.0
        %4524 = vmatprep.subr.mxu0 0.0
        %4525 = vmatpush1.msra.mxu0 0.0
        %4526 = vmatprep.subr.mxu0 0.0
        %4527 = vmatpush1.msra.mxu0 0.0
        %4528 = vmatprep.subr.mxu0 0.0
        %4529 = vmatpush1.msra.mxu0 0.0
        %4530 = vmatprep.subr.mxu0 0.0
        %4531 = vmatpush1.msra.mxu0 0.0
        %4532 = vmatprep.subr.mxu0 0.0
        %4533 = vmatpush1.msra.mxu0 0.0
        %4534 = vmatprep.subr.mxu0 0.0
        %4535 = vmatpush1.msra.mxu0 0.0
        %4536 = vmatprep.subr.mxu0 0.0
        %4537 = vmatpush1.msra.mxu0 0.0
        %4538 = vmatprep.subr.mxu0 0.0
        %4539 = vmatpush1.msra.mxu0 0.0
        %4540 = vmatprep.subr.mxu0 0.0
        %4541 = vmatpush1.msra.mxu0 0.0
        %4542 = vmatprep.subr.mxu0 0.0
        %4543 = vmatpush1.msra.mxu0 %v4427
        %4544 = vmatprep.subr.mxu0 0.0
        %4545 = vmatpush1.msra.mxu0 %v4426
        %4546 = vmatprep.subr.mxu0 0.0
        %4547 = vmatpush1.msra.mxu0 %v4425
        %4548 = vmatprep.subr.mxu0 0.0
        %4549 = vmatpush1.msra.mxu0 %v4424
        %4550 = vmatprep.subr.mxu0 0.0
        %4551 = vmatpush2.msra.mxu0 0.0
        %4552 = vmatprep.subr.mxu0 0.0
        %4553 = vmatpush2.msra.mxu0 0.0
        %4554 = vmatprep.subr.mxu0 0.0
        %4555 = vmatpush2.msra.mxu0 0.0
        %4556 = vmatprep.subr.mxu0 0.0
        %4557 = vmatpush2.msra.mxu0 0.0
        %4558 = vmatprep.subr.mxu0 0.0
        %4559 = vmatpush2.msra.mxu0 0.0
        %4560 = vmatprep.subr.mxu0 0.0
        %4561 = vmatpush2.msra.mxu0 0.0
        %4562 = vmatprep.subr.mxu0 0.0
        %4563 = vmatpush2.msra.mxu0 0.0
        %4564 = vmatprep.subr.mxu0 0.0
        %4565 = vmatpush2.msra.mxu0 0.0
        %4566 = vmatprep.subr.mxu0 0.0
        %4567 = vmatpush2.msra.mxu0 0.0
        %4568 = vmatprep.subr.mxu0 0.0
        %4569 = vmatpush2.msra.mxu0 0.0
        %4570 = vmatprep.subr.mxu0 0.0
        %4571 = vmatpush2.msra.mxu0 0.0
        %4572 = vmatprep.subr.mxu0 0.0
        %4573 = vmatpush2.msra.mxu0 0.0
        %4574 = vmatprep.subr.mxu0 0.0
        %4575 = vmatpush2.msra.mxu0 0.0
        %4576 = vmatprep.subr.mxu0 0.0
        %4577 = vmatpush2.msra.mxu0 0.0
        %4578 = vmatprep.subr.mxu0 0.0
        %4579 = vmatpush2.msra.mxu0 0.0
        %4580 = vmatprep.subr.mxu0 0.0
        %4581 = vmatpush2.msra.mxu0 0.0
        %4582 = vmatprep.mubr.f32.mxu0 0.0
        %4583 = vmatmul.mubr.f32.gmra.mxu0 %v4513
        %v4584 = vpop.f32.mrf.mxu0
        %v4585 = vadd.f32 %v4511, %v4584
        %v4586 = vpop.f32.mrf.mxu0
        %4587 = vmatprep.mubr.f32.mxu0 0.0
        %4588 = vmatmul.mubr.f32.gmra.mxu0 %v4516
        %v4589 = vpop.f32.mrf.mxu0
        %v4590 = vadd.f32 %v4511, %v4589
        %v4591 = vpop.f32.mrf.mxu0
        %4592 = vdwg.mxu0
        %v4593 = vmul.f32 %v4585, 0.35355338
        %v4594 = vmul.f32 %v4590, 0.35355338
        %v4595 = vlaneseq
        %v4596 = vshrl.u32 %v4595, 7
        %v4597 = vsub.s32 3, %v4596
        %v4598 = vrot.slane %v4468, %v4597
        %4599 = vmatprep.subr.mxu0 0.0
        %4600 = vmatpush1.msra.mxu0 0.0
        %4601 = vmatprep.subr.mxu0 0.0
        %4602 = vmatpush1.msra.mxu0 0.0
        %4603 = vmatprep.subr.mxu0 0.0
        %4604 = vmatpush1.msra.mxu0 0.0
        %4605 = vmatprep.subr.mxu0 0.0
        %4606 = vmatpush1.msra.mxu0 0.0
        %4607 = vmatprep.subr.mxu0 0.0
        %4608 = vmatpush1.msra.mxu0 0.0
        %4609 = vmatprep.subr.mxu0 0.0
        %4610 = vmatpush1.msra.mxu0 0.0
        %4611 = vmatprep.subr.mxu0 0.0
        %4612 = vmatpush1.msra.mxu0 0.0
        %4613 = vmatprep.subr.mxu0 0.0
        %4614 = vmatpush1.msra.mxu0 0.0
        %4615 = vmatprep.subr.mxu0 0.0
        %4616 = vmatpush1.msra.mxu0 0.0
        %4617 = vmatprep.subr.mxu0 0.0
        %4618 = vmatpush1.msra.mxu0 0.0
        %4619 = vmatprep.subr.mxu0 0.0
        %4620 = vmatpush1.msra.mxu0 0.0
        %4621 = vmatprep.subr.mxu0 0.0
        %4622 = vmatpush1.msra.mxu0 0.0
        %4623 = vmatprep.subr.mxu0 0.0
        %4624 = vmatpush1.msra.mxu0 %v4432
        %4625 = vmatprep.subr.mxu0 0.0
        %4626 = vmatpush1.msra.mxu0 %v4431
        %4627 = vmatprep.subr.mxu0 0.0
        %4628 = vmatpush1.msra.mxu0 %v4430
        %4629 = vmatprep.subr.mxu0 0.0
        %4630 = vmatpush1.msra.mxu0 %v4429
        %4631 = vmatprep.subr.mxu0 0.0
        %4632 = vmatpush2.msra.mxu0 0.0
        %4633 = vmatprep.subr.mxu0 0.0
        %4634 = vmatpush2.msra.mxu0 0.0
        %4635 = vmatprep.subr.mxu0 0.0
        %4636 = vmatpush2.msra.mxu0 0.0
        %4637 = vmatprep.subr.mxu0 0.0
        %4638 = vmatpush2.msra.mxu0 0.0
        %4639 = vmatprep.subr.mxu0 0.0
        %4640 = vmatpush2.msra.mxu0 0.0
        %4641 = vmatprep.subr.mxu0 0.0
        %4642 = vmatpush2.msra.mxu0 0.0
        %4643 = vmatprep.subr.mxu0 0.0
        %4644 = vmatpush2.msra.mxu0 0.0
        %4645 = vmatprep.subr.mxu0 0.0
        %4646 = vmatpush2.msra.mxu0 0.0
        %4647 = vmatprep.subr.mxu0 0.0
        %4648 = vmatpush2.msra.mxu0 0.0
        %4649 = vmatprep.subr.mxu0 0.0
        %4650 = vmatpush2.msra.mxu0 0.0
        %4651 = vmatprep.subr.mxu0 0.0
        %4652 = vmatpush2.msra.mxu0 0.0
        %4653 = vmatprep.subr.mxu0 0.0
        %4654 = vmatpush2.msra.mxu0 0.0
        %4655 = vmatprep.subr.mxu0 0.0
        %4656 = vmatpush2.msra.mxu0 0.0
        %4657 = vmatprep.subr.mxu0 0.0
        %4658 = vmatpush2.msra.mxu0 0.0
        %4659 = vmatprep.subr.mxu0 0.0
        %4660 = vmatpush2.msra.mxu0 0.0
        %4661 = vmatprep.subr.mxu0 0.0
        %4662 = vmatpush2.msra.mxu0 0.0
        %4663 = vmatprep.mubr.f32.mxu0 0.0
        %4664 = vmatmul.mubr.f32.gmra.mxu0 %v4513
        %v4665 = vpop.f32.mrf.mxu0
        %v4666 = vadd.f32 %v4598, %v4665
        %v4667 = vpop.f32.mrf.mxu0
        %4668 = vmatprep.mubr.f32.mxu0 0.0
        %4669 = vmatmul.mubr.f32.gmra.mxu0 %v4516
        %v4670 = vpop.f32.mrf.mxu0
        %v4671 = vadd.f32 %v4598, %v4670
        %v4672 = vpop.f32.mrf.mxu0
        %4673 = vdwg.mxu0
        %v4674 = vlaneseq
        %v4675 = vshrl.u32 %v4674, 7
        %v4676 = vsub.s32 4, %v4675
        %v4677 = vrot.slane %v4468, %v4676
        %4678 = vmatprep.subr.mxu0 0.0
        %4679 = vmatpush1.msra.mxu0 0.0
        %4680 = vmatprep.subr.mxu0 0.0
        %4681 = vmatpush1.msra.mxu0 0.0
        %4682 = vmatprep.subr.mxu0 0.0
        %4683 = vmatpush1.msra.mxu0 0.0
        %4684 = vmatprep.subr.mxu0 0.0
        %4685 = vmatpush1.msra.mxu0 0.0
        %4686 = vmatprep.subr.mxu0 0.0
        %4687 = vmatpush1.msra.mxu0 0.0
        %4688 = vmatprep.subr.mxu0 0.0
        %4689 = vmatpush1.msra.mxu0 0.0
        %4690 = vmatprep.subr.mxu0 0.0
        %4691 = vmatpush1.msra.mxu0 0.0
        %4692 = vmatprep.subr.mxu0 0.0
        %4693 = vmatpush1.msra.mxu0 0.0
        %4694 = vmatprep.subr.mxu0 0.0
        %4695 = vmatpush1.msra.mxu0 0.0
        %4696 = vmatprep.subr.mxu0 0.0
        %4697 = vmatpush1.msra.mxu0 0.0
        %4698 = vmatprep.subr.mxu0 0.0
        %4699 = vmatpush1.msra.mxu0 0.0
        %4700 = vmatprep.subr.mxu0 0.0
        %4701 = vmatpush1.msra.mxu0 0.0
        %4702 = vmatprep.subr.mxu0 0.0
        %4703 = vmatpush1.msra.mxu0 %v4437
        %4704 = vmatprep.subr.mxu0 0.0
        %4705 = vmatpush1.msra.mxu0 %v4436
        %4706 = vmatprep.subr.mxu0 0.0
        %4707 = vmatpush1.msra.mxu0 %v4435
        %4708 = vmatprep.subr.mxu0 0.0
        %4709 = vmatpush1.msra.mxu0 %v4434
        %4710 = vmatprep.subr.mxu0 0.0
        %4711 = vmatpush2.msra.mxu0 0.0
        %4712 = vmatprep.subr.mxu0 0.0
        %4713 = vmatpush2.msra.mxu0 0.0
        %4714 = vmatprep.subr.mxu0 0.0
        %4715 = vmatpush2.msra.mxu0 0.0
        %4716 = vmatprep.subr.mxu0 0.0
        %4717 = vmatpush2.msra.mxu0 0.0
        %4718 = vmatprep.subr.mxu0 0.0
        %4719 = vmatpush2.msra.mxu0 0.0
        %4720 = vmatprep.subr.mxu0 0.0
        %4721 = vmatpush2.msra.mxu0 0.0
        %4722 = vmatprep.subr.mxu0 0.0
        %4723 = vmatpush2.msra.mxu0 0.0
        %4724 = vmatprep.subr.mxu0 0.0
        %4725 = vmatpush2.msra.mxu0 0.0
        %4726 = vmatprep.subr.mxu0 0.0
        %4727 = vmatpush2.msra.mxu0 0.0
        %4728 = vmatprep.subr.mxu0 0.0
        %4729 = vmatpush2.msra.mxu0 0.0
        %4730 = vmatprep.subr.mxu0 0.0
        %4731 = vmatpush2.msra.mxu0 0.0
        %4732 = vmatprep.subr.mxu0 0.0
        %4733 = vmatpush2.msra.mxu0 0.0
        %4734 = vmatprep.subr.mxu0 0.0
        %4735 = vmatpush2.msra.mxu0 0.0
        %4736 = vmatprep.subr.mxu0 0.0
        %4737 = vmatpush2.msra.mxu0 0.0
        %4738 = vmatprep.subr.mxu0 0.0
        %4739 = vmatpush2.msra.mxu0 0.0
        %4740 = vmatprep.subr.mxu0 0.0
        %4741 = vmatpush2.msra.mxu0 0.0
        %4742 = vmatprep.mubr.f32.mxu0 0.0
        %4743 = vmatmul.mubr.f32.gmra.mxu0 %v4513
        %v4744 = vpop.f32.mrf.mxu0
        %v4745 = vadd.f32 %v4677, %v4744
        %v4746 = vpop.f32.mrf.mxu0
        %4747 = vmatprep.mubr.f32.mxu0 0.0
        %4748 = vmatmul.mubr.f32.gmra.mxu0 %v4516
        %v4749 = vpop.f32.mrf.mxu0
        %v4750 = vadd.f32 %v4677, %v4749
        %v4751 = vpop.f32.mrf.mxu0
        %4752 = vdwg.mxu0
        %v4753 = vmul.f32 %v4593, %v1283
        %v4754 = vmul.f32 %v4594, %v1284
        %v4755 = vmul.f32 %v4593, %v1285
        %v4756 = vmul.f32 %v4594, %v1286
        %v4757 = vmul.f32 %v4593, %v1287
        %v4758 = vmul.f32 %v4594, %v1288
        %v4759 = vmul.f32 %v4593, %v1289
        %v4760 = vmul.f32 %v4594, %v1290
        %v4762 = vsel %vm3465, %v4753, 0
        %v4765 = vsel %vm3465, %v4754, 0
        %v4768 = vsel %vm3465, %v4755, 0
        %v4771 = vsel %vm3465, %v4756, 0
        %v4774 = vsel %vm3465, %v4757, 0
        %v4777 = vsel %vm3465, %v4758, 0
        %v4780 = vsel %vm3465, %v4759, 0
        %v4783 = vsel %vm3465, %v4760, 0
        %v4786 = vsel %vm3465, %v4666, 0
        %v4789 = vsel %vm3465, %v4671, 0
        %4791 = vmatprep.subr.mxu0 0.0
        %4792 = vmatpush1.xpose.msra.mxu0 0.0
        %4793 = vmatprep.subr.mxu0 0.0
        %4794 = vmatpush1.xpose.msra.mxu0 0.0
        %4795 = vmatprep.subr.mxu0 0.0
        %4796 = vmatpush1.xpose.msra.mxu0 0.0
        %4797 = vmatprep.subr.mxu0 0.0
        %4798 = vmatpush1.xpose.msra.mxu0 0.0
        %4799 = vmatprep.subr.mxu0 0.0
        %4800 = vmatpush1.xpose.msra.mxu0 0.0
        %4801 = vmatprep.subr.mxu0 0.0
        %4802 = vmatpush1.xpose.msra.mxu0 0.0
        %4803 = vmatprep.subr.mxu0 0.0
        %4804 = vmatpush1.xpose.msra.mxu0 0.0
        %4805 = vmatprep.subr.mxu0 0.0
        %4806 = vmatpush1.xpose.msra.mxu0 0.0
        %4807 = vmatprep.subr.mxu0 0.0
        %4808 = vmatpush1.xpose.msra.mxu0 0.0
        %4809 = vmatprep.subr.mxu0 0.0
        %4810 = vmatpush1.xpose.msra.mxu0 0.0
        %4811 = vmatprep.subr.mxu0 0.0
        %4812 = vmatpush1.xpose.msra.mxu0 0.0
        %4813 = vmatprep.subr.mxu0 0.0
        %4814 = vmatpush1.xpose.msra.mxu0 0.0
        %4815 = vmatprep.subr.mxu0 0.0
        %4816 = vmatpush1.xpose.msra.mxu0 0.0
        %4817 = vmatprep.subr.mxu0 0.0
        %4818 = vmatpush1.xpose.msra.mxu0 0.0
        %4819 = vmatprep.subr.mxu0 0.0
        %4820 = vmatpush1.xpose.msra.mxu0 %v4789
        %4821 = vmatprep.subr.mxu0 0.0
        %4822 = vmatpush1.xpose.msra.mxu0 %v4786
        %4823 = vmatprep.subr.mxu0 0.0
        %4824 = vmatpush2.xpose.msra.mxu0 0.0
        %4825 = vmatprep.subr.mxu0 0.0
        %4826 = vmatpush2.xpose.msra.mxu0 0.0
        %4827 = vmatprep.subr.mxu0 0.0
        %4828 = vmatpush2.xpose.msra.mxu0 0.0
        %4829 = vmatprep.subr.mxu0 0.0
        %4830 = vmatpush2.xpose.msra.mxu0 0.0
        %4831 = vmatprep.subr.mxu0 0.0
        %4832 = vmatpush2.xpose.msra.mxu0 0.0
        %4833 = vmatprep.subr.mxu0 0.0
        %4834 = vmatpush2.xpose.msra.mxu0 0.0
        %4835 = vmatprep.subr.mxu0 0.0
        %4836 = vmatpush2.xpose.msra.mxu0 0.0
        %4837 = vmatprep.subr.mxu0 0.0
        %4838 = vmatpush2.xpose.msra.mxu0 0.0
        %4839 = vmatprep.subr.mxu0 0.0
        %4840 = vmatpush2.xpose.msra.mxu0 0.0
        %4841 = vmatprep.subr.mxu0 0.0
        %4842 = vmatpush2.xpose.msra.mxu0 0.0
        %4843 = vmatprep.subr.mxu0 0.0
        %4844 = vmatpush2.xpose.msra.mxu0 0.0
        %4845 = vmatprep.subr.mxu0 0.0
        %4846 = vmatpush2.xpose.msra.mxu0 0.0
        %4847 = vmatprep.subr.mxu0 0.0
        %4848 = vmatpush2.xpose.msra.mxu0 0.0
        %4849 = vmatprep.subr.mxu0 0.0
        %4850 = vmatpush2.xpose.msra.mxu0 0.0
        %4851 = vmatprep.subr.mxu0 0.0
        %4852 = vmatpush2.xpose.msra.mxu0 0.0
        %4853 = vmatprep.subr.mxu0 0.0
        %4854 = vmatpush2.xpose.msra.mxu0 0.0
        %4855 = vmatprep.mubr.f32.mxu0 0.0
        %4856 = vmatmul.mubr.f32.gmra.mxu0 %v4762
        %v4857 = vpop.f32.mrf.mxu0
        %v4858 = vadd.f32 %v1267, %v4857
        %v4859 = vpop.f32.mrf.mxu0
        %4860 = vmatprep.mubr.f32.mxu0 0.0
        %4861 = vmatmul.mubr.f32.gmra.mxu0 %v4765
        %v4862 = vpop.f32.mrf.mxu0
        %v4863 = vadd.f32 %v1268, %v4862
        %v4864 = vpop.f32.mrf.mxu0
        %4865 = vmatprep.mubr.f32.mxu0 0.0
        %4866 = vmatmul.mubr.f32.gmra.mxu0 %v4768
        %v4867 = vpop.f32.mrf.mxu0
        %v4868 = vadd.f32 %v1269, %v4867
        %v4869 = vpop.f32.mrf.mxu0
        %4870 = vmatprep.mubr.f32.mxu0 0.0
        %4871 = vmatmul.mubr.f32.gmra.mxu0 %v4771
        %v4872 = vpop.f32.mrf.mxu0
        %v4873 = vadd.f32 %v1270, %v4872
        %v4874 = vpop.f32.mrf.mxu0
        %4875 = vmatprep.mubr.f32.mxu0 0.0
        %4876 = vmatmul.mubr.f32.gmra.mxu0 %v4774
        %v4877 = vpop.f32.mrf.mxu0
        %v4878 = vadd.f32 %v1271, %v4877
        %v4879 = vpop.f32.mrf.mxu0
        %4880 = vmatprep.mubr.f32.mxu0 0.0
        %4881 = vmatmul.mubr.f32.gmra.mxu0 %v4777
        %v4882 = vpop.f32.mrf.mxu0
        %v4883 = vadd.f32 %v1272, %v4882
        %v4884 = vpop.f32.mrf.mxu0
        %4885 = vmatprep.mubr.f32.mxu0 0.0
        %4886 = vmatmul.mubr.f32.gmra.mxu0 %v4780
        %v4887 = vpop.f32.mrf.mxu0
        %v4888 = vadd.f32 %v1273, %v4887
        %v4889 = vpop.f32.mrf.mxu0
        %4890 = vmatprep.mubr.f32.mxu0 0.0
        %4891 = vmatmul.mubr.f32.gmra.mxu0 %v4783
        %v4892 = vpop.f32.mrf.mxu0
        %v4893 = vadd.f32 %v1274, %v4892
        %v4894 = vpop.f32.mrf.mxu0
        %4895 = vdwg.mxu0
        %v4896 = vsel %vm1330, %v4858, -inf
        %4897 = vmax.xlane.f32.xlu0 %v4896
        %v4898 = vpop.xlane.xlu0 %4897
        %v4899 = vsel %vm1330, %v4863, -inf
        %4900 = vmax.xlane.f32.xlu0 %v4899
        %v4901 = vpop.xlane.xlu0 %4900
        %v4902 = vsel %vm1330, %v4868, -inf
        %4903 = vmax.xlane.f32.xlu0 %v4902
        %v4904 = vpop.xlane.xlu0 %4903
        %v4905 = vsel %vm1330, %v4873, -inf
        %4906 = vmax.xlane.f32.xlu0 %v4905
        %v4907 = vpop.xlane.xlu0 %4906
        %v4908 = vsel %vm1330, %v4878, -inf
        %4909 = vmax.xlane.f32.xlu0 %v4908
        %v4910 = vpop.xlane.xlu0 %4909
        %v4911 = vsel %vm1330, %v4883, -inf
        %4912 = vmax.xlane.f32.xlu0 %v4911
        %v4913 = vpop.xlane.xlu0 %4912
        %v4914 = vsel %vm1330, %v4888, -inf
        %4915 = vmax.xlane.f32.xlu0 %v4914
        %v4916 = vpop.xlane.xlu0 %4915
        %v4917 = vsel %vm1330, %v4893, -inf
        %4918 = vmax.xlane.f32.xlu0 %v4917
        %v4919 = vpop.xlane.xlu0 %4918
        %v4920 = vsub.f32 %v4858, %v4898
        %v4921 = vsub.f32 %v4863, %v4901
        %v4922 = vsub.f32 %v4868, %v4904
        %v4923 = vsub.f32 %v4873, %v4907
        %v4924 = vsub.f32 %v4878, %v4910
        %v4925 = vsub.f32 %v4883, %v4913
        %v4926 = vsub.f32 %v4888, %v4916
        %v4927 = vsub.f32 %v4893, %v4919
        %v4928 = vmul.f32 %v4920, 1.442695
        %v4929 = vpow.pop %v4928
        %v4930 = vmul.f32 %v4921, 1.442695
        %v4931 = vpow.pop %v4930
        %v4932 = vmul.f32 %v4922, 1.442695
        %v4933 = vpow.pop %v4932
        %v4934 = vmul.f32 %v4923, 1.442695
        %v4935 = vpow.pop %v4934
        %v4936 = vmul.f32 %v4924, 1.442695
        %v4937 = vpow.pop %v4936
        %v4938 = vmul.f32 %v4925, 1.442695
        %v4939 = vpow.pop %v4938
        %v4940 = vmul.f32 %v4926, 1.442695
        %v4941 = vpow.pop %v4940
        %v4942 = vmul.f32 %v4927, 1.442695
        %v4943 = vpow.pop %v4942
        %v4944 = vsel %vm1330, %v4929, 0.0
        %4945 = vadd.xlane.f32.xlu0 %v4944
        %v4946 = vpop.xlane.xlu0 %4945
        %v4947 = vsel %vm1330, %v4931, 0.0
        %4948 = vadd.xlane.f32.xlu0 %v4947
        %v4949 = vpop.xlane.xlu0 %4948
        %v4950 = vsel %vm1330, %v4933, 0.0
        %4951 = vadd.xlane.f32.xlu0 %v4950
        %v4952 = vpop.xlane.xlu0 %4951
        %v4953 = vsel %vm1330, %v4935, 0.0
        %4954 = vadd.xlane.f32.xlu0 %v4953
        %v4955 = vpop.xlane.xlu0 %4954
        %v4956 = vsel %vm1330, %v4937, 0.0
        %4957 = vadd.xlane.f32.xlu0 %v4956
        %v4958 = vpop.xlane.xlu0 %4957
        %v4959 = vsel %vm1330, %v4939, 0.0
        %4960 = vadd.xlane.f32.xlu0 %v4959
        %v4961 = vpop.xlane.xlu0 %4960
        %v4962 = vsel %vm1330, %v4941, 0.0
        %4963 = vadd.xlane.f32.xlu0 %v4962
        %v4964 = vpop.xlane.xlu0 %4963
        %v4965 = vsel %vm1330, %v4943, 0.0
        %4966 = vadd.xlane.f32.xlu0 %v4965
        %v4967 = vpop.xlane.xlu0 %4966
        %v4968 = vrcp.pop %v4946
        %v4969 = vrcp.pop %v4949
        %v4970 = vrcp.pop %v4952
        %v4971 = vrcp.pop %v4955
        %v4972 = vrcp.pop %v4958
        %v4973 = vrcp.pop %v4961
        %v4974 = vrcp.pop %v4964
        %v4975 = vrcp.pop %v4967
        %v4976 = vmul.f32 %v4929, %v4968
        %v4977 = vmul.f32 %v4931, %v4969
        %v4978 = vmul.f32 %v4933, %v4970
        %v4979 = vmul.f32 %v4935, %v4971
        %v4980 = vmul.f32 %v4937, %v4972
        %v4981 = vmul.f32 %v4939, %v4973
        %v4982 = vmul.f32 %v4941, %v4974
        %v4983 = vmul.f32 %v4943, %v4975
        %v4985 = vsel %vm1330, %v4976, 0
        %v4988 = vsel %vm1330, %v4977, 0
        %v4991 = vsel %vm1330, %v4978, 0
        %v4994 = vsel %vm1330, %v4979, 0
        %v4997 = vsel %vm1330, %v4980, 0
        %v5000 = vsel %vm1330, %v4981, 0
        %v5003 = vsel %vm1330, %v4982, 0
        %v5006 = vsel %vm1330, %v4983, 0
        %5008 = vmatprep.subr.mxu0 0.0
        %5009 = vmatpush1.msra.mxu0 0.0
        %5010 = vmatprep.subr.mxu0 0.0
        %5011 = vmatpush1.msra.mxu0 0.0
        %5012 = vmatprep.subr.mxu0 0.0
        %5013 = vmatpush1.msra.mxu0 0.0
        %5014 = vmatprep.subr.mxu0 0.0
        %5015 = vmatpush1.msra.mxu0 0.0
        %5016 = vmatprep.subr.mxu0 0.0
        %5017 = vmatpush1.msra.mxu0 0.0
        %5018 = vmatprep.subr.mxu0 0.0
        %5019 = vmatpush1.msra.mxu0 0.0
        %5020 = vmatprep.subr.mxu0 0.0
        %5021 = vmatpush1.msra.mxu0 0.0
        %5022 = vmatprep.subr.mxu0 0.0
        %5023 = vmatpush1.msra.mxu0 0.0
        %5024 = vmatprep.subr.mxu0 0.0
        %5025 = vmatpush1.msra.mxu0 0.0
        %5026 = vmatprep.subr.mxu0 0.0
        %5027 = vmatpush1.msra.mxu0 0.0
        %5028 = vmatprep.subr.mxu0 0.0
        %5029 = vmatpush1.msra.mxu0 0.0
        %5030 = vmatprep.subr.mxu0 0.0
        %5031 = vmatpush1.msra.mxu0 0.0
        %5032 = vmatprep.subr.mxu0 0.0
        %5033 = vmatpush1.msra.mxu0 0.0
        %5034 = vmatprep.subr.mxu0 0.0
        %5035 = vmatpush1.msra.mxu0 0.0
        %5036 = vmatprep.subr.mxu0 0.0
        %5037 = vmatpush1.msra.mxu0 %v4750
        %5038 = vmatprep.subr.mxu0 0.0
        %5039 = vmatpush1.msra.mxu0 %v4745
        %5040 = vmatprep.subr.mxu0 0.0
        %5041 = vmatpush2.msra.mxu0 0.0
        %5042 = vmatprep.subr.mxu0 0.0
        %5043 = vmatpush2.msra.mxu0 0.0
        %5044 = vmatprep.subr.mxu0 0.0
        %5045 = vmatpush2.msra.mxu0 0.0
        %5046 = vmatprep.subr.mxu0 0.0
        %5047 = vmatpush2.msra.mxu0 0.0
        %5048 = vmatprep.subr.mxu0 0.0
        %5049 = vmatpush2.msra.mxu0 0.0
        %5050 = vmatprep.subr.mxu0 0.0
        %5051 = vmatpush2.msra.mxu0 0.0
        %5052 = vmatprep.subr.mxu0 0.0
        %5053 = vmatpush2.msra.mxu0 0.0
        %5054 = vmatprep.subr.mxu0 0.0
        %5055 = vmatpush2.msra.mxu0 0.0
        %5056 = vmatprep.subr.mxu0 0.0
        %5057 = vmatpush2.msra.mxu0 0.0
        %5058 = vmatprep.subr.mxu0 0.0
        %5059 = vmatpush2.msra.mxu0 0.0
        %5060 = vmatprep.subr.mxu0 0.0
        %5061 = vmatpush2.msra.mxu0 0.0
        %5062 = vmatprep.subr.mxu0 0.0
        %5063 = vmatpush2.msra.mxu0 0.0
        %5064 = vmatprep.subr.mxu0 0.0
        %5065 = vmatpush2.msra.mxu0 0.0
        %5066 = vmatprep.subr.mxu0 0.0
        %5067 = vmatpush2.msra.mxu0 0.0
        %5068 = vmatprep.subr.mxu0 0.0
        %5069 = vmatpush2.msra.mxu0 0.0
        %5070 = vmatprep.subr.mxu0 0.0
        %5071 = vmatpush2.msra.mxu0 0.0
        %5072 = vmatprep.mubr.f32.mxu0 0.0
        %5073 = vmatmul.mubr.f32.gmra.mxu0 %v4985
        %v5074 = vpop.f32.mrf.mxu0
        %v5075 = vadd.f32 0.0, %v5074
        %v5076 = vpop.f32.mrf.mxu0
        %5077 = vmatprep.mubr.f32.mxu0 0.0
        %5078 = vmatmul.mubr.f32.gmra.mxu0 %v4988
        %v5079 = vpop.f32.mrf.mxu0
        %v5080 = vadd.f32 0.0, %v5079
        %v5081 = vpop.f32.mrf.mxu0
        %5082 = vmatprep.mubr.f32.mxu0 0.0
        %5083 = vmatmul.mubr.f32.gmra.mxu0 %v4991
        %v5084 = vpop.f32.mrf.mxu0
        %v5085 = vadd.f32 0.0, %v5084
        %v5086 = vpop.f32.mrf.mxu0
        %5087 = vmatprep.mubr.f32.mxu0 0.0
        %5088 = vmatmul.mubr.f32.gmra.mxu0 %v4994
        %v5089 = vpop.f32.mrf.mxu0
        %v5090 = vadd.f32 0.0, %v5089
        %v5091 = vpop.f32.mrf.mxu0
        %5092 = vmatprep.mubr.f32.mxu0 0.0
        %5093 = vmatmul.mubr.f32.gmra.mxu0 %v4997
        %v5094 = vpop.f32.mrf.mxu0
        %v5095 = vadd.f32 0.0, %v5094
        %v5096 = vpop.f32.mrf.mxu0
        %5097 = vmatprep.mubr.f32.mxu0 0.0
        %5098 = vmatmul.mubr.f32.gmra.mxu0 %v5000
        %v5099 = vpop.f32.mrf.mxu0
        %v5100 = vadd.f32 0.0, %v5099
        %v5101 = vpop.f32.mrf.mxu0
        %5102 = vmatprep.mubr.f32.mxu0 0.0
        %5103 = vmatmul.mubr.f32.gmra.mxu0 %v5003
        %v5104 = vpop.f32.mrf.mxu0
        %v5105 = vadd.f32 0.0, %v5104
        %v5106 = vpop.f32.mrf.mxu0
        %5107 = vmatprep.mubr.f32.mxu0 0.0
        %5108 = vmatmul.mubr.f32.gmra.mxu0 %v5006
        %v5109 = vpop.f32.mrf.mxu0
        %v5110 = vadd.f32 0.0, %v5109
        %v5111 = vpop.f32.mrf.mxu0
        %5112 = vdwg.mxu0
        %v5113 = vmul.f32 %v5075, %v1283
        %v5114 = vmul.f32 %v5080, %v1284
        %v5115 = vmul.f32 %v5085, %v1285
        %v5116 = vmul.f32 %v5090, %v1286
        %v5117 = vmul.f32 %v5095, %v1287
        %v5118 = vmul.f32 %v5100, %v1288
        %v5119 = vmul.f32 %v5105, %v1289
        %v5120 = vmul.f32 %v5110, %v1290
        %v5121 = vadd.f32 %v5113, %v5115
        %v5122 = vadd.f32 %v5114, %v5116
        %v5123 = vadd.f32 %v5121, %v5117
        %v5124 = vadd.f32 %v5122, %v5118
        %v5125 = vadd.f32 %v5123, %v5119
        %v5126 = vadd.f32 %v5124, %v5120
        %v5128 = vsel %vm3465, %v5125, 0
        %v5131 = vsel %vm3465, %v5126, 0
        %5133 = vmatprep.subr.mxu0 0.0
        %5134 = vmatpush1.msra.mxu0 0.0
        %5135 = vmatprep.subr.mxu0 0.0
        %5136 = vmatpush1.msra.mxu0 0.0
        %5137 = vmatprep.subr.mxu0 0.0
        %5138 = vmatpush1.msra.mxu0 0.0
        %5139 = vmatprep.subr.mxu0 0.0
        %5140 = vmatpush1.msra.mxu0 0.0
        %5141 = vmatprep.subr.mxu0 0.0
        %5142 = vmatpush1.msra.mxu0 0.0
        %5143 = vmatprep.subr.mxu0 0.0
        %5144 = vmatpush1.msra.mxu0 0.0
        %5145 = vmatprep.subr.mxu0 0.0
        %5146 = vmatpush1.msra.mxu0 0.0
        %5147 = vmatprep.subr.mxu0 0.0
        %5148 = vmatpush1.msra.mxu0 0.0
        %5149 = vmatprep.subr.mxu0 0.0
        %5150 = vmatpush1.msra.mxu0 0.0
        %5151 = vmatprep.subr.mxu0 0.0
        %5152 = vmatpush1.msra.mxu0 0.0
        %5153 = vmatprep.subr.mxu0 0.0
        %5154 = vmatpush1.msra.mxu0 0.0
        %5155 = vmatprep.subr.mxu0 0.0
        %5156 = vmatpush1.msra.mxu0 0.0
        %5157 = vmatprep.subr.mxu0 0.0
        %5158 = vmatpush1.msra.mxu0 %v4442
        %5159 = vmatprep.subr.mxu0 0.0
        %5160 = vmatpush1.msra.mxu0 %v4441
        %5161 = vmatprep.subr.mxu0 0.0
        %5162 = vmatpush1.msra.mxu0 %v4440
        %5163 = vmatprep.subr.mxu0 0.0
        %5164 = vmatpush1.msra.mxu0 %v4439
        %5165 = vmatprep.subr.mxu0 0.0
        %5166 = vmatpush2.msra.mxu0 0.0
        %5167 = vmatprep.subr.mxu0 0.0
        %5168 = vmatpush2.msra.mxu0 0.0
        %5169 = vmatprep.subr.mxu0 0.0
        %5170 = vmatpush2.msra.mxu0 0.0
        %5171 = vmatprep.subr.mxu0 0.0
        %5172 = vmatpush2.msra.mxu0 0.0
        %5173 = vmatprep.subr.mxu0 0.0
        %5174 = vmatpush2.msra.mxu0 0.0
        %5175 = vmatprep.subr.mxu0 0.0
        %5176 = vmatpush2.msra.mxu0 0.0
        %5177 = vmatprep.subr.mxu0 0.0
        %5178 = vmatpush2.msra.mxu0 0.0
        %5179 = vmatprep.subr.mxu0 0.0
        %5180 = vmatpush2.msra.mxu0 0.0
        %5181 = vmatprep.subr.mxu0 0.0
        %5182 = vmatpush2.msra.mxu0 0.0
        %5183 = vmatprep.subr.mxu0 0.0
        %5184 = vmatpush2.msra.mxu0 0.0
        %5185 = vmatprep.subr.mxu0 0.0
        %5186 = vmatpush2.msra.mxu0 0.0
        %5187 = vmatprep.subr.mxu0 0.0
        %5188 = vmatpush2.msra.mxu0 0.0
        %5189 = vmatprep.subr.mxu0 0.0
        %5190 = vmatpush2.msra.mxu0 0.0
        %5191 = vmatprep.subr.mxu0 0.0
        %5192 = vmatpush2.msra.mxu0 0.0
        %5193 = vmatprep.subr.mxu0 0.0
        %5194 = vmatpush2.msra.mxu0 0.0
        %5195 = vmatprep.subr.mxu0 0.0
        %5196 = vmatpush2.msra.mxu0 0.0
        %5197 = vmatprep.mubr.f32.mxu0 0.0
        %5198 = vmatmul.mubr.f32.gmra.mxu0 %v5128
        %v5199 = vpop.f32.mrf.mxu0
        %v5200 = vadd.f32 0.0, %v5199
        %v5201 = vpop.f32.mrf.mxu0
        %5202 = vmatprep.mubr.f32.mxu0 0.0
        %5203 = vmatmul.mubr.f32.gmra.mxu0 %v5131
        %v5204 = vpop.f32.mrf.mxu0
        %v5205 = vadd.f32 0.0, %v5204
        %v5206 = vpop.f32.mrf.mxu0
        %5207 = vdwg.mxu0
        %v5208 = vadd.f32 %v4421, %v5200
        %v5209 = vadd.f32 %v4422, %v5205
        %v5210 = vlaneseq
        %v5211 = vshrl.u32 %v5210, 7
        %v5212 = vsub.s32 5, %v5211
        %v5213 = vrot.slane %v4468, %v5212
        %v5214 = vadd.f32 %v5208, %v5213
        %v5215 = vadd.f32 %v5209, %v5213
        %v5216 = vsel %vm3465, %v5214, 0.0
        %5217 = vadd.xlane.f32.xlu0 %v5216
        %v5218 = vpop.xlane.xlu0 %5217
        %v5219 = vsel %vm3465, %v5215, 0.0
        %5220 = vadd.xlane.f32.xlu0 %v5219
        %v5221 = vpop.xlane.xlu0 %5220
        %v5222 = vmul.f32 %v5218, %v3472
        %v5223 = vmul.f32 %v5221, %v3472
        %v5224 = vsub.f32 %v5214, %v5222
        %v5225 = vsub.f32 %v5215, %v5223
        %v5226 = vmul.f32 %v5224, %v5224
        %v5227 = vmul.f32 %v5225, %v5225
        %v5228 = vsel %vm3465, %v5226, 0.0
        %5229 = vadd.xlane.f32.xlu0 %v5228
        %v5230 = vpop.xlane.xlu0 %5229
        %v5231 = vsel %vm3465, %v5227, 0.0
        %5232 = vadd.xlane.f32.xlu0 %v5231
        %v5233 = vpop.xlane.xlu0 %5232
        %v5234 = vmul.f32 %v5230, %v3472
        %v5235 = vmul.f32 %v5233, %v3472
        %v5236 = vadd.f32 %v5234, 1e-05
        %v5237 = vadd.f32 %v5235, 1e-05
        %v5238 = vrsqrt.pop %v5236
        %v5239 = vrsqrt.pop %v5237
        %v5240 = vmul.f32 %v5224, %v5238
        %v5241 = vmul.f32 %v5225, %v5239
        %v5242 = vlaneseq
        %v5243 = vshrl.u32 %v5242, 7
        %v5244 = vsub.s32 6, %v5243
        %v5245 = vrot.slane %v4468, %v5244
        %v5246 = vmul.f32 %v5240, %v5245
        %v5247 = vmul.f32 %v5241, %v5245
        %v5248 = vlaneseq
        %v5249 = vshrl.u32 %v5248, 7
        %v5250 = vsub.s32 7, %v5249
        %v5251 = vrot.slane %v4468, %v5250
        %v5252 = vadd.f32 %v5246, %v5251
        %v5253 = vadd.f32 %v5247, %v5251
        %v5255 = vlaneseq
        %v5256 = vshrl.u32 %v5255, 7
        %v5257 = vsub.s32 0, %v5256
        %v5258 = vrot.slane %v4466, %v5257
        %v5261 = vsel %vm3465, %v5252, 0
        %v5264 = vsel %vm3465, %v5253, 0
        %5266 = vmatprep.subr.mxu0 0.0
        %5267 = vmatpush1.msra.mxu0 0.0
        %5268 = vmatprep.subr.mxu0 0.0
        %5269 = vmatpush1.msra.mxu0 0.0
        %5270 = vmatprep.subr.mxu0 0.0
        %5271 = vmatpush1.msra.mxu0 0.0
        %5272 = vmatprep.subr.mxu0 0.0
        %5273 = vmatpush1.msra.mxu0 0.0
        %5274 = vmatprep.subr.mxu0 0.0
        %5275 = vmatpush1.msra.mxu0 0.0
        %5276 = vmatprep.subr.mxu0 0.0
        %5277 = vmatpush1.msra.mxu0 0.0
        %5278 = vmatprep.subr.mxu0 0.0
        %5279 = vmatpush1.msra.mxu0 0.0
        %5280 = vmatprep.subr.mxu0 0.0
        %5281 = vmatpush1.msra.mxu0 0.0
        %5282 = vmatprep.subr.mxu0 0.0
        %5283 = vmatpush1.msra.mxu0 0.0
        %5284 = vmatprep.subr.mxu0 0.0
        %5285 = vmatpush1.msra.mxu0 0.0
        %5286 = vmatprep.subr.mxu0 0.0
        %5287 = vmatpush1.msra.mxu0 0.0
        %5288 = vmatprep.subr.mxu0 0.0
        %5289 = vmatpush1.msra.mxu0 0.0
        %5290 = vmatprep.subr.mxu0 0.0
        %5291 = vmatpush1.msra.mxu0 %v4447
        %5292 = vmatprep.subr.mxu0 0.0
        %5293 = vmatpush1.msra.mxu0 %v4446
        %5294 = vmatprep.subr.mxu0 0.0
        %5295 = vmatpush1.msra.mxu0 %v4445
        %5296 = vmatprep.subr.mxu0 0.0
        %5297 = vmatpush1.msra.mxu0 %v4444
        %5298 = vmatprep.subr.mxu0 0.0
        %5299 = vmatpush2.msra.mxu0 0.0
        %5300 = vmatprep.subr.mxu0 0.0
        %5301 = vmatpush2.msra.mxu0 0.0
        %5302 = vmatprep.subr.mxu0 0.0
        %5303 = vmatpush2.msra.mxu0 0.0
        %5304 = vmatprep.subr.mxu0 0.0
        %5305 = vmatpush2.msra.mxu0 0.0
        %5306 = vmatprep.subr.mxu0 0.0
        %5307 = vmatpush2.msra.mxu0 0.0
        %5308 = vmatprep.subr.mxu0 0.0
        %5309 = vmatpush2.msra.mxu0 0.0
        %5310 = vmatprep.subr.mxu0 0.0
        %5311 = vmatpush2.msra.mxu0 0.0
        %5312 = vmatprep.subr.mxu0 0.0
        %5313 = vmatpush2.msra.mxu0 0.0
        %5314 = vmatprep.subr.mxu0 0.0
        %5315 = vmatpush2.msra.mxu0 0.0
        %5316 = vmatprep.subr.mxu0 0.0
        %5317 = vmatpush2.msra.mxu0 0.0
        %5318 = vmatprep.subr.mxu0 0.0
        %5319 = vmatpush2.msra.mxu0 0.0
        %5320 = vmatprep.subr.mxu0 0.0
        %5321 = vmatpush2.msra.mxu0 0.0
        %5322 = vmatprep.subr.mxu0 0.0
        %5323 = vmatpush2.msra.mxu0 0.0
        %5324 = vmatprep.subr.mxu0 0.0
        %5325 = vmatpush2.msra.mxu0 0.0
        %5326 = vmatprep.subr.mxu0 0.0
        %5327 = vmatpush2.msra.mxu0 0.0
        %5328 = vmatprep.subr.mxu0 0.0
        %5329 = vmatpush2.msra.mxu0 0.0
        %5330 = vmatprep.mubr.f32.mxu0 0.0
        %5331 = vmatmul.mubr.f32.gmra.mxu0 %v5261
        %v5332 = vpop.f32.mrf.mxu0
        %v5333 = vadd.f32 %v5258, %v5332
        %v5334 = vpop.f32.mrf.mxu0
        %5335 = vmatprep.mubr.f32.mxu0 0.0
        %5336 = vmatmul.mubr.f32.gmra.mxu0 %v5264
        %v5337 = vpop.f32.mrf.mxu0
        %v5338 = vadd.f32 %v5258, %v5337
        %v5339 = vpop.f32.mrf.mxu0
        %5340 = vdwg.mxu0
        %v5341 = vmax.f32 %v5333, 0.0
        %v5342 = vmax.f32 %v5338, 0.0
        %5343 = vmatprep.subr.mxu0 0.0
        %5344 = vmatpush1.msra.mxu0 %v4464
        %5345 = vmatprep.subr.mxu0 0.0
        %5346 = vmatpush1.msra.mxu0 %v4463
        %5347 = vmatprep.subr.mxu0 0.0
        %5348 = vmatpush1.msra.mxu0 %v4462
        %5349 = vmatprep.subr.mxu0 0.0
        %5350 = vmatpush1.msra.mxu0 %v4461
        %5351 = vmatprep.subr.mxu0 0.0
        %5352 = vmatpush1.msra.mxu0 %v4460
        %5353 = vmatprep.subr.mxu0 0.0
        %5354 = vmatpush1.msra.mxu0 %v4459
        %5355 = vmatprep.subr.mxu0 0.0
        %5356 = vmatpush1.msra.mxu0 %v4458
        %5357 = vmatprep.subr.mxu0 0.0
        %5358 = vmatpush1.msra.mxu0 %v4457
        %5359 = vmatprep.subr.mxu0 0.0
        %5360 = vmatpush1.msra.mxu0 %v4456
        %5361 = vmatprep.subr.mxu0 0.0
        %5362 = vmatpush1.msra.mxu0 %v4455
        %5363 = vmatprep.subr.mxu0 0.0
        %5364 = vmatpush1.msra.mxu0 %v4454
        %5365 = vmatprep.subr.mxu0 0.0
        %5366 = vmatpush1.msra.mxu0 %v4453
        %5367 = vmatprep.subr.mxu0 0.0
        %5368 = vmatpush1.msra.mxu0 %v4452
        %5369 = vmatprep.subr.mxu0 0.0
        %5370 = vmatpush1.msra.mxu0 %v4451
        %5371 = vmatprep.subr.mxu0 0.0
        %5372 = vmatpush1.msra.mxu0 %v4450
        %5373 = vmatprep.subr.mxu0 0.0
        %5374 = vmatpush1.msra.mxu0 %v4449
        %5375 = vmatprep.subr.mxu0 0.0
        %5376 = vmatpush2.msra.mxu0 0.0
        %5377 = vmatprep.subr.mxu0 0.0
        %5378 = vmatpush2.msra.mxu0 0.0
        %5379 = vmatprep.subr.mxu0 0.0
        %5380 = vmatpush2.msra.mxu0 0.0
        %5381 = vmatprep.subr.mxu0 0.0
        %5382 = vmatpush2.msra.mxu0 0.0
        %5383 = vmatprep.subr.mxu0 0.0
        %5384 = vmatpush2.msra.mxu0 0.0
        %5385 = vmatprep.subr.mxu0 0.0
        %5386 = vmatpush2.msra.mxu0 0.0
        %5387 = vmatprep.subr.mxu0 0.0
        %5388 = vmatpush2.msra.mxu0 0.0
        %5389 = vmatprep.subr.mxu0 0.0
        %5390 = vmatpush2.msra.mxu0 0.0
        %5391 = vmatprep.subr.mxu0 0.0
        %5392 = vmatpush2.msra.mxu0 0.0
        %5393 = vmatprep.subr.mxu0 0.0
        %5394 = vmatpush2.msra.mxu0 0.0
        %5395 = vmatprep.subr.mxu0 0.0
        %5396 = vmatpush2.msra.mxu0 0.0
        %5397 = vmatprep.subr.mxu0 0.0
        %5398 = vmatpush2.msra.mxu0 0.0
        %5399 = vmatprep.subr.mxu0 0.0
        %5400 = vmatpush2.msra.mxu0 0.0
        %5401 = vmatprep.subr.mxu0 0.0
        %5402 = vmatpush2.msra.mxu0 0.0
        %5403 = vmatprep.subr.mxu0 0.0
        %5404 = vmatpush2.msra.mxu0 0.0
        %5405 = vmatprep.subr.mxu0 0.0
        %5406 = vmatpush2.msra.mxu0 0.0
        %5407 = vmatprep.mubr.f32.mxu0 0.0
        %5408 = vmatmul.mubr.f32.gmra.mxu0 %v5341
        %v5409 = vpop.f32.mrf.mxu0
        %v5410 = vadd.f32 0.0, %v5409
        %v5411 = vpop.f32.mrf.mxu0
        %5412 = vmatprep.mubr.f32.mxu0 0.0
        %5413 = vmatmul.mubr.f32.gmra.mxu0 %v5342
        %v5414 = vpop.f32.mrf.mxu0
        %v5415 = vadd.f32 0.0, %v5414
        %v5416 = vpop.f32.mrf.mxu0
        %5417 = vdwg.mxu0
        %v5418 = vadd.f32 %v5214, %v5410
        %v5419 = vadd.f32 %v5215, %v5415
        %v5420 = vlaneseq
        %v5421 = vshrl.u32 %v5420, 7
        %v5422 = vsub.s32 0, %v5421
        %v5423 = vrot.slane %v4469, %v5422
        %v5424 = vadd.f32 %v5418, %v5423
        %v5425 = vadd.f32 %v5419, %v5423
        %s5426 = scalar_lea.vmem %s1230, 64
        %v5427 = vld [vmem:[%s5426] sm:$0xff]
        %v5428 = vld [vmem:[%s5426 + $0x8] sm:$0xff]
        %v5429 = vld [vmem:[%s5426 + $0x10] sm:$0xff]
        %v5430 = vld [vmem:[%s5426 + $0x18] sm:$0xff]
        %s5431 = scalar_lea.vmem %s1235, 64
        %v5432 = vld [vmem:[%s5431] sm:$0xff]
        %v5433 = vld [vmem:[%s5431 + $0x8] sm:$0xff]
        %v5434 = vld [vmem:[%s5431 + $0x10] sm:$0xff]
        %v5435 = vld [vmem:[%s5431 + $0x18] sm:$0xff]
        %s5436 = scalar_lea.vmem %s1240, 64
        %v5437 = vld [vmem:[%s5436] sm:$0xff]
        %v5438 = vld [vmem:[%s5436 + $0x8] sm:$0xff]
        %v5439 = vld [vmem:[%s5436 + $0x10] sm:$0xff]
        %v5440 = vld [vmem:[%s5436 + $0x18] sm:$0xff]
        %s5441 = scalar_lea.vmem %s1245, 64
        %v5442 = vld [vmem:[%s5441] sm:$0xff]
        %v5443 = vld [vmem:[%s5441 + $0x8] sm:$0xff]
        %v5444 = vld [vmem:[%s5441 + $0x10] sm:$0xff]
        %v5445 = vld [vmem:[%s5441 + $0x18] sm:$0xff]
        %s5446 = scalar_lea.vmem %s1250, 64
        %v5447 = vld [vmem:[%s5446] sm:$0xff]
        %v5448 = vld [vmem:[%s5446 + $0x8] sm:$0xff]
        %v5449 = vld [vmem:[%s5446 + $0x10] sm:$0xff]
        %v5450 = vld [vmem:[%s5446 + $0x18] sm:$0xff]
        %s5451 = scalar_lea.vmem %s1255, 256
        %v5452 = vld [vmem:[%s5451] sm:$0xff]
        %v5453 = vld [vmem:[%s5451 + $0x8] sm:$0xff]
        %v5454 = vld [vmem:[%s5451 + $0x10] sm:$0xff]
        %v5455 = vld [vmem:[%s5451 + $0x18] sm:$0xff]
        %v5456 = vld [vmem:[%s5451 + $0x20] sm:$0xff]
        %v5457 = vld [vmem:[%s5451 + $0x28] sm:$0xff]
        %v5458 = vld [vmem:[%s5451 + $0x30] sm:$0xff]
        %v5459 = vld [vmem:[%s5451 + $0x38] sm:$0xff]
        %v5460 = vld [vmem:[%s5451 + $0x40] sm:$0xff]
        %v5461 = vld [vmem:[%s5451 + $0x48] sm:$0xff]
        %v5462 = vld [vmem:[%s5451 + $0x50] sm:$0xff]
        %v5463 = vld [vmem:[%s5451 + $0x58] sm:$0xff]
        %v5464 = vld [vmem:[%s5451 + $0x60] sm:$0xff]
        %v5465 = vld [vmem:[%s5451 + $0x68] sm:$0xff]
        %v5466 = vld [vmem:[%s5451 + $0x70] sm:$0xff]
        %v5467 = vld [vmem:[%s5451 + $0x78] sm:$0xff]
        %s5468 = scalar_lea.vmem %s1001, 2 [#allocation10]
        %v5469 = vld [vmem:[%s5468] sm:$0x1]
        %s5470 = scalar_lea.vmem %s1260, 32
        %v5471 = vld [vmem:[%s5470] sm:$0xff]
        %v5472 = vld [vmem:[%s5470 + $0x8] sm:$0xff]
        %v5473 = vsel %vm3465, %v5424, 0.0
        %5474 = vadd.xlane.f32.xlu0 %v5473
        %v5475 = vpop.xlane.xlu0 %5474
        %v5476 = vsel %vm3465, %v5425, 0.0
        %5477 = vadd.xlane.f32.xlu0 %v5476
        %v5478 = vpop.xlane.xlu0 %5477
        %v5479 = vmul.f32 %v5475, %v3472
        %v5480 = vmul.f32 %v5478, %v3472
        %v5481 = vsub.f32 %v5424, %v5479
        %v5482 = vsub.f32 %v5425, %v5480
        %v5483 = vmul.f32 %v5481, %v5481
        %v5484 = vmul.f32 %v5482, %v5482
        %v5485 = vsel %vm3465, %v5483, 0.0
        %5486 = vadd.xlane.f32.xlu0 %v5485
        %v5487 = vpop.xlane.xlu0 %5486
        %v5488 = vsel %vm3465, %v5484, 0.0
        %5489 = vadd.xlane.f32.xlu0 %v5488
        %v5490 = vpop.xlane.xlu0 %5489
        %v5491 = vmul.f32 %v5487, %v3472
        %v5492 = vmul.f32 %v5490, %v3472
        %v5493 = vadd.f32 %v5491, 1e-05
        %v5494 = vadd.f32 %v5492, 1e-05
        %v5495 = vrsqrt.pop %v5493
        %v5496 = vrsqrt.pop %v5494
        %v5497 = vmul.f32 %v5481, %v5495
        %v5498 = vmul.f32 %v5482, %v5496
        %v5499 = vlaneseq
        %v5500 = vshrl.u32 %v5499, 7
        %v5501 = vsub.s32 0, %v5500
        %v5502 = vrot.slane %v5471, %v5501
        %v5503 = vmul.f32 %v5497, %v5502
        %v5504 = vmul.f32 %v5498, %v5502
        %v5505 = vlaneseq
        %v5506 = vshrl.u32 %v5505, 7
        %v5507 = vsub.s32 1, %v5506
        %v5508 = vrot.slane %v5471, %v5507
        %v5509 = vadd.f32 %v5503, %v5508
        %v5510 = vadd.f32 %v5504, %v5508
        %v5511 = vlaneseq
        %v5512 = vshrl.u32 %v5511, 7
        %v5513 = vsub.s32 2, %v5512
        %v5514 = vrot.slane %v5471, %v5513
        %v5516 = vsel %vm3465, %v5509, 0
        %v5519 = vsel %vm3465, %v5510, 0
        %5521 = vmatprep.subr.mxu0 0.0
        %5522 = vmatpush1.msra.mxu0 0.0
        %5523 = vmatprep.subr.mxu0 0.0
        %5524 = vmatpush1.msra.mxu0 0.0
        %5525 = vmatprep.subr.mxu0 0.0
        %5526 = vmatpush1.msra.mxu0 0.0
        %5527 = vmatprep.subr.mxu0 0.0
        %5528 = vmatpush1.msra.mxu0 0.0
        %5529 = vmatprep.subr.mxu0 0.0
        %5530 = vmatpush1.msra.mxu0 0.0
        %5531 = vmatprep.subr.mxu0 0.0
        %5532 = vmatpush1.msra.mxu0 0.0
        %5533 = vmatprep.subr.mxu0 0.0
        %5534 = vmatpush1.msra.mxu0 0.0
        %5535 = vmatprep.subr.mxu0 0.0
        %5536 = vmatpush1.msra.mxu0 0.0
        %5537 = vmatprep.subr.mxu0 0.0
        %5538 = vmatpush1.msra.mxu0 0.0
        %5539 = vmatprep.subr.mxu0 0.0
        %5540 = vmatpush1.msra.mxu0 0.0
        %5541 = vmatprep.subr.mxu0 0.0
        %5542 = vmatpush1.msra.mxu0 0.0
        %5543 = vmatprep.subr.mxu0 0.0
        %5544 = vmatpush1.msra.mxu0 0.0
        %5545 = vmatprep.subr.mxu0 0.0
        %5546 = vmatpush1.msra.mxu0 %v5430
        %5547 = vmatprep.subr.mxu0 0.0
        %5548 = vmatpush1.msra.mxu0 %v5429
        %5549 = vmatprep.subr.mxu0 0.0
        %5550 = vmatpush1.msra.mxu0 %v5428
        %5551 = vmatprep.subr.mxu0 0.0
        %5552 = vmatpush1.msra.mxu0 %v5427
        %5553 = vmatprep.subr.mxu0 0.0
        %5554 = vmatpush2.msra.mxu0 0.0
        %5555 = vmatprep.subr.mxu0 0.0
        %5556 = vmatpush2.msra.mxu0 0.0
        %5557 = vmatprep.subr.mxu0 0.0
        %5558 = vmatpush2.msra.mxu0 0.0
        %5559 = vmatprep.subr.mxu0 0.0
        %5560 = vmatpush2.msra.mxu0 0.0
        %5561 = vmatprep.subr.mxu0 0.0
        %5562 = vmatpush2.msra.mxu0 0.0
        %5563 = vmatprep.subr.mxu0 0.0
        %5564 = vmatpush2.msra.mxu0 0.0
        %5565 = vmatprep.subr.mxu0 0.0
        %5566 = vmatpush2.msra.mxu0 0.0
        %5567 = vmatprep.subr.mxu0 0.0
        %5568 = vmatpush2.msra.mxu0 0.0
        %5569 = vmatprep.subr.mxu0 0.0
        %5570 = vmatpush2.msra.mxu0 0.0
        %5571 = vmatprep.subr.mxu0 0.0
        %5572 = vmatpush2.msra.mxu0 0.0
        %5573 = vmatprep.subr.mxu0 0.0
        %5574 = vmatpush2.msra.mxu0 0.0
        %5575 = vmatprep.subr.mxu0 0.0
        %5576 = vmatpush2.msra.mxu0 0.0
        %5577 = vmatprep.subr.mxu0 0.0
        %5578 = vmatpush2.msra.mxu0 0.0
        %5579 = vmatprep.subr.mxu0 0.0
        %5580 = vmatpush2.msra.mxu0 0.0
        %5581 = vmatprep.subr.mxu0 0.0
        %5582 = vmatpush2.msra.mxu0 0.0
        %5583 = vmatprep.subr.mxu0 0.0
        %5584 = vmatpush2.msra.mxu0 0.0
        %5585 = vmatprep.mubr.f32.mxu0 0.0
        %5586 = vmatmul.mubr.f32.gmra.mxu0 %v5516
        %v5587 = vpop.f32.mrf.mxu0
        %v5588 = vadd.f32 %v5514, %v5587
        %v5589 = vpop.f32.mrf.mxu0
        %5590 = vmatprep.mubr.f32.mxu0 0.0
        %5591 = vmatmul.mubr.f32.gmra.mxu0 %v5519
        %v5592 = vpop.f32.mrf.mxu0
        %v5593 = vadd.f32 %v5514, %v5592
        %v5594 = vpop.f32.mrf.mxu0
        %5595 = vdwg.mxu0
        %v5596 = vmul.f32 %v5588, 0.35355338
        %v5597 = vmul.f32 %v5593, 0.35355338
        %v5598 = vlaneseq
        %v5599 = vshrl.u32 %v5598, 7
        %v5600 = vsub.s32 3, %v5599
        %v5601 = vrot.slane %v5471, %v5600
        %5602 = vmatprep.subr.mxu0 0.0
        %5603 = vmatpush1.msra.mxu0 0.0
        %5604 = vmatprep.subr.mxu0 0.0
        %5605 = vmatpush1.msra.mxu0 0.0
        %5606 = vmatprep.subr.mxu0 0.0
        %5607 = vmatpush1.msra.mxu0 0.0
        %5608 = vmatprep.subr.mxu0 0.0
        %5609 = vmatpush1.msra.mxu0 0.0
        %5610 = vmatprep.subr.mxu0 0.0
        %5611 = vmatpush1.msra.mxu0 0.0
        %5612 = vmatprep.subr.mxu0 0.0
        %5613 = vmatpush1.msra.mxu0 0.0
        %5614 = vmatprep.subr.mxu0 0.0
        %5615 = vmatpush1.msra.mxu0 0.0
        %5616 = vmatprep.subr.mxu0 0.0
        %5617 = vmatpush1.msra.mxu0 0.0
        %5618 = vmatprep.subr.mxu0 0.0
        %5619 = vmatpush1.msra.mxu0 0.0
        %5620 = vmatprep.subr.mxu0 0.0
        %5621 = vmatpush1.msra.mxu0 0.0
        %5622 = vmatprep.subr.mxu0 0.0
        %5623 = vmatpush1.msra.mxu0 0.0
        %5624 = vmatprep.subr.mxu0 0.0
        %5625 = vmatpush1.msra.mxu0 0.0
        %5626 = vmatprep.subr.mxu0 0.0
        %5627 = vmatpush1.msra.mxu0 %v5435
        %5628 = vmatprep.subr.mxu0 0.0
        %5629 = vmatpush1.msra.mxu0 %v5434
        %5630 = vmatprep.subr.mxu0 0.0
        %5631 = vmatpush1.msra.mxu0 %v5433
        %5632 = vmatprep.subr.mxu0 0.0
        %5633 = vmatpush1.msra.mxu0 %v5432
        %5634 = vmatprep.subr.mxu0 0.0
        %5635 = vmatpush2.msra.mxu0 0.0
        %5636 = vmatprep.subr.mxu0 0.0
        %5637 = vmatpush2.msra.mxu0 0.0
        %5638 = vmatprep.subr.mxu0 0.0
        %5639 = vmatpush2.msra.mxu0 0.0
        %5640 = vmatprep.subr.mxu0 0.0
        %5641 = vmatpush2.msra.mxu0 0.0
        %5642 = vmatprep.subr.mxu0 0.0
        %5643 = vmatpush2.msra.mxu0 0.0
        %5644 = vmatprep.subr.mxu0 0.0
        %5645 = vmatpush2.msra.mxu0 0.0
        %5646 = vmatprep.subr.mxu0 0.0
        %5647 = vmatpush2.msra.mxu0 0.0
        %5648 = vmatprep.subr.mxu0 0.0
        %5649 = vmatpush2.msra.mxu0 0.0
        %5650 = vmatprep.subr.mxu0 0.0
        %5651 = vmatpush2.msra.mxu0 0.0
        %5652 = vmatprep.subr.mxu0 0.0
        %5653 = vmatpush2.msra.mxu0 0.0
        %5654 = vmatprep.subr.mxu0 0.0
        %5655 = vmatpush2.msra.mxu0 0.0
        %5656 = vmatprep.subr.mxu0 0.0
        %5657 = vmatpush2.msra.mxu0 0.0
        %5658 = vmatprep.subr.mxu0 0.0
        %5659 = vmatpush2.msra.mxu0 0.0
        %5660 = vmatprep.subr.mxu0 0.0
        %5661 = vmatpush2.msra.mxu0 0.0
        %5662 = vmatprep.subr.mxu0 0.0
        %5663 = vmatpush2.msra.mxu0 0.0
        %5664 = vmatprep.subr.mxu0 0.0
        %5665 = vmatpush2.msra.mxu0 0.0
        %5666 = vmatprep.mubr.f32.mxu0 0.0
        %5667 = vmatmul.mubr.f32.gmra.mxu0 %v5516
        %v5668 = vpop.f32.mrf.mxu0
        %v5669 = vadd.f32 %v5601, %v5668
        %v5670 = vpop.f32.mrf.mxu0
        %5671 = vmatprep.mubr.f32.mxu0 0.0
        %5672 = vmatmul.mubr.f32.gmra.mxu0 %v5519
        %v5673 = vpop.f32.mrf.mxu0
        %v5674 = vadd.f32 %v5601, %v5673
        %v5675 = vpop.f32.mrf.mxu0
        %5676 = vdwg.mxu0
        %v5677 = vlaneseq
        %v5678 = vshrl.u32 %v5677, 7
        %v5679 = vsub.s32 4, %v5678
        %v5680 = vrot.slane %v5471, %v5679
        %5681 = vmatprep.subr.mxu0 0.0
        %5682 = vmatpush1.msra.mxu0 0.0
        %5683 = vmatprep.subr.mxu0 0.0
        %5684 = vmatpush1.msra.mxu0 0.0
        %5685 = vmatprep.subr.mxu0 0.0
        %5686 = vmatpush1.msra.mxu0 0.0
        %5687 = vmatprep.subr.mxu0 0.0
        %5688 = vmatpush1.msra.mxu0 0.0
        %5689 = vmatprep.subr.mxu0 0.0
        %5690 = vmatpush1.msra.mxu0 0.0
        %5691 = vmatprep.subr.mxu0 0.0
        %5692 = vmatpush1.msra.mxu0 0.0
        %5693 = vmatprep.subr.mxu0 0.0
        %5694 = vmatpush1.msra.mxu0 0.0
        %5695 = vmatprep.subr.mxu0 0.0
        %5696 = vmatpush1.msra.mxu0 0.0
        %5697 = vmatprep.subr.mxu0 0.0
        %5698 = vmatpush1.msra.mxu0 0.0
        %5699 = vmatprep.subr.mxu0 0.0
        %5700 = vmatpush1.msra.mxu0 0.0
        %5701 = vmatprep.subr.mxu0 0.0
        %5702 = vmatpush1.msra.mxu0 0.0
        %5703 = vmatprep.subr.mxu0 0.0
        %5704 = vmatpush1.msra.mxu0 0.0
        %5705 = vmatprep.subr.mxu0 0.0
        %5706 = vmatpush1.msra.mxu0 %v5440
        %5707 = vmatprep.subr.mxu0 0.0
        %5708 = vmatpush1.msra.mxu0 %v5439
        %5709 = vmatprep.subr.mxu0 0.0
        %5710 = vmatpush1.msra.mxu0 %v5438
        %5711 = vmatprep.subr.mxu0 0.0
        %5712 = vmatpush1.msra.mxu0 %v5437
        %5713 = vmatprep.subr.mxu0 0.0
        %5714 = vmatpush2.msra.mxu0 0.0
        %5715 = vmatprep.subr.mxu0 0.0
        %5716 = vmatpush2.msra.mxu0 0.0
        %5717 = vmatprep.subr.mxu0 0.0
        %5718 = vmatpush2.msra.mxu0 0.0
        %5719 = vmatprep.subr.mxu0 0.0
        %5720 = vmatpush2.msra.mxu0 0.0
        %5721 = vmatprep.subr.mxu0 0.0
        %5722 = vmatpush2.msra.mxu0 0.0
        %5723 = vmatprep.subr.mxu0 0.0
        %5724 = vmatpush2.msra.mxu0 0.0
        %5725 = vmatprep.subr.mxu0 0.0
        %5726 = vmatpush2.msra.mxu0 0.0
        %5727 = vmatprep.subr.mxu0 0.0
        %5728 = vmatpush2.msra.mxu0 0.0
        %5729 = vmatprep.subr.mxu0 0.0
        %5730 = vmatpush2.msra.mxu0 0.0
        %5731 = vmatprep.subr.mxu0 0.0
        %5732 = vmatpush2.msra.mxu0 0.0
        %5733 = vmatprep.subr.mxu0 0.0
        %5734 = vmatpush2.msra.mxu0 0.0
        %5735 = vmatprep.subr.mxu0 0.0
        %5736 = vmatpush2.msra.mxu0 0.0
        %5737 = vmatprep.subr.mxu0 0.0
        %5738 = vmatpush2.msra.mxu0 0.0
        %5739 = vmatprep.subr.mxu0 0.0
        %5740 = vmatpush2.msra.mxu0 0.0
        %5741 = vmatprep.subr.mxu0 0.0
        %5742 = vmatpush2.msra.mxu0 0.0
        %5743 = vmatprep.subr.mxu0 0.0
        %5744 = vmatpush2.msra.mxu0 0.0
        %5745 = vmatprep.mubr.f32.mxu0 0.0
        %5746 = vmatmul.mubr.f32.gmra.mxu0 %v5516
        %v5747 = vpop.f32.mrf.mxu0
        %v5748 = vadd.f32 %v5680, %v5747
        %v5749 = vpop.f32.mrf.mxu0
        %5750 = vmatprep.mubr.f32.mxu0 0.0
        %5751 = vmatmul.mubr.f32.gmra.mxu0 %v5519
        %v5752 = vpop.f32.mrf.mxu0
        %v5753 = vadd.f32 %v5680, %v5752
        %v5754 = vpop.f32.mrf.mxu0
        %5755 = vdwg.mxu0
        %v5756 = vmul.f32 %v5596, %v1283
        %v5757 = vmul.f32 %v5597, %v1284
        %v5758 = vmul.f32 %v5596, %v1285
        %v5759 = vmul.f32 %v5597, %v1286
        %v5760 = vmul.f32 %v5596, %v1287
        %v5761 = vmul.f32 %v5597, %v1288
        %v5762 = vmul.f32 %v5596, %v1289
        %v5763 = vmul.f32 %v5597, %v1290
        %v5765 = vsel %vm3465, %v5756, 0
        %v5768 = vsel %vm3465, %v5757, 0
        %v5771 = vsel %vm3465, %v5758, 0
        %v5774 = vsel %vm3465, %v5759, 0
        %v5777 = vsel %vm3465, %v5760, 0
        %v5780 = vsel %vm3465, %v5761, 0
        %v5783 = vsel %vm3465, %v5762, 0
        %v5786 = vsel %vm3465, %v5763, 0
        %v5789 = vsel %vm3465, %v5669, 0
        %v5792 = vsel %vm3465, %v5674, 0
        %5794 = vmatprep.subr.mxu0 0.0
        %5795 = vmatpush1.xpose.msra.mxu0 0.0
        %5796 = vmatprep.subr.mxu0 0.0
        %5797 = vmatpush1.xpose.msra.mxu0 0.0
        %5798 = vmatprep.subr.mxu0 0.0
        %5799 = vmatpush1.xpose.msra.mxu0 0.0
        %5800 = vmatprep.subr.mxu0 0.0
        %5801 = vmatpush1.xpose.msra.mxu0 0.0
        %5802 = vmatprep.subr.mxu0 0.0
        %5803 = vmatpush1.xpose.msra.mxu0 0.0
        %5804 = vmatprep.subr.mxu0 0.0
        %5805 = vmatpush1.xpose.msra.mxu0 0.0
        %5806 = vmatprep.subr.mxu0 0.0
        %5807 = vmatpush1.xpose.msra.mxu0 0.0
        %5808 = vmatprep.subr.mxu0 0.0
        %5809 = vmatpush1.xpose.msra.mxu0 0.0
        %5810 = vmatprep.subr.mxu0 0.0
        %5811 = vmatpush1.xpose.msra.mxu0 0.0
        %5812 = vmatprep.subr.mxu0 0.0
        %5813 = vmatpush1.xpose.msra.mxu0 0.0
        %5814 = vmatprep.subr.mxu0 0.0
        %5815 = vmatpush1.xpose.msra.mxu0 0.0
        %5816 = vmatprep.subr.mxu0 0.0
        %5817 = vmatpush1.xpose.msra.mxu0 0.0
        %5818 = vmatprep.subr.mxu0 0.0
        %5819 = vmatpush1.xpose.msra.mxu0 0.0
        %5820 = vmatprep.subr.mxu0 0.0
        %5821 = vmatpush1.xpose.msra.mxu0 0.0
        %5822 = vmatprep.subr.mxu0 0.0
        %5823 = vmatpush1.xpose.msra.mxu0 %v5792
        %5824 = vmatprep.subr.mxu0 0.0
        %5825 = vmatpush1.xpose.msra.mxu0 %v5789
        %5826 = vmatprep.subr.mxu0 0.0
        %5827 = vmatpush2.xpose.msra.mxu0 0.0
        %5828 = vmatprep.subr.mxu0 0.0
        %5829 = vmatpush2.xpose.msra.mxu0 0.0
        %5830 = vmatprep.subr.mxu0 0.0
        %5831 = vmatpush2.xpose.msra.mxu0 0.0
        %5832 = vmatprep.subr.mxu0 0.0
        %5833 = vmatpush2.xpose.msra.mxu0 0.0
        %5834 = vmatprep.subr.mxu0 0.0
        %5835 = vmatpush2.xpose.msra.mxu0 0.0
        %5836 = vmatprep.subr.mxu0 0.0
        %5837 = vmatpush2.xpose.msra.mxu0 0.0
        %5838 = vmatprep.subr.mxu0 0.0
        %5839 = vmatpush2.xpose.msra.mxu0 0.0
        %5840 = vmatprep.subr.mxu0 0.0
        %5841 = vmatpush2.xpose.msra.mxu0 0.0
        %5842 = vmatprep.subr.mxu0 0.0
        %5843 = vmatpush2.xpose.msra.mxu0 0.0
        %5844 = vmatprep.subr.mxu0 0.0
        %5845 = vmatpush2.xpose.msra.mxu0 0.0
        %5846 = vmatprep.subr.mxu0 0.0
        %5847 = vmatpush2.xpose.msra.mxu0 0.0
        %5848 = vmatprep.subr.mxu0 0.0
        %5849 = vmatpush2.xpose.msra.mxu0 0.0
        %5850 = vmatprep.subr.mxu0 0.0
        %5851 = vmatpush2.xpose.msra.mxu0 0.0
        %5852 = vmatprep.subr.mxu0 0.0
        %5853 = vmatpush2.xpose.msra.mxu0 0.0
        %5854 = vmatprep.subr.mxu0 0.0
        %5855 = vmatpush2.xpose.msra.mxu0 0.0
        %5856 = vmatprep.subr.mxu0 0.0
        %5857 = vmatpush2.xpose.msra.mxu0 0.0
        %5858 = vmatprep.mubr.f32.mxu0 0.0
        %5859 = vmatmul.mubr.f32.gmra.mxu0 %v5765
        %v5860 = vpop.f32.mrf.mxu0
        %v5861 = vadd.f32 %v1267, %v5860
        %v5862 = vpop.f32.mrf.mxu0
        %5863 = vmatprep.mubr.f32.mxu0 0.0
        %5864 = vmatmul.mubr.f32.gmra.mxu0 %v5768
        %v5865 = vpop.f32.mrf.mxu0
        %v5866 = vadd.f32 %v1268, %v5865
        %v5867 = vpop.f32.mrf.mxu0
        %5868 = vmatprep.mubr.f32.mxu0 0.0
        %5869 = vmatmul.mubr.f32.gmra.mxu0 %v5771
        %v5870 = vpop.f32.mrf.mxu0
        %v5871 = vadd.f32 %v1269, %v5870
        %v5872 = vpop.f32.mrf.mxu0
        %5873 = vmatprep.mubr.f32.mxu0 0.0
        %5874 = vmatmul.mubr.f32.gmra.mxu0 %v5774
        %v5875 = vpop.f32.mrf.mxu0
        %v5876 = vadd.f32 %v1270, %v5875
        %v5877 = vpop.f32.mrf.mxu0
        %5878 = vmatprep.mubr.f32.mxu0 0.0
        %5879 = vmatmul.mubr.f32.gmra.mxu0 %v5777
        %v5880 = vpop.f32.mrf.mxu0
        %v5881 = vadd.f32 %v1271, %v5880
        %v5882 = vpop.f32.mrf.mxu0
        %5883 = vmatprep.mubr.f32.mxu0 0.0
        %5884 = vmatmul.mubr.f32.gmra.mxu0 %v5780
        %v5885 = vpop.f32.mrf.mxu0
        %v5886 = vadd.f32 %v1272, %v5885
        %v5887 = vpop.f32.mrf.mxu0
        %5888 = vmatprep.mubr.f32.mxu0 0.0
        %5889 = vmatmul.mubr.f32.gmra.mxu0 %v5783
        %v5890 = vpop.f32.mrf.mxu0
        %v5891 = vadd.f32 %v1273, %v5890
        %v5892 = vpop.f32.mrf.mxu0
        %5893 = vmatprep.mubr.f32.mxu0 0.0
        %5894 = vmatmul.mubr.f32.gmra.mxu0 %v5786
        %v5895 = vpop.f32.mrf.mxu0
        %v5896 = vadd.f32 %v1274, %v5895
        %v5897 = vpop.f32.mrf.mxu0
        %5898 = vdwg.mxu0
        %v5899 = vsel %vm1330, %v5861, -inf
        %5900 = vmax.xlane.f32.xlu0 %v5899
        %v5901 = vpop.xlane.xlu0 %5900
        %v5902 = vsel %vm1330, %v5866, -inf
        %5903 = vmax.xlane.f32.xlu0 %v5902
        %v5904 = vpop.xlane.xlu0 %5903
        %v5905 = vsel %vm1330, %v5871, -inf
        %5906 = vmax.xlane.f32.xlu0 %v5905
        %v5907 = vpop.xlane.xlu0 %5906
        %v5908 = vsel %vm1330, %v5876, -inf
        %5909 = vmax.xlane.f32.xlu0 %v5908
        %v5910 = vpop.xlane.xlu0 %5909
        %v5911 = vsel %vm1330, %v5881, -inf
        %5912 = vmax.xlane.f32.xlu0 %v5911
        %v5913 = vpop.xlane.xlu0 %5912
        %v5914 = vsel %vm1330, %v5886, -inf
        %5915 = vmax.xlane.f32.xlu0 %v5914
        %v5916 = vpop.xlane.xlu0 %5915
        %v5917 = vsel %vm1330, %v5891, -inf
        %5918 = vmax.xlane.f32.xlu0 %v5917
        %v5919 = vpop.xlane.xlu0 %5918
        %v5920 = vsel %vm1330, %v5896, -inf
        %5921 = vmax.xlane.f32.xlu0 %v5920
        %v5922 = vpop.xlane.xlu0 %5921
        %v5923 = vsub.f32 %v5861, %v5901
        %v5924 = vsub.f32 %v5866, %v5904
        %v5925 = vsub.f32 %v5871, %v5907
        %v5926 = vsub.f32 %v5876, %v5910
        %v5927 = vsub.f32 %v5881, %v5913
        %v5928 = vsub.f32 %v5886, %v5916
        %v5929 = vsub.f32 %v5891, %v5919
        %v5930 = vsub.f32 %v5896, %v5922
        %v5931 = vmul.f32 %v5923, 1.442695
        %v5932 = vpow.pop %v5931
        %v5933 = vmul.f32 %v5924, 1.442695
        %v5934 = vpow.pop %v5933
        %v5935 = vmul.f32 %v5925, 1.442695
        %v5936 = vpow.pop %v5935
        %v5937 = vmul.f32 %v5926, 1.442695
        %v5938 = vpow.pop %v5937
        %v5939 = vmul.f32 %v5927, 1.442695
        %v5940 = vpow.pop %v5939
        %v5941 = vmul.f32 %v5928, 1.442695
        %v5942 = vpow.pop %v5941
        %v5943 = vmul.f32 %v5929, 1.442695
        %v5944 = vpow.pop %v5943
        %v5945 = vmul.f32 %v5930, 1.442695
        %v5946 = vpow.pop %v5945
        %v5947 = vsel %vm1330, %v5932, 0.0
        %5948 = vadd.xlane.f32.xlu0 %v5947
        %v5949 = vpop.xlane.xlu0 %5948
        %v5950 = vsel %vm1330, %v5934, 0.0
        %5951 = vadd.xlane.f32.xlu0 %v5950
        %v5952 = vpop.xlane.xlu0 %5951
        %v5953 = vsel %vm1330, %v5936, 0.0
        %5954 = vadd.xlane.f32.xlu0 %v5953
        %v5955 = vpop.xlane.xlu0 %5954
        %v5956 = vsel %vm1330, %v5938, 0.0
        %5957 = vadd.xlane.f32.xlu0 %v5956
        %v5958 = vpop.xlane.xlu0 %5957
        %v5959 = vsel %vm1330, %v5940, 0.0
        %5960 = vadd.xlane.f32.xlu0 %v5959
        %v5961 = vpop.xlane.xlu0 %5960
        %v5962 = vsel %vm1330, %v5942, 0.0
        %5963 = vadd.xlane.f32.xlu0 %v5962
        %v5964 = vpop.xlane.xlu0 %5963
        %v5965 = vsel %vm1330, %v5944, 0.0
        %5966 = vadd.xlane.f32.xlu0 %v5965
        %v5967 = vpop.xlane.xlu0 %5966
        %v5968 = vsel %vm1330, %v5946, 0.0
        %5969 = vadd.xlane.f32.xlu0 %v5968
        %v5970 = vpop.xlane.xlu0 %5969
        %v5971 = vrcp.pop %v5949
        %v5972 = vrcp.pop %v5952
        %v5973 = vrcp.pop %v5955
        %v5974 = vrcp.pop %v5958
        %v5975 = vrcp.pop %v5961
        %v5976 = vrcp.pop %v5964
        %v5977 = vrcp.pop %v5967
        %v5978 = vrcp.pop %v5970
        %v5979 = vmul.f32 %v5932, %v5971
        %v5980 = vmul.f32 %v5934, %v5972
        %v5981 = vmul.f32 %v5936, %v5973
        %v5982 = vmul.f32 %v5938, %v5974
        %v5983 = vmul.f32 %v5940, %v5975
        %v5984 = vmul.f32 %v5942, %v5976
        %v5985 = vmul.f32 %v5944, %v5977
        %v5986 = vmul.f32 %v5946, %v5978
        %v5988 = vsel %vm1330, %v5979, 0
        %v5991 = vsel %vm1330, %v5980, 0
        %v5994 = vsel %vm1330, %v5981, 0
        %v5997 = vsel %vm1330, %v5982, 0
        %v6000 = vsel %vm1330, %v5983, 0
        %v6003 = vsel %vm1330, %v5984, 0
        %v6006 = vsel %vm1330, %v5985, 0
        %v6009 = vsel %vm1330, %v5986, 0
        %6011 = vmatprep.subr.mxu0 0.0
        %6012 = vmatpush1.msra.mxu0 0.0
        %6013 = vmatprep.subr.mxu0 0.0
        %6014 = vmatpush1.msra.mxu0 0.0
        %6015 = vmatprep.subr.mxu0 0.0
        %6016 = vmatpush1.msra.mxu0 0.0
        %6017 = vmatprep.subr.mxu0 0.0
        %6018 = vmatpush1.msra.mxu0 0.0
        %6019 = vmatprep.subr.mxu0 0.0
        %6020 = vmatpush1.msra.mxu0 0.0
        %6021 = vmatprep.subr.mxu0 0.0
        %6022 = vmatpush1.msra.mxu0 0.0
        %6023 = vmatprep.subr.mxu0 0.0
        %6024 = vmatpush1.msra.mxu0 0.0
        %6025 = vmatprep.subr.mxu0 0.0
        %6026 = vmatpush1.msra.mxu0 0.0
        %6027 = vmatprep.subr.mxu0 0.0
        %6028 = vmatpush1.msra.mxu0 0.0
        %6029 = vmatprep.subr.mxu0 0.0
        %6030 = vmatpush1.msra.mxu0 0.0
        %6031 = vmatprep.subr.mxu0 0.0
        %6032 = vmatpush1.msra.mxu0 0.0
        %6033 = vmatprep.subr.mxu0 0.0
        %6034 = vmatpush1.msra.mxu0 0.0
        %6035 = vmatprep.subr.mxu0 0.0
        %6036 = vmatpush1.msra.mxu0 0.0
        %6037 = vmatprep.subr.mxu0 0.0
        %6038 = vmatpush1.msra.mxu0 0.0
        %6039 = vmatprep.subr.mxu0 0.0
        %6040 = vmatpush1.msra.mxu0 %v5753
        %6041 = vmatprep.subr.mxu0 0.0
        %6042 = vmatpush1.msra.mxu0 %v5748
        %6043 = vmatprep.subr.mxu0 0.0
        %6044 = vmatpush2.msra.mxu0 0.0
        %6045 = vmatprep.subr.mxu0 0.0
        %6046 = vmatpush2.msra.mxu0 0.0
        %6047 = vmatprep.subr.mxu0 0.0
        %6048 = vmatpush2.msra.mxu0 0.0
        %6049 = vmatprep.subr.mxu0 0.0
        %6050 = vmatpush2.msra.mxu0 0.0
        %6051 = vmatprep.subr.mxu0 0.0
        %6052 = vmatpush2.msra.mxu0 0.0
        %6053 = vmatprep.subr.mxu0 0.0
        %6054 = vmatpush2.msra.mxu0 0.0
        %6055 = vmatprep.subr.mxu0 0.0
        %6056 = vmatpush2.msra.mxu0 0.0
        %6057 = vmatprep.subr.mxu0 0.0
        %6058 = vmatpush2.msra.mxu0 0.0
        %6059 = vmatprep.subr.mxu0 0.0
        %6060 = vmatpush2.msra.mxu0 0.0
        %6061 = vmatprep.subr.mxu0 0.0
        %6062 = vmatpush2.msra.mxu0 0.0
        %6063 = vmatprep.subr.mxu0 0.0
        %6064 = vmatpush2.msra.mxu0 0.0
        %6065 = vmatprep.subr.mxu0 0.0
        %6066 = vmatpush2.msra.mxu0 0.0
        %6067 = vmatprep.subr.mxu0 0.0
        %6068 = vmatpush2.msra.mxu0 0.0
        %6069 = vmatprep.subr.mxu0 0.0
        %6070 = vmatpush2.msra.mxu0 0.0
        %6071 = vmatprep.subr.mxu0 0.0
        %6072 = vmatpush2.msra.mxu0 0.0
        %6073 = vmatprep.subr.mxu0 0.0
        %6074 = vmatpush2.msra.mxu0 0.0
        %6075 = vmatprep.mubr.f32.mxu0 0.0
        %6076 = vmatmul.mubr.f32.gmra.mxu0 %v5988
        %v6077 = vpop.f32.mrf.mxu0
        %v6078 = vadd.f32 0.0, %v6077
        %v6079 = vpop.f32.mrf.mxu0
        %6080 = vmatprep.mubr.f32.mxu0 0.0
        %6081 = vmatmul.mubr.f32.gmra.mxu0 %v5991
        %v6082 = vpop.f32.mrf.mxu0
        %v6083 = vadd.f32 0.0, %v6082
        %v6084 = vpop.f32.mrf.mxu0
        %6085 = vmatprep.mubr.f32.mxu0 0.0
        %6086 = vmatmul.mubr.f32.gmra.mxu0 %v5994
        %v6087 = vpop.f32.mrf.mxu0
        %v6088 = vadd.f32 0.0, %v6087
        %v6089 = vpop.f32.mrf.mxu0
        %6090 = vmatprep.mubr.f32.mxu0 0.0
        %6091 = vmatmul.mubr.f32.gmra.mxu0 %v5997
        %v6092 = vpop.f32.mrf.mxu0
        %v6093 = vadd.f32 0.0, %v6092
        %v6094 = vpop.f32.mrf.mxu0
        %6095 = vmatprep.mubr.f32.mxu0 0.0
        %6096 = vmatmul.mubr.f32.gmra.mxu0 %v6000
        %v6097 = vpop.f32.mrf.mxu0
        %v6098 = vadd.f32 0.0, %v6097
        %v6099 = vpop.f32.mrf.mxu0
        %6100 = vmatprep.mubr.f32.mxu0 0.0
        %6101 = vmatmul.mubr.f32.gmra.mxu0 %v6003
        %v6102 = vpop.f32.mrf.mxu0
        %v6103 = vadd.f32 0.0, %v6102
        %v6104 = vpop.f32.mrf.mxu0
        %6105 = vmatprep.mubr.f32.mxu0 0.0
        %6106 = vmatmul.mubr.f32.gmra.mxu0 %v6006
        %v6107 = vpop.f32.mrf.mxu0
        %v6108 = vadd.f32 0.0, %v6107
        %v6109 = vpop.f32.mrf.mxu0
        %6110 = vmatprep.mubr.f32.mxu0 0.0
        %6111 = vmatmul.mubr.f32.gmra.mxu0 %v6009
        %v6112 = vpop.f32.mrf.mxu0
        %v6113 = vadd.f32 0.0, %v6112
        %v6114 = vpop.f32.mrf.mxu0
        %6115 = vdwg.mxu0
        %v6116 = vmul.f32 %v6078, %v1283
        %v6117 = vmul.f32 %v6083, %v1284
        %v6118 = vmul.f32 %v6088, %v1285
        %v6119 = vmul.f32 %v6093, %v1286
        %v6120 = vmul.f32 %v6098, %v1287
        %v6121 = vmul.f32 %v6103, %v1288
        %v6122 = vmul.f32 %v6108, %v1289
        %v6123 = vmul.f32 %v6113, %v1290
        %v6124 = vadd.f32 %v6116, %v6118
        %v6125 = vadd.f32 %v6117, %v6119
        %v6126 = vadd.f32 %v6124, %v6120
        %v6127 = vadd.f32 %v6125, %v6121
        %v6128 = vadd.f32 %v6126, %v6122
        %v6129 = vadd.f32 %v6127, %v6123
        %v6131 = vsel %vm3465, %v6128, 0
        %v6134 = vsel %vm3465, %v6129, 0
        %6136 = vmatprep.subr.mxu0 0.0
        %6137 = vmatpush1.msra.mxu0 0.0
        %6138 = vmatprep.subr.mxu0 0.0
        %6139 = vmatpush1.msra.mxu0 0.0
        %6140 = vmatprep.subr.mxu0 0.0
        %6141 = vmatpush1.msra.mxu0 0.0
        %6142 = vmatprep.subr.mxu0 0.0
        %6143 = vmatpush1.msra.mxu0 0.0
        %6144 = vmatprep.subr.mxu0 0.0
        %6145 = vmatpush1.msra.mxu0 0.0
        %6146 = vmatprep.subr.mxu0 0.0
        %6147 = vmatpush1.msra.mxu0 0.0
        %6148 = vmatprep.subr.mxu0 0.0
        %6149 = vmatpush1.msra.mxu0 0.0
        %6150 = vmatprep.subr.mxu0 0.0
        %6151 = vmatpush1.msra.mxu0 0.0
        %6152 = vmatprep.subr.mxu0 0.0
        %6153 = vmatpush1.msra.mxu0 0.0
        %6154 = vmatprep.subr.mxu0 0.0
        %6155 = vmatpush1.msra.mxu0 0.0
        %6156 = vmatprep.subr.mxu0 0.0
        %6157 = vmatpush1.msra.mxu0 0.0
        %6158 = vmatprep.subr.mxu0 0.0
        %6159 = vmatpush1.msra.mxu0 0.0
        %6160 = vmatprep.subr.mxu0 0.0
        %6161 = vmatpush1.msra.mxu0 %v5445
        %6162 = vmatprep.subr.mxu0 0.0
        %6163 = vmatpush1.msra.mxu0 %v5444
        %6164 = vmatprep.subr.mxu0 0.0
        %6165 = vmatpush1.msra.mxu0 %v5443
        %6166 = vmatprep.subr.mxu0 0.0
        %6167 = vmatpush1.msra.mxu0 %v5442
        %6168 = vmatprep.subr.mxu0 0.0
        %6169 = vmatpush2.msra.mxu0 0.0
        %6170 = vmatprep.subr.mxu0 0.0
        %6171 = vmatpush2.msra.mxu0 0.0
        %6172 = vmatprep.subr.mxu0 0.0
        %6173 = vmatpush2.msra.mxu0 0.0
        %6174 = vmatprep.subr.mxu0 0.0
        %6175 = vmatpush2.msra.mxu0 0.0
        %6176 = vmatprep.subr.mxu0 0.0
        %6177 = vmatpush2.msra.mxu0 0.0
        %6178 = vmatprep.subr.mxu0 0.0
        %6179 = vmatpush2.msra.mxu0 0.0
        %6180 = vmatprep.subr.mxu0 0.0
        %6181 = vmatpush2.msra.mxu0 0.0
        %6182 = vmatprep.subr.mxu0 0.0
        %6183 = vmatpush2.msra.mxu0 0.0
        %6184 = vmatprep.subr.mxu0 0.0
        %6185 = vmatpush2.msra.mxu0 0.0
        %6186 = vmatprep.subr.mxu0 0.0
        %6187 = vmatpush2.msra.mxu0 0.0
        %6188 = vmatprep.subr.mxu0 0.0
        %6189 = vmatpush2.msra.mxu0 0.0
        %6190 = vmatprep.subr.mxu0 0.0
        %6191 = vmatpush2.msra.mxu0 0.0
        %6192 = vmatprep.subr.mxu0 0.0
        %6193 = vmatpush2.msra.mxu0 0.0
        %6194 = vmatprep.subr.mxu0 0.0
        %6195 = vmatpush2.msra.mxu0 0.0
        %6196 = vmatprep.subr.mxu0 0.0
        %6197 = vmatpush2.msra.mxu0 0.0
        %6198 = vmatprep.subr.mxu0 0.0
        %6199 = vmatpush2.msra.mxu0 0.0
        %6200 = vmatprep.mubr.f32.mxu0 0.0
        %6201 = vmatmul.mubr.f32.gmra.mxu0 %v6131
        %v6202 = vpop.f32.mrf.mxu0
        %v6203 = vadd.f32 0.0, %v6202
        %v6204 = vpop.f32.mrf.mxu0
        %6205 = vmatprep.mubr.f32.mxu0 0.0
        %6206 = vmatmul.mubr.f32.gmra.mxu0 %v6134
        %v6207 = vpop.f32.mrf.mxu0
        %v6208 = vadd.f32 0.0, %v6207
        %v6209 = vpop.f32.mrf.mxu0
        %6210 = vdwg.mxu0
        %v6211 = vadd.f32 %v5424, %v6203
        %v6212 = vadd.f32 %v5425, %v6208
        %v6213 = vlaneseq
        %v6214 = vshrl.u32 %v6213, 7
        %v6215 = vsub.s32 5, %v6214
        %v6216 = vrot.slane %v5471, %v6215
        %v6217 = vadd.f32 %v6211, %v6216
        %v6218 = vadd.f32 %v6212, %v6216
        %v6219 = vsel %vm3465, %v6217, 0.0
        %6220 = vadd.xlane.f32.xlu0 %v6219
        %v6221 = vpop.xlane.xlu0 %6220
        %v6222 = vsel %vm3465, %v6218, 0.0
        %6223 = vadd.xlane.f32.xlu0 %v6222
        %v6224 = vpop.xlane.xlu0 %6223
        %v6225 = vmul.f32 %v6221, %v3472
        %v6226 = vmul.f32 %v6224, %v3472
        %v6227 = vsub.f32 %v6217, %v6225
        %v6228 = vsub.f32 %v6218, %v6226
        %v6229 = vmul.f32 %v6227, %v6227
        %v6230 = vmul.f32 %v6228, %v6228
        %v6231 = vsel %vm3465, %v6229, 0.0
        %6232 = vadd.xlane.f32.xlu0 %v6231
        %v6233 = vpop.xlane.xlu0 %6232
        %v6234 = vsel %vm3465, %v6230, 0.0
        %6235 = vadd.xlane.f32.xlu0 %v6234
        %v6236 = vpop.xlane.xlu0 %6235
        %v6237 = vmul.f32 %v6233, %v3472
        %v6238 = vmul.f32 %v6236, %v3472
        %v6239 = vadd.f32 %v6237, 1e-05
        %v6240 = vadd.f32 %v6238, 1e-05
        %v6241 = vrsqrt.pop %v6239
        %v6242 = vrsqrt.pop %v6240
        %v6243 = vmul.f32 %v6227, %v6241
        %v6244 = vmul.f32 %v6228, %v6242
        %v6245 = vlaneseq
        %v6246 = vshrl.u32 %v6245, 7
        %v6247 = vsub.s32 6, %v6246
        %v6248 = vrot.slane %v5471, %v6247
        %v6249 = vmul.f32 %v6243, %v6248
        %v6250 = vmul.f32 %v6244, %v6248
        %v6251 = vlaneseq
        %v6252 = vshrl.u32 %v6251, 7
        %v6253 = vsub.s32 7, %v6252
        %v6254 = vrot.slane %v5471, %v6253
        %v6255 = vadd.f32 %v6249, %v6254
        %v6256 = vadd.f32 %v6250, %v6254
        %v6258 = vlaneseq
        %v6259 = vshrl.u32 %v6258, 7
        %v6260 = vsub.s32 0, %v6259
        %v6261 = vrot.slane %v5469, %v6260
        %v6264 = vsel %vm3465, %v6255, 0
        %v6267 = vsel %vm3465, %v6256, 0
        %6269 = vmatprep.subr.mxu0 0.0
        %6270 = vmatpush1.msra.mxu0 0.0
        %6271 = vmatprep.subr.mxu0 0.0
        %6272 = vmatpush1.msra.mxu0 0.0
        %6273 = vmatprep.subr.mxu0 0.0
        %6274 = vmatpush1.msra.mxu0 0.0
        %6275 = vmatprep.subr.mxu0 0.0
        %6276 = vmatpush1.msra.mxu0 0.0
        %6277 = vmatprep.subr.mxu0 0.0
        %6278 = vmatpush1.msra.mxu0 0.0
        %6279 = vmatprep.subr.mxu0 0.0
        %6280 = vmatpush1.msra.mxu0 0.0
        %6281 = vmatprep.subr.mxu0 0.0
        %6282 = vmatpush1.msra.mxu0 0.0
        %6283 = vmatprep.subr.mxu0 0.0
        %6284 = vmatpush1.msra.mxu0 0.0
        %6285 = vmatprep.subr.mxu0 0.0
        %6286 = vmatpush1.msra.mxu0 0.0
        %6287 = vmatprep.subr.mxu0 0.0
        %6288 = vmatpush1.msra.mxu0 0.0
        %6289 = vmatprep.subr.mxu0 0.0
        %6290 = vmatpush1.msra.mxu0 0.0
        %6291 = vmatprep.subr.mxu0 0.0
        %6292 = vmatpush1.msra.mxu0 0.0
        %6293 = vmatprep.subr.mxu0 0.0
        %6294 = vmatpush1.msra.mxu0 %v5450
        %6295 = vmatprep.subr.mxu0 0.0
        %6296 = vmatpush1.msra.mxu0 %v5449
        %6297 = vmatprep.subr.mxu0 0.0
        %6298 = vmatpush1.msra.mxu0 %v5448
        %6299 = vmatprep.subr.mxu0 0.0
        %6300 = vmatpush1.msra.mxu0 %v5447
        %6301 = vmatprep.subr.mxu0 0.0
        %6302 = vmatpush2.msra.mxu0 0.0
        %6303 = vmatprep.subr.mxu0 0.0
        %6304 = vmatpush2.msra.mxu0 0.0
        %6305 = vmatprep.subr.mxu0 0.0
        %6306 = vmatpush2.msra.mxu0 0.0
        %6307 = vmatprep.subr.mxu0 0.0
        %6308 = vmatpush2.msra.mxu0 0.0
        %6309 = vmatprep.subr.mxu0 0.0
        %6310 = vmatpush2.msra.mxu0 0.0
        %6311 = vmatprep.subr.mxu0 0.0
        %6312 = vmatpush2.msra.mxu0 0.0
        %6313 = vmatprep.subr.mxu0 0.0
        %6314 = vmatpush2.msra.mxu0 0.0
        %6315 = vmatprep.subr.mxu0 0.0
        %6316 = vmatpush2.msra.mxu0 0.0
        %6317 = vmatprep.subr.mxu0 0.0
        %6318 = vmatpush2.msra.mxu0 0.0
        %6319 = vmatprep.subr.mxu0 0.0
        %6320 = vmatpush2.msra.mxu0 0.0
        %6321 = vmatprep.subr.mxu0 0.0
        %6322 = vmatpush2.msra.mxu0 0.0
        %6323 = vmatprep.subr.mxu0 0.0
        %6324 = vmatpush2.msra.mxu0 0.0
        %6325 = vmatprep.subr.mxu0 0.0
        %6326 = vmatpush2.msra.mxu0 0.0
        %6327 = vmatprep.subr.mxu0 0.0
        %6328 = vmatpush2.msra.mxu0 0.0
        %6329 = vmatprep.subr.mxu0 0.0
        %6330 = vmatpush2.msra.mxu0 0.0
        %6331 = vmatprep.subr.mxu0 0.0
        %6332 = vmatpush2.msra.mxu0 0.0
        %6333 = vmatprep.mubr.f32.mxu0 0.0
        %6334 = vmatmul.mubr.f32.gmra.mxu0 %v6264
        %v6335 = vpop.f32.mrf.mxu0
        %v6336 = vadd.f32 %v6261, %v6335
        %v6337 = vpop.f32.mrf.mxu0
        %6338 = vmatprep.mubr.f32.mxu0 0.0
        %6339 = vmatmul.mubr.f32.gmra.mxu0 %v6267
        %v6340 = vpop.f32.mrf.mxu0
        %v6341 = vadd.f32 %v6261, %v6340
        %v6342 = vpop.f32.mrf.mxu0
        %6343 = vdwg.mxu0
        %v6344 = vmax.f32 %v6336, 0.0
        %v6345 = vmax.f32 %v6341, 0.0
        %6346 = vmatprep.subr.mxu0 0.0
        %6347 = vmatpush1.msra.mxu0 %v5467
        %6348 = vmatprep.subr.mxu0 0.0
        %6349 = vmatpush1.msra.mxu0 %v5466
        %6350 = vmatprep.subr.mxu0 0.0
        %6351 = vmatpush1.msra.mxu0 %v5465
        %6352 = vmatprep.subr.mxu0 0.0
        %6353 = vmatpush1.msra.mxu0 %v5464
        %6354 = vmatprep.subr.mxu0 0.0
        %6355 = vmatpush1.msra.mxu0 %v5463
        %6356 = vmatprep.subr.mxu0 0.0
        %6357 = vmatpush1.msra.mxu0 %v5462
        %6358 = vmatprep.subr.mxu0 0.0
        %6359 = vmatpush1.msra.mxu0 %v5461
        %6360 = vmatprep.subr.mxu0 0.0
        %6361 = vmatpush1.msra.mxu0 %v5460
        %6362 = vmatprep.subr.mxu0 0.0
        %6363 = vmatpush1.msra.mxu0 %v5459
        %6364 = vmatprep.subr.mxu0 0.0
        %6365 = vmatpush1.msra.mxu0 %v5458
        %6366 = vmatprep.subr.mxu0 0.0
        %6367 = vmatpush1.msra.mxu0 %v5457
        %6368 = vmatprep.subr.mxu0 0.0
        %6369 = vmatpush1.msra.mxu0 %v5456
        %6370 = vmatprep.subr.mxu0 0.0
        %6371 = vmatpush1.msra.mxu0 %v5455
        %6372 = vmatprep.subr.mxu0 0.0
        %6373 = vmatpush1.msra.mxu0 %v5454
        %6374 = vmatprep.subr.mxu0 0.0
        %6375 = vmatpush1.msra.mxu0 %v5453
        %6376 = vmatprep.subr.mxu0 0.0
        %6377 = vmatpush1.msra.mxu0 %v5452
        %6378 = vmatprep.subr.mxu0 0.0
        %6379 = vmatpush2.msra.mxu0 0.0
        %6380 = vmatprep.subr.mxu0 0.0
        %6381 = vmatpush2.msra.mxu0 0.0
        %6382 = vmatprep.subr.mxu0 0.0
        %6383 = vmatpush2.msra.mxu0 0.0
        %6384 = vmatprep.subr.mxu0 0.0
        %6385 = vmatpush2.msra.mxu0 0.0
        %6386 = vmatprep.subr.mxu0 0.0
        %6387 = vmatpush2.msra.mxu0 0.0
        %6388 = vmatprep.subr.mxu0 0.0
        %6389 = vmatpush2.msra.mxu0 0.0
        %6390 = vmatprep.subr.mxu0 0.0
        %6391 = vmatpush2.msra.mxu0 0.0
        %6392 = vmatprep.subr.mxu0 0.0
        %6393 = vmatpush2.msra.mxu0 0.0
        %6394 = vmatprep.subr.mxu0 0.0
        %6395 = vmatpush2.msra.mxu0 0.0
        %6396 = vmatprep.subr.mxu0 0.0
        %6397 = vmatpush2.msra.mxu0 0.0
        %6398 = vmatprep.subr.mxu0 0.0
        %6399 = vmatpush2.msra.mxu0 0.0
        %6400 = vmatprep.subr.mxu0 0.0
        %6401 = vmatpush2.msra.mxu0 0.0
        %6402 = vmatprep.subr.mxu0 0.0
        %6403 = vmatpush2.msra.mxu0 0.0
        %6404 = vmatprep.subr.mxu0 0.0
        %6405 = vmatpush2.msra.mxu0 0.0
        %6406 = vmatprep.subr.mxu0 0.0
        %6407 = vmatpush2.msra.mxu0 0.0
        %6408 = vmatprep.subr.mxu0 0.0
        %6409 = vmatpush2.msra.mxu0 0.0
        %6410 = vmatprep.mubr.f32.mxu0 0.0
        %6411 = vmatmul.mubr.f32.gmra.mxu0 %v6344
        %v6412 = vpop.f32.mrf.mxu0
        %v6413 = vadd.f32 0.0, %v6412
        %v6414 = vpop.f32.mrf.mxu0
        %6415 = vmatprep.mubr.f32.mxu0 0.0
        %6416 = vmatmul.mubr.f32.gmra.mxu0 %v6345
        %v6417 = vpop.f32.mrf.mxu0
        %v6418 = vadd.f32 0.0, %v6417
        %v6419 = vpop.f32.mrf.mxu0
        %6420 = vdwg.mxu0
        %v6421 = vadd.f32 %v6217, %v6413
        %v6422 = vadd.f32 %v6218, %v6418
        %v6423 = vlaneseq
        %v6424 = vshrl.u32 %v6423, 7
        %v6425 = vsub.s32 0, %v6424
        %v6426 = vrot.slane %v5472, %v6425
        %v6427 = vadd.f32 %v6421, %v6426
        %v6428 = vadd.f32 %v6422, %v6426
        %v6429 = vld [vmem:[%s1260 + $0x8] sm:$0xff]
        %v6430 = vsel %vm3465, %v6427, 0.0
        %6431 = vadd.xlane.f32.xlu0 %v6430
        %v6432 = vpop.xlane.xlu0 %6431
        %v6433 = vsel %vm3465, %v6428, 0.0
        %6434 = vadd.xlane.f32.xlu0 %v6433
        %v6435 = vpop.xlane.xlu0 %6434
        %v6436 = vmul.f32 %v6432, %v3472
        %v6437 = vmul.f32 %v6435, %v3472
        %v6438 = vsub.f32 %v6427, %v6436
        %v6439 = vsub.f32 %v6428, %v6437
        %v6440 = vmul.f32 %v6438, %v6438
        %v6441 = vmul.f32 %v6439, %v6439
        %v6442 = vsel %vm3465, %v6440, 0.0
        %6443 = vadd.xlane.f32.xlu0 %v6442
        %v6444 = vpop.xlane.xlu0 %6443
        %v6445 = vsel %vm3465, %v6441, 0.0
        %6446 = vadd.xlane.f32.xlu0 %v6445
        %v6447 = vpop.xlane.xlu0 %6446
        %v6448 = vmul.f32 %v6444, %v3472
        %v6449 = vmul.f32 %v6447, %v3472
        %v6450 = vadd.f32 %v6448, 1e-05
        %v6451 = vadd.f32 %v6449, 1e-05
        %v6452 = vrsqrt.pop %v6450
        %v6453 = vrsqrt.pop %v6451
        %v6454 = vmul.f32 %v6438, %v6452
        %v6455 = vmul.f32 %v6439, %v6453
        %v6456 = vlaneseq
        %v6457 = vshrl.u32 %v6456, 7
        %v6458 = vsub.s32 1, %v6457
        %v6459 = vrot.slane %v6429, %v6458
        %v6460 = vmul.f32 %v6454, %v6459
        %v6461 = vmul.f32 %v6455, %v6459
        %v6462 = vlaneseq
        %v6463 = vshrl.u32 %v6462, 7
        %v6464 = vsub.s32 2, %v6463
        %v6465 = vrot.slane %v6429, %v6464
        %v6466 = vadd.f32 %v6460, %v6465
        %v6467 = vadd.f32 %v6461, %v6465
        %v6468 = vld [vmem:[%s9] sm:$0x3]
        %v6470 = vsel %vm1330, %v6468, 0
        %6472 = vmatprep.subr.mxu0 0.0
        %6473 = vmatpush1.msra.mxu0 0.0
        %6474 = vmatprep.subr.mxu0 0.0
        %6475 = vmatpush1.msra.mxu0 0.0
        %6476 = vmatprep.subr.mxu0 0.0
        %6477 = vmatpush1.msra.mxu0 0.0
        %6478 = vmatprep.subr.mxu0 0.0
        %6479 = vmatpush1.msra.mxu0 0.0
        %6480 = vmatprep.subr.mxu0 0.0
        %6481 = vmatpush1.msra.mxu0 0.0
        %6482 = vmatprep.subr.mxu0 0.0
        %6483 = vmatpush1.msra.mxu0 0.0
        %6484 = vmatprep.subr.mxu0 0.0
        %6485 = vmatpush1.msra.mxu0 0.0
        %6486 = vmatprep.subr.mxu0 0.0
        %6487 = vmatpush1.msra.mxu0 0.0
        %6488 = vmatprep.subr.mxu0 0.0
        %6489 = vmatpush1.msra.mxu0 0.0
        %6490 = vmatprep.subr.mxu0 0.0
        %6491 = vmatpush1.msra.mxu0 0.0
        %6492 = vmatprep.subr.mxu0 0.0
        %6493 = vmatpush1.msra.mxu0 0.0
        %6494 = vmatprep.subr.mxu0 0.0
        %6495 = vmatpush1.msra.mxu0 0.0
        %6496 = vmatprep.subr.mxu0 0.0
        %6497 = vmatpush1.msra.mxu0 0.0
        %6498 = vmatprep.subr.mxu0 0.0
        %6499 = vmatpush1.msra.mxu0 0.0
        %6500 = vmatprep.subr.mxu0 0.0
        %6501 = vmatpush1.msra.mxu0 %v6467
        %6502 = vmatprep.subr.mxu0 0.0
        %6503 = vmatpush1.msra.mxu0 %v6466
        %6504 = vmatprep.subr.mxu0 0.0
        %6505 = vmatpush2.msra.mxu0 0.0
        %6506 = vmatprep.subr.mxu0 0.0
        %6507 = vmatpush2.msra.mxu0 0.0
        %6508 = vmatprep.subr.mxu0 0.0
        %6509 = vmatpush2.msra.mxu0 0.0
        %6510 = vmatprep.subr.mxu0 0.0
        %6511 = vmatpush2.msra.mxu0 0.0
        %6512 = vmatprep.subr.mxu0 0.0
        %6513 = vmatpush2.msra.mxu0 0.0
        %6514 = vmatprep.subr.mxu0 0.0
        %6515 = vmatpush2.msra.mxu0 0.0
        %6516 = vmatprep.subr.mxu0 0.0
        %6517 = vmatpush2.msra.mxu0 0.0
        %6518 = vmatprep.subr.mxu0 0.0
        %6519 = vmatpush2.msra.mxu0 0.0
        %6520 = vmatprep.subr.mxu0 0.0
        %6521 = vmatpush2.msra.mxu0 0.0
        %6522 = vmatprep.subr.mxu0 0.0
        %6523 = vmatpush2.msra.mxu0 0.0
        %6524 = vmatprep.subr.mxu0 0.0
        %6525 = vmatpush2.msra.mxu0 0.0
        %6526 = vmatprep.subr.mxu0 0.0
        %6527 = vmatpush2.msra.mxu0 0.0
        %6528 = vmatprep.subr.mxu0 0.0
        %6529 = vmatpush2.msra.mxu0 0.0
        %6530 = vmatprep.subr.mxu0 0.0
        %6531 = vmatpush2.msra.mxu0 0.0
        %6532 = vmatprep.subr.mxu0 0.0
        %6533 = vmatpush2.msra.mxu0 0.0
        %6534 = vmatprep.subr.mxu0 0.0
        %6535 = vmatpush2.msra.mxu0 0.0
        %6536 = vmatprep.mubr.f32.mxu0 0.0
        %6537 = vmatmul.mubr.f32.gmra.mxu0 %v6470
        %v6538 = vpop.f32.mrf.mxu0
        %v6539 = vadd.f32 0.0, %v6538
        %v6540 = vpop.f32.mrf.mxu0
        %6541 = vdwg.mxu0
        %vm6542 = vcmask 254976
        %6543 = vst.msk [vmem:[%s1264] sm:$0x3] %vm6542, %v6539
        %p6544 = scmp.lt.s32.totalorder %s43, 2
        %s6545 = scalar_select %p6544, %s43, 2
        %s6546 = smul.addr %s6545, 2
        %s6547 = scalar_lea.vmem %s26, %s6546
        // Predicated region
        $region141: #{dicmor_forward.3} parent=119 // pred_check
          %p6548 = pneg %p697
        $region142: #{dicmor_forward.3} parent=119 // pred_check_branch
          %6550 = sbr.rel (%p6548) target = $region144
        $region143: #{dicmor_forward.3} parent=119 // pred_region
          _
        $region144: #{dicmor_forward.3} parent=119 // pred_fallthru
          _
      $region120: #{dicmor_forward.3} parent=5 // pred_fallthru
        _
      %p6551 = scmp.le.s32.totalorder 2, %s38
      // Predicated region
      $region145: #{dicmor_forward.3} parent=5 // pred_check
        %p6552 = pneg %p6551
      $region146: #{dicmor_forward.3} parent=5 // pred_check_branch
        %6554 = sbr.rel (%p6552) target = $region148
      $region147: #{dicmor_forward.3} parent=5 // pred_region
        %s6555 = ssub.s32 %s38, 2
        // Predicated region
        $region149: #{dicmor_forward.3} parent=147 // pred_check
          %p6556 = pneg %p703
        $region150: #{dicmor_forward.3} parent=147 // pred_check_branch
          %6558 = sbr.rel (%p6556) target = $region152
        $region151: #{dicmor_forward.3} parent=147 // pred_region
          %p6559 = scmp.lt.s32.totalorder %s44, 2
          %s6560 = scalar_select %p6559, %s44, 2
          %s6561 = smul.addr %s6560, 2
          %s6562 = scalar_lea.vmem %s26, %s6561
        $region152: #{dicmor_forward.3} parent=147 // pred_fallthru
          _
      $region148: #{dicmor_forward.3} parent=5 // pred_fallthru
        _
    $region6: #{dicmor_forward.3} parent=1 // loop_footer
      %s42 = sadd.s32 1, %s38
    $region7: #{dicmor_forward.3} parent=1 // loop_footer_branch
      %37 = sbr.rel target = $region3
    $region8: #{dicmor_forward.3} parent=1 // loop_exit
      _
    %6563 = vsyncpa [#allocation5], 1
    %s6564 = scalar_lea.sflag [#allocation5], 1
    %6565 = vsyncpa %s6564, 1
    %6566 = vsyncpa [#allocation7], 1

</llo_original>
